<compile_context>
chip_gen: v7x
topology: tpu7x:2x2x1
jax: 0.10.0
libtpu: 0.0.40
codegen_flags: <defaults>
</compile_context>

<pallas_src>
import jax
import jax.numpy as jnp
from jax.experimental import pallas as pl
from jax.experimental.pallas import tpu as pltpu

EMBED_DIM = 128   # STEncoder.embedding_dim
HIDDEN = 512      # STEncoder.thought_size


# ----------------------------- Pallas kernel -----------------------------
def _bilstm_kernel(gates_ref, mask_ref, whh_ref, hout_ref):
    """One LSTM direction per grid step.

    gates_ref: (T, B, 4H) f32  precomputed x@W_ih^T + b (time order already
                               matches the scan order for this direction)
    mask_ref : (T, B, 1)  f32  1.0 where this timestep is inside the sequence
    whh_ref  : (H, 4H)    bf16 recurrent weight (transposed)
    hout_ref : (B, H)     f32  final hidden state of this direction
    """
    T = gates_ref.shape[0]
    Bp, H = hout_ref.shape

    def step(s, carry):
        h_prev, c_prev = carry
        # recurrent matmul: bf16 operands, f32 accumulation on the MXU
        g = gates_ref[s] + jnp.dot(h_prev.astype(jnp.bfloat16), whh_ref[...],
                                   preferred_element_type=jnp.float32)
        # PyTorch gate order: input, forget, cell(g), output
        i_g = jax.nn.sigmoid(g[:, 0 * H:1 * H])
        f_g = jax.nn.sigmoid(g[:, 1 * H:2 * H])
        g_g = jnp.tanh(g[:, 2 * H:3 * H])
        o_g = jax.nn.sigmoid(g[:, 3 * H:4 * H])
        c_new = f_g * c_prev + i_g * g_g
        h_new = o_g * jnp.tanh(c_new)
        # packed-sequence masking: only rows still active at this timestep move
        m = mask_ref[s]                               # (B, 1) f32
        c = c_prev + m * (c_new - c_prev)
        h = h_prev + m * (h_new - h_prev)
        return h, c

    h0 = jnp.zeros((Bp, H), jnp.float32)
    c0 = jnp.zeros((Bp, H), jnp.float32)
    h_fin, _ = jax.lax.fori_loop(0, T, step, (h0, c0), unroll=True)
    hout_ref[...] = h_fin                             # unconditional writeback


# ------------------------------- wrapper --------------------------------
def st_encoder_forward(params, x, lengths):
    """Pallas STEncoder.forward. x: (T, B, E) f32, lengths: (B,) int. -> (B, H)."""
    T, B, E = x.shape
    H = params["w_hh_f"].shape[1]
    B_pad = max(8, ((B + 7) // 8) * 8)

    x_p = jnp.pad(x, ((0, 0), (0, B_pad - B), (0, 0)))
    lens_p = jnp.pad(lengths.astype(jnp.int32), (0, B_pad - B))   # pads -> len 0

    # validity mask (T, B_pad, 1): 1.0 while t < length_b
    mask = (lens_p[None, :] > jnp.arange(T, dtype=jnp.int32)[:, None])
    mask = mask.astype(jnp.float32)[..., None]

    def direction_inputs(w_ih, b_ih, b_hh, reverse):
        bias = (b_ih + b_hh).reshape(1, 1, -1)
        # hoisted input projection: one (T*B, E)@(E, 4H) matmul, full f32
        g = jnp.einsum("tbe,ge->tbg", x_p, w_ih, precision="highest") + bias
        m = mask
        if reverse:
            g = g[::-1]
            m = m[::-1]
        return g, m

    g_f, m_f = direction_inputs(params["w_ih_f"], params["b_ih_f"],
                                params["b_hh_f"], reverse=False)
    g_b, m_b = direction_inputs(params["w_ih_b"], params["b_ih_b"],
                                params["b_hh_b"], reverse=True)

    gates = jnp.stack([g_f, g_b])                                  # (2,T,Bp,4H) f32
    masks = jnp.stack([m_f, m_b])                                  # (2,T,Bp,1)  f32
    whh = jnp.stack([params["w_hh_f"].T,
                     params["w_hh_b"].T]).astype(jnp.bfloat16)     # (2,H,4H)   bf16

    h_out = pl.pallas_call(
        _bilstm_kernel,
        out_shape=jax.ShapeDtypeStruct((2, B_pad, H), jnp.float32),
        grid_spec=pltpu.PrefetchScalarGridSpec(
            num_scalar_prefetch=0,
            grid=(2,),                                # direction axis only
            in_specs=[
                pl.BlockSpec((None, T, B_pad, 4 * H), lambda d: (d, 0, 0, 0)),
                pl.BlockSpec((None, T, B_pad, 1),     lambda d: (d, 0, 0, 0)),
                pl.BlockSpec((None, H, 4 * H),        lambda d: (d, 0, 0)),
            ],
            out_specs=pl.BlockSpec((None, B_pad, H),  lambda d: (d, 0, 0)),
        ),
        compiler_params=pltpu.CompilerParams(
            dimension_semantics=("parallel",),        # 2 TCs on v7x; serial elsewhere
            vmem_limit_bytes=32 << 20,
        ),
    )(gates, masks, whh)

    # torch.mean(h_n, dim=0) over the 2 directions, drop batch padding
    return (h_out[0, :B] + h_out[1, :B]) * 0.5


# --------------------------- pure-JAX reference ---------------------------
def _lstm_dir_ref(x, lengths, w_ih, w_hh, b_ih, b_hh, reverse,
                  recur_dtype=jnp.float32):
    T, B, E = x.shape
    H = w_hh.shape[1]
    bias = b_ih + b_hh
    ts = jnp.arange(T)
    xs = x[::-1] if reverse else x
    tact = ts[::-1] if reverse else ts

    def step(carry, inp):
        h, c = carry
        x_t, t = inp
        gates = (jnp.dot(x_t, w_ih.T, precision="highest") + bias
                 + jnp.dot(h.astype(recur_dtype), w_hh.T.astype(recur_dtype),
                           preferred_element_type=jnp.float32))
        i, f, g, o = jnp.split(gates, 4, axis=-1)
        i, f, o = jax.nn.sigmoid(i), jax.nn.sigmoid(f), jax.nn.sigmoid(o)
        g = jnp.tanh(g)
        c_new = f * c + i * g
        h_new = o * jnp.tanh(c_new)
        valid = (lengths > t)[:, None]
        return (jnp.where(valid, h_new, h), jnp.where(valid, c_new, c)), None

    (h, _), _ = jax.lax.scan(step, (jnp.zeros((B, H)), jnp.zeros((B, H))),
                             (xs, tact))
    return h


def st_encoder_ref(params, x, lengths, recur_dtype=jnp.float32):
    h_f = _lstm_dir_ref(x, lengths, params["w_ih_f"], params["w_hh_f"],
                        params["b_ih_f"], params["b_hh_f"], reverse=False,
                        recur_dtype=recur_dtype)
    h_b = _lstm_dir_ref(x, lengths, params["w_ih_b"], params["w_hh_b"],
                        params["b_ih_b"], params["b_hh_b"], reverse=True,
                        recur_dtype=recur_dtype)
    return (h_f + h_b) * 0.5


# -------------------------------- main --------------------------------
if __name__ == "__main__":
    T, B = 8, 2
    E, H = EMBED_DIM, HIDDEN

    key = jax.random.PRNGKey(0)
    keys = jax.random.split(key, 9)
    bound = 1.0 / (H ** 0.5)  # PyTorch LSTM default uniform init range

    def uni(k, shape):
        return jax.random.uniform(k, shape, jnp.float32, -bound, bound)

    params = {
        "w_ih_f": uni(keys[0], (4 * H, E)),
        "w_hh_f": uni(keys[1], (4 * H, H)),
        "b_ih_f": uni(keys[2], (4 * H,)),
        "b_hh_f": uni(keys[3], (4 * H,)),
        "w_ih_b": uni(keys[4], (4 * H, E)),
        "w_hh_b": uni(keys[5], (4 * H, H)),
        "b_ih_b": uni(keys[6], (4 * H,)),
        "b_hh_b": uni(keys[7], (4 * H,)),
    }

    x = jax.random.normal(keys[8], (T, B, E), jnp.float32)
    # lengths sorted descending, as pack_padded_sequence(enforce_sorted=True) requires
    lengths = jnp.array([8, 5], dtype=jnp.int32)

    out = jax.block_until_ready(st_encoder_forward(params, x, lengths))
    assert out.shape == (B, H)

    # (1) matched-precision reference (recurrent matmul in bf16, f32 accumulate,
    #     identical to the kernel's numerics) -> expected agreement ~1e-5,
    #     assert at 1e-3.
    ref_match = st_encoder_ref(params, x, lengths, recur_dtype=jnp.bfloat16)
    assert jnp.allclose(out, ref_match, atol=1e-3, rtol=1e-3), (
        float(jnp.max(jnp.abs(out - ref_match))))

    # (2) full-f32 reference (the PyTorch semantics). Derived bf16 error bound:
    #     per-step pre-activation error ~ sqrt(H)*|term|*2^-8 ~ 1e-3, contracted
    #     by sigmoid/tanh and compounded over T=8 steps -> final |h| error of a
    #     few e-3, so 1e-2 is a comfortable but meaningful bound.
    ref_f32 = st_encoder_ref(params, x, lengths, recur_dtype=jnp.float32)
    assert jnp.allclose(out, ref_f32, atol=1e-2, rtol=1e-2), (
        float(jnp.max(jnp.abs(out - ref_f32))))

    print("KERNEL_OK")
</pallas_src>

<mosaic_0001>
module attributes {stable_mosaic.version = 11 : i64} {
  func.func @_bilstm_kernel(%arg0: i32, %arg1: memref<1x8x8x2048xf32, #tpu.memory_space<vmem>>, %arg2: memref<1x8x8x1xf32, #tpu.memory_space<vmem>>, %arg3: memref<1x512x2048xbf16, #tpu.memory_space<vmem>>, %arg4: memref<1x8x512xf32, #tpu.memory_space<vmem>>) attributes {dimension_semantics = [#tpu.dimension_semantics<parallel>], iteration_bounds = array<i64: 2>, scalar_prefetch = 0 : i64, scratch_operands = 0 : i64, tpu.core_type = #tpu.core_type<tc>, window_params = [{transform_indices = @transform_0, window_bounds = array<i64: 1, 8, 8, 2048>}, {transform_indices = @transform_1, window_bounds = array<i64: 1, 8, 8, 1>}, {transform_indices = @transform_2, window_bounds = array<i64: 1, 512, 2048>}, {transform_indices = @transform_3, window_bounds = array<i64: 1, 8, 512>}]} {
    %cst = arith.constant 0.000000e+00 : f32
    %0 = vector.broadcast %cst : f32 to vector<8x512xf32>
    %cst_0 = arith.constant 0.000000e+00 : f32
    %1 = vector.broadcast %cst_0 : f32 to vector<8x512xf32>
    %c0_i32 = arith.constant 0 : i32
    %c0 = arith.constant 0 : index
    %2 = arith.index_cast %c0_i32 : i32 to index
    %c0_1 = arith.constant 0 : index
    %c0_2 = arith.constant 0 : index
    %3 = vector.load %arg1[%c0, %2, %c0_1, %c0_2] : memref<1x8x8x2048xf32, #tpu.memory_space<vmem>>, vector<1x1x8x2048xf32>
    %4 = vector.shape_cast %3 : vector<1x1x8x2048xf32> to vector<8x2048xf32>
    %5 = arith.truncf %0 : vector<8x512xf32> to vector<8x512xbf16>
    %c0_3 = arith.constant 0 : index
    %c0_4 = arith.constant 0 : index
    %c0_5 = arith.constant 0 : index
    %6 = vector.load %arg3[%c0_3, %c0_4, %c0_5] : memref<1x512x2048xbf16, #tpu.memory_space<vmem>>, vector<1x512x2048xbf16>
    %7 = vector.shape_cast %6 : vector<1x512x2048xbf16> to vector<512x2048xbf16>
    %cst_6 = arith.constant dense<0.000000e+00> : vector<8x2048xf32>
    %8 = tpu.matmul %5, %7, %cst_6 {dimension_numbers = #tpu.dot_dimension_numbers<[1], [0], [0], [1], [0, 0, 1, 1], [], []>} : vector<8x512xbf16>, vector<512x2048xbf16>, vector<8x2048xf32> -> vector<8x2048xf32>
    %9 = arith.addf %4, %8 : vector<8x2048xf32>
    %10 = vector.extract_strided_slice %9 {offsets = [0, 0], sizes = [8, 512], strides = [1, 1]} : vector<8x2048xf32> to vector<8x512xf32>
    %11 = arith.negf %10 : vector<8x512xf32>
    %12 = math.exp %11 : vector<8x512xf32>
    %cst_7 = arith.constant 1.000000e+00 : f32
    %13 = vector.broadcast %cst_7 : f32 to vector<8x512xf32>
    %14 = arith.addf %13, %12 : vector<8x512xf32>
    %15 = arith.divf %13, %14 : vector<8x512xf32>
    %16 = vector.extract_strided_slice %9 {offsets = [0, 512], sizes = [8, 512], strides = [1, 1]} : vector<8x2048xf32> to vector<8x512xf32>
    %17 = arith.negf %16 : vector<8x512xf32>
    %18 = math.exp %17 : vector<8x512xf32>
    %cst_8 = arith.constant 1.000000e+00 : f32
    %19 = vector.broadcast %cst_8 : f32 to vector<8x512xf32>
    %20 = arith.addf %19, %18 : vector<8x512xf32>
    %21 = arith.divf %19, %20 : vector<8x512xf32>
    %22 = vector.extract_strided_slice %9 {offsets = [0, 1024], sizes = [8, 512], strides = [1, 1]} : vector<8x2048xf32> to vector<8x512xf32>
    %23 = math.tanh %22 : vector<8x512xf32>
    %24 = vector.extract_strided_slice %9 {offsets = [0, 1536], sizes = [8, 512], strides = [1, 1]} : vector<8x2048xf32> to vector<8x512xf32>
    %25 = arith.negf %24 : vector<8x512xf32>
    %26 = math.exp %25 : vector<8x512xf32>
    %cst_9 = arith.constant 1.000000e+00 : f32
    %27 = vector.broadcast %cst_9 : f32 to vector<8x512xf32>
    %28 = arith.addf %27, %26 : vector<8x512xf32>
    %29 = arith.divf %27, %28 : vector<8x512xf32>
    %30 = arith.mulf %21, %1 : vector<8x512xf32>
    %31 = arith.mulf %15, %23 : vector<8x512xf32>
    %32 = arith.addf %30, %31 : vector<8x512xf32>
    %33 = math.tanh %32 : vector<8x512xf32>
    %34 = arith.mulf %29, %33 : vector<8x512xf32>
    %c0_10 = arith.constant 0 : index
    %35 = arith.index_cast %c0_i32 : i32 to index
    %c0_11 = arith.constant 0 : index
    %c0_12 = arith.constant 0 : index
    %36 = vector.load %arg2[%c0_10, %35, %c0_11, %c0_12] : memref<1x8x8x1xf32, #tpu.memory_space<vmem>>, vector<1x1x8x1xf32>
    %37 = vector.shape_cast %36 : vector<1x1x8x1xf32> to vector<8x1xf32>
    %38 = arith.subf %32, %1 : vector<8x512xf32>
    %39 = vector.broadcast %37 : vector<8x1xf32> to vector<8x512xf32>
    %40 = arith.mulf %39, %38 : vector<8x512xf32>
    %41 = arith.addf %1, %40 : vector<8x512xf32>
    %42 = arith.subf %34, %0 : vector<8x512xf32>
    %43 = vector.broadcast %37 : vector<8x1xf32> to vector<8x512xf32>
    %44 = arith.mulf %43, %42 : vector<8x512xf32>
    %45 = arith.addf %0, %44 : vector<8x512xf32>
    %c1_i32 = arith.constant 1 : i32
    %c0_13 = arith.constant 0 : index
    %46 = arith.index_cast %c1_i32 : i32 to index
    %c0_14 = arith.constant 0 : index
    %c0_15 = arith.constant 0 : index
    %47 = vector.load %arg1[%c0_13, %46, %c0_14, %c0_15] : memref<1x8x8x2048xf32, #tpu.memory_space<vmem>>, vector<1x1x8x2048xf32>
    %48 = vector.shape_cast %47 : vector<1x1x8x2048xf32> to vector<8x2048xf32>
    %49 = arith.truncf %45 : vector<8x512xf32> to vector<8x512xbf16>
    %c0_16 = arith.constant 0 : index
    %c0_17 = arith.constant 0 : index
    %c0_18 = arith.constant 0 : index
    %50 = vector.load %arg3[%c0_16, %c0_17, %c0_18] : memref<1x512x2048xbf16, #tpu.memory_space<vmem>>, vector<1x512x2048xbf16>
    %51 = vector.shape_cast %50 : vector<1x512x2048xbf16> to vector<512x2048xbf16>
    %cst_19 = arith.constant dense<0.000000e+00> : vector<8x2048xf32>
    %52 = tpu.matmul %49, %51, %cst_19 {dimension_numbers = #tpu.dot_dimension_numbers<[1], [0], [0], [1], [0, 0, 1, 1], [], []>} : vector<8x512xbf16>, vector<512x2048xbf16>, vector<8x2048xf32> -> vector<8x2048xf32>
    %53 = arith.addf %48, %52 : vector<8x2048xf32>
    %54 = vector.extract_strided_slice %53 {offsets = [0, 0], sizes = [8, 512], strides = [1, 1]} : vector<8x2048xf32> to vector<8x512xf32>
    %55 = arith.negf %54 : vector<8x512xf32>
    %56 = math.exp %55 : vector<8x512xf32>
    %cst_20 = arith.constant 1.000000e+00 : f32
    %57 = vector.broadcast %cst_20 : f32 to vector<8x512xf32>
    %58 = arith.addf %57, %56 : vector<8x512xf32>
    %59 = arith.divf %57, %58 : vector<8x512xf32>
    %60 = vector.extract_strided_slice %53 {offsets = [0, 512], sizes = [8, 512], strides = [1, 1]} : vector<8x2048xf32> to vector<8x512xf32>
    %61 = arith.negf %60 : vector<8x512xf32>
    %62 = math.exp %61 : vector<8x512xf32>
    %cst_21 = arith.constant 1.000000e+00 : f32
    %63 = vector.broadcast %cst_21 : f32 to vector<8x512xf32>
    %64 = arith.addf %63, %62 : vector<8x512xf32>
    %65 = arith.divf %63, %64 : vector<8x512xf32>
    %66 = vector.extract_strided_slice %53 {offsets = [0, 1024], sizes = [8, 512], strides = [1, 1]} : vector<8x2048xf32> to vector<8x512xf32>
    %67 = math.tanh %66 : vector<8x512xf32>
    %68 = vector.extract_strided_slice %53 {offsets = [0, 1536], sizes = [8, 512], strides = [1, 1]} : vector<8x2048xf32> to vector<8x512xf32>
    %69 = arith.negf %68 : vector<8x512xf32>
    %70 = math.exp %69 : vector<8x512xf32>
    %cst_22 = arith.constant 1.000000e+00 : f32
    %71 = vector.broadcast %cst_22 : f32 to vector<8x512xf32>
    %72 = arith.addf %71, %70 : vector<8x512xf32>
    %73 = arith.divf %71, %72 : vector<8x512xf32>
    %74 = arith.mulf %65, %41 : vector<8x512xf32>
    %75 = arith.mulf %59, %67 : vector<8x512xf32>
    %76 = arith.addf %74, %75 : vector<8x512xf32>
    %77 = math.tanh %76 : vector<8x512xf32>
    %78 = arith.mulf %73, %77 : vector<8x512xf32>
    %c0_23 = arith.constant 0 : index
    %79 = arith.index_cast %c1_i32 : i32 to index
    %c0_24 = arith.constant 0 : index
    %c0_25 = arith.constant 0 : index
    %80 = vector.load %arg2[%c0_23, %79, %c0_24, %c0_25] : memref<1x8x8x1xf32, #tpu.memory_space<vmem>>, vector<1x1x8x1xf32>
    %81 = vector.shape_cast %80 : vector<1x1x8x1xf32> to vector<8x1xf32>
    %82 = arith.subf %76, %41 : vector<8x512xf32>
    %83 = vector.broadcast %81 : vector<8x1xf32> to vector<8x512xf32>
    %84 = arith.mulf %83, %82 : vector<8x512xf32>
    %85 = arith.addf %41, %84 : vector<8x512xf32>
    %86 = arith.subf %78, %45 : vector<8x512xf32>
    %87 = vector.broadcast %81 : vector<8x1xf32> to vector<8x512xf32>
    %88 = arith.mulf %87, %86 : vector<8x512xf32>
    %89 = arith.addf %45, %88 : vector<8x512xf32>
    %c2_i32 = arith.constant 2 : i32
    %c0_26 = arith.constant 0 : index
    %90 = arith.index_cast %c2_i32 : i32 to index
    %c0_27 = arith.constant 0 : index
    %c0_28 = arith.constant 0 : index
    %91 = vector.load %arg1[%c0_26, %90, %c0_27, %c0_28] : memref<1x8x8x2048xf32, #tpu.memory_space<vmem>>, vector<1x1x8x2048xf32>
    %92 = vector.shape_cast %91 : vector<1x1x8x2048xf32> to vector<8x2048xf32>
    %93 = arith.truncf %89 : vector<8x512xf32> to vector<8x512xbf16>
    %c0_29 = arith.constant 0 : index
    %c0_30 = arith.constant 0 : index
    %c0_31 = arith.constant 0 : index
    %94 = vector.load %arg3[%c0_29, %c0_30, %c0_31] : memref<1x512x2048xbf16, #tpu.memory_space<vmem>>, vector<1x512x2048xbf16>
    %95 = vector.shape_cast %94 : vector<1x512x2048xbf16> to vector<512x2048xbf16>
    %cst_32 = arith.constant dense<0.000000e+00> : vector<8x2048xf32>
    %96 = tpu.matmul %93, %95, %cst_32 {dimension_numbers = #tpu.dot_dimension_numbers<[1], [0], [0], [1], [0, 0, 1, 1], [], []>} : vector<8x512xbf16>, vector<512x2048xbf16>, vector<8x2048xf32> -> vector<8x2048xf32>
    %97 = arith.addf %92, %96 : vector<8x2048xf32>
    %98 = vector.extract_strided_slice %97 {offsets = [0, 0], sizes = [8, 512], strides = [1, 1]} : vector<8x2048xf32> to vector<8x512xf32>
    %99 = arith.negf %98 : vector<8x512xf32>
    %100 = math.exp %99 : vector<8x512xf32>
    %cst_33 = arith.constant 1.000000e+00 : f32
    %101 = vector.broadcast %cst_33 : f32 to vector<8x512xf32>
    %102 = arith.addf %101, %100 : vector<8x512xf32>
    %103 = arith.divf %101, %102 : vector<8x512xf32>
    %104 = vector.extract_strided_slice %97 {offsets = [0, 512], sizes = [8, 512], strides = [1, 1]} : vector<8x2048xf32> to vector<8x512xf32>
    %105 = arith.negf %104 : vector<8x512xf32>
    %106 = math.exp %105 : vector<8x512xf32>
    %cst_34 = arith.constant 1.000000e+00 : f32
    %107 = vector.broadcast %cst_34 : f32 to vector<8x512xf32>
    %108 = arith.addf %107, %106 : vector<8x512xf32>
    %109 = arith.divf %107, %108 : vector<8x512xf32>
    %110 = vector.extract_strided_slice %97 {offsets = [0, 1024], sizes = [8, 512], strides = [1, 1]} : vector<8x2048xf32> to vector<8x512xf32>
    %111 = math.tanh %110 : vector<8x512xf32>
    %112 = vector.extract_strided_slice %97 {offsets = [0, 1536], sizes = [8, 512], strides = [1, 1]} : vector<8x2048xf32> to vector<8x512xf32>
    %113 = arith.negf %112 : vector<8x512xf32>
    %114 = math.exp %113 : vector<8x512xf32>
    %cst_35 = arith.constant 1.000000e+00 : f32
    %115 = vector.broadcast %cst_35 : f32 to vector<8x512xf32>
    %116 = arith.addf %115, %114 : vector<8x512xf32>
    %117 = arith.divf %115, %116 : vector<8x512xf32>
    %118 = arith.mulf %109, %85 : vector<8x512xf32>
    %119 = arith.mulf %103, %111 : vector<8x512xf32>
    %120 = arith.addf %118, %119 : vector<8x512xf32>
    %121 = math.tanh %120 : vector<8x512xf32>
    %122 = arith.mulf %117, %121 : vector<8x512xf32>
    %c0_36 = arith.constant 0 : index
    %123 = arith.index_cast %c2_i32 : i32 to index
    %c0_37 = arith.constant 0 : index
    %c0_38 = arith.constant 0 : index
    %124 = vector.load %arg2[%c0_36, %123, %c0_37, %c0_38] : memref<1x8x8x1xf32, #tpu.memory_space<vmem>>, vector<1x1x8x1xf32>
    %125 = vector.shape_cast %124 : vector<1x1x8x1xf32> to vector<8x1xf32>
    %126 = arith.subf %120, %85 : vector<8x512xf32>
    %127 = vector.broadcast %125 : vector<8x1xf32> to vector<8x512xf32>
    %128 = arith.mulf %127, %126 : vector<8x512xf32>
    %129 = arith.addf %85, %128 : vector<8x512xf32>
    %130 = arith.subf %122, %89 : vector<8x512xf32>
    %131 = vector.broadcast %125 : vector<8x1xf32> to vector<8x512xf32>
    %132 = arith.mulf %131, %130 : vector<8x512xf32>
    %133 = arith.addf %89, %132 : vector<8x512xf32>
    %c3_i32 = arith.constant 3 : i32
    %c0_39 = arith.constant 0 : index
    %134 = arith.index_cast %c3_i32 : i32 to index
    %c0_40 = arith.constant 0 : index
    %c0_41 = arith.constant 0 : index
    %135 = vector.load %arg1[%c0_39, %134, %c0_40, %c0_41] : memref<1x8x8x2048xf32, #tpu.memory_space<vmem>>, vector<1x1x8x2048xf32>
    %136 = vector.shape_cast %135 : vector<1x1x8x2048xf32> to vector<8x2048xf32>
    %137 = arith.truncf %133 : vector<8x512xf32> to vector<8x512xbf16>
    %c0_42 = arith.constant 0 : index
    %c0_43 = arith.constant 0 : index
    %c0_44 = arith.constant 0 : index
    %138 = vector.load %arg3[%c0_42, %c0_43, %c0_44] : memref<1x512x2048xbf16, #tpu.memory_space<vmem>>, vector<1x512x2048xbf16>
    %139 = vector.shape_cast %138 : vector<1x512x2048xbf16> to vector<512x2048xbf16>
    %cst_45 = arith.constant dense<0.000000e+00> : vector<8x2048xf32>
    %140 = tpu.matmul %137, %139, %cst_45 {dimension_numbers = #tpu.dot_dimension_numbers<[1], [0], [0], [1], [0, 0, 1, 1], [], []>} : vector<8x512xbf16>, vector<512x2048xbf16>, vector<8x2048xf32> -> vector<8x2048xf32>
    %141 = arith.addf %136, %140 : vector<8x2048xf32>
    %142 = vector.extract_strided_slice %141 {offsets = [0, 0], sizes = [8, 512], strides = [1, 1]} : vector<8x2048xf32> to vector<8x512xf32>
    %143 = arith.negf %142 : vector<8x512xf32>
    %144 = math.exp %143 : vector<8x512xf32>
    %cst_46 = arith.constant 1.000000e+00 : f32
    %145 = vector.broadcast %cst_46 : f32 to vector<8x512xf32>
    %146 = arith.addf %145, %144 : vector<8x512xf32>
    %147 = arith.divf %145, %146 : vector<8x512xf32>
    %148 = vector.extract_strided_slice %141 {offsets = [0, 512], sizes = [8, 512], strides = [1, 1]} : vector<8x2048xf32> to vector<8x512xf32>
    %149 = arith.negf %148 : vector<8x512xf32>
    %150 = math.exp %149 : vector<8x512xf32>
    %cst_47 = arith.constant 1.000000e+00 : f32
    %151 = vector.broadcast %cst_47 : f32 to vector<8x512xf32>
    %152 = arith.addf %151, %150 : vector<8x512xf32>
    %153 = arith.divf %151, %152 : vector<8x512xf32>
    %154 = vector.extract_strided_slice %141 {offsets = [0, 1024], sizes = [8, 512], strides = [1, 1]} : vector<8x2048xf32> to vector<8x512xf32>
    %155 = math.tanh %154 : vector<8x512xf32>
    %156 = vector.extract_strided_slice %141 {offsets = [0, 1536], sizes = [8, 512], strides = [1, 1]} : vector<8x2048xf32> to vector<8x512xf32>
    %157 = arith.negf %156 : vector<8x512xf32>
    %158 = math.exp %157 : vector<8x512xf32>
    %cst_48 = arith.constant 1.000000e+00 : f32
    %159 = vector.broadcast %cst_48 : f32 to vector<8x512xf32>
    %160 = arith.addf %159, %158 : vector<8x512xf32>
    %161 = arith.divf %159, %160 : vector<8x512xf32>
    %162 = arith.mulf %153, %129 : vector<8x512xf32>
    %163 = arith.mulf %147, %155 : vector<8x512xf32>
    %164 = arith.addf %162, %163 : vector<8x512xf32>
    %165 = math.tanh %164 : vector<8x512xf32>
    %166 = arith.mulf %161, %165 : vector<8x512xf32>
    %c0_49 = arith.constant 0 : index
    %167 = arith.index_cast %c3_i32 : i32 to index
    %c0_50 = arith.constant 0 : index
    %c0_51 = arith.constant 0 : index
    %168 = vector.load %arg2[%c0_49, %167, %c0_50, %c0_51] : memref<1x8x8x1xf32, #tpu.memory_space<vmem>>, vector<1x1x8x1xf32>
    %169 = vector.shape_cast %168 : vector<1x1x8x1xf32> to vector<8x1xf32>
    %170 = arith.subf %164, %129 : vector<8x512xf32>
    %171 = vector.broadcast %169 : vector<8x1xf32> to vector<8x512xf32>
    %172 = arith.mulf %171, %170 : vector<8x512xf32>
    %173 = arith.addf %129, %172 : vector<8x512xf32>
    %174 = arith.subf %166, %133 : vector<8x512xf32>
    %175 = vector.broadcast %169 : vector<8x1xf32> to vector<8x512xf32>
    %176 = arith.mulf %175, %174 : vector<8x512xf32>
    %177 = arith.addf %133, %176 : vector<8x512xf32>
    %c4_i32 = arith.constant 4 : i32
    %c0_52 = arith.constant 0 : index
    %178 = arith.index_cast %c4_i32 : i32 to index
    %c0_53 = arith.constant 0 : index
    %c0_54 = arith.constant 0 : index
    %179 = vector.load %arg1[%c0_52, %178, %c0_53, %c0_54] : memref<1x8x8x2048xf32, #tpu.memory_space<vmem>>, vector<1x1x8x2048xf32>
    %180 = vector.shape_cast %179 : vector<1x1x8x2048xf32> to vector<8x2048xf32>
    %181 = arith.truncf %177 : vector<8x512xf32> to vector<8x512xbf16>
    %c0_55 = arith.constant 0 : index
    %c0_56 = arith.constant 0 : index
    %c0_57 = arith.constant 0 : index
    %182 = vector.load %arg3[%c0_55, %c0_56, %c0_57] : memref<1x512x2048xbf16, #tpu.memory_space<vmem>>, vector<1x512x2048xbf16>
    %183 = vector.shape_cast %182 : vector<1x512x2048xbf16> to vector<512x2048xbf16>
    %cst_58 = arith.constant dense<0.000000e+00> : vector<8x2048xf32>
    %184 = tpu.matmul %181, %183, %cst_58 {dimension_numbers = #tpu.dot_dimension_numbers<[1], [0], [0], [1], [0, 0, 1, 1], [], []>} : vector<8x512xbf16>, vector<512x2048xbf16>, vector<8x2048xf32> -> vector<8x2048xf32>
    %185 = arith.addf %180, %184 : vector<8x2048xf32>
    %186 = vector.extract_strided_slice %185 {offsets = [0, 0], sizes = [8, 512], strides = [1, 1]} : vector<8x2048xf32> to vector<8x512xf32>
    %187 = arith.negf %186 : vector<8x512xf32>
    %188 = math.exp %187 : vector<8x512xf32>
    %cst_59 = arith.constant 1.000000e+00 : f32
    %189 = vector.broadcast %cst_59 : f32 to vector<8x512xf32>
    %190 = arith.addf %189, %188 : vector<8x512xf32>
    %191 = arith.divf %189, %190 : vector<8x512xf32>
    %192 = vector.extract_strided_slice %185 {offsets = [0, 512], sizes = [8, 512], strides = [1, 1]} : vector<8x2048xf32> to vector<8x512xf32>
    %193 = arith.negf %192 : vector<8x512xf32>
    %194 = math.exp %193 : vector<8x512xf32>
    %cst_60 = arith.constant 1.000000e+00 : f32
    %195 = vector.broadcast %cst_60 : f32 to vector<8x512xf32>
    %196 = arith.addf %195, %194 : vector<8x512xf32>
    %197 = arith.divf %195, %196 : vector<8x512xf32>
    %198 = vector.extract_strided_slice %185 {offsets = [0, 1024], sizes = [8, 512], strides = [1, 1]} : vector<8x2048xf32> to vector<8x512xf32>
    %199 = math.tanh %198 : vector<8x512xf32>
    %200 = vector.extract_strided_slice %185 {offsets = [0, 1536], sizes = [8, 512], strides = [1, 1]} : vector<8x2048xf32> to vector<8x512xf32>
    %201 = arith.negf %200 : vector<8x512xf32>
    %202 = math.exp %201 : vector<8x512xf32>
    %cst_61 = arith.constant 1.000000e+00 : f32
    %203 = vector.broadcast %cst_61 : f32 to vector<8x512xf32>
    %204 = arith.addf %203, %202 : vector<8x512xf32>
    %205 = arith.divf %203, %204 : vector<8x512xf32>
    %206 = arith.mulf %197, %173 : vector<8x512xf32>
    %207 = arith.mulf %191, %199 : vector<8x512xf32>
    %208 = arith.addf %206, %207 : vector<8x512xf32>
    %209 = math.tanh %208 : vector<8x512xf32>
    %210 = arith.mulf %205, %209 : vector<8x512xf32>
    %c0_62 = arith.constant 0 : index
    %211 = arith.index_cast %c4_i32 : i32 to index
    %c0_63 = arith.constant 0 : index
    %c0_64 = arith.constant 0 : index
    %212 = vector.load %arg2[%c0_62, %211, %c0_63, %c0_64] : memref<1x8x8x1xf32, #tpu.memory_space<vmem>>, vector<1x1x8x1xf32>
    %213 = vector.shape_cast %212 : vector<1x1x8x1xf32> to vector<8x1xf32>
    %214 = arith.subf %208, %173 : vector<8x512xf32>
    %215 = vector.broadcast %213 : vector<8x1xf32> to vector<8x512xf32>
    %216 = arith.mulf %215, %214 : vector<8x512xf32>
    %217 = arith.addf %173, %216 : vector<8x512xf32>
    %218 = arith.subf %210, %177 : vector<8x512xf32>
    %219 = vector.broadcast %213 : vector<8x1xf32> to vector<8x512xf32>
    %220 = arith.mulf %219, %218 : vector<8x512xf32>
    %221 = arith.addf %177, %220 : vector<8x512xf32>
    %c5_i32 = arith.constant 5 : i32
    %c0_65 = arith.constant 0 : index
    %222 = arith.index_cast %c5_i32 : i32 to index
    %c0_66 = arith.constant 0 : index
    %c0_67 = arith.constant 0 : index
    %223 = vector.load %arg1[%c0_65, %222, %c0_66, %c0_67] : memref<1x8x8x2048xf32, #tpu.memory_space<vmem>>, vector<1x1x8x2048xf32>
    %224 = vector.shape_cast %223 : vector<1x1x8x2048xf32> to vector<8x2048xf32>
    %225 = arith.truncf %221 : vector<8x512xf32> to vector<8x512xbf16>
    %c0_68 = arith.constant 0 : index
    %c0_69 = arith.constant 0 : index
    %c0_70 = arith.constant 0 : index
    %226 = vector.load %arg3[%c0_68, %c0_69, %c0_70] : memref<1x512x2048xbf16, #tpu.memory_space<vmem>>, vector<1x512x2048xbf16>
    %227 = vector.shape_cast %226 : vector<1x512x2048xbf16> to vector<512x2048xbf16>
    %cst_71 = arith.constant dense<0.000000e+00> : vector<8x2048xf32>
    %228 = tpu.matmul %225, %227, %cst_71 {dimension_numbers = #tpu.dot_dimension_numbers<[1], [0], [0], [1], [0, 0, 1, 1], [], []>} : vector<8x512xbf16>, vector<512x2048xbf16>, vector<8x2048xf32> -> vector<8x2048xf32>
    %229 = arith.addf %224, %228 : vector<8x2048xf32>
    %230 = vector.extract_strided_slice %229 {offsets = [0, 0], sizes = [8, 512], strides = [1, 1]} : vector<8x2048xf32> to vector<8x512xf32>
    %231 = arith.negf %230 : vector<8x512xf32>
    %232 = math.exp %231 : vector<8x512xf32>
    %cst_72 = arith.constant 1.000000e+00 : f32
    %233 = vector.broadcast %cst_72 : f32 to vector<8x512xf32>
    %234 = arith.addf %233, %232 : vector<8x512xf32>
    %235 = arith.divf %233, %234 : vector<8x512xf32>
    %236 = vector.extract_strided_slice %229 {offsets = [0, 512], sizes = [8, 512], strides = [1, 1]} : vector<8x2048xf32> to vector<8x512xf32>
    %237 = arith.negf %236 : vector<8x512xf32>
    %238 = math.exp %237 : vector<8x512xf32>
    %cst_73 = arith.constant 1.000000e+00 : f32
    %239 = vector.broadcast %cst_73 : f32 to vector<8x512xf32>
    %240 = arith.addf %239, %238 : vector<8x512xf32>
    %241 = arith.divf %239, %240 : vector<8x512xf32>
    %242 = vector.extract_strided_slice %229 {offsets = [0, 1024], sizes = [8, 512], strides = [1, 1]} : vector<8x2048xf32> to vector<8x512xf32>
    %243 = math.tanh %242 : vector<8x512xf32>
    %244 = vector.extract_strided_slice %229 {offsets = [0, 1536], sizes = [8, 512], strides = [1, 1]} : vector<8x2048xf32> to vector<8x512xf32>
    %245 = arith.negf %244 : vector<8x512xf32>
    %246 = math.exp %245 : vector<8x512xf32>
    %cst_74 = arith.constant 1.000000e+00 : f32
    %247 = vector.broadcast %cst_74 : f32 to vector<8x512xf32>
    %248 = arith.addf %247, %246 : vector<8x512xf32>
    %249 = arith.divf %247, %248 : vector<8x512xf32>
    %250 = arith.mulf %241, %217 : vector<8x512xf32>
    %251 = arith.mulf %235, %243 : vector<8x512xf32>
    %252 = arith.addf %250, %251 : vector<8x512xf32>
    %253 = math.tanh %252 : vector<8x512xf32>
    %254 = arith.mulf %249, %253 : vector<8x512xf32>
    %c0_75 = arith.constant 0 : index
    %255 = arith.index_cast %c5_i32 : i32 to index
    %c0_76 = arith.constant 0 : index
    %c0_77 = arith.constant 0 : index
    %256 = vector.load %arg2[%c0_75, %255, %c0_76, %c0_77] : memref<1x8x8x1xf32, #tpu.memory_space<vmem>>, vector<1x1x8x1xf32>
    %257 = vector.shape_cast %256 : vector<1x1x8x1xf32> to vector<8x1xf32>
    %258 = arith.subf %252, %217 : vector<8x512xf32>
    %259 = vector.broadcast %257 : vector<8x1xf32> to vector<8x512xf32>
    %260 = arith.mulf %259, %258 : vector<8x512xf32>
    %261 = arith.addf %217, %260 : vector<8x512xf32>
    %262 = arith.subf %254, %221 : vector<8x512xf32>
    %263 = vector.broadcast %257 : vector<8x1xf32> to vector<8x512xf32>
    %264 = arith.mulf %263, %262 : vector<8x512xf32>
    %265 = arith.addf %221, %264 : vector<8x512xf32>
    %c6_i32 = arith.constant 6 : i32
    %c0_78 = arith.constant 0 : index
    %266 = arith.index_cast %c6_i32 : i32 to index
    %c0_79 = arith.constant 0 : index
    %c0_80 = arith.constant 0 : index
    %267 = vector.load %arg1[%c0_78, %266, %c0_79, %c0_80] : memref<1x8x8x2048xf32, #tpu.memory_space<vmem>>, vector<1x1x8x2048xf32>
    %268 = vector.shape_cast %267 : vector<1x1x8x2048xf32> to vector<8x2048xf32>
    %269 = arith.truncf %265 : vector<8x512xf32> to vector<8x512xbf16>
    %c0_81 = arith.constant 0 : index
    %c0_82 = arith.constant 0 : index
    %c0_83 = arith.constant 0 : index
    %270 = vector.load %arg3[%c0_81, %c0_82, %c0_83] : memref<1x512x2048xbf16, #tpu.memory_space<vmem>>, vector<1x512x2048xbf16>
    %271 = vector.shape_cast %270 : vector<1x512x2048xbf16> to vector<512x2048xbf16>
    %cst_84 = arith.constant dense<0.000000e+00> : vector<8x2048xf32>
    %272 = tpu.matmul %269, %271, %cst_84 {dimension_numbers = #tpu.dot_dimension_numbers<[1], [0], [0], [1], [0, 0, 1, 1], [], []>} : vector<8x512xbf16>, vector<512x2048xbf16>, vector<8x2048xf32> -> vector<8x2048xf32>
    %273 = arith.addf %268, %272 : vector<8x2048xf32>
    %274 = vector.extract_strided_slice %273 {offsets = [0, 0], sizes = [8, 512], strides = [1, 1]} : vector<8x2048xf32> to vector<8x512xf32>
    %275 = arith.negf %274 : vector<8x512xf32>
    %276 = math.exp %275 : vector<8x512xf32>
    %cst_85 = arith.constant 1.000000e+00 : f32
    %277 = vector.broadcast %cst_85 : f32 to vector<8x512xf32>
    %278 = arith.addf %277, %276 : vector<8x512xf32>
    %279 = arith.divf %277, %278 : vector<8x512xf32>
    %280 = vector.extract_strided_slice %273 {offsets = [0, 512], sizes = [8, 512], strides = [1, 1]} : vector<8x2048xf32> to vector<8x512xf32>
    %281 = arith.negf %280 : vector<8x512xf32>
    %282 = math.exp %281 : vector<8x512xf32>
    %cst_86 = arith.constant 1.000000e+00 : f32
    %283 = vector.broadcast %cst_86 : f32 to vector<8x512xf32>
    %284 = arith.addf %283, %282 : vector<8x512xf32>
    %285 = arith.divf %283, %284 : vector<8x512xf32>
    %286 = vector.extract_strided_slice %273 {offsets = [0, 1024], sizes = [8, 512], strides = [1, 1]} : vector<8x2048xf32> to vector<8x512xf32>
    %287 = math.tanh %286 : vector<8x512xf32>
    %288 = vector.extract_strided_slice %273 {offsets = [0, 1536], sizes = [8, 512], strides = [1, 1]} : vector<8x2048xf32> to vector<8x512xf32>
    %289 = arith.negf %288 : vector<8x512xf32>
    %290 = math.exp %289 : vector<8x512xf32>
    %cst_87 = arith.constant 1.000000e+00 : f32
    %291 = vector.broadcast %cst_87 : f32 to vector<8x512xf32>
    %292 = arith.addf %291, %290 : vector<8x512xf32>
    %293 = arith.divf %291, %292 : vector<8x512xf32>
    %294 = arith.mulf %285, %261 : vector<8x512xf32>
    %295 = arith.mulf %279, %287 : vector<8x512xf32>
    %296 = arith.addf %294, %295 : vector<8x512xf32>
    %297 = math.tanh %296 : vector<8x512xf32>
    %298 = arith.mulf %293, %297 : vector<8x512xf32>
    %c0_88 = arith.constant 0 : index
    %299 = arith.index_cast %c6_i32 : i32 to index
    %c0_89 = arith.constant 0 : index
    %c0_90 = arith.constant 0 : index
    %300 = vector.load %arg2[%c0_88, %299, %c0_89, %c0_90] : memref<1x8x8x1xf32, #tpu.memory_space<vmem>>, vector<1x1x8x1xf32>
    %301 = vector.shape_cast %300 : vector<1x1x8x1xf32> to vector<8x1xf32>
    %302 = arith.subf %296, %261 : vector<8x512xf32>
    %303 = vector.broadcast %301 : vector<8x1xf32> to vector<8x512xf32>
    %304 = arith.mulf %303, %302 : vector<8x512xf32>
    %305 = arith.addf %261, %304 : vector<8x512xf32>
    %306 = arith.subf %298, %265 : vector<8x512xf32>
    %307 = vector.broadcast %301 : vector<8x1xf32> to vector<8x512xf32>
    %308 = arith.mulf %307, %306 : vector<8x512xf32>
    %309 = arith.addf %265, %308 : vector<8x512xf32>
    %c7_i32 = arith.constant 7 : i32
    %c0_91 = arith.constant 0 : index
    %310 = arith.index_cast %c7_i32 : i32 to index
    %c0_92 = arith.constant 0 : index
    %c0_93 = arith.constant 0 : index
    %311 = vector.load %arg1[%c0_91, %310, %c0_92, %c0_93] : memref<1x8x8x2048xf32, #tpu.memory_space<vmem>>, vector<1x1x8x2048xf32>
    %312 = vector.shape_cast %311 : vector<1x1x8x2048xf32> to vector<8x2048xf32>
    %313 = arith.truncf %309 : vector<8x512xf32> to vector<8x512xbf16>
    %c0_94 = arith.constant 0 : index
    %c0_95 = arith.constant 0 : index
    %c0_96 = arith.constant 0 : index
    %314 = vector.load %arg3[%c0_94, %c0_95, %c0_96] : memref<1x512x2048xbf16, #tpu.memory_space<vmem>>, vector<1x512x2048xbf16>
    %315 = vector.shape_cast %314 : vector<1x512x2048xbf16> to vector<512x2048xbf16>
    %cst_97 = arith.constant dense<0.000000e+00> : vector<8x2048xf32>
    %316 = tpu.matmul %313, %315, %cst_97 {dimension_numbers = #tpu.dot_dimension_numbers<[1], [0], [0], [1], [0, 0, 1, 1], [], []>} : vector<8x512xbf16>, vector<512x2048xbf16>, vector<8x2048xf32> -> vector<8x2048xf32>
    %317 = arith.addf %312, %316 : vector<8x2048xf32>
    %318 = vector.extract_strided_slice %317 {offsets = [0, 0], sizes = [8, 512], strides = [1, 1]} : vector<8x2048xf32> to vector<8x512xf32>
    %319 = arith.negf %318 : vector<8x512xf32>
    %320 = math.exp %319 : vector<8x512xf32>
    %cst_98 = arith.constant 1.000000e+00 : f32
    %321 = vector.broadcast %cst_98 : f32 to vector<8x512xf32>
    %322 = arith.addf %321, %320 : vector<8x512xf32>
    %323 = arith.divf %321, %322 : vector<8x512xf32>
    %324 = vector.extract_strided_slice %317 {offsets = [0, 512], sizes = [8, 512], strides = [1, 1]} : vector<8x2048xf32> to vector<8x512xf32>
    %325 = arith.negf %324 : vector<8x512xf32>
    %326 = math.exp %325 : vector<8x512xf32>
    %cst_99 = arith.constant 1.000000e+00 : f32
    %327 = vector.broadcast %cst_99 : f32 to vector<8x512xf32>
    %328 = arith.addf %327, %326 : vector<8x512xf32>
    %329 = arith.divf %327, %328 : vector<8x512xf32>
    %330 = vector.extract_strided_slice %317 {offsets = [0, 1024], sizes = [8, 512], strides = [1, 1]} : vector<8x2048xf32> to vector<8x512xf32>
    %331 = math.tanh %330 : vector<8x512xf32>
    %332 = vector.extract_strided_slice %317 {offsets = [0, 1536], sizes = [8, 512], strides = [1, 1]} : vector<8x2048xf32> to vector<8x512xf32>
    %333 = arith.negf %332 : vector<8x512xf32>
    %334 = math.exp %333 : vector<8x512xf32>
    %cst_100 = arith.constant 1.000000e+00 : f32
    %335 = vector.broadcast %cst_100 : f32 to vector<8x512xf32>
    %336 = arith.addf %335, %334 : vector<8x512xf32>
    %337 = arith.divf %335, %336 : vector<8x512xf32>
    %338 = arith.mulf %329, %305 : vector<8x512xf32>
    %339 = arith.mulf %323, %331 : vector<8x512xf32>
    %340 = arith.addf %338, %339 : vector<8x512xf32>
    %341 = math.tanh %340 : vector<8x512xf32>
    %342 = arith.mulf %337, %341 : vector<8x512xf32>
    %c0_101 = arith.constant 0 : index
    %343 = arith.index_cast %c7_i32 : i32 to index
    %c0_102 = arith.constant 0 : index
    %c0_103 = arith.constant 0 : index
    %344 = vector.load %arg2[%c0_101, %343, %c0_102, %c0_103] : memref<1x8x8x1xf32, #tpu.memory_space<vmem>>, vector<1x1x8x1xf32>
    %345 = vector.shape_cast %344 : vector<1x1x8x1xf32> to vector<8x1xf32>
    %346 = arith.subf %340, %305 : vector<8x512xf32>
    %347 = vector.broadcast %345 : vector<8x1xf32> to vector<8x512xf32>
    %348 = arith.mulf %347, %346 : vector<8x512xf32>
    %349 = arith.addf %305, %348 : vector<8x512xf32>
    %350 = arith.subf %342, %309 : vector<8x512xf32>
    %351 = vector.broadcast %345 : vector<8x1xf32> to vector<8x512xf32>
    %352 = arith.mulf %351, %350 : vector<8x512xf32>
    %353 = arith.addf %309, %352 : vector<8x512xf32>
    %c8_i32 = arith.constant 8 : i32
    %c0_104 = arith.constant 0 : index
    %c0_105 = arith.constant 0 : index
    %c0_106 = arith.constant 0 : index
    %354 = vector.load %arg4[%c0_104, %c0_105, %c0_106] : memref<1x8x512xf32, #tpu.memory_space<vmem>>, vector<1x8x512xf32>
    %355 = vector.shape_cast %354 : vector<1x8x512xf32> to vector<8x512xf32>
    %356 = vector.shape_cast %353 : vector<8x512xf32> to vector<1x8x512xf32>
    tpu.vector_store %arg4[%c0_104, %c0_105, %c0_106], %356 {strides = array<i32>} : memref<1x8x512xf32, #tpu.memory_space<vmem>>, vector<1x8x512xf32>,
    return
  }
  func.func @transform_0(%arg0: i32) -> (i32, i32, i32, i32) {
    %c0_i32 = arith.constant 0 : i32
    %c0_i32_0 = arith.constant 0 : i32
    %c0_i32_1 = arith.constant 0 : i32
    %c0_i32_2 = arith.constant 0 : i32
    return %arg0, %c0_i32, %c0_i32_0, %c0_i32_1 : i32, i32, i32, i32
  }
  func.func @transform_1(%arg0: i32) -> (i32, i32, i32, i32) {
    %c0_i32 = arith.constant 0 : i32
    %c0_i32_0 = arith.constant 0 : i32
    %c0_i32_1 = arith.constant 0 : i32
    %c0_i32_2 = arith.constant 0 : i32
    return %arg0, %c0_i32, %c0_i32_0, %c0_i32_1 : i32, i32, i32, i32
  }
  func.func @transform_2(%arg0: i32) -> (i32, i32, i32) {
    %c0_i32 = arith.constant 0 : i32
    %c0_i32_0 = arith.constant 0 : i32
    %c0_i32_1 = arith.constant 0 : i32
    return %arg0, %c0_i32, %c0_i32_0 : i32, i32, i32
  }
  func.func @transform_3(%arg0: i32) -> (i32, i32, i32) {
    %c0_i32 = arith.constant 0 : i32
    %c0_i32_0 = arith.constant 0 : i32
    %c0_i32_1 = arith.constant 0 : i32
    return %arg0, %c0_i32, %c0_i32_0 : i32, i32, i32
  }
}

</mosaic_0001>

<llo_original>
// kernel: tpu_custom_call.1
$region0: #{tpu_custom_call.1}
  #allocation0 [shape = 'u32[]', space=smem, size = 0x4, offset = 0x4, fixed_abs, tag = 'smem constant byte address 0x4 - core index']
  #allocation1 [shape = 'u32[144,128]{1,0:T(1,128)}', space=vmem, size = 0x12000, scoped, tag = 'internal scratch']
  %s0 = inlined_call_operand.hbm [shape: f32[2,8,8,2048], index: 0, kind: input, shape index: {}]
  %s1 = inlined_call_operand.vmem [shape: f32[2,8,8,1], index: 1, kind: input, shape index: {}]
  %s2 = inlined_call_operand.hbm [shape: bf16[2,512,2048], index: 2, kind: input, shape index: {}]
  %s3 = inlined_call_operand.hbm [shape: f32[2,8,512], index: 3, kind: output, shape index: {}]
  %s4 = sld [smem:[#allocation0]]
  $region53: #{tpu_custom_call.1} parent=0
    _
  %s6 = ssub.s32 1, %s4
  %s7 = scalar_select 0, %s6, %s4
  $region1: #{tpu_custom_call.1} parent=0
    #allocation2 [shape = 'u8[1048576]{0}', space=vmem, size = 0x100000, scoped, tag = 'input window, operand 0']
    #allocation3 [shape = 's32[2]{0}', space=sflag, size = 0x8, scoped, tag = 'scoped memory for tpu_custom_call.1']
    #allocation4 [shape = 's32[2]{0}', space=sflag, size = 0x8, scoped, tag = 'scoped memory for tpu_custom_call.1']
    #allocation5 [shape = 'u8[4194304]{0}', space=vmem, size = 0x400000, scoped, tag = 'input window, operand 2']
    #allocation6 [shape = 's32[2]{0}', space=sflag, size = 0x8, scoped, tag = 'scoped memory for tpu_custom_call.1']
    #allocation7 [shape = 'u8[32768]{0}', space=vmem, size = 0x8000, scoped, tag = 'output window, operand 0']
    %8 = vsyncpa [#allocation3], 0
    %s9 = scalar_lea.sflag [#allocation3], 1
    %10 = vsyncpa %s9, 0
    %11 = vsyncpa [#allocation6], 0
    %s12 = scalar_lea.sflag [#allocation6], 1
    %13 = vsyncpa %s12, 0
    %14 = vsyncpa [#allocation4], 0
    %s15 = scalar_lea.sflag [#allocation4], 1
    %16 = vsyncpa %s15, 0
    loop: start=0, step=1, limit=4
    $region2: #{tpu_custom_call.1} parent=1 // loop_pre_header
      _
    $region3: #{tpu_custom_call.1} parent=1 // loop_header
      %s18 = sphi 0, %s22
      %p19 = scmp.ge.s32.totalorder %s18, 4
      %s28 = sphi 0, %s30
      %s31 = sphi 0, %s28
      %s32 = sphi 0, %s31
      %s48 = sphi 0, %s32
      %s54 = sphi 0, %s56
      %s57 = sphi 0, %s54
      %s58 = sphi 0, %s57
      %s74 = sphi 0, %s58
      %s80 = sphi 0, %s82
      %s83 = sphi 0, %s80
      %s84 = sphi 0, %s83
      %s100 = sphi 0, %s84
      %s106 = sphi 0, %s108
      %s109 = sphi 0, %s106
      %s110 = sphi 0, %s109
      %s126 = sphi 0, %s110
    $region4: #{tpu_custom_call.1} parent=1 // loop_header_branch
      %21 = sbr.rel (%p19) target = $region8
    $region5: #{tpu_custom_call.1} parent=1 // loop_body
      %s23 = ssub.s32 %s18, 1
      %s24 = ssub.s32 %s18, 2
      %s25 = sadd.s32 %s18, 1
      %s26 = ssub.s32 %s18, %s25
      %p27 = scmp.eq.s32.totalorder %s26, 0
      %s29 = sadd.s32 %s28, 1
      %s30 = scalar_select %p27, %s28, %s29
      %p33 = pneg %p27
      %p34 = scmp.eq.s32.totalorder %s18, 1
      %p35 = por %p33, %p34
      %p36 = scmp.ne.s32.totalorder %s28, %s31
      %p37 = scmp.eq.s32.totalorder %s18, 0
      %p38 = por %p36, %p37
      %p39 = scmp.ne.s32.totalorder %s28, %s31
      %p40 = scmp.eq.s32.totalorder %s23, 1
      %p41 = por %p39, %p40
      %p42 = scmp.ne.s32.totalorder %s31, %s32
      %p43 = scmp.eq.s32.totalorder %s23, 0
      %p44 = por %p42, %p43
      %p45 = scmp.ne.s32.totalorder %s31, %s32
      %p46 = scmp.eq.s32.totalorder %s24, 1
      %p47 = por %p45, %p46
      %p49 = scmp.ne.s32.totalorder %s32, %s48
      %p50 = scmp.eq.s32.totalorder %s24, 0
      %p51 = por %p49, %p50
      %s52 = ssub.s32 %s18, %s25
      %p53 = scmp.eq.s32.totalorder %s52, 0
      %s55 = sadd.s32 %s54, 1
      %s56 = scalar_select %p53, %s54, %s55
      %p59 = pneg %p53
      %p60 = scmp.eq.s32.totalorder %s18, 1
      %p61 = por %p59, %p60
      %p62 = scmp.ne.s32.totalorder %s54, %s57
      %p63 = scmp.eq.s32.totalorder %s18, 0
      %p64 = por %p62, %p63
      %p65 = scmp.ne.s32.totalorder %s54, %s57
      %p66 = scmp.eq.s32.totalorder %s23, 1
      %p67 = por %p65, %p66
      %p68 = scmp.ne.s32.totalorder %s57, %s58
      %p69 = scmp.eq.s32.totalorder %s23, 0
      %p70 = por %p68, %p69
      %p71 = scmp.ne.s32.totalorder %s57, %s58
      %p72 = scmp.eq.s32.totalorder %s24, 1
      %p73 = por %p71, %p72
      %p75 = scmp.ne.s32.totalorder %s58, %s74
      %p76 = scmp.eq.s32.totalorder %s24, 0
      %p77 = por %p75, %p76
      %s78 = ssub.s32 %s18, %s25
      %p79 = scmp.eq.s32.totalorder %s78, 0
      %s81 = sadd.s32 %s80, 1
      %s82 = scalar_select %p79, %s80, %s81
      %p85 = pneg %p79
      %p86 = scmp.eq.s32.totalorder %s18, 1
      %p87 = por %p85, %p86
      %p88 = scmp.ne.s32.totalorder %s80, %s83
      %p89 = scmp.eq.s32.totalorder %s18, 0
      %p90 = por %p88, %p89
      %p91 = scmp.ne.s32.totalorder %s80, %s83
      %p92 = scmp.eq.s32.totalorder %s23, 1
      %p93 = por %p91, %p92
      %p94 = scmp.ne.s32.totalorder %s83, %s84
      %p95 = scmp.eq.s32.totalorder %s23, 0
      %p96 = por %p94, %p95
      %p97 = scmp.ne.s32.totalorder %s83, %s84
      %p98 = scmp.eq.s32.totalorder %s24, 1
      %p99 = por %p97, %p98
      %p101 = scmp.ne.s32.totalorder %s84, %s100
      %p102 = scmp.eq.s32.totalorder %s24, 0
      %p103 = por %p101, %p102
      %s104 = ssub.s32 %s18, %s25
      %p105 = scmp.eq.s32.totalorder %s104, 0
      %s107 = sadd.s32 %s106, 1
      %s108 = scalar_select %p105, %s106, %s107
      %p111 = pneg %p105
      %p112 = scmp.eq.s32.totalorder %s18, 1
      %p113 = por %p111, %p112
      %p114 = scmp.ne.s32.totalorder %s106, %s109
      %p115 = scmp.eq.s32.totalorder %s18, 0
      %p116 = por %p114, %p115
      %p117 = scmp.ne.s32.totalorder %s106, %s109
      %p118 = scmp.eq.s32.totalorder %s23, 1
      %p119 = por %p117, %p118
      %p120 = scmp.ne.s32.totalorder %s109, %s110
      %p121 = scmp.eq.s32.totalorder %s23, 0
      %p122 = por %p120, %p121
      %p123 = scmp.ne.s32.totalorder %s109, %s110
      %p124 = scmp.eq.s32.totalorder %s24, 1
      %p125 = por %p123, %p124
      %p127 = scmp.ne.s32.totalorder %s110, %s126
      %p128 = scmp.eq.s32.totalorder %s24, 0
      %p129 = por %p127, %p128
      %p130 = scmp.le.s32.totalorder 1, %s18
      %p131 = scmp.lt.s32.totalorder %s18, 3
      %p132 = pnand %p130, %p131
      %p133 = pneg %p132
      // Predicated region
      $region9: #{tpu_custom_call.1} parent=5 // pred_check
        _
      $region10: #{tpu_custom_call.1} parent=5 // pred_check_branch
        %135 = sbr.rel (%p132) target = $region12
      $region11: #{tpu_custom_call.1} parent=5 // pred_region
        %s136 = ssub.s32 %s18, 1
      $region12: #{tpu_custom_call.1} parent=5 // pred_fallthru
        _
      %p137 = scmp.lt.s32.totalorder %s18, 2
      // Predicated region
      $region13: #{tpu_custom_call.1} parent=5 // pred_check
        %p138 = pneg %p137
      $region14: #{tpu_custom_call.1} parent=5 // pred_check_branch
        %140 = sbr.rel (%p138) target = $region16
      $region15: #{tpu_custom_call.1} parent=5 // pred_region
        // Predicated region
        $region17: #{tpu_custom_call.1} parent=15 // pred_check
          %p141 = pneg %p38
        $region18: #{tpu_custom_call.1} parent=15 // pred_check_branch
          %143 = sbr.rel (%p141) target = $region20
        $region19: #{tpu_custom_call.1} parent=15 // pred_region
          %s144 = sand.u32 %s28, 1
          %s145 = scalar_lea.sflag [#allocation3], %s144
          %s146 = sand.u32 %s28, 1
          %s147 = smul.addr %s146, 1024
          %s148 = scalar_lea.vmem [#allocation2], %s147
          %s150 = ssub.s32 16384, 16384
          %151 = vsyncadd %s145, %s150
          %s152 = smul.addr %s18, 128
          %s153 = smul.addr %s152, 128
          %s154 = scalar_lea.hbm %s0, %s153
          %s155 = sshll.u32 %s148, 4
          %s156 = int_to_ptr.vmem [resolvable:$true] %s155
          %161 = dma.hbm_to_vmem [thread:$0]  %s154, 16384, %s156, %s145, 2048, 2048, 128
        $region20: #{tpu_custom_call.1} parent=15 // pred_fallthru
          _
        // Predicated region
        $region21: #{tpu_custom_call.1} parent=15 // pred_check
          %p162 = pneg %p64
        $region22: #{tpu_custom_call.1} parent=15 // pred_check_branch
          %164 = sbr.rel (%p162) target = $region24
        $region23: #{tpu_custom_call.1} parent=15 // pred_region
          %p165 = scmp.lt.s32.totalorder %s18, 1
          %s166 = scalar_select %p165, %s18, 1
          %s167 = smul.addr %s166, 8
          %s168 = smul.addr %s167, 8
          %s169 = scalar_lea.vmem %s1, %s168
        $region24: #{tpu_custom_call.1} parent=15 // pred_fallthru
          _
        // Predicated region
        $region25: #{tpu_custom_call.1} parent=15 // pred_check
          %p170 = pneg %p90
        $region26: #{tpu_custom_call.1} parent=15 // pred_check_branch
          %172 = sbr.rel (%p170) target = $region28
        $region27: #{tpu_custom_call.1} parent=15 // pred_region
          %s173 = sand.u32 %s80, 1
          %s174 = scalar_lea.sflag [#allocation6], %s173
          %s175 = sand.u32 %s80, 1
          %s176 = smul.addr %s175, 4096
          %s177 = scalar_lea.vmem [#allocation5], %s176
          %s179 = ssub.s32 65536, 65536
          %180 = vsyncadd %s174, %s179
          %s181 = smul.addr %s18, 1024
          %s182 = smul.addr %s181, 64
          %s183 = scalar_lea.hbm %s2, %s182
          %s184 = sshll.u32 %s177, 4
          %s185 = int_to_ptr.vmem [resolvable:$true] %s184
          %190 = dma.hbm_to_vmem [thread:$0]  %s183, 65536, %s185, %s174, 1024, 1024, 64
        $region28: #{tpu_custom_call.1} parent=15 // pred_fallthru
          _
      $region16: #{tpu_custom_call.1} parent=5 // pred_fallthru
        _
      %p191 = scmp.le.s32.totalorder 1, %s18
      %p192 = scmp.lt.s32.totalorder %s18, 3
      %p193 = pnand %p191, %p192
      %p194 = pneg %p193
      // Predicated region
      $region29: #{tpu_custom_call.1} parent=5 // pred_check
        _
      $region30: #{tpu_custom_call.1} parent=5 // pred_check_branch
        %196 = sbr.rel (%p193) target = $region32
      $region31: #{tpu_custom_call.1} parent=5 // pred_region
        %s197 = ssub.s32 %s18, 1
        %s198 = sand.u32 %s31, 1
        %s199 = scalar_lea.sflag [#allocation3], %s198
        %s200 = sand.u32 %s31, 1
        %s201 = smul.addr %s200, 1024
        %s202 = scalar_lea.vmem [#allocation2], %s201
        // Predicated region
        $region33: #{tpu_custom_call.1} parent=31 // pred_check
          %p203 = pneg %p44
        $region34: #{tpu_custom_call.1} parent=31 // pred_check_branch
          %205 = sbr.rel (%p203) target = $region36
        $region35: #{tpu_custom_call.1} parent=31 // pred_region
          %206 = dma.done %s199, 16384
        $region36: #{tpu_custom_call.1} parent=31 // pred_fallthru
          _
        %s207 = sand.u32 %s83, 1
        %s208 = scalar_lea.sflag [#allocation6], %s207
        %s209 = sand.u32 %s83, 1
        %s210 = smul.addr %s209, 4096
        %s211 = scalar_lea.vmem [#allocation5], %s210
        // Predicated region
        $region37: #{tpu_custom_call.1} parent=31 // pred_check
          %p212 = pneg %p96
        $region38: #{tpu_custom_call.1} parent=31 // pred_check_branch
          %214 = sbr.rel (%p212) target = $region40
        $region39: #{tpu_custom_call.1} parent=31 // pred_region
          %215 = dma.done %s208, 65536
        $region40: #{tpu_custom_call.1} parent=31 // pred_fallthru
          _
        %s216 = sand.u32 %s31, 1
        %s217 = scalar_lea.sflag [#allocation3], %s216
        %s218 = sand.u32 %s31, 1
        %s219 = smul.addr %s218, 1024
        %s220 = scalar_lea.vmem [#allocation2], %s219
        %p221 = pneg %p44
        %p222 = pneg %p41
        %p223 = scmp.lt.s32.totalorder %s23, 1
        %s224 = scalar_select %p223, %s23, 1
        %s225 = smul.addr %s224, 8
        %s226 = smul.addr %s225, 8
        %s227 = scalar_lea.vmem %s1, %s226
        %p228 = pneg %p70
        %p229 = pneg %p67
        %s230 = sand.u32 %s83, 1
        %s231 = scalar_lea.sflag [#allocation6], %s230
        %s232 = sand.u32 %s83, 1
        %s233 = smul.addr %s232, 4096
        %s234 = scalar_lea.vmem [#allocation5], %s233
        %p235 = pneg %p96
        %p236 = pneg %p93
        %p237 = pneg %p122
        %p238 = pneg %p119
        %s239 = sand.u32 %s109, 1
        %s240 = scalar_lea.sflag [#allocation4], %s239
        %s241 = sand.u32 %s109, 1
        %s242 = smul.addr %s241, 32
        %s243 = scalar_lea.vmem [#allocation7], %s242
        %p244 = scmp.lt.s32.totalorder %s23, 1
        %s245 = scalar_select %p244, %s23, 1
        %s246 = smul.addr %s245, 8
        %s247 = smul.addr %s246, 8
        %s248 = scalar_lea.vmem %s1, %s247
        %v250 = vld [vmem:[%s202] sm:$0xff]
        %v251 = vld [vmem:[%s202 + $0x8] sm:$0xff]
        %v252 = vld [vmem:[%s202 + $0x10] sm:$0xff]
        %v253 = vld [vmem:[%s202 + $0x18] sm:$0xff]
        %v254 = vld [vmem:[%s202 + $0x20] sm:$0xff]
        %v255 = vld [vmem:[%s202 + $0x28] sm:$0xff]
        %v256 = vld [vmem:[%s202 + $0x30] sm:$0xff]
        %v257 = vld [vmem:[%s202 + $0x38] sm:$0xff]
        %v258 = vld [vmem:[%s202 + $0x40] sm:$0xff]
        %v259 = vld [vmem:[%s202 + $0x48] sm:$0xff]
        %v260 = vld [vmem:[%s202 + $0x50] sm:$0xff]
        %v261 = vld [vmem:[%s202 + $0x58] sm:$0xff]
        %v262 = vld [vmem:[%s202 + $0x60] sm:$0xff]
        %v263 = vld [vmem:[%s202 + $0x68] sm:$0xff]
        %v264 = vld [vmem:[%s202 + $0x70] sm:$0xff]
        %v265 = vld [vmem:[%s202 + $0x78] sm:$0xff]
        %v266 = vld [vmem:[%s211] sm:$0xff]
        %v267 = vld [vmem:[%s211 + $0x8] sm:$0xff]
        %v268 = vld [vmem:[%s211 + $0x10] sm:$0xff]
        %v269 = vld [vmem:[%s211 + $0x18] sm:$0xff]
        %v270 = vld [vmem:[%s211 + $0x20] sm:$0xff]
        %v271 = vld [vmem:[%s211 + $0x28] sm:$0xff]
        %v272 = vld [vmem:[%s211 + $0x30] sm:$0xff]
        %v273 = vld [vmem:[%s211 + $0x38] sm:$0xff]
        %v274 = vld [vmem:[%s211 + $0x40] sm:$0xff]
        %v275 = vld [vmem:[%s211 + $0x48] sm:$0xff]
        %v276 = vld [vmem:[%s211 + $0x50] sm:$0xff]
        %v277 = vld [vmem:[%s211 + $0x58] sm:$0xff]
        %v278 = vld [vmem:[%s211 + $0x60] sm:$0xff]
        %v279 = vld [vmem:[%s211 + $0x68] sm:$0xff]
        %v280 = vld [vmem:[%s211 + $0x70] sm:$0xff]
        %v281 = vld [vmem:[%s211 + $0x78] sm:$0xff]
        %v282 = vld [vmem:[%s211 + $0x80] sm:$0xff]
        %v283 = vld [vmem:[%s211 + $0x88] sm:$0xff]
        %v284 = vld [vmem:[%s211 + $0x90] sm:$0xff]
        %v285 = vld [vmem:[%s211 + $0x98] sm:$0xff]
        %v286 = vld [vmem:[%s211 + $0xa0] sm:$0xff]
        %v287 = vld [vmem:[%s211 + $0xa8] sm:$0xff]
        %v288 = vld [vmem:[%s211 + $0xb0] sm:$0xff]
        %v289 = vld [vmem:[%s211 + $0xb8] sm:$0xff]
        %v290 = vld [vmem:[%s211 + $0xc0] sm:$0xff]
        %v291 = vld [vmem:[%s211 + $0xc8] sm:$0xff]
        %v292 = vld [vmem:[%s211 + $0xd0] sm:$0xff]
        %v293 = vld [vmem:[%s211 + $0xd8] sm:$0xff]
        %v294 = vld [vmem:[%s211 + $0xe0] sm:$0xff]
        %v295 = vld [vmem:[%s211 + $0xe8] sm:$0xff]
        %v296 = vld [vmem:[%s211 + $0xf0] sm:$0xff]
        %v297 = vld [vmem:[%s211 + $0xf8] sm:$0xff]
        %v298 = vld [vmem:[%s211 + $0x100] sm:$0xff]
        %v299 = vld [vmem:[%s211 + $0x108] sm:$0xff]
        %v300 = vld [vmem:[%s211 + $0x110] sm:$0xff]
        %v301 = vld [vmem:[%s211 + $0x118] sm:$0xff]
        %v302 = vld [vmem:[%s211 + $0x120] sm:$0xff]
        %v303 = vld [vmem:[%s211 + $0x128] sm:$0xff]
        %v304 = vld [vmem:[%s211 + $0x130] sm:$0xff]
        %v305 = vld [vmem:[%s211 + $0x138] sm:$0xff]
        %v306 = vld [vmem:[%s211 + $0x140] sm:$0xff]
        %v307 = vld [vmem:[%s211 + $0x148] sm:$0xff]
        %v308 = vld [vmem:[%s211 + $0x150] sm:$0xff]
        %v309 = vld [vmem:[%s211 + $0x158] sm:$0xff]
        %v310 = vld [vmem:[%s211 + $0x160] sm:$0xff]
        %v311 = vld [vmem:[%s211 + $0x168] sm:$0xff]
        %v312 = vld [vmem:[%s211 + $0x170] sm:$0xff]
        %v313 = vld [vmem:[%s211 + $0x178] sm:$0xff]
        %v314 = vld [vmem:[%s211 + $0x180] sm:$0xff]
        %v315 = vld [vmem:[%s211 + $0x188] sm:$0xff]
        %v316 = vld [vmem:[%s211 + $0x190] sm:$0xff]
        %v317 = vld [vmem:[%s211 + $0x198] sm:$0xff]
        %v318 = vld [vmem:[%s211 + $0x1a0] sm:$0xff]
        %v319 = vld [vmem:[%s211 + $0x1a8] sm:$0xff]
        %v320 = vld [vmem:[%s211 + $0x1b0] sm:$0xff]
        %v321 = vld [vmem:[%s211 + $0x1b8] sm:$0xff]
        %v322 = vld [vmem:[%s211 + $0x1c0] sm:$0xff]
        %v323 = vld [vmem:[%s211 + $0x1c8] sm:$0xff]
        %v324 = vld [vmem:[%s211 + $0x1d0] sm:$0xff]
        %v325 = vld [vmem:[%s211 + $0x1d8] sm:$0xff]
        %v326 = vld [vmem:[%s211 + $0x1e0] sm:$0xff]
        %v327 = vld [vmem:[%s211 + $0x1e8] sm:$0xff]
        %v328 = vld [vmem:[%s211 + $0x1f0] sm:$0xff]
        %v329 = vld [vmem:[%s211 + $0x1f8] sm:$0xff]
        %v330 = vld [vmem:[%s211 + $0x200] sm:$0xff]
        %v331 = vld [vmem:[%s211 + $0x208] sm:$0xff]
        %v332 = vld [vmem:[%s211 + $0x210] sm:$0xff]
        %v333 = vld [vmem:[%s211 + $0x218] sm:$0xff]
        %v334 = vld [vmem:[%s211 + $0x220] sm:$0xff]
        %v335 = vld [vmem:[%s211 + $0x228] sm:$0xff]
        %v336 = vld [vmem:[%s211 + $0x230] sm:$0xff]
        %v337 = vld [vmem:[%s211 + $0x238] sm:$0xff]
        %v338 = vld [vmem:[%s211 + $0x240] sm:$0xff]
        %v339 = vld [vmem:[%s211 + $0x248] sm:$0xff]
        %v340 = vld [vmem:[%s211 + $0x250] sm:$0xff]
        %v341 = vld [vmem:[%s211 + $0x258] sm:$0xff]
        %v342 = vld [vmem:[%s211 + $0x260] sm:$0xff]
        %v343 = vld [vmem:[%s211 + $0x268] sm:$0xff]
        %v344 = vld [vmem:[%s211 + $0x270] sm:$0xff]
        %v345 = vld [vmem:[%s211 + $0x278] sm:$0xff]
        %v346 = vld [vmem:[%s211 + $0x280] sm:$0xff]
        %v347 = vld [vmem:[%s211 + $0x288] sm:$0xff]
        %v348 = vld [vmem:[%s211 + $0x290] sm:$0xff]
        %v349 = vld [vmem:[%s211 + $0x298] sm:$0xff]
        %v350 = vld [vmem:[%s211 + $0x2a0] sm:$0xff]
        %v351 = vld [vmem:[%s211 + $0x2a8] sm:$0xff]
        %v352 = vld [vmem:[%s211 + $0x2b0] sm:$0xff]
        %v353 = vld [vmem:[%s211 + $0x2b8] sm:$0xff]
        %v354 = vld [vmem:[%s211 + $0x2c0] sm:$0xff]
        %v355 = vld [vmem:[%s211 + $0x2c8] sm:$0xff]
        %v356 = vld [vmem:[%s211 + $0x2d0] sm:$0xff]
        %v357 = vld [vmem:[%s211 + $0x2d8] sm:$0xff]
        %v358 = vld [vmem:[%s211 + $0x2e0] sm:$0xff]
        %v359 = vld [vmem:[%s211 + $0x2e8] sm:$0xff]
        %v360 = vld [vmem:[%s211 + $0x2f0] sm:$0xff]
        %v361 = vld [vmem:[%s211 + $0x2f8] sm:$0xff]
        %v362 = vld [vmem:[%s211 + $0x300] sm:$0xff]
        %v363 = vld [vmem:[%s211 + $0x308] sm:$0xff]
        %v364 = vld [vmem:[%s211 + $0x310] sm:$0xff]
        %v365 = vld [vmem:[%s211 + $0x318] sm:$0xff]
        %v366 = vld [vmem:[%s211 + $0x320] sm:$0xff]
        %v367 = vld [vmem:[%s211 + $0x328] sm:$0xff]
        %v368 = vld [vmem:[%s211 + $0x330] sm:$0xff]
        %v369 = vld [vmem:[%s211 + $0x338] sm:$0xff]
        %v370 = vld [vmem:[%s211 + $0x340] sm:$0xff]
        %v371 = vld [vmem:[%s211 + $0x348] sm:$0xff]
        %v372 = vld [vmem:[%s211 + $0x350] sm:$0xff]
        %v373 = vld [vmem:[%s211 + $0x358] sm:$0xff]
        %v374 = vld [vmem:[%s211 + $0x360] sm:$0xff]
        %v375 = vld [vmem:[%s211 + $0x368] sm:$0xff]
        %v376 = vld [vmem:[%s211 + $0x370] sm:$0xff]
        %v377 = vld [vmem:[%s211 + $0x378] sm:$0xff]
        %v378 = vld [vmem:[%s211 + $0x380] sm:$0xff]
        %v379 = vld [vmem:[%s211 + $0x388] sm:$0xff]
        %v380 = vld [vmem:[%s211 + $0x390] sm:$0xff]
        %v381 = vld [vmem:[%s211 + $0x398] sm:$0xff]
        %v382 = vld [vmem:[%s211 + $0x3a0] sm:$0xff]
        %v383 = vld [vmem:[%s211 + $0x3a8] sm:$0xff]
        %v384 = vld [vmem:[%s211 + $0x3b0] sm:$0xff]
        %v385 = vld [vmem:[%s211 + $0x3b8] sm:$0xff]
        %v386 = vld [vmem:[%s211 + $0x3c0] sm:$0xff]
        %v387 = vld [vmem:[%s211 + $0x3c8] sm:$0xff]
        %v388 = vld [vmem:[%s211 + $0x3d0] sm:$0xff]
        %v389 = vld [vmem:[%s211 + $0x3d8] sm:$0xff]
        %v390 = vld [vmem:[%s211 + $0x3e0] sm:$0xff]
        %v391 = vld [vmem:[%s211 + $0x3e8] sm:$0xff]
        %v392 = vld [vmem:[%s211 + $0x3f0] sm:$0xff]
        %v393 = vld [vmem:[%s211 + $0x3f8] sm:$0xff]
        %v394 = vld [vmem:[%s211 + $0x400] sm:$0xff]
        %v395 = vld [vmem:[%s211 + $0x408] sm:$0xff]
        %v396 = vld [vmem:[%s211 + $0x410] sm:$0xff]
        %v397 = vld [vmem:[%s211 + $0x418] sm:$0xff]
        %v398 = vld [vmem:[%s211 + $0x420] sm:$0xff]
        %v399 = vld [vmem:[%s211 + $0x428] sm:$0xff]
        %v400 = vld [vmem:[%s211 + $0x430] sm:$0xff]
        %v401 = vld [vmem:[%s211 + $0x438] sm:$0xff]
        %v402 = vld [vmem:[%s211 + $0x440] sm:$0xff]
        %v403 = vld [vmem:[%s211 + $0x448] sm:$0xff]
        %v404 = vld [vmem:[%s211 + $0x450] sm:$0xff]
        %v405 = vld [vmem:[%s211 + $0x458] sm:$0xff]
        %v406 = vld [vmem:[%s211 + $0x460] sm:$0xff]
        %v407 = vld [vmem:[%s211 + $0x468] sm:$0xff]
        %v408 = vld [vmem:[%s211 + $0x470] sm:$0xff]
        %v409 = vld [vmem:[%s211 + $0x478] sm:$0xff]
        %v410 = vld [vmem:[%s211 + $0x480] sm:$0xff]
        %v411 = vld [vmem:[%s211 + $0x488] sm:$0xff]
        %v412 = vld [vmem:[%s211 + $0x490] sm:$0xff]
        %v413 = vld [vmem:[%s211 + $0x498] sm:$0xff]
        %v414 = vld [vmem:[%s211 + $0x4a0] sm:$0xff]
        %v415 = vld [vmem:[%s211 + $0x4a8] sm:$0xff]
        %v416 = vld [vmem:[%s211 + $0x4b0] sm:$0xff]
        %v417 = vld [vmem:[%s211 + $0x4b8] sm:$0xff]
        %v418 = vld [vmem:[%s211 + $0x4c0] sm:$0xff]
        %v419 = vld [vmem:[%s211 + $0x4c8] sm:$0xff]
        %v420 = vld [vmem:[%s211 + $0x4d0] sm:$0xff]
        %v421 = vld [vmem:[%s211 + $0x4d8] sm:$0xff]
        %v422 = vld [vmem:[%s211 + $0x4e0] sm:$0xff]
        %v423 = vld [vmem:[%s211 + $0x4e8] sm:$0xff]
        %v424 = vld [vmem:[%s211 + $0x4f0] sm:$0xff]
        %v425 = vld [vmem:[%s211 + $0x4f8] sm:$0xff]
        %v426 = vld [vmem:[%s211 + $0x500] sm:$0xff]
        %v427 = vld [vmem:[%s211 + $0x508] sm:$0xff]
        %v428 = vld [vmem:[%s211 + $0x510] sm:$0xff]
        %v429 = vld [vmem:[%s211 + $0x518] sm:$0xff]
        %v430 = vld [vmem:[%s211 + $0x520] sm:$0xff]
        %v431 = vld [vmem:[%s211 + $0x528] sm:$0xff]
        %v432 = vld [vmem:[%s211 + $0x530] sm:$0xff]
        %v433 = vld [vmem:[%s211 + $0x538] sm:$0xff]
        %v434 = vld [vmem:[%s211 + $0x540] sm:$0xff]
        %v435 = vld [vmem:[%s211 + $0x548] sm:$0xff]
        %v436 = vld [vmem:[%s211 + $0x550] sm:$0xff]
        %v437 = vld [vmem:[%s211 + $0x558] sm:$0xff]
        %v438 = vld [vmem:[%s211 + $0x560] sm:$0xff]
        %v439 = vld [vmem:[%s211 + $0x568] sm:$0xff]
        %v440 = vld [vmem:[%s211 + $0x570] sm:$0xff]
        %v441 = vld [vmem:[%s211 + $0x578] sm:$0xff]
        %v442 = vld [vmem:[%s211 + $0x580] sm:$0xff]
        %v443 = vld [vmem:[%s211 + $0x588] sm:$0xff]
        %v444 = vld [vmem:[%s211 + $0x590] sm:$0xff]
        %v445 = vld [vmem:[%s211 + $0x598] sm:$0xff]
        %v446 = vld [vmem:[%s211 + $0x5a0] sm:$0xff]
        %v447 = vld [vmem:[%s211 + $0x5a8] sm:$0xff]
        %v448 = vld [vmem:[%s211 + $0x5b0] sm:$0xff]
        %v449 = vld [vmem:[%s211 + $0x5b8] sm:$0xff]
        %v450 = vld [vmem:[%s211 + $0x5c0] sm:$0xff]
        %v451 = vld [vmem:[%s211 + $0x5c8] sm:$0xff]
        %v452 = vld [vmem:[%s211 + $0x5d0] sm:$0xff]
        %v453 = vld [vmem:[%s211 + $0x5d8] sm:$0xff]
        %v454 = vld [vmem:[%s211 + $0x5e0] sm:$0xff]
        %v455 = vld [vmem:[%s211 + $0x5e8] sm:$0xff]
        %v456 = vld [vmem:[%s211 + $0x5f0] sm:$0xff]
        %v457 = vld [vmem:[%s211 + $0x5f8] sm:$0xff]
        %v458 = vld [vmem:[%s211 + $0x600] sm:$0xff]
        %v459 = vld [vmem:[%s211 + $0x608] sm:$0xff]
        %v460 = vld [vmem:[%s211 + $0x610] sm:$0xff]
        %v461 = vld [vmem:[%s211 + $0x618] sm:$0xff]
        %v462 = vld [vmem:[%s211 + $0x620] sm:$0xff]
        %v463 = vld [vmem:[%s211 + $0x628] sm:$0xff]
        %v464 = vld [vmem:[%s211 + $0x630] sm:$0xff]
        %v465 = vld [vmem:[%s211 + $0x638] sm:$0xff]
        %v466 = vld [vmem:[%s211 + $0x640] sm:$0xff]
        %v467 = vld [vmem:[%s211 + $0x648] sm:$0xff]
        %v468 = vld [vmem:[%s211 + $0x650] sm:$0xff]
        %v469 = vld [vmem:[%s211 + $0x658] sm:$0xff]
        %v470 = vld [vmem:[%s211 + $0x660] sm:$0xff]
        %v471 = vld [vmem:[%s211 + $0x668] sm:$0xff]
        %v472 = vld [vmem:[%s211 + $0x670] sm:$0xff]
        %v473 = vld [vmem:[%s211 + $0x678] sm:$0xff]
        %v474 = vld [vmem:[%s211 + $0x680] sm:$0xff]
        %v475 = vld [vmem:[%s211 + $0x688] sm:$0xff]
        %v476 = vld [vmem:[%s211 + $0x690] sm:$0xff]
        %v477 = vld [vmem:[%s211 + $0x698] sm:$0xff]
        %v478 = vld [vmem:[%s211 + $0x6a0] sm:$0xff]
        %v479 = vld [vmem:[%s211 + $0x6a8] sm:$0xff]
        %v480 = vld [vmem:[%s211 + $0x6b0] sm:$0xff]
        %v481 = vld [vmem:[%s211 + $0x6b8] sm:$0xff]
        %v482 = vld [vmem:[%s211 + $0x6c0] sm:$0xff]
        %v483 = vld [vmem:[%s211 + $0x6c8] sm:$0xff]
        %v484 = vld [vmem:[%s211 + $0x6d0] sm:$0xff]
        %v485 = vld [vmem:[%s211 + $0x6d8] sm:$0xff]
        %v486 = vld [vmem:[%s211 + $0x6e0] sm:$0xff]
        %v487 = vld [vmem:[%s211 + $0x6e8] sm:$0xff]
        %v488 = vld [vmem:[%s211 + $0x6f0] sm:$0xff]
        %v489 = vld [vmem:[%s211 + $0x6f8] sm:$0xff]
        %v490 = vld [vmem:[%s211 + $0x700] sm:$0xff]
        %v491 = vld [vmem:[%s211 + $0x708] sm:$0xff]
        %v492 = vld [vmem:[%s211 + $0x710] sm:$0xff]
        %v493 = vld [vmem:[%s211 + $0x718] sm:$0xff]
        %v494 = vld [vmem:[%s211 + $0x720] sm:$0xff]
        %v495 = vld [vmem:[%s211 + $0x728] sm:$0xff]
        %v496 = vld [vmem:[%s211 + $0x730] sm:$0xff]
        %v497 = vld [vmem:[%s211 + $0x738] sm:$0xff]
        %v498 = vld [vmem:[%s211 + $0x740] sm:$0xff]
        %v499 = vld [vmem:[%s211 + $0x748] sm:$0xff]
        %v500 = vld [vmem:[%s211 + $0x750] sm:$0xff]
        %v501 = vld [vmem:[%s211 + $0x758] sm:$0xff]
        %v502 = vld [vmem:[%s211 + $0x760] sm:$0xff]
        %v503 = vld [vmem:[%s211 + $0x768] sm:$0xff]
        %v504 = vld [vmem:[%s211 + $0x770] sm:$0xff]
        %v505 = vld [vmem:[%s211 + $0x778] sm:$0xff]
        %v506 = vld [vmem:[%s211 + $0x780] sm:$0xff]
        %v507 = vld [vmem:[%s211 + $0x788] sm:$0xff]
        %v508 = vld [vmem:[%s211 + $0x790] sm:$0xff]
        %v509 = vld [vmem:[%s211 + $0x798] sm:$0xff]
        %v510 = vld [vmem:[%s211 + $0x7a0] sm:$0xff]
        %v511 = vld [vmem:[%s211 + $0x7a8] sm:$0xff]
        %v512 = vld [vmem:[%s211 + $0x7b0] sm:$0xff]
        %v513 = vld [vmem:[%s211 + $0x7b8] sm:$0xff]
        %v514 = vld [vmem:[%s211 + $0x7c0] sm:$0xff]
        %v515 = vld [vmem:[%s211 + $0x7c8] sm:$0xff]
        %v516 = vld [vmem:[%s211 + $0x7d0] sm:$0xff]
        %v517 = vld [vmem:[%s211 + $0x7d8] sm:$0xff]
        %v518 = vld [vmem:[%s211 + $0x7e0] sm:$0xff]
        %v519 = vld [vmem:[%s211 + $0x7e8] sm:$0xff]
        %v520 = vld [vmem:[%s211 + $0x7f0] sm:$0xff]
        %v521 = vld [vmem:[%s211 + $0x7f8] sm:$0xff]
        %v522 = vld [vmem:[%s211 + $0x800] sm:$0xff]
        %v523 = vld [vmem:[%s211 + $0x808] sm:$0xff]
        %v524 = vld [vmem:[%s211 + $0x810] sm:$0xff]
        %v525 = vld [vmem:[%s211 + $0x818] sm:$0xff]
        %v526 = vld [vmem:[%s211 + $0x820] sm:$0xff]
        %v527 = vld [vmem:[%s211 + $0x828] sm:$0xff]
        %v528 = vld [vmem:[%s211 + $0x830] sm:$0xff]
        %v529 = vld [vmem:[%s211 + $0x838] sm:$0xff]
        %v530 = vld [vmem:[%s211 + $0x840] sm:$0xff]
        %v531 = vld [vmem:[%s211 + $0x848] sm:$0xff]
        %v532 = vld [vmem:[%s211 + $0x850] sm:$0xff]
        %v533 = vld [vmem:[%s211 + $0x858] sm:$0xff]
        %v534 = vld [vmem:[%s211 + $0x860] sm:$0xff]
        %v535 = vld [vmem:[%s211 + $0x868] sm:$0xff]
        %v536 = vld [vmem:[%s211 + $0x870] sm:$0xff]
        %v537 = vld [vmem:[%s211 + $0x878] sm:$0xff]
        %v538 = vld [vmem:[%s211 + $0x880] sm:$0xff]
        %v539 = vld [vmem:[%s211 + $0x888] sm:$0xff]
        %v540 = vld [vmem:[%s211 + $0x890] sm:$0xff]
        %v541 = vld [vmem:[%s211 + $0x898] sm:$0xff]
        %v542 = vld [vmem:[%s211 + $0x8a0] sm:$0xff]
        %v543 = vld [vmem:[%s211 + $0x8a8] sm:$0xff]
        %v544 = vld [vmem:[%s211 + $0x8b0] sm:$0xff]
        %v545 = vld [vmem:[%s211 + $0x8b8] sm:$0xff]
        %v546 = vld [vmem:[%s211 + $0x8c0] sm:$0xff]
        %v547 = vld [vmem:[%s211 + $0x8c8] sm:$0xff]
        %v548 = vld [vmem:[%s211 + $0x8d0] sm:$0xff]
        %v549 = vld [vmem:[%s211 + $0x8d8] sm:$0xff]
        %v550 = vld [vmem:[%s211 + $0x8e0] sm:$0xff]
        %v551 = vld [vmem:[%s211 + $0x8e8] sm:$0xff]
        %v552 = vld [vmem:[%s211 + $0x8f0] sm:$0xff]
        %v553 = vld [vmem:[%s211 + $0x8f8] sm:$0xff]
        %v554 = vld [vmem:[%s211 + $0x900] sm:$0xff]
        %v555 = vld [vmem:[%s211 + $0x908] sm:$0xff]
        %v556 = vld [vmem:[%s211 + $0x910] sm:$0xff]
        %v557 = vld [vmem:[%s211 + $0x918] sm:$0xff]
        %v558 = vld [vmem:[%s211 + $0x920] sm:$0xff]
        %v559 = vld [vmem:[%s211 + $0x928] sm:$0xff]
        %v560 = vld [vmem:[%s211 + $0x930] sm:$0xff]
        %v561 = vld [vmem:[%s211 + $0x938] sm:$0xff]
        %v562 = vld [vmem:[%s211 + $0x940] sm:$0xff]
        %v563 = vld [vmem:[%s211 + $0x948] sm:$0xff]
        %v564 = vld [vmem:[%s211 + $0x950] sm:$0xff]
        %v565 = vld [vmem:[%s211 + $0x958] sm:$0xff]
        %v566 = vld [vmem:[%s211 + $0x960] sm:$0xff]
        %v567 = vld [vmem:[%s211 + $0x968] sm:$0xff]
        %v568 = vld [vmem:[%s211 + $0x970] sm:$0xff]
        %v569 = vld [vmem:[%s211 + $0x978] sm:$0xff]
        %v570 = vld [vmem:[%s211 + $0x980] sm:$0xff]
        %v571 = vld [vmem:[%s211 + $0x988] sm:$0xff]
        %v572 = vld [vmem:[%s211 + $0x990] sm:$0xff]
        %v573 = vld [vmem:[%s211 + $0x998] sm:$0xff]
        %v574 = vld [vmem:[%s211 + $0x9a0] sm:$0xff]
        %v575 = vld [vmem:[%s211 + $0x9a8] sm:$0xff]
        %v576 = vld [vmem:[%s211 + $0x9b0] sm:$0xff]
        %v577 = vld [vmem:[%s211 + $0x9b8] sm:$0xff]
        %v578 = vld [vmem:[%s211 + $0x9c0] sm:$0xff]
        %v579 = vld [vmem:[%s211 + $0x9c8] sm:$0xff]
        %v580 = vld [vmem:[%s211 + $0x9d0] sm:$0xff]
        %v581 = vld [vmem:[%s211 + $0x9d8] sm:$0xff]
        %v582 = vld [vmem:[%s211 + $0x9e0] sm:$0xff]
        %v583 = vld [vmem:[%s211 + $0x9e8] sm:$0xff]
        %v584 = vld [vmem:[%s211 + $0x9f0] sm:$0xff]
        %v585 = vld [vmem:[%s211 + $0x9f8] sm:$0xff]
        %v586 = vld [vmem:[%s211 + $0xa00] sm:$0xff]
        %v587 = vld [vmem:[%s211 + $0xa08] sm:$0xff]
        %v588 = vld [vmem:[%s211 + $0xa10] sm:$0xff]
        %v589 = vld [vmem:[%s211 + $0xa18] sm:$0xff]
        %v590 = vld [vmem:[%s211 + $0xa20] sm:$0xff]
        %v591 = vld [vmem:[%s211 + $0xa28] sm:$0xff]
        %v592 = vld [vmem:[%s211 + $0xa30] sm:$0xff]
        %v593 = vld [vmem:[%s211 + $0xa38] sm:$0xff]
        %v594 = vld [vmem:[%s211 + $0xa40] sm:$0xff]
        %v595 = vld [vmem:[%s211 + $0xa48] sm:$0xff]
        %v596 = vld [vmem:[%s211 + $0xa50] sm:$0xff]
        %v597 = vld [vmem:[%s211 + $0xa58] sm:$0xff]
        %v598 = vld [vmem:[%s211 + $0xa60] sm:$0xff]
        %v599 = vld [vmem:[%s211 + $0xa68] sm:$0xff]
        %v600 = vld [vmem:[%s211 + $0xa70] sm:$0xff]
        %v601 = vld [vmem:[%s211 + $0xa78] sm:$0xff]
        %v602 = vld [vmem:[%s211 + $0xa80] sm:$0xff]
        %v603 = vld [vmem:[%s211 + $0xa88] sm:$0xff]
        %v604 = vld [vmem:[%s211 + $0xa90] sm:$0xff]
        %v605 = vld [vmem:[%s211 + $0xa98] sm:$0xff]
        %v606 = vld [vmem:[%s211 + $0xaa0] sm:$0xff]
        %v607 = vld [vmem:[%s211 + $0xaa8] sm:$0xff]
        %v608 = vld [vmem:[%s211 + $0xab0] sm:$0xff]
        %v609 = vld [vmem:[%s211 + $0xab8] sm:$0xff]
        %v610 = vld [vmem:[%s211 + $0xac0] sm:$0xff]
        %v611 = vld [vmem:[%s211 + $0xac8] sm:$0xff]
        %v612 = vld [vmem:[%s211 + $0xad0] sm:$0xff]
        %v613 = vld [vmem:[%s211 + $0xad8] sm:$0xff]
        %v614 = vld [vmem:[%s211 + $0xae0] sm:$0xff]
        %v615 = vld [vmem:[%s211 + $0xae8] sm:$0xff]
        %v616 = vld [vmem:[%s211 + $0xaf0] sm:$0xff]
        %v617 = vld [vmem:[%s211 + $0xaf8] sm:$0xff]
        %v618 = vld [vmem:[%s211 + $0xb00] sm:$0xff]
        %v619 = vld [vmem:[%s211 + $0xb08] sm:$0xff]
        %v620 = vld [vmem:[%s211 + $0xb10] sm:$0xff]
        %v621 = vld [vmem:[%s211 + $0xb18] sm:$0xff]
        %v622 = vld [vmem:[%s211 + $0xb20] sm:$0xff]
        %v623 = vld [vmem:[%s211 + $0xb28] sm:$0xff]
        %v624 = vld [vmem:[%s211 + $0xb30] sm:$0xff]
        %v625 = vld [vmem:[%s211 + $0xb38] sm:$0xff]
        %v626 = vld [vmem:[%s211 + $0xb40] sm:$0xff]
        %v627 = vld [vmem:[%s211 + $0xb48] sm:$0xff]
        %v628 = vld [vmem:[%s211 + $0xb50] sm:$0xff]
        %v629 = vld [vmem:[%s211 + $0xb58] sm:$0xff]
        %v630 = vld [vmem:[%s211 + $0xb60] sm:$0xff]
        %v631 = vld [vmem:[%s211 + $0xb68] sm:$0xff]
        %v632 = vld [vmem:[%s211 + $0xb70] sm:$0xff]
        %v633 = vld [vmem:[%s211 + $0xb78] sm:$0xff]
        %v634 = vld [vmem:[%s211 + $0xb80] sm:$0xff]
        %v635 = vld [vmem:[%s211 + $0xb88] sm:$0xff]
        %v636 = vld [vmem:[%s211 + $0xb90] sm:$0xff]
        %v637 = vld [vmem:[%s211 + $0xb98] sm:$0xff]
        %v638 = vld [vmem:[%s211 + $0xba0] sm:$0xff]
        %v639 = vld [vmem:[%s211 + $0xba8] sm:$0xff]
        %v640 = vld [vmem:[%s211 + $0xbb0] sm:$0xff]
        %v641 = vld [vmem:[%s211 + $0xbb8] sm:$0xff]
        %v642 = vld [vmem:[%s211 + $0xbc0] sm:$0xff]
        %v643 = vld [vmem:[%s211 + $0xbc8] sm:$0xff]
        %v644 = vld [vmem:[%s211 + $0xbd0] sm:$0xff]
        %v645 = vld [vmem:[%s211 + $0xbd8] sm:$0xff]
        %v646 = vld [vmem:[%s211 + $0xbe0] sm:$0xff]
        %v647 = vld [vmem:[%s211 + $0xbe8] sm:$0xff]
        %v648 = vld [vmem:[%s211 + $0xbf0] sm:$0xff]
        %v649 = vld [vmem:[%s211 + $0xbf8] sm:$0xff]
        %v650 = vld [vmem:[%s211 + $0xc00] sm:$0xff]
        %v651 = vld [vmem:[%s211 + $0xc08] sm:$0xff]
        %v652 = vld [vmem:[%s211 + $0xc10] sm:$0xff]
        %v653 = vld [vmem:[%s211 + $0xc18] sm:$0xff]
        %v654 = vld [vmem:[%s211 + $0xc20] sm:$0xff]
        %v655 = vld [vmem:[%s211 + $0xc28] sm:$0xff]
        %v656 = vld [vmem:[%s211 + $0xc30] sm:$0xff]
        %v657 = vld [vmem:[%s211 + $0xc38] sm:$0xff]
        %v658 = vld [vmem:[%s211 + $0xc40] sm:$0xff]
        %v659 = vld [vmem:[%s211 + $0xc48] sm:$0xff]
        %v660 = vld [vmem:[%s211 + $0xc50] sm:$0xff]
        %v661 = vld [vmem:[%s211 + $0xc58] sm:$0xff]
        %v662 = vld [vmem:[%s211 + $0xc60] sm:$0xff]
        %v663 = vld [vmem:[%s211 + $0xc68] sm:$0xff]
        %v664 = vld [vmem:[%s211 + $0xc70] sm:$0xff]
        %v665 = vld [vmem:[%s211 + $0xc78] sm:$0xff]
        %v666 = vld [vmem:[%s211 + $0xc80] sm:$0xff]
        %v667 = vld [vmem:[%s211 + $0xc88] sm:$0xff]
        %v668 = vld [vmem:[%s211 + $0xc90] sm:$0xff]
        %v669 = vld [vmem:[%s211 + $0xc98] sm:$0xff]
        %v670 = vld [vmem:[%s211 + $0xca0] sm:$0xff]
        %v671 = vld [vmem:[%s211 + $0xca8] sm:$0xff]
        %v672 = vld [vmem:[%s211 + $0xcb0] sm:$0xff]
        %v673 = vld [vmem:[%s211 + $0xcb8] sm:$0xff]
        %v674 = vld [vmem:[%s211 + $0xcc0] sm:$0xff]
        %v675 = vld [vmem:[%s211 + $0xcc8] sm:$0xff]
        %v676 = vld [vmem:[%s211 + $0xcd0] sm:$0xff]
        %v677 = vld [vmem:[%s211 + $0xcd8] sm:$0xff]
        %v678 = vld [vmem:[%s211 + $0xce0] sm:$0xff]
        %v679 = vld [vmem:[%s211 + $0xce8] sm:$0xff]
        %v680 = vld [vmem:[%s211 + $0xcf0] sm:$0xff]
        %v681 = vld [vmem:[%s211 + $0xcf8] sm:$0xff]
        %v682 = vld [vmem:[%s211 + $0xd00] sm:$0xff]
        %v683 = vld [vmem:[%s211 + $0xd08] sm:$0xff]
        %v684 = vld [vmem:[%s211 + $0xd10] sm:$0xff]
        %v685 = vld [vmem:[%s211 + $0xd18] sm:$0xff]
        %v686 = vld [vmem:[%s211 + $0xd20] sm:$0xff]
        %v687 = vld [vmem:[%s211 + $0xd28] sm:$0xff]
        %v688 = vld [vmem:[%s211 + $0xd30] sm:$0xff]
        %v689 = vld [vmem:[%s211 + $0xd38] sm:$0xff]
        %v690 = vld [vmem:[%s211 + $0xd40] sm:$0xff]
        %v691 = vld [vmem:[%s211 + $0xd48] sm:$0xff]
        %v692 = vld [vmem:[%s211 + $0xd50] sm:$0xff]
        %v693 = vld [vmem:[%s211 + $0xd58] sm:$0xff]
        %v694 = vld [vmem:[%s211 + $0xd60] sm:$0xff]
        %v695 = vld [vmem:[%s211 + $0xd68] sm:$0xff]
        %v696 = vld [vmem:[%s211 + $0xd70] sm:$0xff]
        %v697 = vld [vmem:[%s211 + $0xd78] sm:$0xff]
        %v698 = vld [vmem:[%s211 + $0xd80] sm:$0xff]
        %v699 = vld [vmem:[%s211 + $0xd88] sm:$0xff]
        %v700 = vld [vmem:[%s211 + $0xd90] sm:$0xff]
        %v701 = vld [vmem:[%s211 + $0xd98] sm:$0xff]
        %v702 = vld [vmem:[%s211 + $0xda0] sm:$0xff]
        %v703 = vld [vmem:[%s211 + $0xda8] sm:$0xff]
        %v704 = vld [vmem:[%s211 + $0xdb0] sm:$0xff]
        %v705 = vld [vmem:[%s211 + $0xdb8] sm:$0xff]
        %v706 = vld [vmem:[%s211 + $0xdc0] sm:$0xff]
        %v707 = vld [vmem:[%s211 + $0xdc8] sm:$0xff]
        %v708 = vld [vmem:[%s211 + $0xdd0] sm:$0xff]
        %v709 = vld [vmem:[%s211 + $0xdd8] sm:$0xff]
        %v710 = vld [vmem:[%s211 + $0xde0] sm:$0xff]
        %v711 = vld [vmem:[%s211 + $0xde8] sm:$0xff]
        %v712 = vld [vmem:[%s211 + $0xdf0] sm:$0xff]
        %v713 = vld [vmem:[%s211 + $0xdf8] sm:$0xff]
        %v714 = vld [vmem:[%s211 + $0xe00] sm:$0xff]
        %v715 = vld [vmem:[%s211 + $0xe08] sm:$0xff]
        %v716 = vld [vmem:[%s211 + $0xe10] sm:$0xff]
        %v717 = vld [vmem:[%s211 + $0xe18] sm:$0xff]
        %v718 = vld [vmem:[%s211 + $0xe20] sm:$0xff]
        %v719 = vld [vmem:[%s211 + $0xe28] sm:$0xff]
        %v720 = vld [vmem:[%s211 + $0xe30] sm:$0xff]
        %v721 = vld [vmem:[%s211 + $0xe38] sm:$0xff]
        %v722 = vld [vmem:[%s211 + $0xe40] sm:$0xff]
        %v723 = vld [vmem:[%s211 + $0xe48] sm:$0xff]
        %v724 = vld [vmem:[%s211 + $0xe50] sm:$0xff]
        %v725 = vld [vmem:[%s211 + $0xe58] sm:$0xff]
        %v726 = vld [vmem:[%s211 + $0xe60] sm:$0xff]
        %v727 = vld [vmem:[%s211 + $0xe68] sm:$0xff]
        %v728 = vld [vmem:[%s211 + $0xe70] sm:$0xff]
        %v729 = vld [vmem:[%s211 + $0xe78] sm:$0xff]
        %v730 = vld [vmem:[%s211 + $0xe80] sm:$0xff]
        %v731 = vld [vmem:[%s211 + $0xe88] sm:$0xff]
        %v732 = vld [vmem:[%s211 + $0xe90] sm:$0xff]
        %v733 = vld [vmem:[%s211 + $0xe98] sm:$0xff]
        %v734 = vld [vmem:[%s211 + $0xea0] sm:$0xff]
        %v735 = vld [vmem:[%s211 + $0xea8] sm:$0xff]
        %v736 = vld [vmem:[%s211 + $0xeb0] sm:$0xff]
        %v737 = vld [vmem:[%s211 + $0xeb8] sm:$0xff]
        %v738 = vld [vmem:[%s211 + $0xec0] sm:$0xff]
        %v739 = vld [vmem:[%s211 + $0xec8] sm:$0xff]
        %v740 = vld [vmem:[%s211 + $0xed0] sm:$0xff]
        %v741 = vld [vmem:[%s211 + $0xed8] sm:$0xff]
        %v742 = vld [vmem:[%s211 + $0xee0] sm:$0xff]
        %v743 = vld [vmem:[%s211 + $0xee8] sm:$0xff]
        %v744 = vld [vmem:[%s211 + $0xef0] sm:$0xff]
        %v745 = vld [vmem:[%s211 + $0xef8] sm:$0xff]
        %v746 = vld [vmem:[%s211 + $0xf00] sm:$0xff]
        %v747 = vld [vmem:[%s211 + $0xf08] sm:$0xff]
        %v748 = vld [vmem:[%s211 + $0xf10] sm:$0xff]
        %v749 = vld [vmem:[%s211 + $0xf18] sm:$0xff]
        %v750 = vld [vmem:[%s211 + $0xf20] sm:$0xff]
        %v751 = vld [vmem:[%s211 + $0xf28] sm:$0xff]
        %v752 = vld [vmem:[%s211 + $0xf30] sm:$0xff]
        %v753 = vld [vmem:[%s211 + $0xf38] sm:$0xff]
        %v754 = vld [vmem:[%s211 + $0xf40] sm:$0xff]
        %v755 = vld [vmem:[%s211 + $0xf48] sm:$0xff]
        %v756 = vld [vmem:[%s211 + $0xf50] sm:$0xff]
        %v757 = vld [vmem:[%s211 + $0xf58] sm:$0xff]
        %v758 = vld [vmem:[%s211 + $0xf60] sm:$0xff]
        %v759 = vld [vmem:[%s211 + $0xf68] sm:$0xff]
        %v760 = vld [vmem:[%s211 + $0xf70] sm:$0xff]
        %v761 = vld [vmem:[%s211 + $0xf78] sm:$0xff]
        %v762 = vld [vmem:[%s211 + $0xf80] sm:$0xff]
        %v763 = vld [vmem:[%s211 + $0xf88] sm:$0xff]
        %v764 = vld [vmem:[%s211 + $0xf90] sm:$0xff]
        %v765 = vld [vmem:[%s211 + $0xf98] sm:$0xff]
        %v766 = vld [vmem:[%s211 + $0xfa0] sm:$0xff]
        %v767 = vld [vmem:[%s211 + $0xfa8] sm:$0xff]
        %v768 = vld [vmem:[%s211 + $0xfb0] sm:$0xff]
        %v769 = vld [vmem:[%s211 + $0xfb8] sm:$0xff]
        %v770 = vld [vmem:[%s211 + $0xfc0] sm:$0xff]
        %v771 = vld [vmem:[%s211 + $0xfc8] sm:$0xff]
        %v772 = vld [vmem:[%s211 + $0xfd0] sm:$0xff]
        %v773 = vld [vmem:[%s211 + $0xfd8] sm:$0xff]
        %v774 = vld [vmem:[%s211 + $0xfe0] sm:$0xff]
        %v775 = vld [vmem:[%s211 + $0xfe8] sm:$0xff]
        %v776 = vld [vmem:[%s211 + $0xff0] sm:$0xff]
        %v777 = vld [vmem:[%s211 + $0xff8] sm:$0xff]
        %v1290 = vunpack.c.l.b16 %v266
        %v1291 = vunpack.c.h.b16 %v266
        %v1292 = vunpack.c.l.b16 %v267
        %v1293 = vunpack.c.h.b16 %v267
        %v1294 = vunpack.c.l.b16 %v268
        %v1295 = vunpack.c.h.b16 %v268
        %v1296 = vunpack.c.l.b16 %v269
        %v1297 = vunpack.c.h.b16 %v269
        %v1298 = vunpack.c.l.b16 %v270
        %v1299 = vunpack.c.h.b16 %v270
        %v1300 = vunpack.c.l.b16 %v271
        %v1301 = vunpack.c.h.b16 %v271
        %v1302 = vunpack.c.l.b16 %v272
        %v1303 = vunpack.c.h.b16 %v272
        %v1304 = vunpack.c.l.b16 %v273
        %v1305 = vunpack.c.h.b16 %v273
        %v1306 = vunpack.c.l.b16 %v274
        %v1307 = vunpack.c.h.b16 %v274
        %v1308 = vunpack.c.l.b16 %v275
        %v1309 = vunpack.c.h.b16 %v275
        %v1310 = vunpack.c.l.b16 %v276
        %v1311 = vunpack.c.h.b16 %v276
        %v1312 = vunpack.c.l.b16 %v277
        %v1313 = vunpack.c.h.b16 %v277
        %v1314 = vunpack.c.l.b16 %v278
        %v1315 = vunpack.c.h.b16 %v278
        %v1316 = vunpack.c.l.b16 %v279
        %v1317 = vunpack.c.h.b16 %v279
        %v1318 = vunpack.c.l.b16 %v280
        %v1319 = vunpack.c.h.b16 %v280
        %v1320 = vunpack.c.l.b16 %v281
        %v1321 = vunpack.c.h.b16 %v281
        %v1322 = vunpack.c.l.b16 %v282
        %v1323 = vunpack.c.h.b16 %v282
        %v1324 = vunpack.c.l.b16 %v283
        %v1325 = vunpack.c.h.b16 %v283
        %v1326 = vunpack.c.l.b16 %v284
        %v1327 = vunpack.c.h.b16 %v284
        %v1328 = vunpack.c.l.b16 %v285
        %v1329 = vunpack.c.h.b16 %v285
        %v1330 = vunpack.c.l.b16 %v286
        %v1331 = vunpack.c.h.b16 %v286
        %v1332 = vunpack.c.l.b16 %v287
        %v1333 = vunpack.c.h.b16 %v287
        %v1334 = vunpack.c.l.b16 %v288
        %v1335 = vunpack.c.h.b16 %v288
        %v1336 = vunpack.c.l.b16 %v289
        %v1337 = vunpack.c.h.b16 %v289
        %v1338 = vunpack.c.l.b16 %v290
        %v1339 = vunpack.c.h.b16 %v290
        %v1340 = vunpack.c.l.b16 %v291
        %v1341 = vunpack.c.h.b16 %v291
        %v1342 = vunpack.c.l.b16 %v292
        %v1343 = vunpack.c.h.b16 %v292
        %v1344 = vunpack.c.l.b16 %v293
        %v1345 = vunpack.c.h.b16 %v293
        %v1346 = vunpack.c.l.b16 %v294
        %v1347 = vunpack.c.h.b16 %v294
        %v1348 = vunpack.c.l.b16 %v295
        %v1349 = vunpack.c.h.b16 %v295
        %v1350 = vunpack.c.l.b16 %v296
        %v1351 = vunpack.c.h.b16 %v296
        %v1352 = vunpack.c.l.b16 %v297
        %v1353 = vunpack.c.h.b16 %v297
        %v1354 = vunpack.c.l.b16 %v298
        %v1355 = vunpack.c.h.b16 %v298
        %v1356 = vunpack.c.l.b16 %v299
        %v1357 = vunpack.c.h.b16 %v299
        %v1358 = vunpack.c.l.b16 %v300
        %v1359 = vunpack.c.h.b16 %v300
        %v1360 = vunpack.c.l.b16 %v301
        %v1361 = vunpack.c.h.b16 %v301
        %v1362 = vunpack.c.l.b16 %v302
        %v1363 = vunpack.c.h.b16 %v302
        %v1364 = vunpack.c.l.b16 %v303
        %v1365 = vunpack.c.h.b16 %v303
        %v1366 = vunpack.c.l.b16 %v304
        %v1367 = vunpack.c.h.b16 %v304
        %v1368 = vunpack.c.l.b16 %v305
        %v1369 = vunpack.c.h.b16 %v305
        %v1370 = vunpack.c.l.b16 %v306
        %v1371 = vunpack.c.h.b16 %v306
        %v1372 = vunpack.c.l.b16 %v307
        %v1373 = vunpack.c.h.b16 %v307
        %v1374 = vunpack.c.l.b16 %v308
        %v1375 = vunpack.c.h.b16 %v308
        %v1376 = vunpack.c.l.b16 %v309
        %v1377 = vunpack.c.h.b16 %v309
        %v1378 = vunpack.c.l.b16 %v310
        %v1379 = vunpack.c.h.b16 %v310
        %v1380 = vunpack.c.l.b16 %v311
        %v1381 = vunpack.c.h.b16 %v311
        %v1382 = vunpack.c.l.b16 %v312
        %v1383 = vunpack.c.h.b16 %v312
        %v1384 = vunpack.c.l.b16 %v313
        %v1385 = vunpack.c.h.b16 %v313
        %v1386 = vunpack.c.l.b16 %v314
        %v1387 = vunpack.c.h.b16 %v314
        %v1388 = vunpack.c.l.b16 %v315
        %v1389 = vunpack.c.h.b16 %v315
        %v1390 = vunpack.c.l.b16 %v316
        %v1391 = vunpack.c.h.b16 %v316
        %v1392 = vunpack.c.l.b16 %v317
        %v1393 = vunpack.c.h.b16 %v317
        %v1394 = vunpack.c.l.b16 %v318
        %v1395 = vunpack.c.h.b16 %v318
        %v1396 = vunpack.c.l.b16 %v319
        %v1397 = vunpack.c.h.b16 %v319
        %v1398 = vunpack.c.l.b16 %v320
        %v1399 = vunpack.c.h.b16 %v320
        %v1400 = vunpack.c.l.b16 %v321
        %v1401 = vunpack.c.h.b16 %v321
        %v1402 = vunpack.c.l.b16 %v322
        %v1403 = vunpack.c.h.b16 %v322
        %v1404 = vunpack.c.l.b16 %v323
        %v1405 = vunpack.c.h.b16 %v323
        %v1406 = vunpack.c.l.b16 %v324
        %v1407 = vunpack.c.h.b16 %v324
        %v1408 = vunpack.c.l.b16 %v325
        %v1409 = vunpack.c.h.b16 %v325
        %v1410 = vunpack.c.l.b16 %v326
        %v1411 = vunpack.c.h.b16 %v326
        %v1412 = vunpack.c.l.b16 %v327
        %v1413 = vunpack.c.h.b16 %v327
        %v1414 = vunpack.c.l.b16 %v328
        %v1415 = vunpack.c.h.b16 %v328
        %v1416 = vunpack.c.l.b16 %v329
        %v1417 = vunpack.c.h.b16 %v329
        %v1418 = vunpack.c.l.b16 %v330
        %v1419 = vunpack.c.h.b16 %v330
        %v1420 = vunpack.c.l.b16 %v331
        %v1421 = vunpack.c.h.b16 %v331
        %v1422 = vunpack.c.l.b16 %v332
        %v1423 = vunpack.c.h.b16 %v332
        %v1424 = vunpack.c.l.b16 %v333
        %v1425 = vunpack.c.h.b16 %v333
        %v1426 = vunpack.c.l.b16 %v334
        %v1427 = vunpack.c.h.b16 %v334
        %v1428 = vunpack.c.l.b16 %v335
        %v1429 = vunpack.c.h.b16 %v335
        %v1430 = vunpack.c.l.b16 %v336
        %v1431 = vunpack.c.h.b16 %v336
        %v1432 = vunpack.c.l.b16 %v337
        %v1433 = vunpack.c.h.b16 %v337
        %v1434 = vunpack.c.l.b16 %v338
        %v1435 = vunpack.c.h.b16 %v338
        %v1436 = vunpack.c.l.b16 %v339
        %v1437 = vunpack.c.h.b16 %v339
        %v1438 = vunpack.c.l.b16 %v340
        %v1439 = vunpack.c.h.b16 %v340
        %v1440 = vunpack.c.l.b16 %v341
        %v1441 = vunpack.c.h.b16 %v341
        %v1442 = vunpack.c.l.b16 %v342
        %v1443 = vunpack.c.h.b16 %v342
        %v1444 = vunpack.c.l.b16 %v343
        %v1445 = vunpack.c.h.b16 %v343
        %v1446 = vunpack.c.l.b16 %v344
        %v1447 = vunpack.c.h.b16 %v344
        %v1448 = vunpack.c.l.b16 %v345
        %v1449 = vunpack.c.h.b16 %v345
        %v1450 = vunpack.c.l.b16 %v346
        %v1451 = vunpack.c.h.b16 %v346
        %v1452 = vunpack.c.l.b16 %v347
        %v1453 = vunpack.c.h.b16 %v347
        %v1454 = vunpack.c.l.b16 %v348
        %v1455 = vunpack.c.h.b16 %v348
        %v1456 = vunpack.c.l.b16 %v349
        %v1457 = vunpack.c.h.b16 %v349
        %v1458 = vunpack.c.l.b16 %v350
        %v1459 = vunpack.c.h.b16 %v350
        %v1460 = vunpack.c.l.b16 %v351
        %v1461 = vunpack.c.h.b16 %v351
        %v1462 = vunpack.c.l.b16 %v352
        %v1463 = vunpack.c.h.b16 %v352
        %v1464 = vunpack.c.l.b16 %v353
        %v1465 = vunpack.c.h.b16 %v353
        %v1466 = vunpack.c.l.b16 %v354
        %v1467 = vunpack.c.h.b16 %v354
        %v1468 = vunpack.c.l.b16 %v355
        %v1469 = vunpack.c.h.b16 %v355
        %v1470 = vunpack.c.l.b16 %v356
        %v1471 = vunpack.c.h.b16 %v356
        %v1472 = vunpack.c.l.b16 %v357
        %v1473 = vunpack.c.h.b16 %v357
        %v1474 = vunpack.c.l.b16 %v358
        %v1475 = vunpack.c.h.b16 %v358
        %v1476 = vunpack.c.l.b16 %v359
        %v1477 = vunpack.c.h.b16 %v359
        %v1478 = vunpack.c.l.b16 %v360
        %v1479 = vunpack.c.h.b16 %v360
        %v1480 = vunpack.c.l.b16 %v361
        %v1481 = vunpack.c.h.b16 %v361
        %v1482 = vunpack.c.l.b16 %v362
        %v1483 = vunpack.c.h.b16 %v362
        %v1484 = vunpack.c.l.b16 %v363
        %v1485 = vunpack.c.h.b16 %v363
        %v1486 = vunpack.c.l.b16 %v364
        %v1487 = vunpack.c.h.b16 %v364
        %v1488 = vunpack.c.l.b16 %v365
        %v1489 = vunpack.c.h.b16 %v365
        %v1490 = vunpack.c.l.b16 %v366
        %v1491 = vunpack.c.h.b16 %v366
        %v1492 = vunpack.c.l.b16 %v367
        %v1493 = vunpack.c.h.b16 %v367
        %v1494 = vunpack.c.l.b16 %v368
        %v1495 = vunpack.c.h.b16 %v368
        %v1496 = vunpack.c.l.b16 %v369
        %v1497 = vunpack.c.h.b16 %v369
        %v1498 = vunpack.c.l.b16 %v370
        %v1499 = vunpack.c.h.b16 %v370
        %v1500 = vunpack.c.l.b16 %v371
        %v1501 = vunpack.c.h.b16 %v371
        %v1502 = vunpack.c.l.b16 %v372
        %v1503 = vunpack.c.h.b16 %v372
        %v1504 = vunpack.c.l.b16 %v373
        %v1505 = vunpack.c.h.b16 %v373
        %v1506 = vunpack.c.l.b16 %v374
        %v1507 = vunpack.c.h.b16 %v374
        %v1508 = vunpack.c.l.b16 %v375
        %v1509 = vunpack.c.h.b16 %v375
        %v1510 = vunpack.c.l.b16 %v376
        %v1511 = vunpack.c.h.b16 %v376
        %v1512 = vunpack.c.l.b16 %v377
        %v1513 = vunpack.c.h.b16 %v377
        %v1514 = vunpack.c.l.b16 %v378
        %v1515 = vunpack.c.h.b16 %v378
        %v1516 = vunpack.c.l.b16 %v379
        %v1517 = vunpack.c.h.b16 %v379
        %v1518 = vunpack.c.l.b16 %v380
        %v1519 = vunpack.c.h.b16 %v380
        %v1520 = vunpack.c.l.b16 %v381
        %v1521 = vunpack.c.h.b16 %v381
        %v1522 = vunpack.c.l.b16 %v382
        %v1523 = vunpack.c.h.b16 %v382
        %v1524 = vunpack.c.l.b16 %v383
        %v1525 = vunpack.c.h.b16 %v383
        %v1526 = vunpack.c.l.b16 %v384
        %v1527 = vunpack.c.h.b16 %v384
        %v1528 = vunpack.c.l.b16 %v385
        %v1529 = vunpack.c.h.b16 %v385
        %v1530 = vunpack.c.l.b16 %v386
        %v1531 = vunpack.c.h.b16 %v386
        %v1532 = vunpack.c.l.b16 %v387
        %v1533 = vunpack.c.h.b16 %v387
        %v1534 = vunpack.c.l.b16 %v388
        %v1535 = vunpack.c.h.b16 %v388
        %v1536 = vunpack.c.l.b16 %v389
        %v1537 = vunpack.c.h.b16 %v389
        %v1538 = vunpack.c.l.b16 %v390
        %v1539 = vunpack.c.h.b16 %v390
        %v1540 = vunpack.c.l.b16 %v391
        %v1541 = vunpack.c.h.b16 %v391
        %v1542 = vunpack.c.l.b16 %v392
        %v1543 = vunpack.c.h.b16 %v392
        %v1544 = vunpack.c.l.b16 %v393
        %v1545 = vunpack.c.h.b16 %v393
        %v1546 = vunpack.c.l.b16 %v394
        %v1547 = vunpack.c.h.b16 %v394
        %v1548 = vunpack.c.l.b16 %v395
        %v1549 = vunpack.c.h.b16 %v395
        %v1550 = vunpack.c.l.b16 %v396
        %v1551 = vunpack.c.h.b16 %v396
        %v1552 = vunpack.c.l.b16 %v397
        %v1553 = vunpack.c.h.b16 %v397
        %v1554 = vunpack.c.l.b16 %v398
        %v1555 = vunpack.c.h.b16 %v398
        %v1556 = vunpack.c.l.b16 %v399
        %v1557 = vunpack.c.h.b16 %v399
        %v1558 = vunpack.c.l.b16 %v400
        %v1559 = vunpack.c.h.b16 %v400
        %v1560 = vunpack.c.l.b16 %v401
        %v1561 = vunpack.c.h.b16 %v401
        %v1562 = vunpack.c.l.b16 %v402
        %v1563 = vunpack.c.h.b16 %v402
        %v1564 = vunpack.c.l.b16 %v403
        %v1565 = vunpack.c.h.b16 %v403
        %v1566 = vunpack.c.l.b16 %v404
        %v1567 = vunpack.c.h.b16 %v404
        %v1568 = vunpack.c.l.b16 %v405
        %v1569 = vunpack.c.h.b16 %v405
        %v1570 = vunpack.c.l.b16 %v406
        %v1571 = vunpack.c.h.b16 %v406
        %v1572 = vunpack.c.l.b16 %v407
        %v1573 = vunpack.c.h.b16 %v407
        %v1574 = vunpack.c.l.b16 %v408
        %v1575 = vunpack.c.h.b16 %v408
        %v1576 = vunpack.c.l.b16 %v409
        %v1577 = vunpack.c.h.b16 %v409
        %v1578 = vunpack.c.l.b16 %v410
        %v1579 = vunpack.c.h.b16 %v410
        %v1580 = vunpack.c.l.b16 %v411
        %v1581 = vunpack.c.h.b16 %v411
        %v1582 = vunpack.c.l.b16 %v412
        %v1583 = vunpack.c.h.b16 %v412
        %v1584 = vunpack.c.l.b16 %v413
        %v1585 = vunpack.c.h.b16 %v413
        %v1586 = vunpack.c.l.b16 %v414
        %v1587 = vunpack.c.h.b16 %v414
        %v1588 = vunpack.c.l.b16 %v415
        %v1589 = vunpack.c.h.b16 %v415
        %v1590 = vunpack.c.l.b16 %v416
        %v1591 = vunpack.c.h.b16 %v416
        %v1592 = vunpack.c.l.b16 %v417
        %v1593 = vunpack.c.h.b16 %v417
        %v1594 = vunpack.c.l.b16 %v418
        %v1595 = vunpack.c.h.b16 %v418
        %v1596 = vunpack.c.l.b16 %v419
        %v1597 = vunpack.c.h.b16 %v419
        %v1598 = vunpack.c.l.b16 %v420
        %v1599 = vunpack.c.h.b16 %v420
        %v1600 = vunpack.c.l.b16 %v421
        %v1601 = vunpack.c.h.b16 %v421
        %v1602 = vunpack.c.l.b16 %v422
        %v1603 = vunpack.c.h.b16 %v422
        %v1604 = vunpack.c.l.b16 %v423
        %v1605 = vunpack.c.h.b16 %v423
        %v1606 = vunpack.c.l.b16 %v424
        %v1607 = vunpack.c.h.b16 %v424
        %v1608 = vunpack.c.l.b16 %v425
        %v1609 = vunpack.c.h.b16 %v425
        %v1610 = vunpack.c.l.b16 %v426
        %v1611 = vunpack.c.h.b16 %v426
        %v1612 = vunpack.c.l.b16 %v427
        %v1613 = vunpack.c.h.b16 %v427
        %v1614 = vunpack.c.l.b16 %v428
        %v1615 = vunpack.c.h.b16 %v428
        %v1616 = vunpack.c.l.b16 %v429
        %v1617 = vunpack.c.h.b16 %v429
        %v1618 = vunpack.c.l.b16 %v430
        %v1619 = vunpack.c.h.b16 %v430
        %v1620 = vunpack.c.l.b16 %v431
        %v1621 = vunpack.c.h.b16 %v431
        %v1622 = vunpack.c.l.b16 %v432
        %v1623 = vunpack.c.h.b16 %v432
        %v1624 = vunpack.c.l.b16 %v433
        %v1625 = vunpack.c.h.b16 %v433
        %v1626 = vunpack.c.l.b16 %v434
        %v1627 = vunpack.c.h.b16 %v434
        %v1628 = vunpack.c.l.b16 %v435
        %v1629 = vunpack.c.h.b16 %v435
        %v1630 = vunpack.c.l.b16 %v436
        %v1631 = vunpack.c.h.b16 %v436
        %v1632 = vunpack.c.l.b16 %v437
        %v1633 = vunpack.c.h.b16 %v437
        %v1634 = vunpack.c.l.b16 %v438
        %v1635 = vunpack.c.h.b16 %v438
        %v1636 = vunpack.c.l.b16 %v439
        %v1637 = vunpack.c.h.b16 %v439
        %v1638 = vunpack.c.l.b16 %v440
        %v1639 = vunpack.c.h.b16 %v440
        %v1640 = vunpack.c.l.b16 %v441
        %v1641 = vunpack.c.h.b16 %v441
        %v1642 = vunpack.c.l.b16 %v442
        %v1643 = vunpack.c.h.b16 %v442
        %v1644 = vunpack.c.l.b16 %v443
        %v1645 = vunpack.c.h.b16 %v443
        %v1646 = vunpack.c.l.b16 %v444
        %v1647 = vunpack.c.h.b16 %v444
        %v1648 = vunpack.c.l.b16 %v445
        %v1649 = vunpack.c.h.b16 %v445
        %v1650 = vunpack.c.l.b16 %v446
        %v1651 = vunpack.c.h.b16 %v446
        %v1652 = vunpack.c.l.b16 %v447
        %v1653 = vunpack.c.h.b16 %v447
        %v1654 = vunpack.c.l.b16 %v448
        %v1655 = vunpack.c.h.b16 %v448
        %v1656 = vunpack.c.l.b16 %v449
        %v1657 = vunpack.c.h.b16 %v449
        %v1658 = vunpack.c.l.b16 %v450
        %v1659 = vunpack.c.h.b16 %v450
        %v1660 = vunpack.c.l.b16 %v451
        %v1661 = vunpack.c.h.b16 %v451
        %v1662 = vunpack.c.l.b16 %v452
        %v1663 = vunpack.c.h.b16 %v452
        %v1664 = vunpack.c.l.b16 %v453
        %v1665 = vunpack.c.h.b16 %v453
        %v1666 = vunpack.c.l.b16 %v454
        %v1667 = vunpack.c.h.b16 %v454
        %v1668 = vunpack.c.l.b16 %v455
        %v1669 = vunpack.c.h.b16 %v455
        %v1670 = vunpack.c.l.b16 %v456
        %v1671 = vunpack.c.h.b16 %v456
        %v1672 = vunpack.c.l.b16 %v457
        %v1673 = vunpack.c.h.b16 %v457
        %v1674 = vunpack.c.l.b16 %v458
        %v1675 = vunpack.c.h.b16 %v458
        %v1676 = vunpack.c.l.b16 %v459
        %v1677 = vunpack.c.h.b16 %v459
        %v1678 = vunpack.c.l.b16 %v460
        %v1679 = vunpack.c.h.b16 %v460
        %v1680 = vunpack.c.l.b16 %v461
        %v1681 = vunpack.c.h.b16 %v461
        %v1682 = vunpack.c.l.b16 %v462
        %v1683 = vunpack.c.h.b16 %v462
        %v1684 = vunpack.c.l.b16 %v463
        %v1685 = vunpack.c.h.b16 %v463
        %v1686 = vunpack.c.l.b16 %v464
        %v1687 = vunpack.c.h.b16 %v464
        %v1688 = vunpack.c.l.b16 %v465
        %v1689 = vunpack.c.h.b16 %v465
        %v1690 = vunpack.c.l.b16 %v466
        %v1691 = vunpack.c.h.b16 %v466
        %v1692 = vunpack.c.l.b16 %v467
        %v1693 = vunpack.c.h.b16 %v467
        %v1694 = vunpack.c.l.b16 %v468
        %v1695 = vunpack.c.h.b16 %v468
        %v1696 = vunpack.c.l.b16 %v469
        %v1697 = vunpack.c.h.b16 %v469
        %v1698 = vunpack.c.l.b16 %v470
        %v1699 = vunpack.c.h.b16 %v470
        %v1700 = vunpack.c.l.b16 %v471
        %v1701 = vunpack.c.h.b16 %v471
        %v1702 = vunpack.c.l.b16 %v472
        %v1703 = vunpack.c.h.b16 %v472
        %v1704 = vunpack.c.l.b16 %v473
        %v1705 = vunpack.c.h.b16 %v473
        %v1706 = vunpack.c.l.b16 %v474
        %v1707 = vunpack.c.h.b16 %v474
        %v1708 = vunpack.c.l.b16 %v475
        %v1709 = vunpack.c.h.b16 %v475
        %v1710 = vunpack.c.l.b16 %v476
        %v1711 = vunpack.c.h.b16 %v476
        %v1712 = vunpack.c.l.b16 %v477
        %v1713 = vunpack.c.h.b16 %v477
        %v1714 = vunpack.c.l.b16 %v478
        %v1715 = vunpack.c.h.b16 %v478
        %v1716 = vunpack.c.l.b16 %v479
        %v1717 = vunpack.c.h.b16 %v479
        %v1718 = vunpack.c.l.b16 %v480
        %v1719 = vunpack.c.h.b16 %v480
        %v1720 = vunpack.c.l.b16 %v481
        %v1721 = vunpack.c.h.b16 %v481
        %v1722 = vunpack.c.l.b16 %v482
        %v1723 = vunpack.c.h.b16 %v482
        %v1724 = vunpack.c.l.b16 %v483
        %v1725 = vunpack.c.h.b16 %v483
        %v1726 = vunpack.c.l.b16 %v484
        %v1727 = vunpack.c.h.b16 %v484
        %v1728 = vunpack.c.l.b16 %v485
        %v1729 = vunpack.c.h.b16 %v485
        %v1730 = vunpack.c.l.b16 %v486
        %v1731 = vunpack.c.h.b16 %v486
        %v1732 = vunpack.c.l.b16 %v487
        %v1733 = vunpack.c.h.b16 %v487
        %v1734 = vunpack.c.l.b16 %v488
        %v1735 = vunpack.c.h.b16 %v488
        %v1736 = vunpack.c.l.b16 %v489
        %v1737 = vunpack.c.h.b16 %v489
        %v1738 = vunpack.c.l.b16 %v490
        %v1739 = vunpack.c.h.b16 %v490
        %v1740 = vunpack.c.l.b16 %v491
        %v1741 = vunpack.c.h.b16 %v491
        %v1742 = vunpack.c.l.b16 %v492
        %v1743 = vunpack.c.h.b16 %v492
        %v1744 = vunpack.c.l.b16 %v493
        %v1745 = vunpack.c.h.b16 %v493
        %v1746 = vunpack.c.l.b16 %v494
        %v1747 = vunpack.c.h.b16 %v494
        %v1748 = vunpack.c.l.b16 %v495
        %v1749 = vunpack.c.h.b16 %v495
        %v1750 = vunpack.c.l.b16 %v496
        %v1751 = vunpack.c.h.b16 %v496
        %v1752 = vunpack.c.l.b16 %v497
        %v1753 = vunpack.c.h.b16 %v497
        %v1754 = vunpack.c.l.b16 %v498
        %v1755 = vunpack.c.h.b16 %v498
        %v1756 = vunpack.c.l.b16 %v499
        %v1757 = vunpack.c.h.b16 %v499
        %v1758 = vunpack.c.l.b16 %v500
        %v1759 = vunpack.c.h.b16 %v500
        %v1760 = vunpack.c.l.b16 %v501
        %v1761 = vunpack.c.h.b16 %v501
        %v1762 = vunpack.c.l.b16 %v502
        %v1763 = vunpack.c.h.b16 %v502
        %v1764 = vunpack.c.l.b16 %v503
        %v1765 = vunpack.c.h.b16 %v503
        %v1766 = vunpack.c.l.b16 %v504
        %v1767 = vunpack.c.h.b16 %v504
        %v1768 = vunpack.c.l.b16 %v505
        %v1769 = vunpack.c.h.b16 %v505
        %v1770 = vunpack.c.l.b16 %v506
        %v1771 = vunpack.c.h.b16 %v506
        %v1772 = vunpack.c.l.b16 %v507
        %v1773 = vunpack.c.h.b16 %v507
        %v1774 = vunpack.c.l.b16 %v508
        %v1775 = vunpack.c.h.b16 %v508
        %v1776 = vunpack.c.l.b16 %v509
        %v1777 = vunpack.c.h.b16 %v509
        %v1778 = vunpack.c.l.b16 %v510
        %v1779 = vunpack.c.h.b16 %v510
        %v1780 = vunpack.c.l.b16 %v511
        %v1781 = vunpack.c.h.b16 %v511
        %v1782 = vunpack.c.l.b16 %v512
        %v1783 = vunpack.c.h.b16 %v512
        %v1784 = vunpack.c.l.b16 %v513
        %v1785 = vunpack.c.h.b16 %v513
        %v1786 = vunpack.c.l.b16 %v514
        %v1787 = vunpack.c.h.b16 %v514
        %v1788 = vunpack.c.l.b16 %v515
        %v1789 = vunpack.c.h.b16 %v515
        %v1790 = vunpack.c.l.b16 %v516
        %v1791 = vunpack.c.h.b16 %v516
        %v1792 = vunpack.c.l.b16 %v517
        %v1793 = vunpack.c.h.b16 %v517
        %v1794 = vunpack.c.l.b16 %v518
        %v1795 = vunpack.c.h.b16 %v518
        %v1796 = vunpack.c.l.b16 %v519
        %v1797 = vunpack.c.h.b16 %v519
        %v1798 = vunpack.c.l.b16 %v520
        %v1799 = vunpack.c.h.b16 %v520
        %v1800 = vunpack.c.l.b16 %v521
        %v1801 = vunpack.c.h.b16 %v521
        %v1802 = vunpack.c.l.b16 %v522
        %v1803 = vunpack.c.h.b16 %v522
        %v1804 = vunpack.c.l.b16 %v523
        %v1805 = vunpack.c.h.b16 %v523
        %v1806 = vunpack.c.l.b16 %v524
        %v1807 = vunpack.c.h.b16 %v524
        %v1808 = vunpack.c.l.b16 %v525
        %v1809 = vunpack.c.h.b16 %v525
        %v1810 = vunpack.c.l.b16 %v526
        %v1811 = vunpack.c.h.b16 %v526
        %v1812 = vunpack.c.l.b16 %v527
        %v1813 = vunpack.c.h.b16 %v527
        %v1814 = vunpack.c.l.b16 %v528
        %v1815 = vunpack.c.h.b16 %v528
        %v1816 = vunpack.c.l.b16 %v529
        %v1817 = vunpack.c.h.b16 %v529
        %v1818 = vunpack.c.l.b16 %v530
        %v1819 = vunpack.c.h.b16 %v530
        %v1820 = vunpack.c.l.b16 %v531
        %v1821 = vunpack.c.h.b16 %v531
        %v1822 = vunpack.c.l.b16 %v532
        %v1823 = vunpack.c.h.b16 %v532
        %v1824 = vunpack.c.l.b16 %v533
        %v1825 = vunpack.c.h.b16 %v533
        %v1826 = vunpack.c.l.b16 %v534
        %v1827 = vunpack.c.h.b16 %v534
        %v1828 = vunpack.c.l.b16 %v535
        %v1829 = vunpack.c.h.b16 %v535
        %v1830 = vunpack.c.l.b16 %v536
        %v1831 = vunpack.c.h.b16 %v536
        %v1832 = vunpack.c.l.b16 %v537
        %v1833 = vunpack.c.h.b16 %v537
        %v1834 = vunpack.c.l.b16 %v538
        %v1835 = vunpack.c.h.b16 %v538
        %v1836 = vunpack.c.l.b16 %v539
        %v1837 = vunpack.c.h.b16 %v539
        %v1838 = vunpack.c.l.b16 %v540
        %v1839 = vunpack.c.h.b16 %v540
        %v1840 = vunpack.c.l.b16 %v541
        %v1841 = vunpack.c.h.b16 %v541
        %v1842 = vunpack.c.l.b16 %v542
        %v1843 = vunpack.c.h.b16 %v542
        %v1844 = vunpack.c.l.b16 %v543
        %v1845 = vunpack.c.h.b16 %v543
        %v1846 = vunpack.c.l.b16 %v544
        %v1847 = vunpack.c.h.b16 %v544
        %v1848 = vunpack.c.l.b16 %v545
        %v1849 = vunpack.c.h.b16 %v545
        %v1850 = vunpack.c.l.b16 %v546
        %v1851 = vunpack.c.h.b16 %v546
        %v1852 = vunpack.c.l.b16 %v547
        %v1853 = vunpack.c.h.b16 %v547
        %v1854 = vunpack.c.l.b16 %v548
        %v1855 = vunpack.c.h.b16 %v548
        %v1856 = vunpack.c.l.b16 %v549
        %v1857 = vunpack.c.h.b16 %v549
        %v1858 = vunpack.c.l.b16 %v550
        %v1859 = vunpack.c.h.b16 %v550
        %v1860 = vunpack.c.l.b16 %v551
        %v1861 = vunpack.c.h.b16 %v551
        %v1862 = vunpack.c.l.b16 %v552
        %v1863 = vunpack.c.h.b16 %v552
        %v1864 = vunpack.c.l.b16 %v553
        %v1865 = vunpack.c.h.b16 %v553
        %v1866 = vunpack.c.l.b16 %v554
        %v1867 = vunpack.c.h.b16 %v554
        %v1868 = vunpack.c.l.b16 %v555
        %v1869 = vunpack.c.h.b16 %v555
        %v1870 = vunpack.c.l.b16 %v556
        %v1871 = vunpack.c.h.b16 %v556
        %v1872 = vunpack.c.l.b16 %v557
        %v1873 = vunpack.c.h.b16 %v557
        %v1874 = vunpack.c.l.b16 %v558
        %v1875 = vunpack.c.h.b16 %v558
        %v1876 = vunpack.c.l.b16 %v559
        %v1877 = vunpack.c.h.b16 %v559
        %v1878 = vunpack.c.l.b16 %v560
        %v1879 = vunpack.c.h.b16 %v560
        %v1880 = vunpack.c.l.b16 %v561
        %v1881 = vunpack.c.h.b16 %v561
        %v1882 = vunpack.c.l.b16 %v562
        %v1883 = vunpack.c.h.b16 %v562
        %v1884 = vunpack.c.l.b16 %v563
        %v1885 = vunpack.c.h.b16 %v563
        %v1886 = vunpack.c.l.b16 %v564
        %v1887 = vunpack.c.h.b16 %v564
        %v1888 = vunpack.c.l.b16 %v565
        %v1889 = vunpack.c.h.b16 %v565
        %v1890 = vunpack.c.l.b16 %v566
        %v1891 = vunpack.c.h.b16 %v566
        %v1892 = vunpack.c.l.b16 %v567
        %v1893 = vunpack.c.h.b16 %v567
        %v1894 = vunpack.c.l.b16 %v568
        %v1895 = vunpack.c.h.b16 %v568
        %v1896 = vunpack.c.l.b16 %v569
        %v1897 = vunpack.c.h.b16 %v569
        %v1898 = vunpack.c.l.b16 %v570
        %v1899 = vunpack.c.h.b16 %v570
        %v1900 = vunpack.c.l.b16 %v571
        %v1901 = vunpack.c.h.b16 %v571
        %v1902 = vunpack.c.l.b16 %v572
        %v1903 = vunpack.c.h.b16 %v572
        %v1904 = vunpack.c.l.b16 %v573
        %v1905 = vunpack.c.h.b16 %v573
        %v1906 = vunpack.c.l.b16 %v574
        %v1907 = vunpack.c.h.b16 %v574
        %v1908 = vunpack.c.l.b16 %v575
        %v1909 = vunpack.c.h.b16 %v575
        %v1910 = vunpack.c.l.b16 %v576
        %v1911 = vunpack.c.h.b16 %v576
        %v1912 = vunpack.c.l.b16 %v577
        %v1913 = vunpack.c.h.b16 %v577
        %v1914 = vunpack.c.l.b16 %v578
        %v1915 = vunpack.c.h.b16 %v578
        %v1916 = vunpack.c.l.b16 %v579
        %v1917 = vunpack.c.h.b16 %v579
        %v1918 = vunpack.c.l.b16 %v580
        %v1919 = vunpack.c.h.b16 %v580
        %v1920 = vunpack.c.l.b16 %v581
        %v1921 = vunpack.c.h.b16 %v581
        %v1922 = vunpack.c.l.b16 %v582
        %v1923 = vunpack.c.h.b16 %v582
        %v1924 = vunpack.c.l.b16 %v583
        %v1925 = vunpack.c.h.b16 %v583
        %v1926 = vunpack.c.l.b16 %v584
        %v1927 = vunpack.c.h.b16 %v584
        %v1928 = vunpack.c.l.b16 %v585
        %v1929 = vunpack.c.h.b16 %v585
        %v1930 = vunpack.c.l.b16 %v586
        %v1931 = vunpack.c.h.b16 %v586
        %v1932 = vunpack.c.l.b16 %v587
        %v1933 = vunpack.c.h.b16 %v587
        %v1934 = vunpack.c.l.b16 %v588
        %v1935 = vunpack.c.h.b16 %v588
        %v1936 = vunpack.c.l.b16 %v589
        %v1937 = vunpack.c.h.b16 %v589
        %v1938 = vunpack.c.l.b16 %v590
        %v1939 = vunpack.c.h.b16 %v590
        %v1940 = vunpack.c.l.b16 %v591
        %v1941 = vunpack.c.h.b16 %v591
        %v1942 = vunpack.c.l.b16 %v592
        %v1943 = vunpack.c.h.b16 %v592
        %v1944 = vunpack.c.l.b16 %v593
        %v1945 = vunpack.c.h.b16 %v593
        %v1946 = vunpack.c.l.b16 %v594
        %v1947 = vunpack.c.h.b16 %v594
        %v1948 = vunpack.c.l.b16 %v595
        %v1949 = vunpack.c.h.b16 %v595
        %v1950 = vunpack.c.l.b16 %v596
        %v1951 = vunpack.c.h.b16 %v596
        %v1952 = vunpack.c.l.b16 %v597
        %v1953 = vunpack.c.h.b16 %v597
        %v1954 = vunpack.c.l.b16 %v598
        %v1955 = vunpack.c.h.b16 %v598
        %v1956 = vunpack.c.l.b16 %v599
        %v1957 = vunpack.c.h.b16 %v599
        %v1958 = vunpack.c.l.b16 %v600
        %v1959 = vunpack.c.h.b16 %v600
        %v1960 = vunpack.c.l.b16 %v601
        %v1961 = vunpack.c.h.b16 %v601
        %v1962 = vunpack.c.l.b16 %v602
        %v1963 = vunpack.c.h.b16 %v602
        %v1964 = vunpack.c.l.b16 %v603
        %v1965 = vunpack.c.h.b16 %v603
        %v1966 = vunpack.c.l.b16 %v604
        %v1967 = vunpack.c.h.b16 %v604
        %v1968 = vunpack.c.l.b16 %v605
        %v1969 = vunpack.c.h.b16 %v605
        %v1970 = vunpack.c.l.b16 %v606
        %v1971 = vunpack.c.h.b16 %v606
        %v1972 = vunpack.c.l.b16 %v607
        %v1973 = vunpack.c.h.b16 %v607
        %v1974 = vunpack.c.l.b16 %v608
        %v1975 = vunpack.c.h.b16 %v608
        %v1976 = vunpack.c.l.b16 %v609
        %v1977 = vunpack.c.h.b16 %v609
        %v1978 = vunpack.c.l.b16 %v610
        %v1979 = vunpack.c.h.b16 %v610
        %v1980 = vunpack.c.l.b16 %v611
        %v1981 = vunpack.c.h.b16 %v611
        %v1982 = vunpack.c.l.b16 %v612
        %v1983 = vunpack.c.h.b16 %v612
        %v1984 = vunpack.c.l.b16 %v613
        %v1985 = vunpack.c.h.b16 %v613
        %v1986 = vunpack.c.l.b16 %v614
        %v1987 = vunpack.c.h.b16 %v614
        %v1988 = vunpack.c.l.b16 %v615
        %v1989 = vunpack.c.h.b16 %v615
        %v1990 = vunpack.c.l.b16 %v616
        %v1991 = vunpack.c.h.b16 %v616
        %v1992 = vunpack.c.l.b16 %v617
        %v1993 = vunpack.c.h.b16 %v617
        %v1994 = vunpack.c.l.b16 %v618
        %v1995 = vunpack.c.h.b16 %v618
        %v1996 = vunpack.c.l.b16 %v619
        %v1997 = vunpack.c.h.b16 %v619
        %v1998 = vunpack.c.l.b16 %v620
        %v1999 = vunpack.c.h.b16 %v620
        %v2000 = vunpack.c.l.b16 %v621
        %v2001 = vunpack.c.h.b16 %v621
        %v2002 = vunpack.c.l.b16 %v622
        %v2003 = vunpack.c.h.b16 %v622
        %v2004 = vunpack.c.l.b16 %v623
        %v2005 = vunpack.c.h.b16 %v623
        %v2006 = vunpack.c.l.b16 %v624
        %v2007 = vunpack.c.h.b16 %v624
        %v2008 = vunpack.c.l.b16 %v625
        %v2009 = vunpack.c.h.b16 %v625
        %v2010 = vunpack.c.l.b16 %v626
        %v2011 = vunpack.c.h.b16 %v626
        %v2012 = vunpack.c.l.b16 %v627
        %v2013 = vunpack.c.h.b16 %v627
        %v2014 = vunpack.c.l.b16 %v628
        %v2015 = vunpack.c.h.b16 %v628
        %v2016 = vunpack.c.l.b16 %v629
        %v2017 = vunpack.c.h.b16 %v629
        %v2018 = vunpack.c.l.b16 %v630
        %v2019 = vunpack.c.h.b16 %v630
        %v2020 = vunpack.c.l.b16 %v631
        %v2021 = vunpack.c.h.b16 %v631
        %v2022 = vunpack.c.l.b16 %v632
        %v2023 = vunpack.c.h.b16 %v632
        %v2024 = vunpack.c.l.b16 %v633
        %v2025 = vunpack.c.h.b16 %v633
        %v2026 = vunpack.c.l.b16 %v634
        %v2027 = vunpack.c.h.b16 %v634
        %v2028 = vunpack.c.l.b16 %v635
        %v2029 = vunpack.c.h.b16 %v635
        %v2030 = vunpack.c.l.b16 %v636
        %v2031 = vunpack.c.h.b16 %v636
        %v2032 = vunpack.c.l.b16 %v637
        %v2033 = vunpack.c.h.b16 %v637
        %v2034 = vunpack.c.l.b16 %v638
        %v2035 = vunpack.c.h.b16 %v638
        %v2036 = vunpack.c.l.b16 %v639
        %v2037 = vunpack.c.h.b16 %v639
        %v2038 = vunpack.c.l.b16 %v640
        %v2039 = vunpack.c.h.b16 %v640
        %v2040 = vunpack.c.l.b16 %v641
        %v2041 = vunpack.c.h.b16 %v641
        %v2042 = vunpack.c.l.b16 %v642
        %v2043 = vunpack.c.h.b16 %v642
        %v2044 = vunpack.c.l.b16 %v643
        %v2045 = vunpack.c.h.b16 %v643
        %v2046 = vunpack.c.l.b16 %v644
        %v2047 = vunpack.c.h.b16 %v644
        %v2048 = vunpack.c.l.b16 %v645
        %v2049 = vunpack.c.h.b16 %v645
        %v2050 = vunpack.c.l.b16 %v646
        %v2051 = vunpack.c.h.b16 %v646
        %v2052 = vunpack.c.l.b16 %v647
        %v2053 = vunpack.c.h.b16 %v647
        %v2054 = vunpack.c.l.b16 %v648
        %v2055 = vunpack.c.h.b16 %v648
        %v2056 = vunpack.c.l.b16 %v649
        %v2057 = vunpack.c.h.b16 %v649
        %v2058 = vunpack.c.l.b16 %v650
        %v2059 = vunpack.c.h.b16 %v650
        %v2060 = vunpack.c.l.b16 %v651
        %v2061 = vunpack.c.h.b16 %v651
        %v2062 = vunpack.c.l.b16 %v652
        %v2063 = vunpack.c.h.b16 %v652
        %v2064 = vunpack.c.l.b16 %v653
        %v2065 = vunpack.c.h.b16 %v653
        %v2066 = vunpack.c.l.b16 %v654
        %v2067 = vunpack.c.h.b16 %v654
        %v2068 = vunpack.c.l.b16 %v655
        %v2069 = vunpack.c.h.b16 %v655
        %v2070 = vunpack.c.l.b16 %v656
        %v2071 = vunpack.c.h.b16 %v656
        %v2072 = vunpack.c.l.b16 %v657
        %v2073 = vunpack.c.h.b16 %v657
        %v2074 = vunpack.c.l.b16 %v658
        %v2075 = vunpack.c.h.b16 %v658
        %v2076 = vunpack.c.l.b16 %v659
        %v2077 = vunpack.c.h.b16 %v659
        %v2078 = vunpack.c.l.b16 %v660
        %v2079 = vunpack.c.h.b16 %v660
        %v2080 = vunpack.c.l.b16 %v661
        %v2081 = vunpack.c.h.b16 %v661
        %v2082 = vunpack.c.l.b16 %v662
        %v2083 = vunpack.c.h.b16 %v662
        %v2084 = vunpack.c.l.b16 %v663
        %v2085 = vunpack.c.h.b16 %v663
        %v2086 = vunpack.c.l.b16 %v664
        %v2087 = vunpack.c.h.b16 %v664
        %v2088 = vunpack.c.l.b16 %v665
        %v2089 = vunpack.c.h.b16 %v665
        %v2090 = vunpack.c.l.b16 %v666
        %v2091 = vunpack.c.h.b16 %v666
        %v2092 = vunpack.c.l.b16 %v667
        %v2093 = vunpack.c.h.b16 %v667
        %v2094 = vunpack.c.l.b16 %v668
        %v2095 = vunpack.c.h.b16 %v668
        %v2096 = vunpack.c.l.b16 %v669
        %v2097 = vunpack.c.h.b16 %v669
        %v2098 = vunpack.c.l.b16 %v670
        %v2099 = vunpack.c.h.b16 %v670
        %v2100 = vunpack.c.l.b16 %v671
        %v2101 = vunpack.c.h.b16 %v671
        %v2102 = vunpack.c.l.b16 %v672
        %v2103 = vunpack.c.h.b16 %v672
        %v2104 = vunpack.c.l.b16 %v673
        %v2105 = vunpack.c.h.b16 %v673
        %v2106 = vunpack.c.l.b16 %v674
        %v2107 = vunpack.c.h.b16 %v674
        %v2108 = vunpack.c.l.b16 %v675
        %v2109 = vunpack.c.h.b16 %v675
        %v2110 = vunpack.c.l.b16 %v676
        %v2111 = vunpack.c.h.b16 %v676
        %v2112 = vunpack.c.l.b16 %v677
        %v2113 = vunpack.c.h.b16 %v677
        %v2114 = vunpack.c.l.b16 %v678
        %v2115 = vunpack.c.h.b16 %v678
        %v2116 = vunpack.c.l.b16 %v679
        %v2117 = vunpack.c.h.b16 %v679
        %v2118 = vunpack.c.l.b16 %v680
        %v2119 = vunpack.c.h.b16 %v680
        %v2120 = vunpack.c.l.b16 %v681
        %v2121 = vunpack.c.h.b16 %v681
        %v2122 = vunpack.c.l.b16 %v682
        %v2123 = vunpack.c.h.b16 %v682
        %v2124 = vunpack.c.l.b16 %v683
        %v2125 = vunpack.c.h.b16 %v683
        %v2126 = vunpack.c.l.b16 %v684
        %v2127 = vunpack.c.h.b16 %v684
        %v2128 = vunpack.c.l.b16 %v685
        %v2129 = vunpack.c.h.b16 %v685
        %v2130 = vunpack.c.l.b16 %v686
        %v2131 = vunpack.c.h.b16 %v686
        %v2132 = vunpack.c.l.b16 %v687
        %v2133 = vunpack.c.h.b16 %v687
        %v2134 = vunpack.c.l.b16 %v688
        %v2135 = vunpack.c.h.b16 %v688
        %v2136 = vunpack.c.l.b16 %v689
        %v2137 = vunpack.c.h.b16 %v689
        %v2138 = vunpack.c.l.b16 %v690
        %v2139 = vunpack.c.h.b16 %v690
        %v2140 = vunpack.c.l.b16 %v691
        %v2141 = vunpack.c.h.b16 %v691
        %v2142 = vunpack.c.l.b16 %v692
        %v2143 = vunpack.c.h.b16 %v692
        %v2144 = vunpack.c.l.b16 %v693
        %v2145 = vunpack.c.h.b16 %v693
        %v2146 = vunpack.c.l.b16 %v694
        %v2147 = vunpack.c.h.b16 %v694
        %v2148 = vunpack.c.l.b16 %v695
        %v2149 = vunpack.c.h.b16 %v695
        %v2150 = vunpack.c.l.b16 %v696
        %v2151 = vunpack.c.h.b16 %v696
        %v2152 = vunpack.c.l.b16 %v697
        %v2153 = vunpack.c.h.b16 %v697
        %v2154 = vunpack.c.l.b16 %v698
        %v2155 = vunpack.c.h.b16 %v698
        %v2156 = vunpack.c.l.b16 %v699
        %v2157 = vunpack.c.h.b16 %v699
        %v2158 = vunpack.c.l.b16 %v700
        %v2159 = vunpack.c.h.b16 %v700
        %v2160 = vunpack.c.l.b16 %v701
        %v2161 = vunpack.c.h.b16 %v701
        %v2162 = vunpack.c.l.b16 %v702
        %v2163 = vunpack.c.h.b16 %v702
        %v2164 = vunpack.c.l.b16 %v703
        %v2165 = vunpack.c.h.b16 %v703
        %v2166 = vunpack.c.l.b16 %v704
        %v2167 = vunpack.c.h.b16 %v704
        %v2168 = vunpack.c.l.b16 %v705
        %v2169 = vunpack.c.h.b16 %v705
        %v2170 = vunpack.c.l.b16 %v706
        %v2171 = vunpack.c.h.b16 %v706
        %v2172 = vunpack.c.l.b16 %v707
        %v2173 = vunpack.c.h.b16 %v707
        %v2174 = vunpack.c.l.b16 %v708
        %v2175 = vunpack.c.h.b16 %v708
        %v2176 = vunpack.c.l.b16 %v709
        %v2177 = vunpack.c.h.b16 %v709
        %v2178 = vunpack.c.l.b16 %v710
        %v2179 = vunpack.c.h.b16 %v710
        %v2180 = vunpack.c.l.b16 %v711
        %v2181 = vunpack.c.h.b16 %v711
        %v2182 = vunpack.c.l.b16 %v712
        %v2183 = vunpack.c.h.b16 %v712
        %v2184 = vunpack.c.l.b16 %v713
        %v2185 = vunpack.c.h.b16 %v713
        %v2186 = vunpack.c.l.b16 %v714
        %v2187 = vunpack.c.h.b16 %v714
        %v2188 = vunpack.c.l.b16 %v715
        %v2189 = vunpack.c.h.b16 %v715
        %v2190 = vunpack.c.l.b16 %v716
        %v2191 = vunpack.c.h.b16 %v716
        %v2192 = vunpack.c.l.b16 %v717
        %v2193 = vunpack.c.h.b16 %v717
        %v2194 = vunpack.c.l.b16 %v718
        %v2195 = vunpack.c.h.b16 %v718
        %v2196 = vunpack.c.l.b16 %v719
        %v2197 = vunpack.c.h.b16 %v719
        %v2198 = vunpack.c.l.b16 %v720
        %v2199 = vunpack.c.h.b16 %v720
        %v2200 = vunpack.c.l.b16 %v721
        %v2201 = vunpack.c.h.b16 %v721
        %v2202 = vunpack.c.l.b16 %v722
        %v2203 = vunpack.c.h.b16 %v722
        %v2204 = vunpack.c.l.b16 %v723
        %v2205 = vunpack.c.h.b16 %v723
        %v2206 = vunpack.c.l.b16 %v724
        %v2207 = vunpack.c.h.b16 %v724
        %v2208 = vunpack.c.l.b16 %v725
        %v2209 = vunpack.c.h.b16 %v725
        %v2210 = vunpack.c.l.b16 %v726
        %v2211 = vunpack.c.h.b16 %v726
        %v2212 = vunpack.c.l.b16 %v727
        %v2213 = vunpack.c.h.b16 %v727
        %v2214 = vunpack.c.l.b16 %v728
        %v2215 = vunpack.c.h.b16 %v728
        %v2216 = vunpack.c.l.b16 %v729
        %v2217 = vunpack.c.h.b16 %v729
        %v2218 = vunpack.c.l.b16 %v730
        %v2219 = vunpack.c.h.b16 %v730
        %v2220 = vunpack.c.l.b16 %v731
        %v2221 = vunpack.c.h.b16 %v731
        %v2222 = vunpack.c.l.b16 %v732
        %v2223 = vunpack.c.h.b16 %v732
        %v2224 = vunpack.c.l.b16 %v733
        %v2225 = vunpack.c.h.b16 %v733
        %v2226 = vunpack.c.l.b16 %v734
        %v2227 = vunpack.c.h.b16 %v734
        %v2228 = vunpack.c.l.b16 %v735
        %v2229 = vunpack.c.h.b16 %v735
        %v2230 = vunpack.c.l.b16 %v736
        %v2231 = vunpack.c.h.b16 %v736
        %v2232 = vunpack.c.l.b16 %v737
        %v2233 = vunpack.c.h.b16 %v737
        %v2234 = vunpack.c.l.b16 %v738
        %v2235 = vunpack.c.h.b16 %v738
        %v2236 = vunpack.c.l.b16 %v739
        %v2237 = vunpack.c.h.b16 %v739
        %v2238 = vunpack.c.l.b16 %v740
        %v2239 = vunpack.c.h.b16 %v740
        %v2240 = vunpack.c.l.b16 %v741
        %v2241 = vunpack.c.h.b16 %v741
        %v2242 = vunpack.c.l.b16 %v742
        %v2243 = vunpack.c.h.b16 %v742
        %v2244 = vunpack.c.l.b16 %v743
        %v2245 = vunpack.c.h.b16 %v743
        %v2246 = vunpack.c.l.b16 %v744
        %v2247 = vunpack.c.h.b16 %v744
        %v2248 = vunpack.c.l.b16 %v745
        %v2249 = vunpack.c.h.b16 %v745
        %v2250 = vunpack.c.l.b16 %v746
        %v2251 = vunpack.c.h.b16 %v746
        %v2252 = vunpack.c.l.b16 %v747
        %v2253 = vunpack.c.h.b16 %v747
        %v2254 = vunpack.c.l.b16 %v748
        %v2255 = vunpack.c.h.b16 %v748
        %v2256 = vunpack.c.l.b16 %v749
        %v2257 = vunpack.c.h.b16 %v749
        %v2258 = vunpack.c.l.b16 %v750
        %v2259 = vunpack.c.h.b16 %v750
        %v2260 = vunpack.c.l.b16 %v751
        %v2261 = vunpack.c.h.b16 %v751
        %v2262 = vunpack.c.l.b16 %v752
        %v2263 = vunpack.c.h.b16 %v752
        %v2264 = vunpack.c.l.b16 %v753
        %v2265 = vunpack.c.h.b16 %v753
        %v2266 = vunpack.c.l.b16 %v754
        %v2267 = vunpack.c.h.b16 %v754
        %v2268 = vunpack.c.l.b16 %v755
        %v2269 = vunpack.c.h.b16 %v755
        %v2270 = vunpack.c.l.b16 %v756
        %v2271 = vunpack.c.h.b16 %v756
        %v2272 = vunpack.c.l.b16 %v757
        %v2273 = vunpack.c.h.b16 %v757
        %v2274 = vunpack.c.l.b16 %v758
        %v2275 = vunpack.c.h.b16 %v758
        %v2276 = vunpack.c.l.b16 %v759
        %v2277 = vunpack.c.h.b16 %v759
        %v2278 = vunpack.c.l.b16 %v760
        %v2279 = vunpack.c.h.b16 %v760
        %v2280 = vunpack.c.l.b16 %v761
        %v2281 = vunpack.c.h.b16 %v761
        %v2282 = vunpack.c.l.b16 %v762
        %v2283 = vunpack.c.h.b16 %v762
        %v2284 = vunpack.c.l.b16 %v763
        %v2285 = vunpack.c.h.b16 %v763
        %v2286 = vunpack.c.l.b16 %v764
        %v2287 = vunpack.c.h.b16 %v764
        %v2288 = vunpack.c.l.b16 %v765
        %v2289 = vunpack.c.h.b16 %v765
        %v2290 = vunpack.c.l.b16 %v766
        %v2291 = vunpack.c.h.b16 %v766
        %v2292 = vunpack.c.l.b16 %v767
        %v2293 = vunpack.c.h.b16 %v767
        %v2294 = vunpack.c.l.b16 %v768
        %v2295 = vunpack.c.h.b16 %v768
        %v2296 = vunpack.c.l.b16 %v769
        %v2297 = vunpack.c.h.b16 %v769
        %v2298 = vunpack.c.l.b16 %v770
        %v2299 = vunpack.c.h.b16 %v770
        %v2300 = vunpack.c.l.b16 %v771
        %v2301 = vunpack.c.h.b16 %v771
        %v2302 = vunpack.c.l.b16 %v772
        %v2303 = vunpack.c.h.b16 %v772
        %v2304 = vunpack.c.l.b16 %v773
        %v2305 = vunpack.c.h.b16 %v773
        %v2306 = vunpack.c.l.b16 %v774
        %v2307 = vunpack.c.h.b16 %v774
        %v2308 = vunpack.c.l.b16 %v775
        %v2309 = vunpack.c.h.b16 %v775
        %v2310 = vunpack.c.l.b16 %v776
        %v2311 = vunpack.c.h.b16 %v776
        %v2312 = vunpack.c.l.b16 %v777
        %v2313 = vunpack.c.h.b16 %v777
        %v2314 = vpack.c.b16 %v1306, %v1290
        %v2315 = vpack.c.b16 %v1307, %v1291
        %v2316 = vpack.c.b16 %v1308, %v1292
        %v2317 = vpack.c.b16 %v1309, %v1293
        %v2318 = vpack.c.b16 %v1310, %v1294
        %v2319 = vpack.c.b16 %v1311, %v1295
        %v2320 = vpack.c.b16 %v1312, %v1296
        %v2321 = vpack.c.b16 %v1313, %v1297
        %v2322 = vpack.c.b16 %v1314, %v1298
        %v2323 = vpack.c.b16 %v1315, %v1299
        %v2324 = vpack.c.b16 %v1316, %v1300
        %v2325 = vpack.c.b16 %v1317, %v1301
        %v2326 = vpack.c.b16 %v1318, %v1302
        %v2327 = vpack.c.b16 %v1319, %v1303
        %v2328 = vpack.c.b16 %v1320, %v1304
        %v2329 = vpack.c.b16 %v1321, %v1305
        %v2330 = vpack.c.b16 %v1338, %v1322
        %v2331 = vpack.c.b16 %v1339, %v1323
        %v2332 = vpack.c.b16 %v1340, %v1324
        %v2333 = vpack.c.b16 %v1341, %v1325
        %v2334 = vpack.c.b16 %v1342, %v1326
        %v2335 = vpack.c.b16 %v1343, %v1327
        %v2336 = vpack.c.b16 %v1344, %v1328
        %v2337 = vpack.c.b16 %v1345, %v1329
        %v2338 = vpack.c.b16 %v1346, %v1330
        %v2339 = vpack.c.b16 %v1347, %v1331
        %v2340 = vpack.c.b16 %v1348, %v1332
        %v2341 = vpack.c.b16 %v1349, %v1333
        %v2342 = vpack.c.b16 %v1350, %v1334
        %v2343 = vpack.c.b16 %v1351, %v1335
        %v2344 = vpack.c.b16 %v1352, %v1336
        %v2345 = vpack.c.b16 %v1353, %v1337
        %v2346 = vpack.c.b16 %v1370, %v1354
        %v2347 = vpack.c.b16 %v1371, %v1355
        %v2348 = vpack.c.b16 %v1372, %v1356
        %v2349 = vpack.c.b16 %v1373, %v1357
        %v2350 = vpack.c.b16 %v1374, %v1358
        %v2351 = vpack.c.b16 %v1375, %v1359
        %v2352 = vpack.c.b16 %v1376, %v1360
        %v2353 = vpack.c.b16 %v1377, %v1361
        %v2354 = vpack.c.b16 %v1378, %v1362
        %v2355 = vpack.c.b16 %v1379, %v1363
        %v2356 = vpack.c.b16 %v1380, %v1364
        %v2357 = vpack.c.b16 %v1381, %v1365
        %v2358 = vpack.c.b16 %v1382, %v1366
        %v2359 = vpack.c.b16 %v1383, %v1367
        %v2360 = vpack.c.b16 %v1384, %v1368
        %v2361 = vpack.c.b16 %v1385, %v1369
        %v2362 = vpack.c.b16 %v1402, %v1386
        %v2363 = vpack.c.b16 %v1403, %v1387
        %v2364 = vpack.c.b16 %v1404, %v1388
        %v2365 = vpack.c.b16 %v1405, %v1389
        %v2366 = vpack.c.b16 %v1406, %v1390
        %v2367 = vpack.c.b16 %v1407, %v1391
        %v2368 = vpack.c.b16 %v1408, %v1392
        %v2369 = vpack.c.b16 %v1409, %v1393
        %v2370 = vpack.c.b16 %v1410, %v1394
        %v2371 = vpack.c.b16 %v1411, %v1395
        %v2372 = vpack.c.b16 %v1412, %v1396
        %v2373 = vpack.c.b16 %v1413, %v1397
        %v2374 = vpack.c.b16 %v1414, %v1398
        %v2375 = vpack.c.b16 %v1415, %v1399
        %v2376 = vpack.c.b16 %v1416, %v1400
        %v2377 = vpack.c.b16 %v1417, %v1401
        %v2378 = vpack.c.b16 %v1434, %v1418
        %v2379 = vpack.c.b16 %v1435, %v1419
        %v2380 = vpack.c.b16 %v1436, %v1420
        %v2381 = vpack.c.b16 %v1437, %v1421
        %v2382 = vpack.c.b16 %v1438, %v1422
        %v2383 = vpack.c.b16 %v1439, %v1423
        %v2384 = vpack.c.b16 %v1440, %v1424
        %v2385 = vpack.c.b16 %v1441, %v1425
        %v2386 = vpack.c.b16 %v1442, %v1426
        %v2387 = vpack.c.b16 %v1443, %v1427
        %v2388 = vpack.c.b16 %v1444, %v1428
        %v2389 = vpack.c.b16 %v1445, %v1429
        %v2390 = vpack.c.b16 %v1446, %v1430
        %v2391 = vpack.c.b16 %v1447, %v1431
        %v2392 = vpack.c.b16 %v1448, %v1432
        %v2393 = vpack.c.b16 %v1449, %v1433
        %v2394 = vpack.c.b16 %v1466, %v1450
        %v2395 = vpack.c.b16 %v1467, %v1451
        %v2396 = vpack.c.b16 %v1468, %v1452
        %v2397 = vpack.c.b16 %v1469, %v1453
        %v2398 = vpack.c.b16 %v1470, %v1454
        %v2399 = vpack.c.b16 %v1471, %v1455
        %v2400 = vpack.c.b16 %v1472, %v1456
        %v2401 = vpack.c.b16 %v1473, %v1457
        %v2402 = vpack.c.b16 %v1474, %v1458
        %v2403 = vpack.c.b16 %v1475, %v1459
        %v2404 = vpack.c.b16 %v1476, %v1460
        %v2405 = vpack.c.b16 %v1477, %v1461
        %v2406 = vpack.c.b16 %v1478, %v1462
        %v2407 = vpack.c.b16 %v1479, %v1463
        %v2408 = vpack.c.b16 %v1480, %v1464
        %v2409 = vpack.c.b16 %v1481, %v1465
        %v2410 = vpack.c.b16 %v1498, %v1482
        %v2411 = vpack.c.b16 %v1499, %v1483
        %v2412 = vpack.c.b16 %v1500, %v1484
        %v2413 = vpack.c.b16 %v1501, %v1485
        %v2414 = vpack.c.b16 %v1502, %v1486
        %v2415 = vpack.c.b16 %v1503, %v1487
        %v2416 = vpack.c.b16 %v1504, %v1488
        %v2417 = vpack.c.b16 %v1505, %v1489
        %v2418 = vpack.c.b16 %v1506, %v1490
        %v2419 = vpack.c.b16 %v1507, %v1491
        %v2420 = vpack.c.b16 %v1508, %v1492
        %v2421 = vpack.c.b16 %v1509, %v1493
        %v2422 = vpack.c.b16 %v1510, %v1494
        %v2423 = vpack.c.b16 %v1511, %v1495
        %v2424 = vpack.c.b16 %v1512, %v1496
        %v2425 = vpack.c.b16 %v1513, %v1497
        %v2426 = vpack.c.b16 %v1530, %v1514
        %v2427 = vpack.c.b16 %v1531, %v1515
        %v2428 = vpack.c.b16 %v1532, %v1516
        %v2429 = vpack.c.b16 %v1533, %v1517
        %v2430 = vpack.c.b16 %v1534, %v1518
        %v2431 = vpack.c.b16 %v1535, %v1519
        %v2432 = vpack.c.b16 %v1536, %v1520
        %v2433 = vpack.c.b16 %v1537, %v1521
        %v2434 = vpack.c.b16 %v1538, %v1522
        %v2435 = vpack.c.b16 %v1539, %v1523
        %v2436 = vpack.c.b16 %v1540, %v1524
        %v2437 = vpack.c.b16 %v1541, %v1525
        %v2438 = vpack.c.b16 %v1542, %v1526
        %v2439 = vpack.c.b16 %v1543, %v1527
        %v2440 = vpack.c.b16 %v1544, %v1528
        %v2441 = vpack.c.b16 %v1545, %v1529
        %v2442 = vpack.c.b16 %v1562, %v1546
        %v2443 = vpack.c.b16 %v1563, %v1547
        %v2444 = vpack.c.b16 %v1564, %v1548
        %v2445 = vpack.c.b16 %v1565, %v1549
        %v2446 = vpack.c.b16 %v1566, %v1550
        %v2447 = vpack.c.b16 %v1567, %v1551
        %v2448 = vpack.c.b16 %v1568, %v1552
        %v2449 = vpack.c.b16 %v1569, %v1553
        %v2450 = vpack.c.b16 %v1570, %v1554
        %v2451 = vpack.c.b16 %v1571, %v1555
        %v2452 = vpack.c.b16 %v1572, %v1556
        %v2453 = vpack.c.b16 %v1573, %v1557
        %v2454 = vpack.c.b16 %v1574, %v1558
        %v2455 = vpack.c.b16 %v1575, %v1559
        %v2456 = vpack.c.b16 %v1576, %v1560
        %v2457 = vpack.c.b16 %v1577, %v1561
        %v2458 = vpack.c.b16 %v1594, %v1578
        %v2459 = vpack.c.b16 %v1595, %v1579
        %v2460 = vpack.c.b16 %v1596, %v1580
        %v2461 = vpack.c.b16 %v1597, %v1581
        %v2462 = vpack.c.b16 %v1598, %v1582
        %v2463 = vpack.c.b16 %v1599, %v1583
        %v2464 = vpack.c.b16 %v1600, %v1584
        %v2465 = vpack.c.b16 %v1601, %v1585
        %v2466 = vpack.c.b16 %v1602, %v1586
        %v2467 = vpack.c.b16 %v1603, %v1587
        %v2468 = vpack.c.b16 %v1604, %v1588
        %v2469 = vpack.c.b16 %v1605, %v1589
        %v2470 = vpack.c.b16 %v1606, %v1590
        %v2471 = vpack.c.b16 %v1607, %v1591
        %v2472 = vpack.c.b16 %v1608, %v1592
        %v2473 = vpack.c.b16 %v1609, %v1593
        %v2474 = vpack.c.b16 %v1626, %v1610
        %v2475 = vpack.c.b16 %v1627, %v1611
        %v2476 = vpack.c.b16 %v1628, %v1612
        %v2477 = vpack.c.b16 %v1629, %v1613
        %v2478 = vpack.c.b16 %v1630, %v1614
        %v2479 = vpack.c.b16 %v1631, %v1615
        %v2480 = vpack.c.b16 %v1632, %v1616
        %v2481 = vpack.c.b16 %v1633, %v1617
        %v2482 = vpack.c.b16 %v1634, %v1618
        %v2483 = vpack.c.b16 %v1635, %v1619
        %v2484 = vpack.c.b16 %v1636, %v1620
        %v2485 = vpack.c.b16 %v1637, %v1621
        %v2486 = vpack.c.b16 %v1638, %v1622
        %v2487 = vpack.c.b16 %v1639, %v1623
        %v2488 = vpack.c.b16 %v1640, %v1624
        %v2489 = vpack.c.b16 %v1641, %v1625
        %v2490 = vpack.c.b16 %v1658, %v1642
        %v2491 = vpack.c.b16 %v1659, %v1643
        %v2492 = vpack.c.b16 %v1660, %v1644
        %v2493 = vpack.c.b16 %v1661, %v1645
        %v2494 = vpack.c.b16 %v1662, %v1646
        %v2495 = vpack.c.b16 %v1663, %v1647
        %v2496 = vpack.c.b16 %v1664, %v1648
        %v2497 = vpack.c.b16 %v1665, %v1649
        %v2498 = vpack.c.b16 %v1666, %v1650
        %v2499 = vpack.c.b16 %v1667, %v1651
        %v2500 = vpack.c.b16 %v1668, %v1652
        %v2501 = vpack.c.b16 %v1669, %v1653
        %v2502 = vpack.c.b16 %v1670, %v1654
        %v2503 = vpack.c.b16 %v1671, %v1655
        %v2504 = vpack.c.b16 %v1672, %v1656
        %v2505 = vpack.c.b16 %v1673, %v1657
        %v2506 = vpack.c.b16 %v1690, %v1674
        %v2507 = vpack.c.b16 %v1691, %v1675
        %v2508 = vpack.c.b16 %v1692, %v1676
        %v2509 = vpack.c.b16 %v1693, %v1677
        %v2510 = vpack.c.b16 %v1694, %v1678
        %v2511 = vpack.c.b16 %v1695, %v1679
        %v2512 = vpack.c.b16 %v1696, %v1680
        %v2513 = vpack.c.b16 %v1697, %v1681
        %v2514 = vpack.c.b16 %v1698, %v1682
        %v2515 = vpack.c.b16 %v1699, %v1683
        %v2516 = vpack.c.b16 %v1700, %v1684
        %v2517 = vpack.c.b16 %v1701, %v1685
        %v2518 = vpack.c.b16 %v1702, %v1686
        %v2519 = vpack.c.b16 %v1703, %v1687
        %v2520 = vpack.c.b16 %v1704, %v1688
        %v2521 = vpack.c.b16 %v1705, %v1689
        %v2522 = vpack.c.b16 %v1722, %v1706
        %v2523 = vpack.c.b16 %v1723, %v1707
        %v2524 = vpack.c.b16 %v1724, %v1708
        %v2525 = vpack.c.b16 %v1725, %v1709
        %v2526 = vpack.c.b16 %v1726, %v1710
        %v2527 = vpack.c.b16 %v1727, %v1711
        %v2528 = vpack.c.b16 %v1728, %v1712
        %v2529 = vpack.c.b16 %v1729, %v1713
        %v2530 = vpack.c.b16 %v1730, %v1714
        %v2531 = vpack.c.b16 %v1731, %v1715
        %v2532 = vpack.c.b16 %v1732, %v1716
        %v2533 = vpack.c.b16 %v1733, %v1717
        %v2534 = vpack.c.b16 %v1734, %v1718
        %v2535 = vpack.c.b16 %v1735, %v1719
        %v2536 = vpack.c.b16 %v1736, %v1720
        %v2537 = vpack.c.b16 %v1737, %v1721
        %v2538 = vpack.c.b16 %v1754, %v1738
        %v2539 = vpack.c.b16 %v1755, %v1739
        %v2540 = vpack.c.b16 %v1756, %v1740
        %v2541 = vpack.c.b16 %v1757, %v1741
        %v2542 = vpack.c.b16 %v1758, %v1742
        %v2543 = vpack.c.b16 %v1759, %v1743
        %v2544 = vpack.c.b16 %v1760, %v1744
        %v2545 = vpack.c.b16 %v1761, %v1745
        %v2546 = vpack.c.b16 %v1762, %v1746
        %v2547 = vpack.c.b16 %v1763, %v1747
        %v2548 = vpack.c.b16 %v1764, %v1748
        %v2549 = vpack.c.b16 %v1765, %v1749
        %v2550 = vpack.c.b16 %v1766, %v1750
        %v2551 = vpack.c.b16 %v1767, %v1751
        %v2552 = vpack.c.b16 %v1768, %v1752
        %v2553 = vpack.c.b16 %v1769, %v1753
        %v2554 = vpack.c.b16 %v1786, %v1770
        %v2555 = vpack.c.b16 %v1787, %v1771
        %v2556 = vpack.c.b16 %v1788, %v1772
        %v2557 = vpack.c.b16 %v1789, %v1773
        %v2558 = vpack.c.b16 %v1790, %v1774
        %v2559 = vpack.c.b16 %v1791, %v1775
        %v2560 = vpack.c.b16 %v1792, %v1776
        %v2561 = vpack.c.b16 %v1793, %v1777
        %v2562 = vpack.c.b16 %v1794, %v1778
        %v2563 = vpack.c.b16 %v1795, %v1779
        %v2564 = vpack.c.b16 %v1796, %v1780
        %v2565 = vpack.c.b16 %v1797, %v1781
        %v2566 = vpack.c.b16 %v1798, %v1782
        %v2567 = vpack.c.b16 %v1799, %v1783
        %v2568 = vpack.c.b16 %v1800, %v1784
        %v2569 = vpack.c.b16 %v1801, %v1785
        %v2570 = vpack.c.b16 %v1818, %v1802
        %v2571 = vpack.c.b16 %v1819, %v1803
        %v2572 = vpack.c.b16 %v1820, %v1804
        %v2573 = vpack.c.b16 %v1821, %v1805
        %v2574 = vpack.c.b16 %v1822, %v1806
        %v2575 = vpack.c.b16 %v1823, %v1807
        %v2576 = vpack.c.b16 %v1824, %v1808
        %v2577 = vpack.c.b16 %v1825, %v1809
        %v2578 = vpack.c.b16 %v1826, %v1810
        %v2579 = vpack.c.b16 %v1827, %v1811
        %v2580 = vpack.c.b16 %v1828, %v1812
        %v2581 = vpack.c.b16 %v1829, %v1813
        %v2582 = vpack.c.b16 %v1830, %v1814
        %v2583 = vpack.c.b16 %v1831, %v1815
        %v2584 = vpack.c.b16 %v1832, %v1816
        %v2585 = vpack.c.b16 %v1833, %v1817
        %v2586 = vpack.c.b16 %v1850, %v1834
        %v2587 = vpack.c.b16 %v1851, %v1835
        %v2588 = vpack.c.b16 %v1852, %v1836
        %v2589 = vpack.c.b16 %v1853, %v1837
        %v2590 = vpack.c.b16 %v1854, %v1838
        %v2591 = vpack.c.b16 %v1855, %v1839
        %v2592 = vpack.c.b16 %v1856, %v1840
        %v2593 = vpack.c.b16 %v1857, %v1841
        %v2594 = vpack.c.b16 %v1858, %v1842
        %v2595 = vpack.c.b16 %v1859, %v1843
        %v2596 = vpack.c.b16 %v1860, %v1844
        %v2597 = vpack.c.b16 %v1861, %v1845
        %v2598 = vpack.c.b16 %v1862, %v1846
        %v2599 = vpack.c.b16 %v1863, %v1847
        %v2600 = vpack.c.b16 %v1864, %v1848
        %v2601 = vpack.c.b16 %v1865, %v1849
        %v2602 = vpack.c.b16 %v1882, %v1866
        %v2603 = vpack.c.b16 %v1883, %v1867
        %v2604 = vpack.c.b16 %v1884, %v1868
        %v2605 = vpack.c.b16 %v1885, %v1869
        %v2606 = vpack.c.b16 %v1886, %v1870
        %v2607 = vpack.c.b16 %v1887, %v1871
        %v2608 = vpack.c.b16 %v1888, %v1872
        %v2609 = vpack.c.b16 %v1889, %v1873
        %v2610 = vpack.c.b16 %v1890, %v1874
        %v2611 = vpack.c.b16 %v1891, %v1875
        %v2612 = vpack.c.b16 %v1892, %v1876
        %v2613 = vpack.c.b16 %v1893, %v1877
        %v2614 = vpack.c.b16 %v1894, %v1878
        %v2615 = vpack.c.b16 %v1895, %v1879
        %v2616 = vpack.c.b16 %v1896, %v1880
        %v2617 = vpack.c.b16 %v1897, %v1881
        %v2618 = vpack.c.b16 %v1914, %v1898
        %v2619 = vpack.c.b16 %v1915, %v1899
        %v2620 = vpack.c.b16 %v1916, %v1900
        %v2621 = vpack.c.b16 %v1917, %v1901
        %v2622 = vpack.c.b16 %v1918, %v1902
        %v2623 = vpack.c.b16 %v1919, %v1903
        %v2624 = vpack.c.b16 %v1920, %v1904
        %v2625 = vpack.c.b16 %v1921, %v1905
        %v2626 = vpack.c.b16 %v1922, %v1906
        %v2627 = vpack.c.b16 %v1923, %v1907
        %v2628 = vpack.c.b16 %v1924, %v1908
        %v2629 = vpack.c.b16 %v1925, %v1909
        %v2630 = vpack.c.b16 %v1926, %v1910
        %v2631 = vpack.c.b16 %v1927, %v1911
        %v2632 = vpack.c.b16 %v1928, %v1912
        %v2633 = vpack.c.b16 %v1929, %v1913
        %v2634 = vpack.c.b16 %v1946, %v1930
        %v2635 = vpack.c.b16 %v1947, %v1931
        %v2636 = vpack.c.b16 %v1948, %v1932
        %v2637 = vpack.c.b16 %v1949, %v1933
        %v2638 = vpack.c.b16 %v1950, %v1934
        %v2639 = vpack.c.b16 %v1951, %v1935
        %v2640 = vpack.c.b16 %v1952, %v1936
        %v2641 = vpack.c.b16 %v1953, %v1937
        %v2642 = vpack.c.b16 %v1954, %v1938
        %v2643 = vpack.c.b16 %v1955, %v1939
        %v2644 = vpack.c.b16 %v1956, %v1940
        %v2645 = vpack.c.b16 %v1957, %v1941
        %v2646 = vpack.c.b16 %v1958, %v1942
        %v2647 = vpack.c.b16 %v1959, %v1943
        %v2648 = vpack.c.b16 %v1960, %v1944
        %v2649 = vpack.c.b16 %v1961, %v1945
        %v2650 = vpack.c.b16 %v1978, %v1962
        %v2651 = vpack.c.b16 %v1979, %v1963
        %v2652 = vpack.c.b16 %v1980, %v1964
        %v2653 = vpack.c.b16 %v1981, %v1965
        %v2654 = vpack.c.b16 %v1982, %v1966
        %v2655 = vpack.c.b16 %v1983, %v1967
        %v2656 = vpack.c.b16 %v1984, %v1968
        %v2657 = vpack.c.b16 %v1985, %v1969
        %v2658 = vpack.c.b16 %v1986, %v1970
        %v2659 = vpack.c.b16 %v1987, %v1971
        %v2660 = vpack.c.b16 %v1988, %v1972
        %v2661 = vpack.c.b16 %v1989, %v1973
        %v2662 = vpack.c.b16 %v1990, %v1974
        %v2663 = vpack.c.b16 %v1991, %v1975
        %v2664 = vpack.c.b16 %v1992, %v1976
        %v2665 = vpack.c.b16 %v1993, %v1977
        %v2666 = vpack.c.b16 %v2010, %v1994
        %v2667 = vpack.c.b16 %v2011, %v1995
        %v2668 = vpack.c.b16 %v2012, %v1996
        %v2669 = vpack.c.b16 %v2013, %v1997
        %v2670 = vpack.c.b16 %v2014, %v1998
        %v2671 = vpack.c.b16 %v2015, %v1999
        %v2672 = vpack.c.b16 %v2016, %v2000
        %v2673 = vpack.c.b16 %v2017, %v2001
        %v2674 = vpack.c.b16 %v2018, %v2002
        %v2675 = vpack.c.b16 %v2019, %v2003
        %v2676 = vpack.c.b16 %v2020, %v2004
        %v2677 = vpack.c.b16 %v2021, %v2005
        %v2678 = vpack.c.b16 %v2022, %v2006
        %v2679 = vpack.c.b16 %v2023, %v2007
        %v2680 = vpack.c.b16 %v2024, %v2008
        %v2681 = vpack.c.b16 %v2025, %v2009
        %v2682 = vpack.c.b16 %v2042, %v2026
        %v2683 = vpack.c.b16 %v2043, %v2027
        %v2684 = vpack.c.b16 %v2044, %v2028
        %v2685 = vpack.c.b16 %v2045, %v2029
        %v2686 = vpack.c.b16 %v2046, %v2030
        %v2687 = vpack.c.b16 %v2047, %v2031
        %v2688 = vpack.c.b16 %v2048, %v2032
        %v2689 = vpack.c.b16 %v2049, %v2033
        %v2690 = vpack.c.b16 %v2050, %v2034
        %v2691 = vpack.c.b16 %v2051, %v2035
        %v2692 = vpack.c.b16 %v2052, %v2036
        %v2693 = vpack.c.b16 %v2053, %v2037
        %v2694 = vpack.c.b16 %v2054, %v2038
        %v2695 = vpack.c.b16 %v2055, %v2039
        %v2696 = vpack.c.b16 %v2056, %v2040
        %v2697 = vpack.c.b16 %v2057, %v2041
        %v2698 = vpack.c.b16 %v2074, %v2058
        %v2699 = vpack.c.b16 %v2075, %v2059
        %v2700 = vpack.c.b16 %v2076, %v2060
        %v2701 = vpack.c.b16 %v2077, %v2061
        %v2702 = vpack.c.b16 %v2078, %v2062
        %v2703 = vpack.c.b16 %v2079, %v2063
        %v2704 = vpack.c.b16 %v2080, %v2064
        %v2705 = vpack.c.b16 %v2081, %v2065
        %v2706 = vpack.c.b16 %v2082, %v2066
        %v2707 = vpack.c.b16 %v2083, %v2067
        %v2708 = vpack.c.b16 %v2084, %v2068
        %v2709 = vpack.c.b16 %v2085, %v2069
        %v2710 = vpack.c.b16 %v2086, %v2070
        %v2711 = vpack.c.b16 %v2087, %v2071
        %v2712 = vpack.c.b16 %v2088, %v2072
        %v2713 = vpack.c.b16 %v2089, %v2073
        %v2714 = vpack.c.b16 %v2106, %v2090
        %v2715 = vpack.c.b16 %v2107, %v2091
        %v2716 = vpack.c.b16 %v2108, %v2092
        %v2717 = vpack.c.b16 %v2109, %v2093
        %v2718 = vpack.c.b16 %v2110, %v2094
        %v2719 = vpack.c.b16 %v2111, %v2095
        %v2720 = vpack.c.b16 %v2112, %v2096
        %v2721 = vpack.c.b16 %v2113, %v2097
        %v2722 = vpack.c.b16 %v2114, %v2098
        %v2723 = vpack.c.b16 %v2115, %v2099
        %v2724 = vpack.c.b16 %v2116, %v2100
        %v2725 = vpack.c.b16 %v2117, %v2101
        %v2726 = vpack.c.b16 %v2118, %v2102
        %v2727 = vpack.c.b16 %v2119, %v2103
        %v2728 = vpack.c.b16 %v2120, %v2104
        %v2729 = vpack.c.b16 %v2121, %v2105
        %v2730 = vpack.c.b16 %v2138, %v2122
        %v2731 = vpack.c.b16 %v2139, %v2123
        %v2732 = vpack.c.b16 %v2140, %v2124
        %v2733 = vpack.c.b16 %v2141, %v2125
        %v2734 = vpack.c.b16 %v2142, %v2126
        %v2735 = vpack.c.b16 %v2143, %v2127
        %v2736 = vpack.c.b16 %v2144, %v2128
        %v2737 = vpack.c.b16 %v2145, %v2129
        %v2738 = vpack.c.b16 %v2146, %v2130
        %v2739 = vpack.c.b16 %v2147, %v2131
        %v2740 = vpack.c.b16 %v2148, %v2132
        %v2741 = vpack.c.b16 %v2149, %v2133
        %v2742 = vpack.c.b16 %v2150, %v2134
        %v2743 = vpack.c.b16 %v2151, %v2135
        %v2744 = vpack.c.b16 %v2152, %v2136
        %v2745 = vpack.c.b16 %v2153, %v2137
        %v2746 = vpack.c.b16 %v2170, %v2154
        %v2747 = vpack.c.b16 %v2171, %v2155
        %v2748 = vpack.c.b16 %v2172, %v2156
        %v2749 = vpack.c.b16 %v2173, %v2157
        %v2750 = vpack.c.b16 %v2174, %v2158
        %v2751 = vpack.c.b16 %v2175, %v2159
        %v2752 = vpack.c.b16 %v2176, %v2160
        %v2753 = vpack.c.b16 %v2177, %v2161
        %v2754 = vpack.c.b16 %v2178, %v2162
        %v2755 = vpack.c.b16 %v2179, %v2163
        %v2756 = vpack.c.b16 %v2180, %v2164
        %v2757 = vpack.c.b16 %v2181, %v2165
        %v2758 = vpack.c.b16 %v2182, %v2166
        %v2759 = vpack.c.b16 %v2183, %v2167
        %v2760 = vpack.c.b16 %v2184, %v2168
        %v2761 = vpack.c.b16 %v2185, %v2169
        %v2762 = vpack.c.b16 %v2202, %v2186
        %v2763 = vpack.c.b16 %v2203, %v2187
        %v2764 = vpack.c.b16 %v2204, %v2188
        %v2765 = vpack.c.b16 %v2205, %v2189
        %v2766 = vpack.c.b16 %v2206, %v2190
        %v2767 = vpack.c.b16 %v2207, %v2191
        %v2768 = vpack.c.b16 %v2208, %v2192
        %v2769 = vpack.c.b16 %v2209, %v2193
        %v2770 = vpack.c.b16 %v2210, %v2194
        %v2771 = vpack.c.b16 %v2211, %v2195
        %v2772 = vpack.c.b16 %v2212, %v2196
        %v2773 = vpack.c.b16 %v2213, %v2197
        %v2774 = vpack.c.b16 %v2214, %v2198
        %v2775 = vpack.c.b16 %v2215, %v2199
        %v2776 = vpack.c.b16 %v2216, %v2200
        %v2777 = vpack.c.b16 %v2217, %v2201
        %v2778 = vpack.c.b16 %v2234, %v2218
        %v2779 = vpack.c.b16 %v2235, %v2219
        %v2780 = vpack.c.b16 %v2236, %v2220
        %v2781 = vpack.c.b16 %v2237, %v2221
        %v2782 = vpack.c.b16 %v2238, %v2222
        %v2783 = vpack.c.b16 %v2239, %v2223
        %v2784 = vpack.c.b16 %v2240, %v2224
        %v2785 = vpack.c.b16 %v2241, %v2225
        %v2786 = vpack.c.b16 %v2242, %v2226
        %v2787 = vpack.c.b16 %v2243, %v2227
        %v2788 = vpack.c.b16 %v2244, %v2228
        %v2789 = vpack.c.b16 %v2245, %v2229
        %v2790 = vpack.c.b16 %v2246, %v2230
        %v2791 = vpack.c.b16 %v2247, %v2231
        %v2792 = vpack.c.b16 %v2248, %v2232
        %v2793 = vpack.c.b16 %v2249, %v2233
        %v2794 = vpack.c.b16 %v2266, %v2250
        %v2795 = vpack.c.b16 %v2267, %v2251
        %v2796 = vpack.c.b16 %v2268, %v2252
        %v2797 = vpack.c.b16 %v2269, %v2253
        %v2798 = vpack.c.b16 %v2270, %v2254
        %v2799 = vpack.c.b16 %v2271, %v2255
        %v2800 = vpack.c.b16 %v2272, %v2256
        %v2801 = vpack.c.b16 %v2273, %v2257
        %v2802 = vpack.c.b16 %v2274, %v2258
        %v2803 = vpack.c.b16 %v2275, %v2259
        %v2804 = vpack.c.b16 %v2276, %v2260
        %v2805 = vpack.c.b16 %v2277, %v2261
        %v2806 = vpack.c.b16 %v2278, %v2262
        %v2807 = vpack.c.b16 %v2279, %v2263
        %v2808 = vpack.c.b16 %v2280, %v2264
        %v2809 = vpack.c.b16 %v2281, %v2265
        %v2810 = vpack.c.b16 %v2298, %v2282
        %v2811 = vpack.c.b16 %v2299, %v2283
        %v2812 = vpack.c.b16 %v2300, %v2284
        %v2813 = vpack.c.b16 %v2301, %v2285
        %v2814 = vpack.c.b16 %v2302, %v2286
        %v2815 = vpack.c.b16 %v2303, %v2287
        %v2816 = vpack.c.b16 %v2304, %v2288
        %v2817 = vpack.c.b16 %v2305, %v2289
        %v2818 = vpack.c.b16 %v2306, %v2290
        %v2819 = vpack.c.b16 %v2307, %v2291
        %v2820 = vpack.c.b16 %v2308, %v2292
        %v2821 = vpack.c.b16 %v2309, %v2293
        %v2822 = vpack.c.b16 %v2310, %v2294
        %v2823 = vpack.c.b16 %v2311, %v2295
        %v2824 = vpack.c.b16 %v2312, %v2296
        %v2825 = vpack.c.b16 %v2313, %v2297
        %3338 = vmatprep.subr.bf16.mxu0 %v2315
        %3339 = vmatpush1.bf16.msra.mxu0 %v2314
        %3340 = vmatprep.subr.bf16.mxu0 %v2331
        %3341 = vmatpush1.bf16.msra.mxu0 %v2330
        %3342 = vmatprep.subr.bf16.mxu0 %v2347
        %3343 = vmatpush1.bf16.msra.mxu0 %v2346
        %3344 = vmatprep.subr.bf16.mxu0 %v2363
        %3345 = vmatpush1.bf16.msra.mxu0 %v2362
        %3346 = vmatprep.subr.bf16.mxu0 %v2379
        %3347 = vmatpush1.bf16.msra.mxu0 %v2378
        %3348 = vmatprep.subr.bf16.mxu0 %v2395
        %3349 = vmatpush1.bf16.msra.mxu0 %v2394
        %3350 = vmatprep.subr.bf16.mxu0 %v2411
        %3351 = vmatpush1.bf16.msra.mxu0 %v2410
        %3352 = vmatprep.subr.bf16.mxu0 %v2427
        %3353 = vmatpush1.bf16.msra.mxu0 %v2426
        %3354 = vmatprep.subr.bf16.mxu0 %v2443
        %3355 = vmatpush1.bf16.msra.mxu0 %v2442
        %3356 = vmatprep.subr.bf16.mxu0 %v2459
        %3357 = vmatpush1.bf16.msra.mxu0 %v2458
        %3358 = vmatprep.subr.bf16.mxu0 %v2475
        %3359 = vmatpush1.bf16.msra.mxu0 %v2474
        %3360 = vmatprep.subr.bf16.mxu0 %v2491
        %3361 = vmatpush1.bf16.msra.mxu0 %v2490
        %3362 = vmatprep.subr.bf16.mxu0 %v2507
        %3363 = vmatpush1.bf16.msra.mxu0 %v2506
        %3364 = vmatprep.subr.bf16.mxu0 %v2523
        %3365 = vmatpush1.bf16.msra.mxu0 %v2522
        %3366 = vmatprep.subr.bf16.mxu0 %v2539
        %3367 = vmatpush1.bf16.msra.mxu0 %v2538
        %3368 = vmatprep.subr.bf16.mxu0 %v2555
        %3369 = vmatpush1.bf16.msra.mxu0 %v2554
        %3370 = vmatprep.mubr.bf16.mxu0 0
        %3371 = vmatmul.mubr.bf16.gmra.mrb[0].mxu0 0
        %v3372 = vpop.f32.mrb[0].mxu0
        %v3373 = vadd.f32 0.0, %v3372
        %v3374 = vpop.f32.mrb[0].mxu0
        %v3375 = vadd.f32 0.0, %v3374
        %v3376 = vpop.f32.mrb[0].mxu0
        %v3377 = vpop.f32.mrb[0].mxu0
        %3378 = vdwg.mxu0
        %3379 = vmatprep.subr.bf16.mxu0 %v2571
        %3380 = vmatpush1.bf16.msra.mxu0 %v2570
        %3381 = vmatprep.subr.bf16.mxu0 %v2587
        %3382 = vmatpush1.bf16.msra.mxu0 %v2586
        %3383 = vmatprep.subr.bf16.mxu0 %v2603
        %3384 = vmatpush1.bf16.msra.mxu0 %v2602
        %3385 = vmatprep.subr.bf16.mxu0 %v2619
        %3386 = vmatpush1.bf16.msra.mxu0 %v2618
        %3387 = vmatprep.subr.bf16.mxu0 %v2635
        %3388 = vmatpush1.bf16.msra.mxu0 %v2634
        %3389 = vmatprep.subr.bf16.mxu0 %v2651
        %3390 = vmatpush1.bf16.msra.mxu0 %v2650
        %3391 = vmatprep.subr.bf16.mxu0 %v2667
        %3392 = vmatpush1.bf16.msra.mxu0 %v2666
        %3393 = vmatprep.subr.bf16.mxu0 %v2683
        %3394 = vmatpush1.bf16.msra.mxu0 %v2682
        %3395 = vmatprep.subr.bf16.mxu0 %v2699
        %3396 = vmatpush1.bf16.msra.mxu0 %v2698
        %3397 = vmatprep.subr.bf16.mxu0 %v2715
        %3398 = vmatpush1.bf16.msra.mxu0 %v2714
        %3399 = vmatprep.subr.bf16.mxu0 %v2731
        %3400 = vmatpush1.bf16.msra.mxu0 %v2730
        %3401 = vmatprep.subr.bf16.mxu0 %v2747
        %3402 = vmatpush1.bf16.msra.mxu0 %v2746
        %3403 = vmatprep.subr.bf16.mxu0 %v2763
        %3404 = vmatpush1.bf16.msra.mxu0 %v2762
        %3405 = vmatprep.subr.bf16.mxu0 %v2779
        %3406 = vmatpush1.bf16.msra.mxu0 %v2778
        %3407 = vmatprep.subr.bf16.mxu0 %v2795
        %3408 = vmatpush1.bf16.msra.mxu0 %v2794
        %3409 = vmatprep.subr.bf16.mxu0 %v2811
        %3410 = vmatpush1.bf16.msra.mxu0 %v2810
        %3411 = vmatprep.mubr.bf16.mxu0 0
        %3412 = vmatmul.mubr.bf16.gmra.mrb[0].mxu0 0
        %v3413 = vpop.f32.mrb[0].mxu0
        %v3414 = vadd.f32 %v3373, %v3413
        %v3415 = vpop.f32.mrb[0].mxu0
        %v3416 = vadd.f32 %v3375, %v3415
        %v3417 = vpop.f32.mrb[0].mxu0
        %v3418 = vpop.f32.mrb[0].mxu0
        %3419 = vdwg.mxu0
        %3420 = vmatprep.subr.bf16.mxu0 %v2317
        %3421 = vmatpush1.bf16.msra.mxu0 %v2316
        %3422 = vmatprep.subr.bf16.mxu0 %v2333
        %3423 = vmatpush1.bf16.msra.mxu0 %v2332
        %3424 = vmatprep.subr.bf16.mxu0 %v2349
        %3425 = vmatpush1.bf16.msra.mxu0 %v2348
        %3426 = vmatprep.subr.bf16.mxu0 %v2365
        %3427 = vmatpush1.bf16.msra.mxu0 %v2364
        %3428 = vmatprep.subr.bf16.mxu0 %v2381
        %3429 = vmatpush1.bf16.msra.mxu0 %v2380
        %3430 = vmatprep.subr.bf16.mxu0 %v2397
        %3431 = vmatpush1.bf16.msra.mxu0 %v2396
        %3432 = vmatprep.subr.bf16.mxu0 %v2413
        %3433 = vmatpush1.bf16.msra.mxu0 %v2412
        %3434 = vmatprep.subr.bf16.mxu0 %v2429
        %3435 = vmatpush1.bf16.msra.mxu0 %v2428
        %3436 = vmatprep.subr.bf16.mxu0 %v2445
        %3437 = vmatpush1.bf16.msra.mxu0 %v2444
        %3438 = vmatprep.subr.bf16.mxu0 %v2461
        %3439 = vmatpush1.bf16.msra.mxu0 %v2460
        %3440 = vmatprep.subr.bf16.mxu0 %v2477
        %3441 = vmatpush1.bf16.msra.mxu0 %v2476
        %3442 = vmatprep.subr.bf16.mxu0 %v2493
        %3443 = vmatpush1.bf16.msra.mxu0 %v2492
        %3444 = vmatprep.subr.bf16.mxu0 %v2509
        %3445 = vmatpush1.bf16.msra.mxu0 %v2508
        %3446 = vmatprep.subr.bf16.mxu0 %v2525
        %3447 = vmatpush1.bf16.msra.mxu0 %v2524
        %3448 = vmatprep.subr.bf16.mxu0 %v2541
        %3449 = vmatpush1.bf16.msra.mxu0 %v2540
        %3450 = vmatprep.subr.bf16.mxu0 %v2557
        %3451 = vmatpush1.bf16.msra.mxu0 %v2556
        %3452 = vmatprep.mubr.bf16.mxu0 0
        %3453 = vmatmul.mubr.bf16.gmra.mrb[0].mxu0 0
        %v3454 = vpop.f32.mrb[0].mxu0
        %v3455 = vadd.f32 0.0, %v3454
        %v3456 = vpop.f32.mrb[0].mxu0
        %v3457 = vadd.f32 0.0, %v3456
        %v3458 = vpop.f32.mrb[0].mxu0
        %v3459 = vpop.f32.mrb[0].mxu0
        %3460 = vdwg.mxu0
        %3461 = vmatprep.subr.bf16.mxu0 %v2573
        %3462 = vmatpush1.bf16.msra.mxu0 %v2572
        %3463 = vmatprep.subr.bf16.mxu0 %v2589
        %3464 = vmatpush1.bf16.msra.mxu0 %v2588
        %3465 = vmatprep.subr.bf16.mxu0 %v2605
        %3466 = vmatpush1.bf16.msra.mxu0 %v2604
        %3467 = vmatprep.subr.bf16.mxu0 %v2621
        %3468 = vmatpush1.bf16.msra.mxu0 %v2620
        %3469 = vmatprep.subr.bf16.mxu0 %v2637
        %3470 = vmatpush1.bf16.msra.mxu0 %v2636
        %3471 = vmatprep.subr.bf16.mxu0 %v2653
        %3472 = vmatpush1.bf16.msra.mxu0 %v2652
        %3473 = vmatprep.subr.bf16.mxu0 %v2669
        %3474 = vmatpush1.bf16.msra.mxu0 %v2668
        %3475 = vmatprep.subr.bf16.mxu0 %v2685
        %3476 = vmatpush1.bf16.msra.mxu0 %v2684
        %3477 = vmatprep.subr.bf16.mxu0 %v2701
        %3478 = vmatpush1.bf16.msra.mxu0 %v2700
        %3479 = vmatprep.subr.bf16.mxu0 %v2717
        %3480 = vmatpush1.bf16.msra.mxu0 %v2716
        %3481 = vmatprep.subr.bf16.mxu0 %v2733
        %3482 = vmatpush1.bf16.msra.mxu0 %v2732
        %3483 = vmatprep.subr.bf16.mxu0 %v2749
        %3484 = vmatpush1.bf16.msra.mxu0 %v2748
        %3485 = vmatprep.subr.bf16.mxu0 %v2765
        %3486 = vmatpush1.bf16.msra.mxu0 %v2764
        %3487 = vmatprep.subr.bf16.mxu0 %v2781
        %3488 = vmatpush1.bf16.msra.mxu0 %v2780
        %3489 = vmatprep.subr.bf16.mxu0 %v2797
        %3490 = vmatpush1.bf16.msra.mxu0 %v2796
        %3491 = vmatprep.subr.bf16.mxu0 %v2813
        %3492 = vmatpush1.bf16.msra.mxu0 %v2812
        %3493 = vmatprep.mubr.bf16.mxu0 0
        %3494 = vmatmul.mubr.bf16.gmra.mrb[0].mxu0 0
        %v3495 = vpop.f32.mrb[0].mxu0
        %v3496 = vadd.f32 %v3455, %v3495
        %v3497 = vpop.f32.mrb[0].mxu0
        %v3498 = vadd.f32 %v3457, %v3497
        %v3499 = vpop.f32.mrb[0].mxu0
        %v3500 = vpop.f32.mrb[0].mxu0
        %3501 = vdwg.mxu0
        %3502 = vmatprep.subr.bf16.mxu0 %v2319
        %3503 = vmatpush1.bf16.msra.mxu0 %v2318
        %3504 = vmatprep.subr.bf16.mxu0 %v2335
        %3505 = vmatpush1.bf16.msra.mxu0 %v2334
        %3506 = vmatprep.subr.bf16.mxu0 %v2351
        %3507 = vmatpush1.bf16.msra.mxu0 %v2350
        %3508 = vmatprep.subr.bf16.mxu0 %v2367
        %3509 = vmatpush1.bf16.msra.mxu0 %v2366
        %3510 = vmatprep.subr.bf16.mxu0 %v2383
        %3511 = vmatpush1.bf16.msra.mxu0 %v2382
        %3512 = vmatprep.subr.bf16.mxu0 %v2399
        %3513 = vmatpush1.bf16.msra.mxu0 %v2398
        %3514 = vmatprep.subr.bf16.mxu0 %v2415
        %3515 = vmatpush1.bf16.msra.mxu0 %v2414
        %3516 = vmatprep.subr.bf16.mxu0 %v2431
        %3517 = vmatpush1.bf16.msra.mxu0 %v2430
        %3518 = vmatprep.subr.bf16.mxu0 %v2447
        %3519 = vmatpush1.bf16.msra.mxu0 %v2446
        %3520 = vmatprep.subr.bf16.mxu0 %v2463
        %3521 = vmatpush1.bf16.msra.mxu0 %v2462
        %3522 = vmatprep.subr.bf16.mxu0 %v2479
        %3523 = vmatpush1.bf16.msra.mxu0 %v2478
        %3524 = vmatprep.subr.bf16.mxu0 %v2495
        %3525 = vmatpush1.bf16.msra.mxu0 %v2494
        %3526 = vmatprep.subr.bf16.mxu0 %v2511
        %3527 = vmatpush1.bf16.msra.mxu0 %v2510
        %3528 = vmatprep.subr.bf16.mxu0 %v2527
        %3529 = vmatpush1.bf16.msra.mxu0 %v2526
        %3530 = vmatprep.subr.bf16.mxu0 %v2543
        %3531 = vmatpush1.bf16.msra.mxu0 %v2542
        %3532 = vmatprep.subr.bf16.mxu0 %v2559
        %3533 = vmatpush1.bf16.msra.mxu0 %v2558
        %3534 = vmatprep.mubr.bf16.mxu0 0
        %3535 = vmatmul.mubr.bf16.gmra.mrb[0].mxu0 0
        %v3536 = vpop.f32.mrb[0].mxu0
        %v3537 = vadd.f32 0.0, %v3536
        %v3538 = vpop.f32.mrb[0].mxu0
        %v3539 = vadd.f32 0.0, %v3538
        %v3540 = vpop.f32.mrb[0].mxu0
        %v3541 = vpop.f32.mrb[0].mxu0
        %3542 = vdwg.mxu0
        %3543 = vmatprep.subr.bf16.mxu0 %v2575
        %3544 = vmatpush1.bf16.msra.mxu0 %v2574
        %3545 = vmatprep.subr.bf16.mxu0 %v2591
        %3546 = vmatpush1.bf16.msra.mxu0 %v2590
        %3547 = vmatprep.subr.bf16.mxu0 %v2607
        %3548 = vmatpush1.bf16.msra.mxu0 %v2606
        %3549 = vmatprep.subr.bf16.mxu0 %v2623
        %3550 = vmatpush1.bf16.msra.mxu0 %v2622
        %3551 = vmatprep.subr.bf16.mxu0 %v2639
        %3552 = vmatpush1.bf16.msra.mxu0 %v2638
        %3553 = vmatprep.subr.bf16.mxu0 %v2655
        %3554 = vmatpush1.bf16.msra.mxu0 %v2654
        %3555 = vmatprep.subr.bf16.mxu0 %v2671
        %3556 = vmatpush1.bf16.msra.mxu0 %v2670
        %3557 = vmatprep.subr.bf16.mxu0 %v2687
        %3558 = vmatpush1.bf16.msra.mxu0 %v2686
        %3559 = vmatprep.subr.bf16.mxu0 %v2703
        %3560 = vmatpush1.bf16.msra.mxu0 %v2702
        %3561 = vmatprep.subr.bf16.mxu0 %v2719
        %3562 = vmatpush1.bf16.msra.mxu0 %v2718
        %3563 = vmatprep.subr.bf16.mxu0 %v2735
        %3564 = vmatpush1.bf16.msra.mxu0 %v2734
        %3565 = vmatprep.subr.bf16.mxu0 %v2751
        %3566 = vmatpush1.bf16.msra.mxu0 %v2750
        %3567 = vmatprep.subr.bf16.mxu0 %v2767
        %3568 = vmatpush1.bf16.msra.mxu0 %v2766
        %3569 = vmatprep.subr.bf16.mxu0 %v2783
        %3570 = vmatpush1.bf16.msra.mxu0 %v2782
        %3571 = vmatprep.subr.bf16.mxu0 %v2799
        %3572 = vmatpush1.bf16.msra.mxu0 %v2798
        %3573 = vmatprep.subr.bf16.mxu0 %v2815
        %3574 = vmatpush1.bf16.msra.mxu0 %v2814
        %3575 = vmatprep.mubr.bf16.mxu0 0
        %3576 = vmatmul.mubr.bf16.gmra.mrb[0].mxu0 0
        %v3577 = vpop.f32.mrb[0].mxu0
        %v3578 = vadd.f32 %v3537, %v3577
        %v3579 = vpop.f32.mrb[0].mxu0
        %v3580 = vadd.f32 %v3539, %v3579
        %v3581 = vpop.f32.mrb[0].mxu0
        %v3582 = vpop.f32.mrb[0].mxu0
        %3583 = vdwg.mxu0
        %3584 = vmatprep.subr.bf16.mxu0 %v2321
        %3585 = vmatpush1.bf16.msra.mxu0 %v2320
        %3586 = vmatprep.subr.bf16.mxu0 %v2337
        %3587 = vmatpush1.bf16.msra.mxu0 %v2336
        %3588 = vmatprep.subr.bf16.mxu0 %v2353
        %3589 = vmatpush1.bf16.msra.mxu0 %v2352
        %3590 = vmatprep.subr.bf16.mxu0 %v2369
        %3591 = vmatpush1.bf16.msra.mxu0 %v2368
        %3592 = vmatprep.subr.bf16.mxu0 %v2385
        %3593 = vmatpush1.bf16.msra.mxu0 %v2384
        %3594 = vmatprep.subr.bf16.mxu0 %v2401
        %3595 = vmatpush1.bf16.msra.mxu0 %v2400
        %3596 = vmatprep.subr.bf16.mxu0 %v2417
        %3597 = vmatpush1.bf16.msra.mxu0 %v2416
        %3598 = vmatprep.subr.bf16.mxu0 %v2433
        %3599 = vmatpush1.bf16.msra.mxu0 %v2432
        %3600 = vmatprep.subr.bf16.mxu0 %v2449
        %3601 = vmatpush1.bf16.msra.mxu0 %v2448
        %3602 = vmatprep.subr.bf16.mxu0 %v2465
        %3603 = vmatpush1.bf16.msra.mxu0 %v2464
        %3604 = vmatprep.subr.bf16.mxu0 %v2481
        %3605 = vmatpush1.bf16.msra.mxu0 %v2480
        %3606 = vmatprep.subr.bf16.mxu0 %v2497
        %3607 = vmatpush1.bf16.msra.mxu0 %v2496
        %3608 = vmatprep.subr.bf16.mxu0 %v2513
        %3609 = vmatpush1.bf16.msra.mxu0 %v2512
        %3610 = vmatprep.subr.bf16.mxu0 %v2529
        %3611 = vmatpush1.bf16.msra.mxu0 %v2528
        %3612 = vmatprep.subr.bf16.mxu0 %v2545
        %3613 = vmatpush1.bf16.msra.mxu0 %v2544
        %3614 = vmatprep.subr.bf16.mxu0 %v2561
        %3615 = vmatpush1.bf16.msra.mxu0 %v2560
        %3616 = vmatprep.mubr.bf16.mxu0 0
        %3617 = vmatmul.mubr.bf16.gmra.mrb[0].mxu0 0
        %v3618 = vpop.f32.mrb[0].mxu0
        %v3619 = vadd.f32 0.0, %v3618
        %v3620 = vpop.f32.mrb[0].mxu0
        %v3621 = vadd.f32 0.0, %v3620
        %v3622 = vpop.f32.mrb[0].mxu0
        %v3623 = vpop.f32.mrb[0].mxu0
        %3624 = vdwg.mxu0
        %3625 = vmatprep.subr.bf16.mxu0 %v2577
        %3626 = vmatpush1.bf16.msra.mxu0 %v2576
        %3627 = vmatprep.subr.bf16.mxu0 %v2593
        %3628 = vmatpush1.bf16.msra.mxu0 %v2592
        %3629 = vmatprep.subr.bf16.mxu0 %v2609
        %3630 = vmatpush1.bf16.msra.mxu0 %v2608
        %3631 = vmatprep.subr.bf16.mxu0 %v2625
        %3632 = vmatpush1.bf16.msra.mxu0 %v2624
        %3633 = vmatprep.subr.bf16.mxu0 %v2641
        %3634 = vmatpush1.bf16.msra.mxu0 %v2640
        %3635 = vmatprep.subr.bf16.mxu0 %v2657
        %3636 = vmatpush1.bf16.msra.mxu0 %v2656
        %3637 = vmatprep.subr.bf16.mxu0 %v2673
        %3638 = vmatpush1.bf16.msra.mxu0 %v2672
        %3639 = vmatprep.subr.bf16.mxu0 %v2689
        %3640 = vmatpush1.bf16.msra.mxu0 %v2688
        %3641 = vmatprep.subr.bf16.mxu0 %v2705
        %3642 = vmatpush1.bf16.msra.mxu0 %v2704
        %3643 = vmatprep.subr.bf16.mxu0 %v2721
        %3644 = vmatpush1.bf16.msra.mxu0 %v2720
        %3645 = vmatprep.subr.bf16.mxu0 %v2737
        %3646 = vmatpush1.bf16.msra.mxu0 %v2736
        %3647 = vmatprep.subr.bf16.mxu0 %v2753
        %3648 = vmatpush1.bf16.msra.mxu0 %v2752
        %3649 = vmatprep.subr.bf16.mxu0 %v2769
        %3650 = vmatpush1.bf16.msra.mxu0 %v2768
        %3651 = vmatprep.subr.bf16.mxu0 %v2785
        %3652 = vmatpush1.bf16.msra.mxu0 %v2784
        %3653 = vmatprep.subr.bf16.mxu0 %v2801
        %3654 = vmatpush1.bf16.msra.mxu0 %v2800
        %3655 = vmatprep.subr.bf16.mxu0 %v2817
        %3656 = vmatpush1.bf16.msra.mxu0 %v2816
        %3657 = vmatprep.mubr.bf16.mxu0 0
        %3658 = vmatmul.mubr.bf16.gmra.mrb[0].mxu0 0
        %v3659 = vpop.f32.mrb[0].mxu0
        %v3660 = vadd.f32 %v3619, %v3659
        %v3661 = vpop.f32.mrb[0].mxu0
        %v3662 = vadd.f32 %v3621, %v3661
        %v3663 = vpop.f32.mrb[0].mxu0
        %v3664 = vpop.f32.mrb[0].mxu0
        %3665 = vdwg.mxu0
        %3666 = vmatprep.subr.bf16.mxu0 %v2323
        %3667 = vmatpush1.bf16.msra.mxu0 %v2322
        %3668 = vmatprep.subr.bf16.mxu0 %v2339
        %3669 = vmatpush1.bf16.msra.mxu0 %v2338
        %3670 = vmatprep.subr.bf16.mxu0 %v2355
        %3671 = vmatpush1.bf16.msra.mxu0 %v2354
        %3672 = vmatprep.subr.bf16.mxu0 %v2371
        %3673 = vmatpush1.bf16.msra.mxu0 %v2370
        %3674 = vmatprep.subr.bf16.mxu0 %v2387
        %3675 = vmatpush1.bf16.msra.mxu0 %v2386
        %3676 = vmatprep.subr.bf16.mxu0 %v2403
        %3677 = vmatpush1.bf16.msra.mxu0 %v2402
        %3678 = vmatprep.subr.bf16.mxu0 %v2419
        %3679 = vmatpush1.bf16.msra.mxu0 %v2418
        %3680 = vmatprep.subr.bf16.mxu0 %v2435
        %3681 = vmatpush1.bf16.msra.mxu0 %v2434
        %3682 = vmatprep.subr.bf16.mxu0 %v2451
        %3683 = vmatpush1.bf16.msra.mxu0 %v2450
        %3684 = vmatprep.subr.bf16.mxu0 %v2467
        %3685 = vmatpush1.bf16.msra.mxu0 %v2466
        %3686 = vmatprep.subr.bf16.mxu0 %v2483
        %3687 = vmatpush1.bf16.msra.mxu0 %v2482
        %3688 = vmatprep.subr.bf16.mxu0 %v2499
        %3689 = vmatpush1.bf16.msra.mxu0 %v2498
        %3690 = vmatprep.subr.bf16.mxu0 %v2515
        %3691 = vmatpush1.bf16.msra.mxu0 %v2514
        %3692 = vmatprep.subr.bf16.mxu0 %v2531
        %3693 = vmatpush1.bf16.msra.mxu0 %v2530
        %3694 = vmatprep.subr.bf16.mxu0 %v2547
        %3695 = vmatpush1.bf16.msra.mxu0 %v2546
        %3696 = vmatprep.subr.bf16.mxu0 %v2563
        %3697 = vmatpush1.bf16.msra.mxu0 %v2562
        %3698 = vmatprep.mubr.bf16.mxu0 0
        %3699 = vmatmul.mubr.bf16.gmra.mrb[0].mxu0 0
        %v3700 = vpop.f32.mrb[0].mxu0
        %v3701 = vadd.f32 0.0, %v3700
        %v3702 = vpop.f32.mrb[0].mxu0
        %v3703 = vadd.f32 0.0, %v3702
        %v3704 = vpop.f32.mrb[0].mxu0
        %v3705 = vpop.f32.mrb[0].mxu0
        %3706 = vdwg.mxu0
        %3707 = vmatprep.subr.bf16.mxu0 %v2579
        %3708 = vmatpush1.bf16.msra.mxu0 %v2578
        %3709 = vmatprep.subr.bf16.mxu0 %v2595
        %3710 = vmatpush1.bf16.msra.mxu0 %v2594
        %3711 = vmatprep.subr.bf16.mxu0 %v2611
        %3712 = vmatpush1.bf16.msra.mxu0 %v2610
        %3713 = vmatprep.subr.bf16.mxu0 %v2627
        %3714 = vmatpush1.bf16.msra.mxu0 %v2626
        %3715 = vmatprep.subr.bf16.mxu0 %v2643
        %3716 = vmatpush1.bf16.msra.mxu0 %v2642
        %3717 = vmatprep.subr.bf16.mxu0 %v2659
        %3718 = vmatpush1.bf16.msra.mxu0 %v2658
        %3719 = vmatprep.subr.bf16.mxu0 %v2675
        %3720 = vmatpush1.bf16.msra.mxu0 %v2674
        %3721 = vmatprep.subr.bf16.mxu0 %v2691
        %3722 = vmatpush1.bf16.msra.mxu0 %v2690
        %3723 = vmatprep.subr.bf16.mxu0 %v2707
        %3724 = vmatpush1.bf16.msra.mxu0 %v2706
        %3725 = vmatprep.subr.bf16.mxu0 %v2723
        %3726 = vmatpush1.bf16.msra.mxu0 %v2722
        %3727 = vmatprep.subr.bf16.mxu0 %v2739
        %3728 = vmatpush1.bf16.msra.mxu0 %v2738
        %3729 = vmatprep.subr.bf16.mxu0 %v2755
        %3730 = vmatpush1.bf16.msra.mxu0 %v2754
        %3731 = vmatprep.subr.bf16.mxu0 %v2771
        %3732 = vmatpush1.bf16.msra.mxu0 %v2770
        %3733 = vmatprep.subr.bf16.mxu0 %v2787
        %3734 = vmatpush1.bf16.msra.mxu0 %v2786
        %3735 = vmatprep.subr.bf16.mxu0 %v2803
        %3736 = vmatpush1.bf16.msra.mxu0 %v2802
        %3737 = vmatprep.subr.bf16.mxu0 %v2819
        %3738 = vmatpush1.bf16.msra.mxu0 %v2818
        %3739 = vmatprep.mubr.bf16.mxu0 0
        %3740 = vmatmul.mubr.bf16.gmra.mrb[0].mxu0 0
        %v3741 = vpop.f32.mrb[0].mxu0
        %v3742 = vadd.f32 %v3701, %v3741
        %v3743 = vpop.f32.mrb[0].mxu0
        %v3744 = vadd.f32 %v3703, %v3743
        %v3745 = vpop.f32.mrb[0].mxu0
        %v3746 = vpop.f32.mrb[0].mxu0
        %3747 = vdwg.mxu0
        %3748 = vmatprep.subr.bf16.mxu0 %v2325
        %3749 = vmatpush1.bf16.msra.mxu0 %v2324
        %3750 = vmatprep.subr.bf16.mxu0 %v2341
        %3751 = vmatpush1.bf16.msra.mxu0 %v2340
        %3752 = vmatprep.subr.bf16.mxu0 %v2357
        %3753 = vmatpush1.bf16.msra.mxu0 %v2356
        %3754 = vmatprep.subr.bf16.mxu0 %v2373
        %3755 = vmatpush1.bf16.msra.mxu0 %v2372
        %3756 = vmatprep.subr.bf16.mxu0 %v2389
        %3757 = vmatpush1.bf16.msra.mxu0 %v2388
        %3758 = vmatprep.subr.bf16.mxu0 %v2405
        %3759 = vmatpush1.bf16.msra.mxu0 %v2404
        %3760 = vmatprep.subr.bf16.mxu0 %v2421
        %3761 = vmatpush1.bf16.msra.mxu0 %v2420
        %3762 = vmatprep.subr.bf16.mxu0 %v2437
        %3763 = vmatpush1.bf16.msra.mxu0 %v2436
        %3764 = vmatprep.subr.bf16.mxu0 %v2453
        %3765 = vmatpush1.bf16.msra.mxu0 %v2452
        %3766 = vmatprep.subr.bf16.mxu0 %v2469
        %3767 = vmatpush1.bf16.msra.mxu0 %v2468
        %3768 = vmatprep.subr.bf16.mxu0 %v2485
        %3769 = vmatpush1.bf16.msra.mxu0 %v2484
        %3770 = vmatprep.subr.bf16.mxu0 %v2501
        %3771 = vmatpush1.bf16.msra.mxu0 %v2500
        %3772 = vmatprep.subr.bf16.mxu0 %v2517
        %3773 = vmatpush1.bf16.msra.mxu0 %v2516
        %3774 = vmatprep.subr.bf16.mxu0 %v2533
        %3775 = vmatpush1.bf16.msra.mxu0 %v2532
        %3776 = vmatprep.subr.bf16.mxu0 %v2549
        %3777 = vmatpush1.bf16.msra.mxu0 %v2548
        %3778 = vmatprep.subr.bf16.mxu0 %v2565
        %3779 = vmatpush1.bf16.msra.mxu0 %v2564
        %3780 = vmatprep.mubr.bf16.mxu0 0
        %3781 = vmatmul.mubr.bf16.gmra.mrb[0].mxu0 0
        %v3782 = vpop.f32.mrb[0].mxu0
        %v3783 = vadd.f32 0.0, %v3782
        %v3784 = vpop.f32.mrb[0].mxu0
        %v3785 = vadd.f32 0.0, %v3784
        %v3786 = vpop.f32.mrb[0].mxu0
        %v3787 = vpop.f32.mrb[0].mxu0
        %3788 = vdwg.mxu0
        %3789 = vmatprep.subr.bf16.mxu0 %v2581
        %3790 = vmatpush1.bf16.msra.mxu0 %v2580
        %3791 = vmatprep.subr.bf16.mxu0 %v2597
        %3792 = vmatpush1.bf16.msra.mxu0 %v2596
        %3793 = vmatprep.subr.bf16.mxu0 %v2613
        %3794 = vmatpush1.bf16.msra.mxu0 %v2612
        %3795 = vmatprep.subr.bf16.mxu0 %v2629
        %3796 = vmatpush1.bf16.msra.mxu0 %v2628
        %3797 = vmatprep.subr.bf16.mxu0 %v2645
        %3798 = vmatpush1.bf16.msra.mxu0 %v2644
        %3799 = vmatprep.subr.bf16.mxu0 %v2661
        %3800 = vmatpush1.bf16.msra.mxu0 %v2660
        %3801 = vmatprep.subr.bf16.mxu0 %v2677
        %3802 = vmatpush1.bf16.msra.mxu0 %v2676
        %3803 = vmatprep.subr.bf16.mxu0 %v2693
        %3804 = vmatpush1.bf16.msra.mxu0 %v2692
        %3805 = vmatprep.subr.bf16.mxu0 %v2709
        %3806 = vmatpush1.bf16.msra.mxu0 %v2708
        %3807 = vmatprep.subr.bf16.mxu0 %v2725
        %3808 = vmatpush1.bf16.msra.mxu0 %v2724
        %3809 = vmatprep.subr.bf16.mxu0 %v2741
        %3810 = vmatpush1.bf16.msra.mxu0 %v2740
        %3811 = vmatprep.subr.bf16.mxu0 %v2757
        %3812 = vmatpush1.bf16.msra.mxu0 %v2756
        %3813 = vmatprep.subr.bf16.mxu0 %v2773
        %3814 = vmatpush1.bf16.msra.mxu0 %v2772
        %3815 = vmatprep.subr.bf16.mxu0 %v2789
        %3816 = vmatpush1.bf16.msra.mxu0 %v2788
        %3817 = vmatprep.subr.bf16.mxu0 %v2805
        %3818 = vmatpush1.bf16.msra.mxu0 %v2804
        %3819 = vmatprep.subr.bf16.mxu0 %v2821
        %3820 = vmatpush1.bf16.msra.mxu0 %v2820
        %3821 = vmatprep.mubr.bf16.mxu0 0
        %3822 = vmatmul.mubr.bf16.gmra.mrb[0].mxu0 0
        %v3823 = vpop.f32.mrb[0].mxu0
        %v3824 = vadd.f32 %v3783, %v3823
        %v3825 = vpop.f32.mrb[0].mxu0
        %v3826 = vadd.f32 %v3785, %v3825
        %v3827 = vpop.f32.mrb[0].mxu0
        %v3828 = vpop.f32.mrb[0].mxu0
        %3829 = vdwg.mxu0
        %3830 = vmatprep.subr.bf16.mxu0 %v2327
        %3831 = vmatpush1.bf16.msra.mxu0 %v2326
        %3832 = vmatprep.subr.bf16.mxu0 %v2343
        %3833 = vmatpush1.bf16.msra.mxu0 %v2342
        %3834 = vmatprep.subr.bf16.mxu0 %v2359
        %3835 = vmatpush1.bf16.msra.mxu0 %v2358
        %3836 = vmatprep.subr.bf16.mxu0 %v2375
        %3837 = vmatpush1.bf16.msra.mxu0 %v2374
        %3838 = vmatprep.subr.bf16.mxu0 %v2391
        %3839 = vmatpush1.bf16.msra.mxu0 %v2390
        %3840 = vmatprep.subr.bf16.mxu0 %v2407
        %3841 = vmatpush1.bf16.msra.mxu0 %v2406
        %3842 = vmatprep.subr.bf16.mxu0 %v2423
        %3843 = vmatpush1.bf16.msra.mxu0 %v2422
        %3844 = vmatprep.subr.bf16.mxu0 %v2439
        %3845 = vmatpush1.bf16.msra.mxu0 %v2438
        %3846 = vmatprep.subr.bf16.mxu0 %v2455
        %3847 = vmatpush1.bf16.msra.mxu0 %v2454
        %3848 = vmatprep.subr.bf16.mxu0 %v2471
        %3849 = vmatpush1.bf16.msra.mxu0 %v2470
        %3850 = vmatprep.subr.bf16.mxu0 %v2487
        %3851 = vmatpush1.bf16.msra.mxu0 %v2486
        %3852 = vmatprep.subr.bf16.mxu0 %v2503
        %3853 = vmatpush1.bf16.msra.mxu0 %v2502
        %3854 = vmatprep.subr.bf16.mxu0 %v2519
        %3855 = vmatpush1.bf16.msra.mxu0 %v2518
        %3856 = vmatprep.subr.bf16.mxu0 %v2535
        %3857 = vmatpush1.bf16.msra.mxu0 %v2534
        %3858 = vmatprep.subr.bf16.mxu0 %v2551
        %3859 = vmatpush1.bf16.msra.mxu0 %v2550
        %3860 = vmatprep.subr.bf16.mxu0 %v2567
        %3861 = vmatpush1.bf16.msra.mxu0 %v2566
        %3862 = vmatprep.mubr.bf16.mxu0 0
        %3863 = vmatmul.mubr.bf16.gmra.mrb[0].mxu0 0
        %v3864 = vpop.f32.mrb[0].mxu0
        %v3865 = vadd.f32 0.0, %v3864
        %v3866 = vpop.f32.mrb[0].mxu0
        %v3867 = vadd.f32 0.0, %v3866
        %v3868 = vpop.f32.mrb[0].mxu0
        %v3869 = vpop.f32.mrb[0].mxu0
        %3870 = vdwg.mxu0
        %3871 = vmatprep.subr.bf16.mxu0 %v2583
        %3872 = vmatpush1.bf16.msra.mxu0 %v2582
        %3873 = vmatprep.subr.bf16.mxu0 %v2599
        %3874 = vmatpush1.bf16.msra.mxu0 %v2598
        %3875 = vmatprep.subr.bf16.mxu0 %v2615
        %3876 = vmatpush1.bf16.msra.mxu0 %v2614
        %3877 = vmatprep.subr.bf16.mxu0 %v2631
        %3878 = vmatpush1.bf16.msra.mxu0 %v2630
        %3879 = vmatprep.subr.bf16.mxu0 %v2647
        %3880 = vmatpush1.bf16.msra.mxu0 %v2646
        %3881 = vmatprep.subr.bf16.mxu0 %v2663
        %3882 = vmatpush1.bf16.msra.mxu0 %v2662
        %3883 = vmatprep.subr.bf16.mxu0 %v2679
        %3884 = vmatpush1.bf16.msra.mxu0 %v2678
        %3885 = vmatprep.subr.bf16.mxu0 %v2695
        %3886 = vmatpush1.bf16.msra.mxu0 %v2694
        %3887 = vmatprep.subr.bf16.mxu0 %v2711
        %3888 = vmatpush1.bf16.msra.mxu0 %v2710
        %3889 = vmatprep.subr.bf16.mxu0 %v2727
        %3890 = vmatpush1.bf16.msra.mxu0 %v2726
        %3891 = vmatprep.subr.bf16.mxu0 %v2743
        %3892 = vmatpush1.bf16.msra.mxu0 %v2742
        %3893 = vmatprep.subr.bf16.mxu0 %v2759
        %3894 = vmatpush1.bf16.msra.mxu0 %v2758
        %3895 = vmatprep.subr.bf16.mxu0 %v2775
        %3896 = vmatpush1.bf16.msra.mxu0 %v2774
        %3897 = vmatprep.subr.bf16.mxu0 %v2791
        %3898 = vmatpush1.bf16.msra.mxu0 %v2790
        %3899 = vmatprep.subr.bf16.mxu0 %v2807
        %3900 = vmatpush1.bf16.msra.mxu0 %v2806
        %3901 = vmatprep.subr.bf16.mxu0 %v2823
        %3902 = vmatpush1.bf16.msra.mxu0 %v2822
        %3903 = vmatprep.mubr.bf16.mxu0 0
        %3904 = vmatmul.mubr.bf16.gmra.mrb[0].mxu0 0
        %v3905 = vpop.f32.mrb[0].mxu0
        %v3906 = vadd.f32 %v3865, %v3905
        %v3907 = vpop.f32.mrb[0].mxu0
        %v3908 = vadd.f32 %v3867, %v3907
        %v3909 = vpop.f32.mrb[0].mxu0
        %v3910 = vpop.f32.mrb[0].mxu0
        %3911 = vdwg.mxu0
        %3912 = vmatprep.subr.bf16.mxu0 %v2329
        %3913 = vmatpush1.bf16.msra.mxu0 %v2328
        %3914 = vmatprep.subr.bf16.mxu0 %v2345
        %3915 = vmatpush1.bf16.msra.mxu0 %v2344
        %3916 = vmatprep.subr.bf16.mxu0 %v2361
        %3917 = vmatpush1.bf16.msra.mxu0 %v2360
        %3918 = vmatprep.subr.bf16.mxu0 %v2377
        %3919 = vmatpush1.bf16.msra.mxu0 %v2376
        %3920 = vmatprep.subr.bf16.mxu0 %v2393
        %3921 = vmatpush1.bf16.msra.mxu0 %v2392
        %3922 = vmatprep.subr.bf16.mxu0 %v2409
        %3923 = vmatpush1.bf16.msra.mxu0 %v2408
        %3924 = vmatprep.subr.bf16.mxu0 %v2425
        %3925 = vmatpush1.bf16.msra.mxu0 %v2424
        %3926 = vmatprep.subr.bf16.mxu0 %v2441
        %3927 = vmatpush1.bf16.msra.mxu0 %v2440
        %3928 = vmatprep.subr.bf16.mxu0 %v2457
        %3929 = vmatpush1.bf16.msra.mxu0 %v2456
        %3930 = vmatprep.subr.bf16.mxu0 %v2473
        %3931 = vmatpush1.bf16.msra.mxu0 %v2472
        %3932 = vmatprep.subr.bf16.mxu0 %v2489
        %3933 = vmatpush1.bf16.msra.mxu0 %v2488
        %3934 = vmatprep.subr.bf16.mxu0 %v2505
        %3935 = vmatpush1.bf16.msra.mxu0 %v2504
        %3936 = vmatprep.subr.bf16.mxu0 %v2521
        %3937 = vmatpush1.bf16.msra.mxu0 %v2520
        %3938 = vmatprep.subr.bf16.mxu0 %v2537
        %3939 = vmatpush1.bf16.msra.mxu0 %v2536
        %3940 = vmatprep.subr.bf16.mxu0 %v2553
        %3941 = vmatpush1.bf16.msra.mxu0 %v2552
        %3942 = vmatprep.subr.bf16.mxu0 %v2569
        %3943 = vmatpush1.bf16.msra.mxu0 %v2568
        %3944 = vmatprep.mubr.bf16.mxu0 0
        %3945 = vmatmul.mubr.bf16.gmra.mrb[0].mxu0 0
        %v3946 = vpop.f32.mrb[0].mxu0
        %v3947 = vadd.f32 0.0, %v3946
        %v3948 = vpop.f32.mrb[0].mxu0
        %v3949 = vadd.f32 0.0, %v3948
        %v3950 = vpop.f32.mrb[0].mxu0
        %v3951 = vpop.f32.mrb[0].mxu0
        %3952 = vdwg.mxu0
        %3953 = vmatprep.subr.bf16.mxu0 %v2585
        %3954 = vmatpush1.bf16.msra.mxu0 %v2584
        %3955 = vmatprep.subr.bf16.mxu0 %v2601
        %3956 = vmatpush1.bf16.msra.mxu0 %v2600
        %3957 = vmatprep.subr.bf16.mxu0 %v2617
        %3958 = vmatpush1.bf16.msra.mxu0 %v2616
        %3959 = vmatprep.subr.bf16.mxu0 %v2633
        %3960 = vmatpush1.bf16.msra.mxu0 %v2632
        %3961 = vmatprep.subr.bf16.mxu0 %v2649
        %3962 = vmatpush1.bf16.msra.mxu0 %v2648
        %3963 = vmatprep.subr.bf16.mxu0 %v2665
        %3964 = vmatpush1.bf16.msra.mxu0 %v2664
        %3965 = vmatprep.subr.bf16.mxu0 %v2681
        %3966 = vmatpush1.bf16.msra.mxu0 %v2680
        %3967 = vmatprep.subr.bf16.mxu0 %v2697
        %3968 = vmatpush1.bf16.msra.mxu0 %v2696
        %3969 = vmatprep.subr.bf16.mxu0 %v2713
        %3970 = vmatpush1.bf16.msra.mxu0 %v2712
        %3971 = vmatprep.subr.bf16.mxu0 %v2729
        %3972 = vmatpush1.bf16.msra.mxu0 %v2728
        %3973 = vmatprep.subr.bf16.mxu0 %v2745
        %3974 = vmatpush1.bf16.msra.mxu0 %v2744
        %3975 = vmatprep.subr.bf16.mxu0 %v2761
        %3976 = vmatpush1.bf16.msra.mxu0 %v2760
        %3977 = vmatprep.subr.bf16.mxu0 %v2777
        %3978 = vmatpush1.bf16.msra.mxu0 %v2776
        %3979 = vmatprep.subr.bf16.mxu0 %v2793
        %3980 = vmatpush1.bf16.msra.mxu0 %v2792
        %3981 = vmatprep.subr.bf16.mxu0 %v2809
        %3982 = vmatpush1.bf16.msra.mxu0 %v2808
        %3983 = vmatprep.subr.bf16.mxu0 %v2825
        %3984 = vmatpush1.bf16.msra.mxu0 %v2824
        %3985 = vmatprep.mubr.bf16.mxu0 0
        %3986 = vmatmul.mubr.bf16.gmra.mrb[0].mxu0 0
        %v3987 = vpop.f32.mrb[0].mxu0
        %v3988 = vadd.f32 %v3947, %v3987
        %v3989 = vpop.f32.mrb[0].mxu0
        %v3990 = vadd.f32 %v3949, %v3989
        %v3991 = vpop.f32.mrb[0].mxu0
        %v3992 = vpop.f32.mrb[0].mxu0
        %3993 = vdwg.mxu0
        %v3994 = vadd.f32 %v250, %v3414
        %v3995 = vadd.f32 %v251, %v3416
        %v3996 = vadd.f32 %v252, %v3496
        %v3997 = vadd.f32 %v253, %v3498
        %v3998 = vadd.f32 %v254, %v3578
        %v3999 = vadd.f32 %v255, %v3580
        %v4000 = vadd.f32 %v256, %v3660
        %v4001 = vadd.f32 %v257, %v3662
        %v4002 = vadd.f32 %v258, %v3742
        %v4003 = vadd.f32 %v259, %v3744
        %v4004 = vadd.f32 %v260, %v3824
        %v4005 = vadd.f32 %v261, %v3826
        %v4006 = vadd.f32 %v262, %v3906
        %v4007 = vadd.f32 %v263, %v3908
        %v4008 = vadd.f32 %v264, %v3988
        %v4009 = vadd.f32 %v265, %v3990
        %v4010 = vxor.u32 %v3994, 2147483648
        %v4011 = vxor.u32 %v3995, 2147483648
        %v4012 = vxor.u32 %v3996, 2147483648
        %v4013 = vxor.u32 %v3997, 2147483648
        %v4014 = vmul.f32 %v4010, 1.442695
        %v4015 = vpow.pop %v4014
        %v4016 = vmul.f32 %v4011, 1.442695
        %v4017 = vpow.pop %v4016
        %v4018 = vmul.f32 %v4012, 1.442695
        %v4019 = vpow.pop %v4018
        %v4020 = vmul.f32 %v4013, 1.442695
        %v4021 = vpow.pop %v4020
        %v4022 = vadd.f32 %v4015, 1.0
        %v4023 = vadd.f32 %v4017, 1.0
        %v4024 = vadd.f32 %v4019, 1.0
        %v4025 = vadd.f32 %v4021, 1.0
        %v4026 = vrcp.pop %v4022
        %v4027 = vmul.f32 1.0, %v4026
        %v4028 = vrcp.pop %v4023
        %v4029 = vmul.f32 1.0, %v4028
        %v4030 = vrcp.pop %v4024
        %v4031 = vmul.f32 1.0, %v4030
        %v4032 = vrcp.pop %v4025
        %v4033 = vmul.f32 1.0, %v4032
        %v4034 = vxor.u32 %v3998, 2147483648
        %v4035 = vxor.u32 %v3999, 2147483648
        %v4036 = vxor.u32 %v4000, 2147483648
        %v4037 = vxor.u32 %v4001, 2147483648
        %v4038 = vmul.f32 %v4034, 1.442695
        %v4039 = vpow.pop %v4038
        %v4040 = vmul.f32 %v4035, 1.442695
        %v4041 = vpow.pop %v4040
        %v4042 = vmul.f32 %v4036, 1.442695
        %v4043 = vpow.pop %v4042
        %v4044 = vmul.f32 %v4037, 1.442695
        %v4045 = vpow.pop %v4044
        %v4046 = vadd.f32 %v4039, 1.0
        %v4047 = vadd.f32 %v4041, 1.0
        %v4048 = vadd.f32 %v4043, 1.0
        %v4049 = vadd.f32 %v4045, 1.0
        %v4050 = vrcp.pop %v4046
        %v4051 = vmul.f32 1.0, %v4050
        %v4052 = vrcp.pop %v4047
        %v4053 = vmul.f32 1.0, %v4052
        %v4054 = vrcp.pop %v4048
        %v4055 = vmul.f32 1.0, %v4054
        %v4056 = vrcp.pop %v4049
        %v4057 = vmul.f32 1.0, %v4056
        %v4058 = vtanh.pop %v4002
        %v4059 = vtanh.pop %v4003
        %v4060 = vtanh.pop %v4004
        %v4061 = vtanh.pop %v4005
        %v4062 = vxor.u32 %v4006, 2147483648
        %v4063 = vxor.u32 %v4007, 2147483648
        %v4064 = vxor.u32 %v4008, 2147483648
        %v4065 = vxor.u32 %v4009, 2147483648
        %v4066 = vmul.f32 %v4062, 1.442695
        %v4067 = vpow.pop %v4066
        %v4068 = vmul.f32 %v4063, 1.442695
        %v4069 = vpow.pop %v4068
        %v4070 = vmul.f32 %v4064, 1.442695
        %v4071 = vpow.pop %v4070
        %v4072 = vmul.f32 %v4065, 1.442695
        %v4073 = vpow.pop %v4072
        %v4074 = vadd.f32 %v4067, 1.0
        %v4075 = vadd.f32 %v4069, 1.0
        %v4076 = vadd.f32 %v4071, 1.0
        %v4077 = vadd.f32 %v4073, 1.0
        %v4078 = vrcp.pop %v4074
        %v4079 = vmul.f32 1.0, %v4078
        %v4080 = vrcp.pop %v4075
        %v4081 = vmul.f32 1.0, %v4080
        %v4082 = vrcp.pop %v4076
        %v4083 = vmul.f32 1.0, %v4082
        %v4084 = vrcp.pop %v4077
        %v4085 = vmul.f32 1.0, %v4084
        %v4086 = vmul.f32 %v4051, 0.0
        %v4087 = vmul.f32 %v4053, 0.0
        %v4088 = vmul.f32 %v4055, 0.0
        %v4089 = vmul.f32 %v4057, 0.0
        %v4090 = vmul.f32 %v4027, %v4058
        %v4091 = vmul.f32 %v4029, %v4059
        %v4092 = vmul.f32 %v4031, %v4060
        %v4093 = vmul.f32 %v4033, %v4061
        %v4094 = vadd.f32 %v4086, %v4090
        %v4095 = vadd.f32 %v4087, %v4091
        %v4096 = vadd.f32 %v4088, %v4092
        %v4097 = vadd.f32 %v4089, %v4093
        %v4098 = vtanh.pop %v4094
        %v4099 = vtanh.pop %v4095
        %v4100 = vtanh.pop %v4096
        %v4101 = vtanh.pop %v4097
        %v4102 = vmul.f32 %v4079, %v4098
        %v4103 = vmul.f32 %v4081, %v4099
        %v4104 = vmul.f32 %v4083, %v4100
        %v4105 = vmul.f32 %v4085, %v4101
        %v4106 = vld [vmem:[%s248] sm:$0xff]
        %4108 = vset.pattern.permute.xlu0 0
        %4109 = vperm.xlu0 %4108, %v4106
        %v4110 = vpop.permute.xlu0 %4109
        %v4112 = vmul.f32 %v4110, %v4094
        %v4113 = vmul.f32 %v4110, %v4095
        %v4114 = vmul.f32 %v4110, %v4096
        %v4115 = vmul.f32 %v4110, %v4097
        %v4116 = vadd.f32 %v4112, 0.0
        %v4117 = vadd.f32 %v4113, 0.0
        %v4118 = vadd.f32 %v4114, 0.0
        %v4119 = vadd.f32 %v4115, 0.0
        %v4120 = vmul.f32 %v4110, %v4102
        %v4121 = vmul.f32 %v4110, %v4103
        %v4122 = vmul.f32 %v4110, %v4104
        %v4123 = vmul.f32 %v4110, %v4105
        %v4124 = vadd.f32 %v4120, 0.0
        %v4125 = vadd.f32 %v4121, 0.0
        %v4126 = vadd.f32 %v4122, 0.0
        %v4127 = vadd.f32 %v4123, 0.0
        %s4128 = scalar_lea.vmem %s202, 128 [#allocation2]
        %v4129 = vld [vmem:[%s4128] sm:$0xff]
        %v4130 = vld [vmem:[%s4128 + $0x8] sm:$0xff]
        %v4131 = vld [vmem:[%s4128 + $0x10] sm:$0xff]
        %v4132 = vld [vmem:[%s4128 + $0x18] sm:$0xff]
        %v4133 = vld [vmem:[%s4128 + $0x20] sm:$0xff]
        %v4134 = vld [vmem:[%s4128 + $0x28] sm:$0xff]
        %v4135 = vld [vmem:[%s4128 + $0x30] sm:$0xff]
        %v4136 = vld [vmem:[%s4128 + $0x38] sm:$0xff]
        %v4137 = vld [vmem:[%s4128 + $0x40] sm:$0xff]
        %v4138 = vld [vmem:[%s4128 + $0x48] sm:$0xff]
        %v4139 = vld [vmem:[%s4128 + $0x50] sm:$0xff]
        %v4140 = vld [vmem:[%s4128 + $0x58] sm:$0xff]
        %v4141 = vld [vmem:[%s4128 + $0x60] sm:$0xff]
        %v4142 = vld [vmem:[%s4128 + $0x68] sm:$0xff]
        %v4143 = vld [vmem:[%s4128 + $0x70] sm:$0xff]
        %v4144 = vld [vmem:[%s4128 + $0x78] sm:$0xff]
        %v4145 = vpack.c.bf16 %v4124, %v4124
        %v4146 = vpack.c.bf16 %v4125, %v4125
        %v4147 = vpack.c.bf16 %v4126, %v4126
        %v4148 = vpack.c.bf16 %v4127, %v4127
        %4149 = vmatprep.subr.bf16.mxu0 %v2315
        %4150 = vmatpush1.bf16.msra.mxu0 %v2314
        %4151 = vmatprep.subr.bf16.mxu0 %v2331
        %4152 = vmatpush1.bf16.msra.mxu0 %v2330
        %4153 = vmatprep.subr.bf16.mxu0 %v2347
        %4154 = vmatpush1.bf16.msra.mxu0 %v2346
        %4155 = vmatprep.subr.bf16.mxu0 %v2363
        %4156 = vmatpush1.bf16.msra.mxu0 %v2362
        %4157 = vmatprep.subr.bf16.mxu0 %v2379
        %4158 = vmatpush1.bf16.msra.mxu0 %v2378
        %4159 = vmatprep.subr.bf16.mxu0 %v2395
        %4160 = vmatpush1.bf16.msra.mxu0 %v2394
        %4161 = vmatprep.subr.bf16.mxu0 %v2411
        %4162 = vmatpush1.bf16.msra.mxu0 %v2410
        %4163 = vmatprep.subr.bf16.mxu0 %v2427
        %4164 = vmatpush1.bf16.msra.mxu0 %v2426
        %4165 = vmatprep.subr.bf16.mxu0 %v2443
        %4166 = vmatpush1.bf16.msra.mxu0 %v2442
        %4167 = vmatprep.subr.bf16.mxu0 %v2459
        %4168 = vmatpush1.bf16.msra.mxu0 %v2458
        %4169 = vmatprep.subr.bf16.mxu0 %v2475
        %4170 = vmatpush1.bf16.msra.mxu0 %v2474
        %4171 = vmatprep.subr.bf16.mxu0 %v2491
        %4172 = vmatpush1.bf16.msra.mxu0 %v2490
        %4173 = vmatprep.subr.bf16.mxu0 %v2507
        %4174 = vmatpush1.bf16.msra.mxu0 %v2506
        %4175 = vmatprep.subr.bf16.mxu0 %v2523
        %4176 = vmatpush1.bf16.msra.mxu0 %v2522
        %4177 = vmatprep.subr.bf16.mxu0 %v2539
        %4178 = vmatpush1.bf16.msra.mxu0 %v2538
        %4179 = vmatprep.subr.bf16.mxu0 %v2555
        %4180 = vmatpush1.bf16.msra.mxu0 %v2554
        %4181 = vmatprep.mubr.bf16.mxu0 %v4146
        %4182 = vmatmul.mubr.bf16.gmra.mrb[0].mxu0 %v4145
        %v4183 = vpop.f32.mrb[0].mxu0
        %v4184 = vadd.f32 0.0, %v4183
        %v4185 = vpop.f32.mrb[0].mxu0
        %v4186 = vadd.f32 0.0, %v4185
        %v4187 = vpop.f32.mrb[0].mxu0
        %v4188 = vpop.f32.mrb[0].mxu0
        %4189 = vdwg.mxu0
        %4190 = vmatprep.subr.bf16.mxu0 %v2571
        %4191 = vmatpush1.bf16.msra.mxu0 %v2570
        %4192 = vmatprep.subr.bf16.mxu0 %v2587
        %4193 = vmatpush1.bf16.msra.mxu0 %v2586
        %4194 = vmatprep.subr.bf16.mxu0 %v2603
        %4195 = vmatpush1.bf16.msra.mxu0 %v2602
        %4196 = vmatprep.subr.bf16.mxu0 %v2619
        %4197 = vmatpush1.bf16.msra.mxu0 %v2618
        %4198 = vmatprep.subr.bf16.mxu0 %v2635
        %4199 = vmatpush1.bf16.msra.mxu0 %v2634
        %4200 = vmatprep.subr.bf16.mxu0 %v2651
        %4201 = vmatpush1.bf16.msra.mxu0 %v2650
        %4202 = vmatprep.subr.bf16.mxu0 %v2667
        %4203 = vmatpush1.bf16.msra.mxu0 %v2666
        %4204 = vmatprep.subr.bf16.mxu0 %v2683
        %4205 = vmatpush1.bf16.msra.mxu0 %v2682
        %4206 = vmatprep.subr.bf16.mxu0 %v2699
        %4207 = vmatpush1.bf16.msra.mxu0 %v2698
        %4208 = vmatprep.subr.bf16.mxu0 %v2715
        %4209 = vmatpush1.bf16.msra.mxu0 %v2714
        %4210 = vmatprep.subr.bf16.mxu0 %v2731
        %4211 = vmatpush1.bf16.msra.mxu0 %v2730
        %4212 = vmatprep.subr.bf16.mxu0 %v2747
        %4213 = vmatpush1.bf16.msra.mxu0 %v2746
        %4214 = vmatprep.subr.bf16.mxu0 %v2763
        %4215 = vmatpush1.bf16.msra.mxu0 %v2762
        %4216 = vmatprep.subr.bf16.mxu0 %v2779
        %4217 = vmatpush1.bf16.msra.mxu0 %v2778
        %4218 = vmatprep.subr.bf16.mxu0 %v2795
        %4219 = vmatpush1.bf16.msra.mxu0 %v2794
        %4220 = vmatprep.subr.bf16.mxu0 %v2811
        %4221 = vmatpush1.bf16.msra.mxu0 %v2810
        %4222 = vmatprep.mubr.bf16.mxu0 %v4148
        %4223 = vmatmul.mubr.bf16.gmra.mrb[0].mxu0 %v4147
        %v4224 = vpop.f32.mrb[0].mxu0
        %v4225 = vadd.f32 %v4184, %v4224
        %v4226 = vpop.f32.mrb[0].mxu0
        %v4227 = vadd.f32 %v4186, %v4226
        %v4228 = vpop.f32.mrb[0].mxu0
        %v4229 = vpop.f32.mrb[0].mxu0
        %4230 = vdwg.mxu0
        %4231 = vmatprep.subr.bf16.mxu0 %v2317
        %4232 = vmatpush1.bf16.msra.mxu0 %v2316
        %4233 = vmatprep.subr.bf16.mxu0 %v2333
        %4234 = vmatpush1.bf16.msra.mxu0 %v2332
        %4235 = vmatprep.subr.bf16.mxu0 %v2349
        %4236 = vmatpush1.bf16.msra.mxu0 %v2348
        %4237 = vmatprep.subr.bf16.mxu0 %v2365
        %4238 = vmatpush1.bf16.msra.mxu0 %v2364
        %4239 = vmatprep.subr.bf16.mxu0 %v2381
        %4240 = vmatpush1.bf16.msra.mxu0 %v2380
        %4241 = vmatprep.subr.bf16.mxu0 %v2397
        %4242 = vmatpush1.bf16.msra.mxu0 %v2396
        %4243 = vmatprep.subr.bf16.mxu0 %v2413
        %4244 = vmatpush1.bf16.msra.mxu0 %v2412
        %4245 = vmatprep.subr.bf16.mxu0 %v2429
        %4246 = vmatpush1.bf16.msra.mxu0 %v2428
        %4247 = vmatprep.subr.bf16.mxu0 %v2445
        %4248 = vmatpush1.bf16.msra.mxu0 %v2444
        %4249 = vmatprep.subr.bf16.mxu0 %v2461
        %4250 = vmatpush1.bf16.msra.mxu0 %v2460
        %4251 = vmatprep.subr.bf16.mxu0 %v2477
        %4252 = vmatpush1.bf16.msra.mxu0 %v2476
        %4253 = vmatprep.subr.bf16.mxu0 %v2493
        %4254 = vmatpush1.bf16.msra.mxu0 %v2492
        %4255 = vmatprep.subr.bf16.mxu0 %v2509
        %4256 = vmatpush1.bf16.msra.mxu0 %v2508
        %4257 = vmatprep.subr.bf16.mxu0 %v2525
        %4258 = vmatpush1.bf16.msra.mxu0 %v2524
        %4259 = vmatprep.subr.bf16.mxu0 %v2541
        %4260 = vmatpush1.bf16.msra.mxu0 %v2540
        %4261 = vmatprep.subr.bf16.mxu0 %v2557
        %4262 = vmatpush1.bf16.msra.mxu0 %v2556
        %4263 = vmatprep.mubr.bf16.mxu0 %v4146
        %4264 = vmatmul.mubr.bf16.gmra.mrb[0].mxu0 %v4145
        %v4265 = vpop.f32.mrb[0].mxu0
        %v4266 = vadd.f32 0.0, %v4265
        %v4267 = vpop.f32.mrb[0].mxu0
        %v4268 = vadd.f32 0.0, %v4267
        %v4269 = vpop.f32.mrb[0].mxu0
        %v4270 = vpop.f32.mrb[0].mxu0
        %4271 = vdwg.mxu0
        %4272 = vmatprep.subr.bf16.mxu0 %v2573
        %4273 = vmatpush1.bf16.msra.mxu0 %v2572
        %4274 = vmatprep.subr.bf16.mxu0 %v2589
        %4275 = vmatpush1.bf16.msra.mxu0 %v2588
        %4276 = vmatprep.subr.bf16.mxu0 %v2605
        %4277 = vmatpush1.bf16.msra.mxu0 %v2604
        %4278 = vmatprep.subr.bf16.mxu0 %v2621
        %4279 = vmatpush1.bf16.msra.mxu0 %v2620
        %4280 = vmatprep.subr.bf16.mxu0 %v2637
        %4281 = vmatpush1.bf16.msra.mxu0 %v2636
        %4282 = vmatprep.subr.bf16.mxu0 %v2653
        %4283 = vmatpush1.bf16.msra.mxu0 %v2652
        %4284 = vmatprep.subr.bf16.mxu0 %v2669
        %4285 = vmatpush1.bf16.msra.mxu0 %v2668
        %4286 = vmatprep.subr.bf16.mxu0 %v2685
        %4287 = vmatpush1.bf16.msra.mxu0 %v2684
        %4288 = vmatprep.subr.bf16.mxu0 %v2701
        %4289 = vmatpush1.bf16.msra.mxu0 %v2700
        %4290 = vmatprep.subr.bf16.mxu0 %v2717
        %4291 = vmatpush1.bf16.msra.mxu0 %v2716
        %4292 = vmatprep.subr.bf16.mxu0 %v2733
        %4293 = vmatpush1.bf16.msra.mxu0 %v2732
        %4294 = vmatprep.subr.bf16.mxu0 %v2749
        %4295 = vmatpush1.bf16.msra.mxu0 %v2748
        %4296 = vmatprep.subr.bf16.mxu0 %v2765
        %4297 = vmatpush1.bf16.msra.mxu0 %v2764
        %4298 = vmatprep.subr.bf16.mxu0 %v2781
        %4299 = vmatpush1.bf16.msra.mxu0 %v2780
        %4300 = vmatprep.subr.bf16.mxu0 %v2797
        %4301 = vmatpush1.bf16.msra.mxu0 %v2796
        %4302 = vmatprep.subr.bf16.mxu0 %v2813
        %4303 = vmatpush1.bf16.msra.mxu0 %v2812
        %4304 = vmatprep.mubr.bf16.mxu0 %v4148
        %4305 = vmatmul.mubr.bf16.gmra.mrb[0].mxu0 %v4147
        %v4306 = vpop.f32.mrb[0].mxu0
        %v4307 = vadd.f32 %v4266, %v4306
        %v4308 = vpop.f32.mrb[0].mxu0
        %v4309 = vadd.f32 %v4268, %v4308
        %v4310 = vpop.f32.mrb[0].mxu0
        %v4311 = vpop.f32.mrb[0].mxu0
        %4312 = vdwg.mxu0
        %4313 = vmatprep.subr.bf16.mxu0 %v2319
        %4314 = vmatpush1.bf16.msra.mxu0 %v2318
        %4315 = vmatprep.subr.bf16.mxu0 %v2335
        %4316 = vmatpush1.bf16.msra.mxu0 %v2334
        %4317 = vmatprep.subr.bf16.mxu0 %v2351
        %4318 = vmatpush1.bf16.msra.mxu0 %v2350
        %4319 = vmatprep.subr.bf16.mxu0 %v2367
        %4320 = vmatpush1.bf16.msra.mxu0 %v2366
        %4321 = vmatprep.subr.bf16.mxu0 %v2383
        %4322 = vmatpush1.bf16.msra.mxu0 %v2382
        %4323 = vmatprep.subr.bf16.mxu0 %v2399
        %4324 = vmatpush1.bf16.msra.mxu0 %v2398
        %4325 = vmatprep.subr.bf16.mxu0 %v2415
        %4326 = vmatpush1.bf16.msra.mxu0 %v2414
        %4327 = vmatprep.subr.bf16.mxu0 %v2431
        %4328 = vmatpush1.bf16.msra.mxu0 %v2430
        %4329 = vmatprep.subr.bf16.mxu0 %v2447
        %4330 = vmatpush1.bf16.msra.mxu0 %v2446
        %4331 = vmatprep.subr.bf16.mxu0 %v2463
        %4332 = vmatpush1.bf16.msra.mxu0 %v2462
        %4333 = vmatprep.subr.bf16.mxu0 %v2479
        %4334 = vmatpush1.bf16.msra.mxu0 %v2478
        %4335 = vmatprep.subr.bf16.mxu0 %v2495
        %4336 = vmatpush1.bf16.msra.mxu0 %v2494
        %4337 = vmatprep.subr.bf16.mxu0 %v2511
        %4338 = vmatpush1.bf16.msra.mxu0 %v2510
        %4339 = vmatprep.subr.bf16.mxu0 %v2527
        %4340 = vmatpush1.bf16.msra.mxu0 %v2526
        %4341 = vmatprep.subr.bf16.mxu0 %v2543
        %4342 = vmatpush1.bf16.msra.mxu0 %v2542
        %4343 = vmatprep.subr.bf16.mxu0 %v2559
        %4344 = vmatpush1.bf16.msra.mxu0 %v2558
        %4345 = vmatprep.mubr.bf16.mxu0 %v4146
        %4346 = vmatmul.mubr.bf16.gmra.mrb[0].mxu0 %v4145
        %v4347 = vpop.f32.mrb[0].mxu0
        %v4348 = vadd.f32 0.0, %v4347
        %v4349 = vpop.f32.mrb[0].mxu0
        %v4350 = vadd.f32 0.0, %v4349
        %v4351 = vpop.f32.mrb[0].mxu0
        %v4352 = vpop.f32.mrb[0].mxu0
        %4353 = vdwg.mxu0
        %4354 = vmatprep.subr.bf16.mxu0 %v2575
        %4355 = vmatpush1.bf16.msra.mxu0 %v2574
        %4356 = vmatprep.subr.bf16.mxu0 %v2591
        %4357 = vmatpush1.bf16.msra.mxu0 %v2590
        %4358 = vmatprep.subr.bf16.mxu0 %v2607
        %4359 = vmatpush1.bf16.msra.mxu0 %v2606
        %4360 = vmatprep.subr.bf16.mxu0 %v2623
        %4361 = vmatpush1.bf16.msra.mxu0 %v2622
        %4362 = vmatprep.subr.bf16.mxu0 %v2639
        %4363 = vmatpush1.bf16.msra.mxu0 %v2638
        %4364 = vmatprep.subr.bf16.mxu0 %v2655
        %4365 = vmatpush1.bf16.msra.mxu0 %v2654
        %4366 = vmatprep.subr.bf16.mxu0 %v2671
        %4367 = vmatpush1.bf16.msra.mxu0 %v2670
        %4368 = vmatprep.subr.bf16.mxu0 %v2687
        %4369 = vmatpush1.bf16.msra.mxu0 %v2686
        %4370 = vmatprep.subr.bf16.mxu0 %v2703
        %4371 = vmatpush1.bf16.msra.mxu0 %v2702
        %4372 = vmatprep.subr.bf16.mxu0 %v2719
        %4373 = vmatpush1.bf16.msra.mxu0 %v2718
        %4374 = vmatprep.subr.bf16.mxu0 %v2735
        %4375 = vmatpush1.bf16.msra.mxu0 %v2734
        %4376 = vmatprep.subr.bf16.mxu0 %v2751
        %4377 = vmatpush1.bf16.msra.mxu0 %v2750
        %4378 = vmatprep.subr.bf16.mxu0 %v2767
        %4379 = vmatpush1.bf16.msra.mxu0 %v2766
        %4380 = vmatprep.subr.bf16.mxu0 %v2783
        %4381 = vmatpush1.bf16.msra.mxu0 %v2782
        %4382 = vmatprep.subr.bf16.mxu0 %v2799
        %4383 = vmatpush1.bf16.msra.mxu0 %v2798
        %4384 = vmatprep.subr.bf16.mxu0 %v2815
        %4385 = vmatpush1.bf16.msra.mxu0 %v2814
        %4386 = vmatprep.mubr.bf16.mxu0 %v4148
        %4387 = vmatmul.mubr.bf16.gmra.mrb[0].mxu0 %v4147
        %v4388 = vpop.f32.mrb[0].mxu0
        %v4389 = vadd.f32 %v4348, %v4388
        %v4390 = vpop.f32.mrb[0].mxu0
        %v4391 = vadd.f32 %v4350, %v4390
        %v4392 = vpop.f32.mrb[0].mxu0
        %v4393 = vpop.f32.mrb[0].mxu0
        %4394 = vdwg.mxu0
        %4395 = vmatprep.subr.bf16.mxu0 %v2321
        %4396 = vmatpush1.bf16.msra.mxu0 %v2320
        %4397 = vmatprep.subr.bf16.mxu0 %v2337
        %4398 = vmatpush1.bf16.msra.mxu0 %v2336
        %4399 = vmatprep.subr.bf16.mxu0 %v2353
        %4400 = vmatpush1.bf16.msra.mxu0 %v2352
        %4401 = vmatprep.subr.bf16.mxu0 %v2369
        %4402 = vmatpush1.bf16.msra.mxu0 %v2368
        %4403 = vmatprep.subr.bf16.mxu0 %v2385
        %4404 = vmatpush1.bf16.msra.mxu0 %v2384
        %4405 = vmatprep.subr.bf16.mxu0 %v2401
        %4406 = vmatpush1.bf16.msra.mxu0 %v2400
        %4407 = vmatprep.subr.bf16.mxu0 %v2417
        %4408 = vmatpush1.bf16.msra.mxu0 %v2416
        %4409 = vmatprep.subr.bf16.mxu0 %v2433
        %4410 = vmatpush1.bf16.msra.mxu0 %v2432
        %4411 = vmatprep.subr.bf16.mxu0 %v2449
        %4412 = vmatpush1.bf16.msra.mxu0 %v2448
        %4413 = vmatprep.subr.bf16.mxu0 %v2465
        %4414 = vmatpush1.bf16.msra.mxu0 %v2464
        %4415 = vmatprep.subr.bf16.mxu0 %v2481
        %4416 = vmatpush1.bf16.msra.mxu0 %v2480
        %4417 = vmatprep.subr.bf16.mxu0 %v2497
        %4418 = vmatpush1.bf16.msra.mxu0 %v2496
        %4419 = vmatprep.subr.bf16.mxu0 %v2513
        %4420 = vmatpush1.bf16.msra.mxu0 %v2512
        %4421 = vmatprep.subr.bf16.mxu0 %v2529
        %4422 = vmatpush1.bf16.msra.mxu0 %v2528
        %4423 = vmatprep.subr.bf16.mxu0 %v2545
        %4424 = vmatpush1.bf16.msra.mxu0 %v2544
        %4425 = vmatprep.subr.bf16.mxu0 %v2561
        %4426 = vmatpush1.bf16.msra.mxu0 %v2560
        %4427 = vmatprep.mubr.bf16.mxu0 %v4146
        %4428 = vmatmul.mubr.bf16.gmra.mrb[0].mxu0 %v4145
        %v4429 = vpop.f32.mrb[0].mxu0
        %v4430 = vadd.f32 0.0, %v4429
        %v4431 = vpop.f32.mrb[0].mxu0
        %v4432 = vadd.f32 0.0, %v4431
        %v4433 = vpop.f32.mrb[0].mxu0
        %v4434 = vpop.f32.mrb[0].mxu0
        %4435 = vdwg.mxu0
        %4436 = vmatprep.subr.bf16.mxu0 %v2577
        %4437 = vmatpush1.bf16.msra.mxu0 %v2576
        %4438 = vmatprep.subr.bf16.mxu0 %v2593
        %4439 = vmatpush1.bf16.msra.mxu0 %v2592
        %4440 = vmatprep.subr.bf16.mxu0 %v2609
        %4441 = vmatpush1.bf16.msra.mxu0 %v2608
        %4442 = vmatprep.subr.bf16.mxu0 %v2625
        %4443 = vmatpush1.bf16.msra.mxu0 %v2624
        %4444 = vmatprep.subr.bf16.mxu0 %v2641
        %4445 = vmatpush1.bf16.msra.mxu0 %v2640
        %4446 = vmatprep.subr.bf16.mxu0 %v2657
        %4447 = vmatpush1.bf16.msra.mxu0 %v2656
        %4448 = vmatprep.subr.bf16.mxu0 %v2673
        %4449 = vmatpush1.bf16.msra.mxu0 %v2672
        %4450 = vmatprep.subr.bf16.mxu0 %v2689
        %4451 = vmatpush1.bf16.msra.mxu0 %v2688
        %4452 = vmatprep.subr.bf16.mxu0 %v2705
        %4453 = vmatpush1.bf16.msra.mxu0 %v2704
        %4454 = vmatprep.subr.bf16.mxu0 %v2721
        %4455 = vmatpush1.bf16.msra.mxu0 %v2720
        %4456 = vmatprep.subr.bf16.mxu0 %v2737
        %4457 = vmatpush1.bf16.msra.mxu0 %v2736
        %4458 = vmatprep.subr.bf16.mxu0 %v2753
        %4459 = vmatpush1.bf16.msra.mxu0 %v2752
        %4460 = vmatprep.subr.bf16.mxu0 %v2769
        %4461 = vmatpush1.bf16.msra.mxu0 %v2768
        %4462 = vmatprep.subr.bf16.mxu0 %v2785
        %4463 = vmatpush1.bf16.msra.mxu0 %v2784
        %4464 = vmatprep.subr.bf16.mxu0 %v2801
        %4465 = vmatpush1.bf16.msra.mxu0 %v2800
        %4466 = vmatprep.subr.bf16.mxu0 %v2817
        %4467 = vmatpush1.bf16.msra.mxu0 %v2816
        %4468 = vmatprep.mubr.bf16.mxu0 %v4148
        %4469 = vmatmul.mubr.bf16.gmra.mrb[0].mxu0 %v4147
        %v4470 = vpop.f32.mrb[0].mxu0
        %v4471 = vadd.f32 %v4430, %v4470
        %v4472 = vpop.f32.mrb[0].mxu0
        %v4473 = vadd.f32 %v4432, %v4472
        %v4474 = vpop.f32.mrb[0].mxu0
        %v4475 = vpop.f32.mrb[0].mxu0
        %4476 = vdwg.mxu0
        %4477 = vmatprep.subr.bf16.mxu0 %v2323
        %4478 = vmatpush1.bf16.msra.mxu0 %v2322
        %4479 = vmatprep.subr.bf16.mxu0 %v2339
        %4480 = vmatpush1.bf16.msra.mxu0 %v2338
        %4481 = vmatprep.subr.bf16.mxu0 %v2355
        %4482 = vmatpush1.bf16.msra.mxu0 %v2354
        %4483 = vmatprep.subr.bf16.mxu0 %v2371
        %4484 = vmatpush1.bf16.msra.mxu0 %v2370
        %4485 = vmatprep.subr.bf16.mxu0 %v2387
        %4486 = vmatpush1.bf16.msra.mxu0 %v2386
        %4487 = vmatprep.subr.bf16.mxu0 %v2403
        %4488 = vmatpush1.bf16.msra.mxu0 %v2402
        %4489 = vmatprep.subr.bf16.mxu0 %v2419
        %4490 = vmatpush1.bf16.msra.mxu0 %v2418
        %4491 = vmatprep.subr.bf16.mxu0 %v2435
        %4492 = vmatpush1.bf16.msra.mxu0 %v2434
        %4493 = vmatprep.subr.bf16.mxu0 %v2451
        %4494 = vmatpush1.bf16.msra.mxu0 %v2450
        %4495 = vmatprep.subr.bf16.mxu0 %v2467
        %4496 = vmatpush1.bf16.msra.mxu0 %v2466
        %4497 = vmatprep.subr.bf16.mxu0 %v2483
        %4498 = vmatpush1.bf16.msra.mxu0 %v2482
        %4499 = vmatprep.subr.bf16.mxu0 %v2499
        %4500 = vmatpush1.bf16.msra.mxu0 %v2498
        %4501 = vmatprep.subr.bf16.mxu0 %v2515
        %4502 = vmatpush1.bf16.msra.mxu0 %v2514
        %4503 = vmatprep.subr.bf16.mxu0 %v2531
        %4504 = vmatpush1.bf16.msra.mxu0 %v2530
        %4505 = vmatprep.subr.bf16.mxu0 %v2547
        %4506 = vmatpush1.bf16.msra.mxu0 %v2546
        %4507 = vmatprep.subr.bf16.mxu0 %v2563
        %4508 = vmatpush1.bf16.msra.mxu0 %v2562
        %4509 = vmatprep.mubr.bf16.mxu0 %v4146
        %4510 = vmatmul.mubr.bf16.gmra.mrb[0].mxu0 %v4145
        %v4511 = vpop.f32.mrb[0].mxu0
        %v4512 = vadd.f32 0.0, %v4511
        %v4513 = vpop.f32.mrb[0].mxu0
        %v4514 = vadd.f32 0.0, %v4513
        %v4515 = vpop.f32.mrb[0].mxu0
        %v4516 = vpop.f32.mrb[0].mxu0
        %4517 = vdwg.mxu0
        %4518 = vmatprep.subr.bf16.mxu0 %v2579
        %4519 = vmatpush1.bf16.msra.mxu0 %v2578
        %4520 = vmatprep.subr.bf16.mxu0 %v2595
        %4521 = vmatpush1.bf16.msra.mxu0 %v2594
        %4522 = vmatprep.subr.bf16.mxu0 %v2611
        %4523 = vmatpush1.bf16.msra.mxu0 %v2610
        %4524 = vmatprep.subr.bf16.mxu0 %v2627
        %4525 = vmatpush1.bf16.msra.mxu0 %v2626
        %4526 = vmatprep.subr.bf16.mxu0 %v2643
        %4527 = vmatpush1.bf16.msra.mxu0 %v2642
        %4528 = vmatprep.subr.bf16.mxu0 %v2659
        %4529 = vmatpush1.bf16.msra.mxu0 %v2658
        %4530 = vmatprep.subr.bf16.mxu0 %v2675
        %4531 = vmatpush1.bf16.msra.mxu0 %v2674
        %4532 = vmatprep.subr.bf16.mxu0 %v2691
        %4533 = vmatpush1.bf16.msra.mxu0 %v2690
        %4534 = vmatprep.subr.bf16.mxu0 %v2707
        %4535 = vmatpush1.bf16.msra.mxu0 %v2706
        %4536 = vmatprep.subr.bf16.mxu0 %v2723
        %4537 = vmatpush1.bf16.msra.mxu0 %v2722
        %4538 = vmatprep.subr.bf16.mxu0 %v2739
        %4539 = vmatpush1.bf16.msra.mxu0 %v2738
        %4540 = vmatprep.subr.bf16.mxu0 %v2755
        %4541 = vmatpush1.bf16.msra.mxu0 %v2754
        %4542 = vmatprep.subr.bf16.mxu0 %v2771
        %4543 = vmatpush1.bf16.msra.mxu0 %v2770
        %4544 = vmatprep.subr.bf16.mxu0 %v2787
        %4545 = vmatpush1.bf16.msra.mxu0 %v2786
        %4546 = vmatprep.subr.bf16.mxu0 %v2803
        %4547 = vmatpush1.bf16.msra.mxu0 %v2802
        %4548 = vmatprep.subr.bf16.mxu0 %v2819
        %4549 = vmatpush1.bf16.msra.mxu0 %v2818
        %4550 = vmatprep.mubr.bf16.mxu0 %v4148
        %4551 = vmatmul.mubr.bf16.gmra.mrb[0].mxu0 %v4147
        %v4552 = vpop.f32.mrb[0].mxu0
        %v4553 = vadd.f32 %v4512, %v4552
        %v4554 = vpop.f32.mrb[0].mxu0
        %v4555 = vadd.f32 %v4514, %v4554
        %v4556 = vpop.f32.mrb[0].mxu0
        %v4557 = vpop.f32.mrb[0].mxu0
        %4558 = vdwg.mxu0
        %4559 = vmatprep.subr.bf16.mxu0 %v2325
        %4560 = vmatpush1.bf16.msra.mxu0 %v2324
        %4561 = vmatprep.subr.bf16.mxu0 %v2341
        %4562 = vmatpush1.bf16.msra.mxu0 %v2340
        %4563 = vmatprep.subr.bf16.mxu0 %v2357
        %4564 = vmatpush1.bf16.msra.mxu0 %v2356
        %4565 = vmatprep.subr.bf16.mxu0 %v2373
        %4566 = vmatpush1.bf16.msra.mxu0 %v2372
        %4567 = vmatprep.subr.bf16.mxu0 %v2389
        %4568 = vmatpush1.bf16.msra.mxu0 %v2388
        %4569 = vmatprep.subr.bf16.mxu0 %v2405
        %4570 = vmatpush1.bf16.msra.mxu0 %v2404
        %4571 = vmatprep.subr.bf16.mxu0 %v2421
        %4572 = vmatpush1.bf16.msra.mxu0 %v2420
        %4573 = vmatprep.subr.bf16.mxu0 %v2437
        %4574 = vmatpush1.bf16.msra.mxu0 %v2436
        %4575 = vmatprep.subr.bf16.mxu0 %v2453
        %4576 = vmatpush1.bf16.msra.mxu0 %v2452
        %4577 = vmatprep.subr.bf16.mxu0 %v2469
        %4578 = vmatpush1.bf16.msra.mxu0 %v2468
        %4579 = vmatprep.subr.bf16.mxu0 %v2485
        %4580 = vmatpush1.bf16.msra.mxu0 %v2484
        %4581 = vmatprep.subr.bf16.mxu0 %v2501
        %4582 = vmatpush1.bf16.msra.mxu0 %v2500
        %4583 = vmatprep.subr.bf16.mxu0 %v2517
        %4584 = vmatpush1.bf16.msra.mxu0 %v2516
        %4585 = vmatprep.subr.bf16.mxu0 %v2533
        %4586 = vmatpush1.bf16.msra.mxu0 %v2532
        %4587 = vmatprep.subr.bf16.mxu0 %v2549
        %4588 = vmatpush1.bf16.msra.mxu0 %v2548
        %4589 = vmatprep.subr.bf16.mxu0 %v2565
        %4590 = vmatpush1.bf16.msra.mxu0 %v2564
        %4591 = vmatprep.mubr.bf16.mxu0 %v4146
        %4592 = vmatmul.mubr.bf16.gmra.mrb[0].mxu0 %v4145
        %v4593 = vpop.f32.mrb[0].mxu0
        %v4594 = vadd.f32 0.0, %v4593
        %v4595 = vpop.f32.mrb[0].mxu0
        %v4596 = vadd.f32 0.0, %v4595
        %v4597 = vpop.f32.mrb[0].mxu0
        %v4598 = vpop.f32.mrb[0].mxu0
        %4599 = vdwg.mxu0
        %4600 = vmatprep.subr.bf16.mxu0 %v2581
        %4601 = vmatpush1.bf16.msra.mxu0 %v2580
        %4602 = vmatprep.subr.bf16.mxu0 %v2597
        %4603 = vmatpush1.bf16.msra.mxu0 %v2596
        %4604 = vmatprep.subr.bf16.mxu0 %v2613
        %4605 = vmatpush1.bf16.msra.mxu0 %v2612
        %4606 = vmatprep.subr.bf16.mxu0 %v2629
        %4607 = vmatpush1.bf16.msra.mxu0 %v2628
        %4608 = vmatprep.subr.bf16.mxu0 %v2645
        %4609 = vmatpush1.bf16.msra.mxu0 %v2644
        %4610 = vmatprep.subr.bf16.mxu0 %v2661
        %4611 = vmatpush1.bf16.msra.mxu0 %v2660
        %4612 = vmatprep.subr.bf16.mxu0 %v2677
        %4613 = vmatpush1.bf16.msra.mxu0 %v2676
        %4614 = vmatprep.subr.bf16.mxu0 %v2693
        %4615 = vmatpush1.bf16.msra.mxu0 %v2692
        %4616 = vmatprep.subr.bf16.mxu0 %v2709
        %4617 = vmatpush1.bf16.msra.mxu0 %v2708
        %4618 = vmatprep.subr.bf16.mxu0 %v2725
        %4619 = vmatpush1.bf16.msra.mxu0 %v2724
        %4620 = vmatprep.subr.bf16.mxu0 %v2741
        %4621 = vmatpush1.bf16.msra.mxu0 %v2740
        %4622 = vmatprep.subr.bf16.mxu0 %v2757
        %4623 = vmatpush1.bf16.msra.mxu0 %v2756
        %4624 = vmatprep.subr.bf16.mxu0 %v2773
        %4625 = vmatpush1.bf16.msra.mxu0 %v2772
        %4626 = vmatprep.subr.bf16.mxu0 %v2789
        %4627 = vmatpush1.bf16.msra.mxu0 %v2788
        %4628 = vmatprep.subr.bf16.mxu0 %v2805
        %4629 = vmatpush1.bf16.msra.mxu0 %v2804
        %4630 = vmatprep.subr.bf16.mxu0 %v2821
        %4631 = vmatpush1.bf16.msra.mxu0 %v2820
        %4632 = vmatprep.mubr.bf16.mxu0 %v4148
        %4633 = vmatmul.mubr.bf16.gmra.mrb[0].mxu0 %v4147
        %v4634 = vpop.f32.mrb[0].mxu0
        %v4635 = vadd.f32 %v4594, %v4634
        %v4636 = vpop.f32.mrb[0].mxu0
        %v4637 = vadd.f32 %v4596, %v4636
        %v4638 = vpop.f32.mrb[0].mxu0
        %v4639 = vpop.f32.mrb[0].mxu0
        %4640 = vdwg.mxu0
        %4641 = vmatprep.subr.bf16.mxu0 %v2327
        %4642 = vmatpush1.bf16.msra.mxu0 %v2326
        %4643 = vmatprep.subr.bf16.mxu0 %v2343
        %4644 = vmatpush1.bf16.msra.mxu0 %v2342
        %4645 = vmatprep.subr.bf16.mxu0 %v2359
        %4646 = vmatpush1.bf16.msra.mxu0 %v2358
        %4647 = vmatprep.subr.bf16.mxu0 %v2375
        %4648 = vmatpush1.bf16.msra.mxu0 %v2374
        %4649 = vmatprep.subr.bf16.mxu0 %v2391
        %4650 = vmatpush1.bf16.msra.mxu0 %v2390
        %4651 = vmatprep.subr.bf16.mxu0 %v2407
        %4652 = vmatpush1.bf16.msra.mxu0 %v2406
        %4653 = vmatprep.subr.bf16.mxu0 %v2423
        %4654 = vmatpush1.bf16.msra.mxu0 %v2422
        %4655 = vmatprep.subr.bf16.mxu0 %v2439
        %4656 = vmatpush1.bf16.msra.mxu0 %v2438
        %4657 = vmatprep.subr.bf16.mxu0 %v2455
        %4658 = vmatpush1.bf16.msra.mxu0 %v2454
        %4659 = vmatprep.subr.bf16.mxu0 %v2471
        %4660 = vmatpush1.bf16.msra.mxu0 %v2470
        %4661 = vmatprep.subr.bf16.mxu0 %v2487
        %4662 = vmatpush1.bf16.msra.mxu0 %v2486
        %4663 = vmatprep.subr.bf16.mxu0 %v2503
        %4664 = vmatpush1.bf16.msra.mxu0 %v2502
        %4665 = vmatprep.subr.bf16.mxu0 %v2519
        %4666 = vmatpush1.bf16.msra.mxu0 %v2518
        %4667 = vmatprep.subr.bf16.mxu0 %v2535
        %4668 = vmatpush1.bf16.msra.mxu0 %v2534
        %4669 = vmatprep.subr.bf16.mxu0 %v2551
        %4670 = vmatpush1.bf16.msra.mxu0 %v2550
        %4671 = vmatprep.subr.bf16.mxu0 %v2567
        %4672 = vmatpush1.bf16.msra.mxu0 %v2566
        %4673 = vmatprep.mubr.bf16.mxu0 %v4146
        %4674 = vmatmul.mubr.bf16.gmra.mrb[0].mxu0 %v4145
        %v4675 = vpop.f32.mrb[0].mxu0
        %v4676 = vadd.f32 0.0, %v4675
        %v4677 = vpop.f32.mrb[0].mxu0
        %v4678 = vadd.f32 0.0, %v4677
        %v4679 = vpop.f32.mrb[0].mxu0
        %v4680 = vpop.f32.mrb[0].mxu0
        %4681 = vdwg.mxu0
        %4682 = vmatprep.subr.bf16.mxu0 %v2583
        %4683 = vmatpush1.bf16.msra.mxu0 %v2582
        %4684 = vmatprep.subr.bf16.mxu0 %v2599
        %4685 = vmatpush1.bf16.msra.mxu0 %v2598
        %4686 = vmatprep.subr.bf16.mxu0 %v2615
        %4687 = vmatpush1.bf16.msra.mxu0 %v2614
        %4688 = vmatprep.subr.bf16.mxu0 %v2631
        %4689 = vmatpush1.bf16.msra.mxu0 %v2630
        %4690 = vmatprep.subr.bf16.mxu0 %v2647
        %4691 = vmatpush1.bf16.msra.mxu0 %v2646
        %4692 = vmatprep.subr.bf16.mxu0 %v2663
        %4693 = vmatpush1.bf16.msra.mxu0 %v2662
        %4694 = vmatprep.subr.bf16.mxu0 %v2679
        %4695 = vmatpush1.bf16.msra.mxu0 %v2678
        %4696 = vmatprep.subr.bf16.mxu0 %v2695
        %4697 = vmatpush1.bf16.msra.mxu0 %v2694
        %4698 = vmatprep.subr.bf16.mxu0 %v2711
        %4699 = vmatpush1.bf16.msra.mxu0 %v2710
        %4700 = vmatprep.subr.bf16.mxu0 %v2727
        %4701 = vmatpush1.bf16.msra.mxu0 %v2726
        %4702 = vmatprep.subr.bf16.mxu0 %v2743
        %4703 = vmatpush1.bf16.msra.mxu0 %v2742
        %4704 = vmatprep.subr.bf16.mxu0 %v2759
        %4705 = vmatpush1.bf16.msra.mxu0 %v2758
        %4706 = vmatprep.subr.bf16.mxu0 %v2775
        %4707 = vmatpush1.bf16.msra.mxu0 %v2774
        %4708 = vmatprep.subr.bf16.mxu0 %v2791
        %4709 = vmatpush1.bf16.msra.mxu0 %v2790
        %4710 = vmatprep.subr.bf16.mxu0 %v2807
        %4711 = vmatpush1.bf16.msra.mxu0 %v2806
        %4712 = vmatprep.subr.bf16.mxu0 %v2823
        %4713 = vmatpush1.bf16.msra.mxu0 %v2822
        %4714 = vmatprep.mubr.bf16.mxu0 %v4148
        %4715 = vmatmul.mubr.bf16.gmra.mrb[0].mxu0 %v4147
        %v4716 = vpop.f32.mrb[0].mxu0
        %v4717 = vadd.f32 %v4676, %v4716
        %v4718 = vpop.f32.mrb[0].mxu0
        %v4719 = vadd.f32 %v4678, %v4718
        %v4720 = vpop.f32.mrb[0].mxu0
        %v4721 = vpop.f32.mrb[0].mxu0
        %4722 = vdwg.mxu0
        %4723 = vmatprep.subr.bf16.mxu0 %v2329
        %4724 = vmatpush1.bf16.msra.mxu0 %v2328
        %4725 = vmatprep.subr.bf16.mxu0 %v2345
        %4726 = vmatpush1.bf16.msra.mxu0 %v2344
        %4727 = vmatprep.subr.bf16.mxu0 %v2361
        %4728 = vmatpush1.bf16.msra.mxu0 %v2360
        %4729 = vmatprep.subr.bf16.mxu0 %v2377
        %4730 = vmatpush1.bf16.msra.mxu0 %v2376
        %4731 = vmatprep.subr.bf16.mxu0 %v2393
        %4732 = vmatpush1.bf16.msra.mxu0 %v2392
        %4733 = vmatprep.subr.bf16.mxu0 %v2409
        %4734 = vmatpush1.bf16.msra.mxu0 %v2408
        %4735 = vmatprep.subr.bf16.mxu0 %v2425
        %4736 = vmatpush1.bf16.msra.mxu0 %v2424
        %4737 = vmatprep.subr.bf16.mxu0 %v2441
        %4738 = vmatpush1.bf16.msra.mxu0 %v2440
        %4739 = vmatprep.subr.bf16.mxu0 %v2457
        %4740 = vmatpush1.bf16.msra.mxu0 %v2456
        %4741 = vmatprep.subr.bf16.mxu0 %v2473
        %4742 = vmatpush1.bf16.msra.mxu0 %v2472
        %4743 = vmatprep.subr.bf16.mxu0 %v2489
        %4744 = vmatpush1.bf16.msra.mxu0 %v2488
        %4745 = vmatprep.subr.bf16.mxu0 %v2505
        %4746 = vmatpush1.bf16.msra.mxu0 %v2504
        %4747 = vmatprep.subr.bf16.mxu0 %v2521
        %4748 = vmatpush1.bf16.msra.mxu0 %v2520
        %4749 = vmatprep.subr.bf16.mxu0 %v2537
        %4750 = vmatpush1.bf16.msra.mxu0 %v2536
        %4751 = vmatprep.subr.bf16.mxu0 %v2553
        %4752 = vmatpush1.bf16.msra.mxu0 %v2552
        %4753 = vmatprep.subr.bf16.mxu0 %v2569
        %4754 = vmatpush1.bf16.msra.mxu0 %v2568
        %4755 = vmatprep.mubr.bf16.mxu0 %v4146
        %4756 = vmatmul.mubr.bf16.gmra.mrb[0].mxu0 %v4145
        %v4757 = vpop.f32.mrb[0].mxu0
        %v4758 = vadd.f32 0.0, %v4757
        %v4759 = vpop.f32.mrb[0].mxu0
        %v4760 = vadd.f32 0.0, %v4759
        %v4761 = vpop.f32.mrb[0].mxu0
        %v4762 = vpop.f32.mrb[0].mxu0
        %4763 = vdwg.mxu0
        %4764 = vmatprep.subr.bf16.mxu0 %v2585
        %4765 = vmatpush1.bf16.msra.mxu0 %v2584
        %4766 = vmatprep.subr.bf16.mxu0 %v2601
        %4767 = vmatpush1.bf16.msra.mxu0 %v2600
        %4768 = vmatprep.subr.bf16.mxu0 %v2617
        %4769 = vmatpush1.bf16.msra.mxu0 %v2616
        %4770 = vmatprep.subr.bf16.mxu0 %v2633
        %4771 = vmatpush1.bf16.msra.mxu0 %v2632
        %4772 = vmatprep.subr.bf16.mxu0 %v2649
        %4773 = vmatpush1.bf16.msra.mxu0 %v2648
        %4774 = vmatprep.subr.bf16.mxu0 %v2665
        %4775 = vmatpush1.bf16.msra.mxu0 %v2664
        %4776 = vmatprep.subr.bf16.mxu0 %v2681
        %4777 = vmatpush1.bf16.msra.mxu0 %v2680
        %4778 = vmatprep.subr.bf16.mxu0 %v2697
        %4779 = vmatpush1.bf16.msra.mxu0 %v2696
        %4780 = vmatprep.subr.bf16.mxu0 %v2713
        %4781 = vmatpush1.bf16.msra.mxu0 %v2712
        %4782 = vmatprep.subr.bf16.mxu0 %v2729
        %4783 = vmatpush1.bf16.msra.mxu0 %v2728
        %4784 = vmatprep.subr.bf16.mxu0 %v2745
        %4785 = vmatpush1.bf16.msra.mxu0 %v2744
        %4786 = vmatprep.subr.bf16.mxu0 %v2761
        %4787 = vmatpush1.bf16.msra.mxu0 %v2760
        %4788 = vmatprep.subr.bf16.mxu0 %v2777
        %4789 = vmatpush1.bf16.msra.mxu0 %v2776
        %4790 = vmatprep.subr.bf16.mxu0 %v2793
        %4791 = vmatpush1.bf16.msra.mxu0 %v2792
        %4792 = vmatprep.subr.bf16.mxu0 %v2809
        %4793 = vmatpush1.bf16.msra.mxu0 %v2808
        %4794 = vmatprep.subr.bf16.mxu0 %v2825
        %4795 = vmatpush1.bf16.msra.mxu0 %v2824
        %4796 = vmatprep.mubr.bf16.mxu0 %v4148
        %4797 = vmatmul.mubr.bf16.gmra.mrb[0].mxu0 %v4147
        %v4798 = vpop.f32.mrb[0].mxu0
        %v4799 = vadd.f32 %v4758, %v4798
        %v4800 = vpop.f32.mrb[0].mxu0
        %v4801 = vadd.f32 %v4760, %v4800
        %v4802 = vpop.f32.mrb[0].mxu0
        %v4803 = vpop.f32.mrb[0].mxu0
        %4804 = vdwg.mxu0
        %v4805 = vadd.f32 %v4129, %v4225
        %v4806 = vadd.f32 %v4130, %v4227
        %v4807 = vadd.f32 %v4131, %v4307
        %v4808 = vadd.f32 %v4132, %v4309
        %v4809 = vadd.f32 %v4133, %v4389
        %v4810 = vadd.f32 %v4134, %v4391
        %v4811 = vadd.f32 %v4135, %v4471
        %v4812 = vadd.f32 %v4136, %v4473
        %v4813 = vadd.f32 %v4137, %v4553
        %v4814 = vadd.f32 %v4138, %v4555
        %v4815 = vadd.f32 %v4139, %v4635
        %v4816 = vadd.f32 %v4140, %v4637
        %v4817 = vadd.f32 %v4141, %v4717
        %v4818 = vadd.f32 %v4142, %v4719
        %v4819 = vadd.f32 %v4143, %v4799
        %v4820 = vadd.f32 %v4144, %v4801
        %v4821 = vxor.u32 %v4805, 2147483648
        %v4822 = vxor.u32 %v4806, 2147483648
        %v4823 = vxor.u32 %v4807, 2147483648
        %v4824 = vxor.u32 %v4808, 2147483648
        %v4825 = vmul.f32 %v4821, 1.442695
        %v4826 = vpow.pop %v4825
        %v4827 = vmul.f32 %v4822, 1.442695
        %v4828 = vpow.pop %v4827
        %v4829 = vmul.f32 %v4823, 1.442695
        %v4830 = vpow.pop %v4829
        %v4831 = vmul.f32 %v4824, 1.442695
        %v4832 = vpow.pop %v4831
        %v4833 = vadd.f32 %v4826, 1.0
        %v4834 = vadd.f32 %v4828, 1.0
        %v4835 = vadd.f32 %v4830, 1.0
        %v4836 = vadd.f32 %v4832, 1.0
        %v4837 = vrcp.pop %v4833
        %v4838 = vmul.f32 1.0, %v4837
        %v4839 = vrcp.pop %v4834
        %v4840 = vmul.f32 1.0, %v4839
        %v4841 = vrcp.pop %v4835
        %v4842 = vmul.f32 1.0, %v4841
        %v4843 = vrcp.pop %v4836
        %v4844 = vmul.f32 1.0, %v4843
        %v4845 = vxor.u32 %v4809, 2147483648
        %v4846 = vxor.u32 %v4810, 2147483648
        %v4847 = vxor.u32 %v4811, 2147483648
        %v4848 = vxor.u32 %v4812, 2147483648
        %v4849 = vmul.f32 %v4845, 1.442695
        %v4850 = vpow.pop %v4849
        %v4851 = vmul.f32 %v4846, 1.442695
        %v4852 = vpow.pop %v4851
        %v4853 = vmul.f32 %v4847, 1.442695
        %v4854 = vpow.pop %v4853
        %v4855 = vmul.f32 %v4848, 1.442695
        %v4856 = vpow.pop %v4855
        %v4857 = vadd.f32 %v4850, 1.0
        %v4858 = vadd.f32 %v4852, 1.0
        %v4859 = vadd.f32 %v4854, 1.0
        %v4860 = vadd.f32 %v4856, 1.0
        %v4861 = vrcp.pop %v4857
        %v4862 = vmul.f32 1.0, %v4861
        %v4863 = vrcp.pop %v4858
        %v4864 = vmul.f32 1.0, %v4863
        %v4865 = vrcp.pop %v4859
        %v4866 = vmul.f32 1.0, %v4865
        %v4867 = vrcp.pop %v4860
        %v4868 = vmul.f32 1.0, %v4867
        %v4869 = vtanh.pop %v4813
        %v4870 = vtanh.pop %v4814
        %v4871 = vtanh.pop %v4815
        %v4872 = vtanh.pop %v4816
        %v4873 = vxor.u32 %v4817, 2147483648
        %v4874 = vxor.u32 %v4818, 2147483648
        %v4875 = vxor.u32 %v4819, 2147483648
        %v4876 = vxor.u32 %v4820, 2147483648
        %v4877 = vmul.f32 %v4873, 1.442695
        %v4878 = vpow.pop %v4877
        %v4879 = vmul.f32 %v4874, 1.442695
        %v4880 = vpow.pop %v4879
        %v4881 = vmul.f32 %v4875, 1.442695
        %v4882 = vpow.pop %v4881
        %v4883 = vmul.f32 %v4876, 1.442695
        %v4884 = vpow.pop %v4883
        %v4885 = vadd.f32 %v4878, 1.0
        %v4886 = vadd.f32 %v4880, 1.0
        %v4887 = vadd.f32 %v4882, 1.0
        %v4888 = vadd.f32 %v4884, 1.0
        %v4889 = vrcp.pop %v4885
        %v4890 = vmul.f32 1.0, %v4889
        %v4891 = vrcp.pop %v4886
        %v4892 = vmul.f32 1.0, %v4891
        %v4893 = vrcp.pop %v4887
        %v4894 = vmul.f32 1.0, %v4893
        %v4895 = vrcp.pop %v4888
        %v4896 = vmul.f32 1.0, %v4895
        %v4897 = vmul.f32 %v4862, %v4116
        %v4898 = vmul.f32 %v4864, %v4117
        %v4899 = vmul.f32 %v4866, %v4118
        %v4900 = vmul.f32 %v4868, %v4119
        %v4901 = vmul.f32 %v4838, %v4869
        %v4902 = vmul.f32 %v4840, %v4870
        %v4903 = vmul.f32 %v4842, %v4871
        %v4904 = vmul.f32 %v4844, %v4872
        %v4905 = vadd.f32 %v4897, %v4901
        %v4906 = vadd.f32 %v4898, %v4902
        %v4907 = vadd.f32 %v4899, %v4903
        %v4908 = vadd.f32 %v4900, %v4904
        %v4909 = vtanh.pop %v4905
        %v4910 = vtanh.pop %v4906
        %v4911 = vtanh.pop %v4907
        %v4912 = vtanh.pop %v4908
        %v4913 = vmul.f32 %v4890, %v4909
        %v4914 = vmul.f32 %v4892, %v4910
        %v4915 = vmul.f32 %v4894, %v4911
        %v4916 = vmul.f32 %v4896, %v4912
        %s4917 = scalar_lea.vmem %s248, 8
        %v4918 = vld [vmem:[%s4917] sm:$0xff]
        %v4919 = vsub.f32 %v4905, %v4116
        %v4920 = vsub.f32 %v4906, %v4117
        %v4921 = vsub.f32 %v4907, %v4118
        %v4922 = vsub.f32 %v4908, %v4119
        %4924 = vset.pattern.permute.xlu0 0
        %4925 = vperm.xlu0 %4924, %v4918
        %v4926 = vpop.permute.xlu0 %4925
        %v4928 = vmul.f32 %v4926, %v4919
        %v4929 = vmul.f32 %v4926, %v4920
        %v4930 = vmul.f32 %v4926, %v4921
        %v4931 = vmul.f32 %v4926, %v4922
        %v4932 = vadd.f32 %v4116, %v4928
        %v4933 = vadd.f32 %v4117, %v4929
        %v4934 = vadd.f32 %v4118, %v4930
        %v4935 = vadd.f32 %v4119, %v4931
        %v4936 = vsub.f32 %v4913, %v4124
        %v4937 = vsub.f32 %v4914, %v4125
        %v4938 = vsub.f32 %v4915, %v4126
        %v4939 = vsub.f32 %v4916, %v4127
        %v4940 = vmul.f32 %v4926, %v4936
        %v4941 = vmul.f32 %v4926, %v4937
        %v4942 = vmul.f32 %v4926, %v4938
        %v4943 = vmul.f32 %v4926, %v4939
        %v4944 = vadd.f32 %v4124, %v4940
        %v4945 = vadd.f32 %v4125, %v4941
        %v4946 = vadd.f32 %v4126, %v4942
        %v4947 = vadd.f32 %v4127, %v4943
        %s4948 = scalar_lea.vmem %s202, 256 [#allocation2]
        %v4949 = vld [vmem:[%s4948] sm:$0xff]
        %v4950 = vld [vmem:[%s4948 + $0x8] sm:$0xff]
        %v4951 = vld [vmem:[%s4948 + $0x10] sm:$0xff]
        %v4952 = vld [vmem:[%s4948 + $0x18] sm:$0xff]
        %v4953 = vld [vmem:[%s4948 + $0x20] sm:$0xff]
        %v4954 = vld [vmem:[%s4948 + $0x28] sm:$0xff]
        %v4955 = vld [vmem:[%s4948 + $0x30] sm:$0xff]
        %v4956 = vld [vmem:[%s4948 + $0x38] sm:$0xff]
        %v4957 = vld [vmem:[%s4948 + $0x40] sm:$0xff]
        %v4958 = vld [vmem:[%s4948 + $0x48] sm:$0xff]
        %v4959 = vld [vmem:[%s4948 + $0x50] sm:$0xff]
        %v4960 = vld [vmem:[%s4948 + $0x58] sm:$0xff]
        %v4961 = vld [vmem:[%s4948 + $0x60] sm:$0xff]
        %v4962 = vld [vmem:[%s4948 + $0x68] sm:$0xff]
        %v4963 = vld [vmem:[%s4948 + $0x70] sm:$0xff]
        %v4964 = vld [vmem:[%s4948 + $0x78] sm:$0xff]
        %v4965 = vpack.c.bf16 %v4944, %v4944
        %v4966 = vpack.c.bf16 %v4945, %v4945
        %v4967 = vpack.c.bf16 %v4946, %v4946
        %v4968 = vpack.c.bf16 %v4947, %v4947
        %4969 = vmatprep.subr.bf16.mxu0 %v2315
        %4970 = vmatpush1.bf16.msra.mxu0 %v2314
        %4971 = vmatprep.subr.bf16.mxu0 %v2331
        %4972 = vmatpush1.bf16.msra.mxu0 %v2330
        %4973 = vmatprep.subr.bf16.mxu0 %v2347
        %4974 = vmatpush1.bf16.msra.mxu0 %v2346
        %4975 = vmatprep.subr.bf16.mxu0 %v2363
        %4976 = vmatpush1.bf16.msra.mxu0 %v2362
        %4977 = vmatprep.subr.bf16.mxu0 %v2379
        %4978 = vmatpush1.bf16.msra.mxu0 %v2378
        %4979 = vmatprep.subr.bf16.mxu0 %v2395
        %4980 = vmatpush1.bf16.msra.mxu0 %v2394
        %4981 = vmatprep.subr.bf16.mxu0 %v2411
        %4982 = vmatpush1.bf16.msra.mxu0 %v2410
        %4983 = vmatprep.subr.bf16.mxu0 %v2427
        %4984 = vmatpush1.bf16.msra.mxu0 %v2426
        %4985 = vmatprep.subr.bf16.mxu0 %v2443
        %4986 = vmatpush1.bf16.msra.mxu0 %v2442
        %4987 = vmatprep.subr.bf16.mxu0 %v2459
        %4988 = vmatpush1.bf16.msra.mxu0 %v2458
        %4989 = vmatprep.subr.bf16.mxu0 %v2475
        %4990 = vmatpush1.bf16.msra.mxu0 %v2474
        %4991 = vmatprep.subr.bf16.mxu0 %v2491
        %4992 = vmatpush1.bf16.msra.mxu0 %v2490
        %4993 = vmatprep.subr.bf16.mxu0 %v2507
        %4994 = vmatpush1.bf16.msra.mxu0 %v2506
        %4995 = vmatprep.subr.bf16.mxu0 %v2523
        %4996 = vmatpush1.bf16.msra.mxu0 %v2522
        %4997 = vmatprep.subr.bf16.mxu0 %v2539
        %4998 = vmatpush1.bf16.msra.mxu0 %v2538
        %4999 = vmatprep.subr.bf16.mxu0 %v2555
        %5000 = vmatpush1.bf16.msra.mxu0 %v2554
        %5001 = vmatprep.mubr.bf16.mxu0 %v4966
        %5002 = vmatmul.mubr.bf16.gmra.mrb[0].mxu0 %v4965
        %v5003 = vpop.f32.mrb[0].mxu0
        %v5004 = vadd.f32 0.0, %v5003
        %v5005 = vpop.f32.mrb[0].mxu0
        %v5006 = vadd.f32 0.0, %v5005
        %v5007 = vpop.f32.mrb[0].mxu0
        %v5008 = vpop.f32.mrb[0].mxu0
        %5009 = vdwg.mxu0
        %5010 = vmatprep.subr.bf16.mxu0 %v2571
        %5011 = vmatpush1.bf16.msra.mxu0 %v2570
        %5012 = vmatprep.subr.bf16.mxu0 %v2587
        %5013 = vmatpush1.bf16.msra.mxu0 %v2586
        %5014 = vmatprep.subr.bf16.mxu0 %v2603
        %5015 = vmatpush1.bf16.msra.mxu0 %v2602
        %5016 = vmatprep.subr.bf16.mxu0 %v2619
        %5017 = vmatpush1.bf16.msra.mxu0 %v2618
        %5018 = vmatprep.subr.bf16.mxu0 %v2635
        %5019 = vmatpush1.bf16.msra.mxu0 %v2634
        %5020 = vmatprep.subr.bf16.mxu0 %v2651
        %5021 = vmatpush1.bf16.msra.mxu0 %v2650
        %5022 = vmatprep.subr.bf16.mxu0 %v2667
        %5023 = vmatpush1.bf16.msra.mxu0 %v2666
        %5024 = vmatprep.subr.bf16.mxu0 %v2683
        %5025 = vmatpush1.bf16.msra.mxu0 %v2682
        %5026 = vmatprep.subr.bf16.mxu0 %v2699
        %5027 = vmatpush1.bf16.msra.mxu0 %v2698
        %5028 = vmatprep.subr.bf16.mxu0 %v2715
        %5029 = vmatpush1.bf16.msra.mxu0 %v2714
        %5030 = vmatprep.subr.bf16.mxu0 %v2731
        %5031 = vmatpush1.bf16.msra.mxu0 %v2730
        %5032 = vmatprep.subr.bf16.mxu0 %v2747
        %5033 = vmatpush1.bf16.msra.mxu0 %v2746
        %5034 = vmatprep.subr.bf16.mxu0 %v2763
        %5035 = vmatpush1.bf16.msra.mxu0 %v2762
        %5036 = vmatprep.subr.bf16.mxu0 %v2779
        %5037 = vmatpush1.bf16.msra.mxu0 %v2778
        %5038 = vmatprep.subr.bf16.mxu0 %v2795
        %5039 = vmatpush1.bf16.msra.mxu0 %v2794
        %5040 = vmatprep.subr.bf16.mxu0 %v2811
        %5041 = vmatpush1.bf16.msra.mxu0 %v2810
        %5042 = vmatprep.mubr.bf16.mxu0 %v4968
        %5043 = vmatmul.mubr.bf16.gmra.mrb[0].mxu0 %v4967
        %v5044 = vpop.f32.mrb[0].mxu0
        %v5045 = vadd.f32 %v5004, %v5044
        %v5046 = vpop.f32.mrb[0].mxu0
        %v5047 = vadd.f32 %v5006, %v5046
        %v5048 = vpop.f32.mrb[0].mxu0
        %v5049 = vpop.f32.mrb[0].mxu0
        %5050 = vdwg.mxu0
        %5051 = vmatprep.subr.bf16.mxu0 %v2317
        %5052 = vmatpush1.bf16.msra.mxu0 %v2316
        %5053 = vmatprep.subr.bf16.mxu0 %v2333
        %5054 = vmatpush1.bf16.msra.mxu0 %v2332
        %5055 = vmatprep.subr.bf16.mxu0 %v2349
        %5056 = vmatpush1.bf16.msra.mxu0 %v2348
        %5057 = vmatprep.subr.bf16.mxu0 %v2365
        %5058 = vmatpush1.bf16.msra.mxu0 %v2364
        %5059 = vmatprep.subr.bf16.mxu0 %v2381
        %5060 = vmatpush1.bf16.msra.mxu0 %v2380
        %5061 = vmatprep.subr.bf16.mxu0 %v2397
        %5062 = vmatpush1.bf16.msra.mxu0 %v2396
        %5063 = vmatprep.subr.bf16.mxu0 %v2413
        %5064 = vmatpush1.bf16.msra.mxu0 %v2412
        %5065 = vmatprep.subr.bf16.mxu0 %v2429
        %5066 = vmatpush1.bf16.msra.mxu0 %v2428
        %5067 = vmatprep.subr.bf16.mxu0 %v2445
        %5068 = vmatpush1.bf16.msra.mxu0 %v2444
        %5069 = vmatprep.subr.bf16.mxu0 %v2461
        %5070 = vmatpush1.bf16.msra.mxu0 %v2460
        %5071 = vmatprep.subr.bf16.mxu0 %v2477
        %5072 = vmatpush1.bf16.msra.mxu0 %v2476
        %5073 = vmatprep.subr.bf16.mxu0 %v2493
        %5074 = vmatpush1.bf16.msra.mxu0 %v2492
        %5075 = vmatprep.subr.bf16.mxu0 %v2509
        %5076 = vmatpush1.bf16.msra.mxu0 %v2508
        %5077 = vmatprep.subr.bf16.mxu0 %v2525
        %5078 = vmatpush1.bf16.msra.mxu0 %v2524
        %5079 = vmatprep.subr.bf16.mxu0 %v2541
        %5080 = vmatpush1.bf16.msra.mxu0 %v2540
        %5081 = vmatprep.subr.bf16.mxu0 %v2557
        %5082 = vmatpush1.bf16.msra.mxu0 %v2556
        %5083 = vmatprep.mubr.bf16.mxu0 %v4966
        %5084 = vmatmul.mubr.bf16.gmra.mrb[0].mxu0 %v4965
        %v5085 = vpop.f32.mrb[0].mxu0
        %v5086 = vadd.f32 0.0, %v5085
        %v5087 = vpop.f32.mrb[0].mxu0
        %v5088 = vadd.f32 0.0, %v5087
        %v5089 = vpop.f32.mrb[0].mxu0
        %v5090 = vpop.f32.mrb[0].mxu0
        %5091 = vdwg.mxu0
        %5092 = vmatprep.subr.bf16.mxu0 %v2573
        %5093 = vmatpush1.bf16.msra.mxu0 %v2572
        %5094 = vmatprep.subr.bf16.mxu0 %v2589
        %5095 = vmatpush1.bf16.msra.mxu0 %v2588
        %5096 = vmatprep.subr.bf16.mxu0 %v2605
        %5097 = vmatpush1.bf16.msra.mxu0 %v2604
        %5098 = vmatprep.subr.bf16.mxu0 %v2621
        %5099 = vmatpush1.bf16.msra.mxu0 %v2620
        %5100 = vmatprep.subr.bf16.mxu0 %v2637
        %5101 = vmatpush1.bf16.msra.mxu0 %v2636
        %5102 = vmatprep.subr.bf16.mxu0 %v2653
        %5103 = vmatpush1.bf16.msra.mxu0 %v2652
        %5104 = vmatprep.subr.bf16.mxu0 %v2669
        %5105 = vmatpush1.bf16.msra.mxu0 %v2668
        %5106 = vmatprep.subr.bf16.mxu0 %v2685
        %5107 = vmatpush1.bf16.msra.mxu0 %v2684
        %5108 = vmatprep.subr.bf16.mxu0 %v2701
        %5109 = vmatpush1.bf16.msra.mxu0 %v2700
        %5110 = vmatprep.subr.bf16.mxu0 %v2717
        %5111 = vmatpush1.bf16.msra.mxu0 %v2716
        %5112 = vmatprep.subr.bf16.mxu0 %v2733
        %5113 = vmatpush1.bf16.msra.mxu0 %v2732
        %5114 = vmatprep.subr.bf16.mxu0 %v2749
        %5115 = vmatpush1.bf16.msra.mxu0 %v2748
        %5116 = vmatprep.subr.bf16.mxu0 %v2765
        %5117 = vmatpush1.bf16.msra.mxu0 %v2764
        %5118 = vmatprep.subr.bf16.mxu0 %v2781
        %5119 = vmatpush1.bf16.msra.mxu0 %v2780
        %5120 = vmatprep.subr.bf16.mxu0 %v2797
        %5121 = vmatpush1.bf16.msra.mxu0 %v2796
        %5122 = vmatprep.subr.bf16.mxu0 %v2813
        %5123 = vmatpush1.bf16.msra.mxu0 %v2812
        %5124 = vmatprep.mubr.bf16.mxu0 %v4968
        %5125 = vmatmul.mubr.bf16.gmra.mrb[0].mxu0 %v4967
        %v5126 = vpop.f32.mrb[0].mxu0
        %v5127 = vadd.f32 %v5086, %v5126
        %v5128 = vpop.f32.mrb[0].mxu0
        %v5129 = vadd.f32 %v5088, %v5128
        %v5130 = vpop.f32.mrb[0].mxu0
        %v5131 = vpop.f32.mrb[0].mxu0
        %5132 = vdwg.mxu0
        %5133 = vmatprep.subr.bf16.mxu0 %v2319
        %5134 = vmatpush1.bf16.msra.mxu0 %v2318
        %5135 = vmatprep.subr.bf16.mxu0 %v2335
        %5136 = vmatpush1.bf16.msra.mxu0 %v2334
        %5137 = vmatprep.subr.bf16.mxu0 %v2351
        %5138 = vmatpush1.bf16.msra.mxu0 %v2350
        %5139 = vmatprep.subr.bf16.mxu0 %v2367
        %5140 = vmatpush1.bf16.msra.mxu0 %v2366
        %5141 = vmatprep.subr.bf16.mxu0 %v2383
        %5142 = vmatpush1.bf16.msra.mxu0 %v2382
        %5143 = vmatprep.subr.bf16.mxu0 %v2399
        %5144 = vmatpush1.bf16.msra.mxu0 %v2398
        %5145 = vmatprep.subr.bf16.mxu0 %v2415
        %5146 = vmatpush1.bf16.msra.mxu0 %v2414
        %5147 = vmatprep.subr.bf16.mxu0 %v2431
        %5148 = vmatpush1.bf16.msra.mxu0 %v2430
        %5149 = vmatprep.subr.bf16.mxu0 %v2447
        %5150 = vmatpush1.bf16.msra.mxu0 %v2446
        %5151 = vmatprep.subr.bf16.mxu0 %v2463
        %5152 = vmatpush1.bf16.msra.mxu0 %v2462
        %5153 = vmatprep.subr.bf16.mxu0 %v2479
        %5154 = vmatpush1.bf16.msra.mxu0 %v2478
        %5155 = vmatprep.subr.bf16.mxu0 %v2495
        %5156 = vmatpush1.bf16.msra.mxu0 %v2494
        %5157 = vmatprep.subr.bf16.mxu0 %v2511
        %5158 = vmatpush1.bf16.msra.mxu0 %v2510
        %5159 = vmatprep.subr.bf16.mxu0 %v2527
        %5160 = vmatpush1.bf16.msra.mxu0 %v2526
        %5161 = vmatprep.subr.bf16.mxu0 %v2543
        %5162 = vmatpush1.bf16.msra.mxu0 %v2542
        %5163 = vmatprep.subr.bf16.mxu0 %v2559
        %5164 = vmatpush1.bf16.msra.mxu0 %v2558
        %5165 = vmatprep.mubr.bf16.mxu0 %v4966
        %5166 = vmatmul.mubr.bf16.gmra.mrb[0].mxu0 %v4965
        %v5167 = vpop.f32.mrb[0].mxu0
        %v5168 = vadd.f32 0.0, %v5167
        %v5169 = vpop.f32.mrb[0].mxu0
        %v5170 = vadd.f32 0.0, %v5169
        %v5171 = vpop.f32.mrb[0].mxu0
        %v5172 = vpop.f32.mrb[0].mxu0
        %5173 = vdwg.mxu0
        %5174 = vmatprep.subr.bf16.mxu0 %v2575
        %5175 = vmatpush1.bf16.msra.mxu0 %v2574
        %5176 = vmatprep.subr.bf16.mxu0 %v2591
        %5177 = vmatpush1.bf16.msra.mxu0 %v2590
        %5178 = vmatprep.subr.bf16.mxu0 %v2607
        %5179 = vmatpush1.bf16.msra.mxu0 %v2606
        %5180 = vmatprep.subr.bf16.mxu0 %v2623
        %5181 = vmatpush1.bf16.msra.mxu0 %v2622
        %5182 = vmatprep.subr.bf16.mxu0 %v2639
        %5183 = vmatpush1.bf16.msra.mxu0 %v2638
        %5184 = vmatprep.subr.bf16.mxu0 %v2655
        %5185 = vmatpush1.bf16.msra.mxu0 %v2654
        %5186 = vmatprep.subr.bf16.mxu0 %v2671
        %5187 = vmatpush1.bf16.msra.mxu0 %v2670
        %5188 = vmatprep.subr.bf16.mxu0 %v2687
        %5189 = vmatpush1.bf16.msra.mxu0 %v2686
        %5190 = vmatprep.subr.bf16.mxu0 %v2703
        %5191 = vmatpush1.bf16.msra.mxu0 %v2702
        %5192 = vmatprep.subr.bf16.mxu0 %v2719
        %5193 = vmatpush1.bf16.msra.mxu0 %v2718
        %5194 = vmatprep.subr.bf16.mxu0 %v2735
        %5195 = vmatpush1.bf16.msra.mxu0 %v2734
        %5196 = vmatprep.subr.bf16.mxu0 %v2751
        %5197 = vmatpush1.bf16.msra.mxu0 %v2750
        %5198 = vmatprep.subr.bf16.mxu0 %v2767
        %5199 = vmatpush1.bf16.msra.mxu0 %v2766
        %5200 = vmatprep.subr.bf16.mxu0 %v2783
        %5201 = vmatpush1.bf16.msra.mxu0 %v2782
        %5202 = vmatprep.subr.bf16.mxu0 %v2799
        %5203 = vmatpush1.bf16.msra.mxu0 %v2798
        %5204 = vmatprep.subr.bf16.mxu0 %v2815
        %5205 = vmatpush1.bf16.msra.mxu0 %v2814
        %5206 = vmatprep.mubr.bf16.mxu0 %v4968
        %5207 = vmatmul.mubr.bf16.gmra.mrb[0].mxu0 %v4967
        %v5208 = vpop.f32.mrb[0].mxu0
        %v5209 = vadd.f32 %v5168, %v5208
        %v5210 = vpop.f32.mrb[0].mxu0
        %v5211 = vadd.f32 %v5170, %v5210
        %v5212 = vpop.f32.mrb[0].mxu0
        %v5213 = vpop.f32.mrb[0].mxu0
        %5214 = vdwg.mxu0
        %5215 = vmatprep.subr.bf16.mxu0 %v2321
        %5216 = vmatpush1.bf16.msra.mxu0 %v2320
        %5217 = vmatprep.subr.bf16.mxu0 %v2337
        %5218 = vmatpush1.bf16.msra.mxu0 %v2336
        %5219 = vmatprep.subr.bf16.mxu0 %v2353
        %5220 = vmatpush1.bf16.msra.mxu0 %v2352
        %5221 = vmatprep.subr.bf16.mxu0 %v2369
        %5222 = vmatpush1.bf16.msra.mxu0 %v2368
        %5223 = vmatprep.subr.bf16.mxu0 %v2385
        %5224 = vmatpush1.bf16.msra.mxu0 %v2384
        %5225 = vmatprep.subr.bf16.mxu0 %v2401
        %5226 = vmatpush1.bf16.msra.mxu0 %v2400
        %5227 = vmatprep.subr.bf16.mxu0 %v2417
        %5228 = vmatpush1.bf16.msra.mxu0 %v2416
        %5229 = vmatprep.subr.bf16.mxu0 %v2433
        %5230 = vmatpush1.bf16.msra.mxu0 %v2432
        %5231 = vmatprep.subr.bf16.mxu0 %v2449
        %5232 = vmatpush1.bf16.msra.mxu0 %v2448
        %5233 = vmatprep.subr.bf16.mxu0 %v2465
        %5234 = vmatpush1.bf16.msra.mxu0 %v2464
        %5235 = vmatprep.subr.bf16.mxu0 %v2481
        %5236 = vmatpush1.bf16.msra.mxu0 %v2480
        %5237 = vmatprep.subr.bf16.mxu0 %v2497
        %5238 = vmatpush1.bf16.msra.mxu0 %v2496
        %5239 = vmatprep.subr.bf16.mxu0 %v2513
        %5240 = vmatpush1.bf16.msra.mxu0 %v2512
        %5241 = vmatprep.subr.bf16.mxu0 %v2529
        %5242 = vmatpush1.bf16.msra.mxu0 %v2528
        %5243 = vmatprep.subr.bf16.mxu0 %v2545
        %5244 = vmatpush1.bf16.msra.mxu0 %v2544
        %5245 = vmatprep.subr.bf16.mxu0 %v2561
        %5246 = vmatpush1.bf16.msra.mxu0 %v2560
        %5247 = vmatprep.mubr.bf16.mxu0 %v4966
        %5248 = vmatmul.mubr.bf16.gmra.mrb[0].mxu0 %v4965
        %v5249 = vpop.f32.mrb[0].mxu0
        %v5250 = vadd.f32 0.0, %v5249
        %v5251 = vpop.f32.mrb[0].mxu0
        %v5252 = vadd.f32 0.0, %v5251
        %v5253 = vpop.f32.mrb[0].mxu0
        %v5254 = vpop.f32.mrb[0].mxu0
        %5255 = vdwg.mxu0
        %5256 = vmatprep.subr.bf16.mxu0 %v2577
        %5257 = vmatpush1.bf16.msra.mxu0 %v2576
        %5258 = vmatprep.subr.bf16.mxu0 %v2593
        %5259 = vmatpush1.bf16.msra.mxu0 %v2592
        %5260 = vmatprep.subr.bf16.mxu0 %v2609
        %5261 = vmatpush1.bf16.msra.mxu0 %v2608
        %5262 = vmatprep.subr.bf16.mxu0 %v2625
        %5263 = vmatpush1.bf16.msra.mxu0 %v2624
        %5264 = vmatprep.subr.bf16.mxu0 %v2641
        %5265 = vmatpush1.bf16.msra.mxu0 %v2640
        %5266 = vmatprep.subr.bf16.mxu0 %v2657
        %5267 = vmatpush1.bf16.msra.mxu0 %v2656
        %5268 = vmatprep.subr.bf16.mxu0 %v2673
        %5269 = vmatpush1.bf16.msra.mxu0 %v2672
        %5270 = vmatprep.subr.bf16.mxu0 %v2689
        %5271 = vmatpush1.bf16.msra.mxu0 %v2688
        %5272 = vmatprep.subr.bf16.mxu0 %v2705
        %5273 = vmatpush1.bf16.msra.mxu0 %v2704
        %5274 = vmatprep.subr.bf16.mxu0 %v2721
        %5275 = vmatpush1.bf16.msra.mxu0 %v2720
        %5276 = vmatprep.subr.bf16.mxu0 %v2737
        %5277 = vmatpush1.bf16.msra.mxu0 %v2736
        %5278 = vmatprep.subr.bf16.mxu0 %v2753
        %5279 = vmatpush1.bf16.msra.mxu0 %v2752
        %5280 = vmatprep.subr.bf16.mxu0 %v2769
        %5281 = vmatpush1.bf16.msra.mxu0 %v2768
        %5282 = vmatprep.subr.bf16.mxu0 %v2785
        %5283 = vmatpush1.bf16.msra.mxu0 %v2784
        %5284 = vmatprep.subr.bf16.mxu0 %v2801
        %5285 = vmatpush1.bf16.msra.mxu0 %v2800
        %5286 = vmatprep.subr.bf16.mxu0 %v2817
        %5287 = vmatpush1.bf16.msra.mxu0 %v2816
        %5288 = vmatprep.mubr.bf16.mxu0 %v4968
        %5289 = vmatmul.mubr.bf16.gmra.mrb[0].mxu0 %v4967
        %v5290 = vpop.f32.mrb[0].mxu0
        %v5291 = vadd.f32 %v5250, %v5290
        %v5292 = vpop.f32.mrb[0].mxu0
        %v5293 = vadd.f32 %v5252, %v5292
        %v5294 = vpop.f32.mrb[0].mxu0
        %v5295 = vpop.f32.mrb[0].mxu0
        %5296 = vdwg.mxu0
        %5297 = vmatprep.subr.bf16.mxu0 %v2323
        %5298 = vmatpush1.bf16.msra.mxu0 %v2322
        %5299 = vmatprep.subr.bf16.mxu0 %v2339
        %5300 = vmatpush1.bf16.msra.mxu0 %v2338
        %5301 = vmatprep.subr.bf16.mxu0 %v2355
        %5302 = vmatpush1.bf16.msra.mxu0 %v2354
        %5303 = vmatprep.subr.bf16.mxu0 %v2371
        %5304 = vmatpush1.bf16.msra.mxu0 %v2370
        %5305 = vmatprep.subr.bf16.mxu0 %v2387
        %5306 = vmatpush1.bf16.msra.mxu0 %v2386
        %5307 = vmatprep.subr.bf16.mxu0 %v2403
        %5308 = vmatpush1.bf16.msra.mxu0 %v2402
        %5309 = vmatprep.subr.bf16.mxu0 %v2419
        %5310 = vmatpush1.bf16.msra.mxu0 %v2418
        %5311 = vmatprep.subr.bf16.mxu0 %v2435
        %5312 = vmatpush1.bf16.msra.mxu0 %v2434
        %5313 = vmatprep.subr.bf16.mxu0 %v2451
        %5314 = vmatpush1.bf16.msra.mxu0 %v2450
        %5315 = vmatprep.subr.bf16.mxu0 %v2467
        %5316 = vmatpush1.bf16.msra.mxu0 %v2466
        %5317 = vmatprep.subr.bf16.mxu0 %v2483
        %5318 = vmatpush1.bf16.msra.mxu0 %v2482
        %5319 = vmatprep.subr.bf16.mxu0 %v2499
        %5320 = vmatpush1.bf16.msra.mxu0 %v2498
        %5321 = vmatprep.subr.bf16.mxu0 %v2515
        %5322 = vmatpush1.bf16.msra.mxu0 %v2514
        %5323 = vmatprep.subr.bf16.mxu0 %v2531
        %5324 = vmatpush1.bf16.msra.mxu0 %v2530
        %5325 = vmatprep.subr.bf16.mxu0 %v2547
        %5326 = vmatpush1.bf16.msra.mxu0 %v2546
        %5327 = vmatprep.subr.bf16.mxu0 %v2563
        %5328 = vmatpush1.bf16.msra.mxu0 %v2562
        %5329 = vmatprep.mubr.bf16.mxu0 %v4966
        %5330 = vmatmul.mubr.bf16.gmra.mrb[0].mxu0 %v4965
        %v5331 = vpop.f32.mrb[0].mxu0
        %v5332 = vadd.f32 0.0, %v5331
        %v5333 = vpop.f32.mrb[0].mxu0
        %v5334 = vadd.f32 0.0, %v5333
        %v5335 = vpop.f32.mrb[0].mxu0
        %v5336 = vpop.f32.mrb[0].mxu0
        %5337 = vdwg.mxu0
        %5338 = vmatprep.subr.bf16.mxu0 %v2579
        %5339 = vmatpush1.bf16.msra.mxu0 %v2578
        %5340 = vmatprep.subr.bf16.mxu0 %v2595
        %5341 = vmatpush1.bf16.msra.mxu0 %v2594
        %5342 = vmatprep.subr.bf16.mxu0 %v2611
        %5343 = vmatpush1.bf16.msra.mxu0 %v2610
        %5344 = vmatprep.subr.bf16.mxu0 %v2627
        %5345 = vmatpush1.bf16.msra.mxu0 %v2626
        %5346 = vmatprep.subr.bf16.mxu0 %v2643
        %5347 = vmatpush1.bf16.msra.mxu0 %v2642
        %5348 = vmatprep.subr.bf16.mxu0 %v2659
        %5349 = vmatpush1.bf16.msra.mxu0 %v2658
        %5350 = vmatprep.subr.bf16.mxu0 %v2675
        %5351 = vmatpush1.bf16.msra.mxu0 %v2674
        %5352 = vmatprep.subr.bf16.mxu0 %v2691
        %5353 = vmatpush1.bf16.msra.mxu0 %v2690
        %5354 = vmatprep.subr.bf16.mxu0 %v2707
        %5355 = vmatpush1.bf16.msra.mxu0 %v2706
        %5356 = vmatprep.subr.bf16.mxu0 %v2723
        %5357 = vmatpush1.bf16.msra.mxu0 %v2722
        %5358 = vmatprep.subr.bf16.mxu0 %v2739
        %5359 = vmatpush1.bf16.msra.mxu0 %v2738
        %5360 = vmatprep.subr.bf16.mxu0 %v2755
        %5361 = vmatpush1.bf16.msra.mxu0 %v2754
        %5362 = vmatprep.subr.bf16.mxu0 %v2771
        %5363 = vmatpush1.bf16.msra.mxu0 %v2770
        %5364 = vmatprep.subr.bf16.mxu0 %v2787
        %5365 = vmatpush1.bf16.msra.mxu0 %v2786
        %5366 = vmatprep.subr.bf16.mxu0 %v2803
        %5367 = vmatpush1.bf16.msra.mxu0 %v2802
        %5368 = vmatprep.subr.bf16.mxu0 %v2819
        %5369 = vmatpush1.bf16.msra.mxu0 %v2818
        %5370 = vmatprep.mubr.bf16.mxu0 %v4968
        %5371 = vmatmul.mubr.bf16.gmra.mrb[0].mxu0 %v4967
        %v5372 = vpop.f32.mrb[0].mxu0
        %v5373 = vadd.f32 %v5332, %v5372
        %v5374 = vpop.f32.mrb[0].mxu0
        %v5375 = vadd.f32 %v5334, %v5374
        %v5376 = vpop.f32.mrb[0].mxu0
        %v5377 = vpop.f32.mrb[0].mxu0
        %5378 = vdwg.mxu0
        %5379 = vmatprep.subr.bf16.mxu0 %v2325
        %5380 = vmatpush1.bf16.msra.mxu0 %v2324
        %5381 = vmatprep.subr.bf16.mxu0 %v2341
        %5382 = vmatpush1.bf16.msra.mxu0 %v2340
        %5383 = vmatprep.subr.bf16.mxu0 %v2357
        %5384 = vmatpush1.bf16.msra.mxu0 %v2356
        %5385 = vmatprep.subr.bf16.mxu0 %v2373
        %5386 = vmatpush1.bf16.msra.mxu0 %v2372
        %5387 = vmatprep.subr.bf16.mxu0 %v2389
        %5388 = vmatpush1.bf16.msra.mxu0 %v2388
        %5389 = vmatprep.subr.bf16.mxu0 %v2405
        %5390 = vmatpush1.bf16.msra.mxu0 %v2404
        %5391 = vmatprep.subr.bf16.mxu0 %v2421
        %5392 = vmatpush1.bf16.msra.mxu0 %v2420
        %5393 = vmatprep.subr.bf16.mxu0 %v2437
        %5394 = vmatpush1.bf16.msra.mxu0 %v2436
        %5395 = vmatprep.subr.bf16.mxu0 %v2453
        %5396 = vmatpush1.bf16.msra.mxu0 %v2452
        %5397 = vmatprep.subr.bf16.mxu0 %v2469
        %5398 = vmatpush1.bf16.msra.mxu0 %v2468
        %5399 = vmatprep.subr.bf16.mxu0 %v2485
        %5400 = vmatpush1.bf16.msra.mxu0 %v2484
        %5401 = vmatprep.subr.bf16.mxu0 %v2501
        %5402 = vmatpush1.bf16.msra.mxu0 %v2500
        %5403 = vmatprep.subr.bf16.mxu0 %v2517
        %5404 = vmatpush1.bf16.msra.mxu0 %v2516
        %5405 = vmatprep.subr.bf16.mxu0 %v2533
        %5406 = vmatpush1.bf16.msra.mxu0 %v2532
        %5407 = vmatprep.subr.bf16.mxu0 %v2549
        %5408 = vmatpush1.bf16.msra.mxu0 %v2548
        %5409 = vmatprep.subr.bf16.mxu0 %v2565
        %5410 = vmatpush1.bf16.msra.mxu0 %v2564
        %5411 = vmatprep.mubr.bf16.mxu0 %v4966
        %5412 = vmatmul.mubr.bf16.gmra.mrb[0].mxu0 %v4965
        %v5413 = vpop.f32.mrb[0].mxu0
        %v5414 = vadd.f32 0.0, %v5413
        %v5415 = vpop.f32.mrb[0].mxu0
        %v5416 = vadd.f32 0.0, %v5415
        %v5417 = vpop.f32.mrb[0].mxu0
        %v5418 = vpop.f32.mrb[0].mxu0
        %5419 = vdwg.mxu0
        %5420 = vmatprep.subr.bf16.mxu0 %v2581
        %5421 = vmatpush1.bf16.msra.mxu0 %v2580
        %5422 = vmatprep.subr.bf16.mxu0 %v2597
        %5423 = vmatpush1.bf16.msra.mxu0 %v2596
        %5424 = vmatprep.subr.bf16.mxu0 %v2613
        %5425 = vmatpush1.bf16.msra.mxu0 %v2612
        %5426 = vmatprep.subr.bf16.mxu0 %v2629
        %5427 = vmatpush1.bf16.msra.mxu0 %v2628
        %5428 = vmatprep.subr.bf16.mxu0 %v2645
        %5429 = vmatpush1.bf16.msra.mxu0 %v2644
        %5430 = vmatprep.subr.bf16.mxu0 %v2661
        %5431 = vmatpush1.bf16.msra.mxu0 %v2660
        %5432 = vmatprep.subr.bf16.mxu0 %v2677
        %5433 = vmatpush1.bf16.msra.mxu0 %v2676
        %5434 = vmatprep.subr.bf16.mxu0 %v2693
        %5435 = vmatpush1.bf16.msra.mxu0 %v2692
        %5436 = vmatprep.subr.bf16.mxu0 %v2709
        %5437 = vmatpush1.bf16.msra.mxu0 %v2708
        %5438 = vmatprep.subr.bf16.mxu0 %v2725
        %5439 = vmatpush1.bf16.msra.mxu0 %v2724
        %5440 = vmatprep.subr.bf16.mxu0 %v2741
        %5441 = vmatpush1.bf16.msra.mxu0 %v2740
        %5442 = vmatprep.subr.bf16.mxu0 %v2757
        %5443 = vmatpush1.bf16.msra.mxu0 %v2756
        %5444 = vmatprep.subr.bf16.mxu0 %v2773
        %5445 = vmatpush1.bf16.msra.mxu0 %v2772
        %5446 = vmatprep.subr.bf16.mxu0 %v2789
        %5447 = vmatpush1.bf16.msra.mxu0 %v2788
        %5448 = vmatprep.subr.bf16.mxu0 %v2805
        %5449 = vmatpush1.bf16.msra.mxu0 %v2804
        %5450 = vmatprep.subr.bf16.mxu0 %v2821
        %5451 = vmatpush1.bf16.msra.mxu0 %v2820
        %5452 = vmatprep.mubr.bf16.mxu0 %v4968
        %5453 = vmatmul.mubr.bf16.gmra.mrb[0].mxu0 %v4967
        %v5454 = vpop.f32.mrb[0].mxu0
        %v5455 = vadd.f32 %v5414, %v5454
        %v5456 = vpop.f32.mrb[0].mxu0
        %v5457 = vadd.f32 %v5416, %v5456
        %v5458 = vpop.f32.mrb[0].mxu0
        %v5459 = vpop.f32.mrb[0].mxu0
        %5460 = vdwg.mxu0
        %5461 = vmatprep.subr.bf16.mxu0 %v2327
        %5462 = vmatpush1.bf16.msra.mxu0 %v2326
        %5463 = vmatprep.subr.bf16.mxu0 %v2343
        %5464 = vmatpush1.bf16.msra.mxu0 %v2342
        %5465 = vmatprep.subr.bf16.mxu0 %v2359
        %5466 = vmatpush1.bf16.msra.mxu0 %v2358
        %5467 = vmatprep.subr.bf16.mxu0 %v2375
        %5468 = vmatpush1.bf16.msra.mxu0 %v2374
        %5469 = vmatprep.subr.bf16.mxu0 %v2391
        %5470 = vmatpush1.bf16.msra.mxu0 %v2390
        %5471 = vmatprep.subr.bf16.mxu0 %v2407
        %5472 = vmatpush1.bf16.msra.mxu0 %v2406
        %5473 = vmatprep.subr.bf16.mxu0 %v2423
        %5474 = vmatpush1.bf16.msra.mxu0 %v2422
        %5475 = vmatprep.subr.bf16.mxu0 %v2439
        %5476 = vmatpush1.bf16.msra.mxu0 %v2438
        %5477 = vmatprep.subr.bf16.mxu0 %v2455
        %5478 = vmatpush1.bf16.msra.mxu0 %v2454
        %5479 = vmatprep.subr.bf16.mxu0 %v2471
        %5480 = vmatpush1.bf16.msra.mxu0 %v2470
        %5481 = vmatprep.subr.bf16.mxu0 %v2487
        %5482 = vmatpush1.bf16.msra.mxu0 %v2486
        %5483 = vmatprep.subr.bf16.mxu0 %v2503
        %5484 = vmatpush1.bf16.msra.mxu0 %v2502
        %5485 = vmatprep.subr.bf16.mxu0 %v2519
        %5486 = vmatpush1.bf16.msra.mxu0 %v2518
        %5487 = vmatprep.subr.bf16.mxu0 %v2535
        %5488 = vmatpush1.bf16.msra.mxu0 %v2534
        %5489 = vmatprep.subr.bf16.mxu0 %v2551
        %5490 = vmatpush1.bf16.msra.mxu0 %v2550
        %5491 = vmatprep.subr.bf16.mxu0 %v2567
        %5492 = vmatpush1.bf16.msra.mxu0 %v2566
        %5493 = vmatprep.mubr.bf16.mxu0 %v4966
        %5494 = vmatmul.mubr.bf16.gmra.mrb[0].mxu0 %v4965
        %v5495 = vpop.f32.mrb[0].mxu0
        %v5496 = vadd.f32 0.0, %v5495
        %v5497 = vpop.f32.mrb[0].mxu0
        %v5498 = vadd.f32 0.0, %v5497
        %v5499 = vpop.f32.mrb[0].mxu0
        %v5500 = vpop.f32.mrb[0].mxu0
        %5501 = vdwg.mxu0
        %5502 = vmatprep.subr.bf16.mxu0 %v2583
        %5503 = vmatpush1.bf16.msra.mxu0 %v2582
        %5504 = vmatprep.subr.bf16.mxu0 %v2599
        %5505 = vmatpush1.bf16.msra.mxu0 %v2598
        %5506 = vmatprep.subr.bf16.mxu0 %v2615
        %5507 = vmatpush1.bf16.msra.mxu0 %v2614
        %5508 = vmatprep.subr.bf16.mxu0 %v2631
        %5509 = vmatpush1.bf16.msra.mxu0 %v2630
        %5510 = vmatprep.subr.bf16.mxu0 %v2647
        %5511 = vmatpush1.bf16.msra.mxu0 %v2646
        %5512 = vmatprep.subr.bf16.mxu0 %v2663
        %5513 = vmatpush1.bf16.msra.mxu0 %v2662
        %5514 = vmatprep.subr.bf16.mxu0 %v2679
        %5515 = vmatpush1.bf16.msra.mxu0 %v2678
        %5516 = vmatprep.subr.bf16.mxu0 %v2695
        %5517 = vmatpush1.bf16.msra.mxu0 %v2694
        %5518 = vmatprep.subr.bf16.mxu0 %v2711
        %5519 = vmatpush1.bf16.msra.mxu0 %v2710
        %5520 = vmatprep.subr.bf16.mxu0 %v2727
        %5521 = vmatpush1.bf16.msra.mxu0 %v2726
        %5522 = vmatprep.subr.bf16.mxu0 %v2743
        %5523 = vmatpush1.bf16.msra.mxu0 %v2742
        %5524 = vmatprep.subr.bf16.mxu0 %v2759
        %5525 = vmatpush1.bf16.msra.mxu0 %v2758
        %5526 = vmatprep.subr.bf16.mxu0 %v2775
        %5527 = vmatpush1.bf16.msra.mxu0 %v2774
        %5528 = vmatprep.subr.bf16.mxu0 %v2791
        %5529 = vmatpush1.bf16.msra.mxu0 %v2790
        %5530 = vmatprep.subr.bf16.mxu0 %v2807
        %5531 = vmatpush1.bf16.msra.mxu0 %v2806
        %5532 = vmatprep.subr.bf16.mxu0 %v2823
        %5533 = vmatpush1.bf16.msra.mxu0 %v2822
        %5534 = vmatprep.mubr.bf16.mxu0 %v4968
        %5535 = vmatmul.mubr.bf16.gmra.mrb[0].mxu0 %v4967
        %v5536 = vpop.f32.mrb[0].mxu0
        %v5537 = vadd.f32 %v5496, %v5536
        %v5538 = vpop.f32.mrb[0].mxu0
        %v5539 = vadd.f32 %v5498, %v5538
        %v5540 = vpop.f32.mrb[0].mxu0
        %v5541 = vpop.f32.mrb[0].mxu0
        %5542 = vdwg.mxu0
        %5543 = vmatprep.subr.bf16.mxu0 %v2329
        %5544 = vmatpush1.bf16.msra.mxu0 %v2328
        %5545 = vmatprep.subr.bf16.mxu0 %v2345
        %5546 = vmatpush1.bf16.msra.mxu0 %v2344
        %5547 = vmatprep.subr.bf16.mxu0 %v2361
        %5548 = vmatpush1.bf16.msra.mxu0 %v2360
        %5549 = vmatprep.subr.bf16.mxu0 %v2377
        %5550 = vmatpush1.bf16.msra.mxu0 %v2376
        %5551 = vmatprep.subr.bf16.mxu0 %v2393
        %5552 = vmatpush1.bf16.msra.mxu0 %v2392
        %5553 = vmatprep.subr.bf16.mxu0 %v2409
        %5554 = vmatpush1.bf16.msra.mxu0 %v2408
        %5555 = vmatprep.subr.bf16.mxu0 %v2425
        %5556 = vmatpush1.bf16.msra.mxu0 %v2424
        %5557 = vmatprep.subr.bf16.mxu0 %v2441
        %5558 = vmatpush1.bf16.msra.mxu0 %v2440
        %5559 = vmatprep.subr.bf16.mxu0 %v2457
        %5560 = vmatpush1.bf16.msra.mxu0 %v2456
        %5561 = vmatprep.subr.bf16.mxu0 %v2473
        %5562 = vmatpush1.bf16.msra.mxu0 %v2472
        %5563 = vmatprep.subr.bf16.mxu0 %v2489
        %5564 = vmatpush1.bf16.msra.mxu0 %v2488
        %5565 = vmatprep.subr.bf16.mxu0 %v2505
        %5566 = vmatpush1.bf16.msra.mxu0 %v2504
        %5567 = vmatprep.subr.bf16.mxu0 %v2521
        %5568 = vmatpush1.bf16.msra.mxu0 %v2520
        %5569 = vmatprep.subr.bf16.mxu0 %v2537
        %5570 = vmatpush1.bf16.msra.mxu0 %v2536
        %5571 = vmatprep.subr.bf16.mxu0 %v2553
        %5572 = vmatpush1.bf16.msra.mxu0 %v2552
        %5573 = vmatprep.subr.bf16.mxu0 %v2569
        %5574 = vmatpush1.bf16.msra.mxu0 %v2568
        %5575 = vmatprep.mubr.bf16.mxu0 %v4966
        %5576 = vmatmul.mubr.bf16.gmra.mrb[0].mxu0 %v4965
        %v5577 = vpop.f32.mrb[0].mxu0
        %v5578 = vadd.f32 0.0, %v5577
        %v5579 = vpop.f32.mrb[0].mxu0
        %v5580 = vadd.f32 0.0, %v5579
        %v5581 = vpop.f32.mrb[0].mxu0
        %v5582 = vpop.f32.mrb[0].mxu0
        %5583 = vdwg.mxu0
        %5584 = vmatprep.subr.bf16.mxu0 %v2585
        %5585 = vmatpush1.bf16.msra.mxu0 %v2584
        %5586 = vmatprep.subr.bf16.mxu0 %v2601
        %5587 = vmatpush1.bf16.msra.mxu0 %v2600
        %5588 = vmatprep.subr.bf16.mxu0 %v2617
        %5589 = vmatpush1.bf16.msra.mxu0 %v2616
        %5590 = vmatprep.subr.bf16.mxu0 %v2633
        %5591 = vmatpush1.bf16.msra.mxu0 %v2632
        %5592 = vmatprep.subr.bf16.mxu0 %v2649
        %5593 = vmatpush1.bf16.msra.mxu0 %v2648
        %5594 = vmatprep.subr.bf16.mxu0 %v2665
        %5595 = vmatpush1.bf16.msra.mxu0 %v2664
        %5596 = vmatprep.subr.bf16.mxu0 %v2681
        %5597 = vmatpush1.bf16.msra.mxu0 %v2680
        %5598 = vmatprep.subr.bf16.mxu0 %v2697
        %5599 = vmatpush1.bf16.msra.mxu0 %v2696
        %5600 = vmatprep.subr.bf16.mxu0 %v2713
        %5601 = vmatpush1.bf16.msra.mxu0 %v2712
        %5602 = vmatprep.subr.bf16.mxu0 %v2729
        %5603 = vmatpush1.bf16.msra.mxu0 %v2728
        %5604 = vmatprep.subr.bf16.mxu0 %v2745
        %5605 = vmatpush1.bf16.msra.mxu0 %v2744
        %5606 = vmatprep.subr.bf16.mxu0 %v2761
        %5607 = vmatpush1.bf16.msra.mxu0 %v2760
        %5608 = vmatprep.subr.bf16.mxu0 %v2777
        %5609 = vmatpush1.bf16.msra.mxu0 %v2776
        %5610 = vmatprep.subr.bf16.mxu0 %v2793
        %5611 = vmatpush1.bf16.msra.mxu0 %v2792
        %5612 = vmatprep.subr.bf16.mxu0 %v2809
        %5613 = vmatpush1.bf16.msra.mxu0 %v2808
        %5614 = vmatprep.subr.bf16.mxu0 %v2825
        %5615 = vmatpush1.bf16.msra.mxu0 %v2824
        %5616 = vmatprep.mubr.bf16.mxu0 %v4968
        %5617 = vmatmul.mubr.bf16.gmra.mrb[0].mxu0 %v4967
        %v5618 = vpop.f32.mrb[0].mxu0
        %v5619 = vadd.f32 %v5578, %v5618
        %v5620 = vpop.f32.mrb[0].mxu0
        %v5621 = vadd.f32 %v5580, %v5620
        %v5622 = vpop.f32.mrb[0].mxu0
        %v5623 = vpop.f32.mrb[0].mxu0
        %5624 = vdwg.mxu0
        %v5625 = vadd.f32 %v4949, %v5045
        %v5626 = vadd.f32 %v4950, %v5047
        %v5627 = vadd.f32 %v4951, %v5127
        %v5628 = vadd.f32 %v4952, %v5129
        %v5629 = vadd.f32 %v4953, %v5209
        %v5630 = vadd.f32 %v4954, %v5211
        %v5631 = vadd.f32 %v4955, %v5291
        %v5632 = vadd.f32 %v4956, %v5293
        %v5633 = vadd.f32 %v4957, %v5373
        %v5634 = vadd.f32 %v4958, %v5375
        %v5635 = vadd.f32 %v4959, %v5455
        %v5636 = vadd.f32 %v4960, %v5457
        %v5637 = vadd.f32 %v4961, %v5537
        %v5638 = vadd.f32 %v4962, %v5539
        %v5639 = vadd.f32 %v4963, %v5619
        %v5640 = vadd.f32 %v4964, %v5621
        %v5641 = vxor.u32 %v5625, 2147483648
        %v5642 = vxor.u32 %v5626, 2147483648
        %v5643 = vxor.u32 %v5627, 2147483648
        %v5644 = vxor.u32 %v5628, 2147483648
        %v5645 = vmul.f32 %v5641, 1.442695
        %v5646 = vpow.pop %v5645
        %v5647 = vmul.f32 %v5642, 1.442695
        %v5648 = vpow.pop %v5647
        %v5649 = vmul.f32 %v5643, 1.442695
        %v5650 = vpow.pop %v5649
        %v5651 = vmul.f32 %v5644, 1.442695
        %v5652 = vpow.pop %v5651
        %v5653 = vadd.f32 %v5646, 1.0
        %v5654 = vadd.f32 %v5648, 1.0
        %v5655 = vadd.f32 %v5650, 1.0
        %v5656 = vadd.f32 %v5652, 1.0
        %v5657 = vrcp.pop %v5653
        %v5658 = vmul.f32 1.0, %v5657
        %v5659 = vrcp.pop %v5654
        %v5660 = vmul.f32 1.0, %v5659
        %v5661 = vrcp.pop %v5655
        %v5662 = vmul.f32 1.0, %v5661
        %v5663 = vrcp.pop %v5656
        %v5664 = vmul.f32 1.0, %v5663
        %v5665 = vxor.u32 %v5629, 2147483648
        %v5666 = vxor.u32 %v5630, 2147483648
        %v5667 = vxor.u32 %v5631, 2147483648
        %v5668 = vxor.u32 %v5632, 2147483648
        %v5669 = vmul.f32 %v5665, 1.442695
        %v5670 = vpow.pop %v5669
        %v5671 = vmul.f32 %v5666, 1.442695
        %v5672 = vpow.pop %v5671
        %v5673 = vmul.f32 %v5667, 1.442695
        %v5674 = vpow.pop %v5673
        %v5675 = vmul.f32 %v5668, 1.442695
        %v5676 = vpow.pop %v5675
        %v5677 = vadd.f32 %v5670, 1.0
        %v5678 = vadd.f32 %v5672, 1.0
        %v5679 = vadd.f32 %v5674, 1.0
        %v5680 = vadd.f32 %v5676, 1.0
        %v5681 = vrcp.pop %v5677
        %v5682 = vmul.f32 1.0, %v5681
        %v5683 = vrcp.pop %v5678
        %v5684 = vmul.f32 1.0, %v5683
        %v5685 = vrcp.pop %v5679
        %v5686 = vmul.f32 1.0, %v5685
        %v5687 = vrcp.pop %v5680
        %v5688 = vmul.f32 1.0, %v5687
        %v5689 = vtanh.pop %v5633
        %v5690 = vtanh.pop %v5634
        %v5691 = vtanh.pop %v5635
        %v5692 = vtanh.pop %v5636
        %v5693 = vxor.u32 %v5637, 2147483648
        %v5694 = vxor.u32 %v5638, 2147483648
        %v5695 = vxor.u32 %v5639, 2147483648
        %v5696 = vxor.u32 %v5640, 2147483648
        %v5697 = vmul.f32 %v5693, 1.442695
        %v5698 = vpow.pop %v5697
        %v5699 = vmul.f32 %v5694, 1.442695
        %v5700 = vpow.pop %v5699
        %v5701 = vmul.f32 %v5695, 1.442695
        %v5702 = vpow.pop %v5701
        %v5703 = vmul.f32 %v5696, 1.442695
        %v5704 = vpow.pop %v5703
        %v5705 = vadd.f32 %v5698, 1.0
        %v5706 = vadd.f32 %v5700, 1.0
        %v5707 = vadd.f32 %v5702, 1.0
        %v5708 = vadd.f32 %v5704, 1.0
        %v5709 = vrcp.pop %v5705
        %v5710 = vmul.f32 1.0, %v5709
        %v5711 = vrcp.pop %v5706
        %v5712 = vmul.f32 1.0, %v5711
        %v5713 = vrcp.pop %v5707
        %v5714 = vmul.f32 1.0, %v5713
        %v5715 = vrcp.pop %v5708
        %v5716 = vmul.f32 1.0, %v5715
        %v5717 = vmul.f32 %v5682, %v4932
        %v5718 = vmul.f32 %v5684, %v4933
        %v5719 = vmul.f32 %v5686, %v4934
        %v5720 = vmul.f32 %v5688, %v4935
        %v5721 = vmul.f32 %v5658, %v5689
        %v5722 = vmul.f32 %v5660, %v5690
        %v5723 = vmul.f32 %v5662, %v5691
        %v5724 = vmul.f32 %v5664, %v5692
        %v5725 = vadd.f32 %v5717, %v5721
        %v5726 = vadd.f32 %v5718, %v5722
        %v5727 = vadd.f32 %v5719, %v5723
        %v5728 = vadd.f32 %v5720, %v5724
        %v5729 = vtanh.pop %v5725
        %v5730 = vtanh.pop %v5726
        %v5731 = vtanh.pop %v5727
        %v5732 = vtanh.pop %v5728
        %v5733 = vmul.f32 %v5710, %v5729
        %v5734 = vmul.f32 %v5712, %v5730
        %v5735 = vmul.f32 %v5714, %v5731
        %v5736 = vmul.f32 %v5716, %v5732
        %s5737 = scalar_lea.vmem %s248, 16
        %v5738 = vld [vmem:[%s5737] sm:$0xff]
        %v5739 = vsub.f32 %v5725, %v4932
        %v5740 = vsub.f32 %v5726, %v4933
        %v5741 = vsub.f32 %v5727, %v4934
        %v5742 = vsub.f32 %v5728, %v4935
        %5744 = vset.pattern.permute.xlu0 0
        %5745 = vperm.xlu0 %5744, %v5738
        %v5746 = vpop.permute.xlu0 %5745
        %v5748 = vmul.f32 %v5746, %v5739
        %v5749 = vmul.f32 %v5746, %v5740
        %v5750 = vmul.f32 %v5746, %v5741
        %v5751 = vmul.f32 %v5746, %v5742
        %v5752 = vadd.f32 %v4932, %v5748
        %v5753 = vadd.f32 %v4933, %v5749
        %v5754 = vadd.f32 %v4934, %v5750
        %v5755 = vadd.f32 %v4935, %v5751
        %v5756 = vsub.f32 %v5733, %v4944
        %v5757 = vsub.f32 %v5734, %v4945
        %v5758 = vsub.f32 %v5735, %v4946
        %v5759 = vsub.f32 %v5736, %v4947
        %v5760 = vmul.f32 %v5746, %v5756
        %v5761 = vmul.f32 %v5746, %v5757
        %v5762 = vmul.f32 %v5746, %v5758
        %v5763 = vmul.f32 %v5746, %v5759
        %v5764 = vadd.f32 %v4944, %v5760
        %v5765 = vadd.f32 %v4945, %v5761
        %v5766 = vadd.f32 %v4946, %v5762
        %v5767 = vadd.f32 %v4947, %v5763
        %s5768 = scalar_lea.vmem %s202, 384 [#allocation2]
        %v5769 = vld [vmem:[%s5768] sm:$0xff]
        %v5770 = vld [vmem:[%s5768 + $0x8] sm:$0xff]
        %v5771 = vld [vmem:[%s5768 + $0x10] sm:$0xff]
        %v5772 = vld [vmem:[%s5768 + $0x18] sm:$0xff]
        %v5773 = vld [vmem:[%s5768 + $0x20] sm:$0xff]
        %v5774 = vld [vmem:[%s5768 + $0x28] sm:$0xff]
        %v5775 = vld [vmem:[%s5768 + $0x30] sm:$0xff]
        %v5776 = vld [vmem:[%s5768 + $0x38] sm:$0xff]
        %v5777 = vld [vmem:[%s5768 + $0x40] sm:$0xff]
        %v5778 = vld [vmem:[%s5768 + $0x48] sm:$0xff]
        %v5779 = vld [vmem:[%s5768 + $0x50] sm:$0xff]
        %v5780 = vld [vmem:[%s5768 + $0x58] sm:$0xff]
        %v5781 = vld [vmem:[%s5768 + $0x60] sm:$0xff]
        %v5782 = vld [vmem:[%s5768 + $0x68] sm:$0xff]
        %v5783 = vld [vmem:[%s5768 + $0x70] sm:$0xff]
        %v5784 = vld [vmem:[%s5768 + $0x78] sm:$0xff]
        %v5785 = vpack.c.bf16 %v5764, %v5764
        %v5786 = vpack.c.bf16 %v5765, %v5765
        %v5787 = vpack.c.bf16 %v5766, %v5766
        %v5788 = vpack.c.bf16 %v5767, %v5767
        %5789 = vmatprep.subr.bf16.mxu0 %v2315
        %5790 = vmatpush1.bf16.msra.mxu0 %v2314
        %5791 = vmatprep.subr.bf16.mxu0 %v2331
        %5792 = vmatpush1.bf16.msra.mxu0 %v2330
        %5793 = vmatprep.subr.bf16.mxu0 %v2347
        %5794 = vmatpush1.bf16.msra.mxu0 %v2346
        %5795 = vmatprep.subr.bf16.mxu0 %v2363
        %5796 = vmatpush1.bf16.msra.mxu0 %v2362
        %5797 = vmatprep.subr.bf16.mxu0 %v2379
        %5798 = vmatpush1.bf16.msra.mxu0 %v2378
        %5799 = vmatprep.subr.bf16.mxu0 %v2395
        %5800 = vmatpush1.bf16.msra.mxu0 %v2394
        %5801 = vmatprep.subr.bf16.mxu0 %v2411
        %5802 = vmatpush1.bf16.msra.mxu0 %v2410
        %5803 = vmatprep.subr.bf16.mxu0 %v2427
        %5804 = vmatpush1.bf16.msra.mxu0 %v2426
        %5805 = vmatprep.subr.bf16.mxu0 %v2443
        %5806 = vmatpush1.bf16.msra.mxu0 %v2442
        %5807 = vmatprep.subr.bf16.mxu0 %v2459
        %5808 = vmatpush1.bf16.msra.mxu0 %v2458
        %5809 = vmatprep.subr.bf16.mxu0 %v2475
        %5810 = vmatpush1.bf16.msra.mxu0 %v2474
        %5811 = vmatprep.subr.bf16.mxu0 %v2491
        %5812 = vmatpush1.bf16.msra.mxu0 %v2490
        %5813 = vmatprep.subr.bf16.mxu0 %v2507
        %5814 = vmatpush1.bf16.msra.mxu0 %v2506
        %5815 = vmatprep.subr.bf16.mxu0 %v2523
        %5816 = vmatpush1.bf16.msra.mxu0 %v2522
        %5817 = vmatprep.subr.bf16.mxu0 %v2539
        %5818 = vmatpush1.bf16.msra.mxu0 %v2538
        %5819 = vmatprep.subr.bf16.mxu0 %v2555
        %5820 = vmatpush1.bf16.msra.mxu0 %v2554
        %5821 = vmatprep.mubr.bf16.mxu0 %v5786
        %5822 = vmatmul.mubr.bf16.gmra.mrb[0].mxu0 %v5785
        %v5823 = vpop.f32.mrb[0].mxu0
        %v5824 = vadd.f32 0.0, %v5823
        %v5825 = vpop.f32.mrb[0].mxu0
        %v5826 = vadd.f32 0.0, %v5825
        %v5827 = vpop.f32.mrb[0].mxu0
        %v5828 = vpop.f32.mrb[0].mxu0
        %5829 = vdwg.mxu0
        %5830 = vmatprep.subr.bf16.mxu0 %v2571
        %5831 = vmatpush1.bf16.msra.mxu0 %v2570
        %5832 = vmatprep.subr.bf16.mxu0 %v2587
        %5833 = vmatpush1.bf16.msra.mxu0 %v2586
        %5834 = vmatprep.subr.bf16.mxu0 %v2603
        %5835 = vmatpush1.bf16.msra.mxu0 %v2602
        %5836 = vmatprep.subr.bf16.mxu0 %v2619
        %5837 = vmatpush1.bf16.msra.mxu0 %v2618
        %5838 = vmatprep.subr.bf16.mxu0 %v2635
        %5839 = vmatpush1.bf16.msra.mxu0 %v2634
        %5840 = vmatprep.subr.bf16.mxu0 %v2651
        %5841 = vmatpush1.bf16.msra.mxu0 %v2650
        %5842 = vmatprep.subr.bf16.mxu0 %v2667
        %5843 = vmatpush1.bf16.msra.mxu0 %v2666
        %5844 = vmatprep.subr.bf16.mxu0 %v2683
        %5845 = vmatpush1.bf16.msra.mxu0 %v2682
        %5846 = vmatprep.subr.bf16.mxu0 %v2699
        %5847 = vmatpush1.bf16.msra.mxu0 %v2698
        %5848 = vmatprep.subr.bf16.mxu0 %v2715
        %5849 = vmatpush1.bf16.msra.mxu0 %v2714
        %5850 = vmatprep.subr.bf16.mxu0 %v2731
        %5851 = vmatpush1.bf16.msra.mxu0 %v2730
        %5852 = vmatprep.subr.bf16.mxu0 %v2747
        %5853 = vmatpush1.bf16.msra.mxu0 %v2746
        %5854 = vmatprep.subr.bf16.mxu0 %v2763
        %5855 = vmatpush1.bf16.msra.mxu0 %v2762
        %5856 = vmatprep.subr.bf16.mxu0 %v2779
        %5857 = vmatpush1.bf16.msra.mxu0 %v2778
        %5858 = vmatprep.subr.bf16.mxu0 %v2795
        %5859 = vmatpush1.bf16.msra.mxu0 %v2794
        %5860 = vmatprep.subr.bf16.mxu0 %v2811
        %5861 = vmatpush1.bf16.msra.mxu0 %v2810
        %5862 = vmatprep.mubr.bf16.mxu0 %v5788
        %5863 = vmatmul.mubr.bf16.gmra.mrb[0].mxu0 %v5787
        %v5864 = vpop.f32.mrb[0].mxu0
        %v5865 = vadd.f32 %v5824, %v5864
        %v5866 = vpop.f32.mrb[0].mxu0
        %v5867 = vadd.f32 %v5826, %v5866
        %v5868 = vpop.f32.mrb[0].mxu0
        %v5869 = vpop.f32.mrb[0].mxu0
        %5870 = vdwg.mxu0
        %5871 = vmatprep.subr.bf16.mxu0 %v2317
        %5872 = vmatpush1.bf16.msra.mxu0 %v2316
        %5873 = vmatprep.subr.bf16.mxu0 %v2333
        %5874 = vmatpush1.bf16.msra.mxu0 %v2332
        %5875 = vmatprep.subr.bf16.mxu0 %v2349
        %5876 = vmatpush1.bf16.msra.mxu0 %v2348
        %5877 = vmatprep.subr.bf16.mxu0 %v2365
        %5878 = vmatpush1.bf16.msra.mxu0 %v2364
        %5879 = vmatprep.subr.bf16.mxu0 %v2381
        %5880 = vmatpush1.bf16.msra.mxu0 %v2380
        %5881 = vmatprep.subr.bf16.mxu0 %v2397
        %5882 = vmatpush1.bf16.msra.mxu0 %v2396
        %5883 = vmatprep.subr.bf16.mxu0 %v2413
        %5884 = vmatpush1.bf16.msra.mxu0 %v2412
        %5885 = vmatprep.subr.bf16.mxu0 %v2429
        %5886 = vmatpush1.bf16.msra.mxu0 %v2428
        %5887 = vmatprep.subr.bf16.mxu0 %v2445
        %5888 = vmatpush1.bf16.msra.mxu0 %v2444
        %5889 = vmatprep.subr.bf16.mxu0 %v2461
        %5890 = vmatpush1.bf16.msra.mxu0 %v2460
        %5891 = vmatprep.subr.bf16.mxu0 %v2477
        %5892 = vmatpush1.bf16.msra.mxu0 %v2476
        %5893 = vmatprep.subr.bf16.mxu0 %v2493
        %5894 = vmatpush1.bf16.msra.mxu0 %v2492
        %5895 = vmatprep.subr.bf16.mxu0 %v2509
        %5896 = vmatpush1.bf16.msra.mxu0 %v2508
        %5897 = vmatprep.subr.bf16.mxu0 %v2525
        %5898 = vmatpush1.bf16.msra.mxu0 %v2524
        %5899 = vmatprep.subr.bf16.mxu0 %v2541
        %5900 = vmatpush1.bf16.msra.mxu0 %v2540
        %5901 = vmatprep.subr.bf16.mxu0 %v2557
        %5902 = vmatpush1.bf16.msra.mxu0 %v2556
        %5903 = vmatprep.mubr.bf16.mxu0 %v5786
        %5904 = vmatmul.mubr.bf16.gmra.mrb[0].mxu0 %v5785
        %v5905 = vpop.f32.mrb[0].mxu0
        %v5906 = vadd.f32 0.0, %v5905
        %v5907 = vpop.f32.mrb[0].mxu0
        %v5908 = vadd.f32 0.0, %v5907
        %v5909 = vpop.f32.mrb[0].mxu0
        %v5910 = vpop.f32.mrb[0].mxu0
        %5911 = vdwg.mxu0
        %5912 = vmatprep.subr.bf16.mxu0 %v2573
        %5913 = vmatpush1.bf16.msra.mxu0 %v2572
        %5914 = vmatprep.subr.bf16.mxu0 %v2589
        %5915 = vmatpush1.bf16.msra.mxu0 %v2588
        %5916 = vmatprep.subr.bf16.mxu0 %v2605
        %5917 = vmatpush1.bf16.msra.mxu0 %v2604
        %5918 = vmatprep.subr.bf16.mxu0 %v2621
        %5919 = vmatpush1.bf16.msra.mxu0 %v2620
        %5920 = vmatprep.subr.bf16.mxu0 %v2637
        %5921 = vmatpush1.bf16.msra.mxu0 %v2636
        %5922 = vmatprep.subr.bf16.mxu0 %v2653
        %5923 = vmatpush1.bf16.msra.mxu0 %v2652
        %5924 = vmatprep.subr.bf16.mxu0 %v2669
        %5925 = vmatpush1.bf16.msra.mxu0 %v2668
        %5926 = vmatprep.subr.bf16.mxu0 %v2685
        %5927 = vmatpush1.bf16.msra.mxu0 %v2684
        %5928 = vmatprep.subr.bf16.mxu0 %v2701
        %5929 = vmatpush1.bf16.msra.mxu0 %v2700
        %5930 = vmatprep.subr.bf16.mxu0 %v2717
        %5931 = vmatpush1.bf16.msra.mxu0 %v2716
        %5932 = vmatprep.subr.bf16.mxu0 %v2733
        %5933 = vmatpush1.bf16.msra.mxu0 %v2732
        %5934 = vmatprep.subr.bf16.mxu0 %v2749
        %5935 = vmatpush1.bf16.msra.mxu0 %v2748
        %5936 = vmatprep.subr.bf16.mxu0 %v2765
        %5937 = vmatpush1.bf16.msra.mxu0 %v2764
        %5938 = vmatprep.subr.bf16.mxu0 %v2781
        %5939 = vmatpush1.bf16.msra.mxu0 %v2780
        %5940 = vmatprep.subr.bf16.mxu0 %v2797
        %5941 = vmatpush1.bf16.msra.mxu0 %v2796
        %5942 = vmatprep.subr.bf16.mxu0 %v2813
        %5943 = vmatpush1.bf16.msra.mxu0 %v2812
        %5944 = vmatprep.mubr.bf16.mxu0 %v5788
        %5945 = vmatmul.mubr.bf16.gmra.mrb[0].mxu0 %v5787
        %v5946 = vpop.f32.mrb[0].mxu0
        %v5947 = vadd.f32 %v5906, %v5946
        %v5948 = vpop.f32.mrb[0].mxu0
        %v5949 = vadd.f32 %v5908, %v5948
        %v5950 = vpop.f32.mrb[0].mxu0
        %v5951 = vpop.f32.mrb[0].mxu0
        %5952 = vdwg.mxu0
        %5953 = vmatprep.subr.bf16.mxu0 %v2319
        %5954 = vmatpush1.bf16.msra.mxu0 %v2318
        %5955 = vmatprep.subr.bf16.mxu0 %v2335
        %5956 = vmatpush1.bf16.msra.mxu0 %v2334
        %5957 = vmatprep.subr.bf16.mxu0 %v2351
        %5958 = vmatpush1.bf16.msra.mxu0 %v2350
        %5959 = vmatprep.subr.bf16.mxu0 %v2367
        %5960 = vmatpush1.bf16.msra.mxu0 %v2366
        %5961 = vmatprep.subr.bf16.mxu0 %v2383
        %5962 = vmatpush1.bf16.msra.mxu0 %v2382
        %5963 = vmatprep.subr.bf16.mxu0 %v2399
        %5964 = vmatpush1.bf16.msra.mxu0 %v2398
        %5965 = vmatprep.subr.bf16.mxu0 %v2415
        %5966 = vmatpush1.bf16.msra.mxu0 %v2414
        %5967 = vmatprep.subr.bf16.mxu0 %v2431
        %5968 = vmatpush1.bf16.msra.mxu0 %v2430
        %5969 = vmatprep.subr.bf16.mxu0 %v2447
        %5970 = vmatpush1.bf16.msra.mxu0 %v2446
        %5971 = vmatprep.subr.bf16.mxu0 %v2463
        %5972 = vmatpush1.bf16.msra.mxu0 %v2462
        %5973 = vmatprep.subr.bf16.mxu0 %v2479
        %5974 = vmatpush1.bf16.msra.mxu0 %v2478
        %5975 = vmatprep.subr.bf16.mxu0 %v2495
        %5976 = vmatpush1.bf16.msra.mxu0 %v2494
        %5977 = vmatprep.subr.bf16.mxu0 %v2511
        %5978 = vmatpush1.bf16.msra.mxu0 %v2510
        %5979 = vmatprep.subr.bf16.mxu0 %v2527
        %5980 = vmatpush1.bf16.msra.mxu0 %v2526
        %5981 = vmatprep.subr.bf16.mxu0 %v2543
        %5982 = vmatpush1.bf16.msra.mxu0 %v2542
        %5983 = vmatprep.subr.bf16.mxu0 %v2559
        %5984 = vmatpush1.bf16.msra.mxu0 %v2558
        %5985 = vmatprep.mubr.bf16.mxu0 %v5786
        %5986 = vmatmul.mubr.bf16.gmra.mrb[0].mxu0 %v5785
        %v5987 = vpop.f32.mrb[0].mxu0
        %v5988 = vadd.f32 0.0, %v5987
        %v5989 = vpop.f32.mrb[0].mxu0
        %v5990 = vadd.f32 0.0, %v5989
        %v5991 = vpop.f32.mrb[0].mxu0
        %v5992 = vpop.f32.mrb[0].mxu0
        %5993 = vdwg.mxu0
        %5994 = vmatprep.subr.bf16.mxu0 %v2575
        %5995 = vmatpush1.bf16.msra.mxu0 %v2574
        %5996 = vmatprep.subr.bf16.mxu0 %v2591
        %5997 = vmatpush1.bf16.msra.mxu0 %v2590
        %5998 = vmatprep.subr.bf16.mxu0 %v2607
        %5999 = vmatpush1.bf16.msra.mxu0 %v2606
        %6000 = vmatprep.subr.bf16.mxu0 %v2623
        %6001 = vmatpush1.bf16.msra.mxu0 %v2622
        %6002 = vmatprep.subr.bf16.mxu0 %v2639
        %6003 = vmatpush1.bf16.msra.mxu0 %v2638
        %6004 = vmatprep.subr.bf16.mxu0 %v2655
        %6005 = vmatpush1.bf16.msra.mxu0 %v2654
        %6006 = vmatprep.subr.bf16.mxu0 %v2671
        %6007 = vmatpush1.bf16.msra.mxu0 %v2670
        %6008 = vmatprep.subr.bf16.mxu0 %v2687
        %6009 = vmatpush1.bf16.msra.mxu0 %v2686
        %6010 = vmatprep.subr.bf16.mxu0 %v2703
        %6011 = vmatpush1.bf16.msra.mxu0 %v2702
        %6012 = vmatprep.subr.bf16.mxu0 %v2719
        %6013 = vmatpush1.bf16.msra.mxu0 %v2718
        %6014 = vmatprep.subr.bf16.mxu0 %v2735
        %6015 = vmatpush1.bf16.msra.mxu0 %v2734
        %6016 = vmatprep.subr.bf16.mxu0 %v2751
        %6017 = vmatpush1.bf16.msra.mxu0 %v2750
        %6018 = vmatprep.subr.bf16.mxu0 %v2767
        %6019 = vmatpush1.bf16.msra.mxu0 %v2766
        %6020 = vmatprep.subr.bf16.mxu0 %v2783
        %6021 = vmatpush1.bf16.msra.mxu0 %v2782
        %6022 = vmatprep.subr.bf16.mxu0 %v2799
        %6023 = vmatpush1.bf16.msra.mxu0 %v2798
        %6024 = vmatprep.subr.bf16.mxu0 %v2815
        %6025 = vmatpush1.bf16.msra.mxu0 %v2814
        %6026 = vmatprep.mubr.bf16.mxu0 %v5788
        %6027 = vmatmul.mubr.bf16.gmra.mrb[0].mxu0 %v5787
        %v6028 = vpop.f32.mrb[0].mxu0
        %v6029 = vadd.f32 %v5988, %v6028
        %v6030 = vpop.f32.mrb[0].mxu0
        %v6031 = vadd.f32 %v5990, %v6030
        %v6032 = vpop.f32.mrb[0].mxu0
        %v6033 = vpop.f32.mrb[0].mxu0
        %6034 = vdwg.mxu0
        %6035 = vmatprep.subr.bf16.mxu0 %v2321
        %6036 = vmatpush1.bf16.msra.mxu0 %v2320
        %6037 = vmatprep.subr.bf16.mxu0 %v2337
        %6038 = vmatpush1.bf16.msra.mxu0 %v2336
        %6039 = vmatprep.subr.bf16.mxu0 %v2353
        %6040 = vmatpush1.bf16.msra.mxu0 %v2352
        %6041 = vmatprep.subr.bf16.mxu0 %v2369
        %6042 = vmatpush1.bf16.msra.mxu0 %v2368
        %6043 = vmatprep.subr.bf16.mxu0 %v2385
        %6044 = vmatpush1.bf16.msra.mxu0 %v2384
        %6045 = vmatprep.subr.bf16.mxu0 %v2401
        %6046 = vmatpush1.bf16.msra.mxu0 %v2400
        %6047 = vmatprep.subr.bf16.mxu0 %v2417
        %6048 = vmatpush1.bf16.msra.mxu0 %v2416
        %6049 = vmatprep.subr.bf16.mxu0 %v2433
        %6050 = vmatpush1.bf16.msra.mxu0 %v2432
        %6051 = vmatprep.subr.bf16.mxu0 %v2449
        %6052 = vmatpush1.bf16.msra.mxu0 %v2448
        %6053 = vmatprep.subr.bf16.mxu0 %v2465
        %6054 = vmatpush1.bf16.msra.mxu0 %v2464
        %6055 = vmatprep.subr.bf16.mxu0 %v2481
        %6056 = vmatpush1.bf16.msra.mxu0 %v2480
        %6057 = vmatprep.subr.bf16.mxu0 %v2497
        %6058 = vmatpush1.bf16.msra.mxu0 %v2496
        %6059 = vmatprep.subr.bf16.mxu0 %v2513
        %6060 = vmatpush1.bf16.msra.mxu0 %v2512
        %6061 = vmatprep.subr.bf16.mxu0 %v2529
        %6062 = vmatpush1.bf16.msra.mxu0 %v2528
        %6063 = vmatprep.subr.bf16.mxu0 %v2545
        %6064 = vmatpush1.bf16.msra.mxu0 %v2544
        %6065 = vmatprep.subr.bf16.mxu0 %v2561
        %6066 = vmatpush1.bf16.msra.mxu0 %v2560
        %6067 = vmatprep.mubr.bf16.mxu0 %v5786
        %6068 = vmatmul.mubr.bf16.gmra.mrb[0].mxu0 %v5785
        %v6069 = vpop.f32.mrb[0].mxu0
        %v6070 = vadd.f32 0.0, %v6069
        %v6071 = vpop.f32.mrb[0].mxu0
        %v6072 = vadd.f32 0.0, %v6071
        %v6073 = vpop.f32.mrb[0].mxu0
        %v6074 = vpop.f32.mrb[0].mxu0
        %6075 = vdwg.mxu0
        %6076 = vmatprep.subr.bf16.mxu0 %v2577
        %6077 = vmatpush1.bf16.msra.mxu0 %v2576
        %6078 = vmatprep.subr.bf16.mxu0 %v2593
        %6079 = vmatpush1.bf16.msra.mxu0 %v2592
        %6080 = vmatprep.subr.bf16.mxu0 %v2609
        %6081 = vmatpush1.bf16.msra.mxu0 %v2608
        %6082 = vmatprep.subr.bf16.mxu0 %v2625
        %6083 = vmatpush1.bf16.msra.mxu0 %v2624
        %6084 = vmatprep.subr.bf16.mxu0 %v2641
        %6085 = vmatpush1.bf16.msra.mxu0 %v2640
        %6086 = vmatprep.subr.bf16.mxu0 %v2657
        %6087 = vmatpush1.bf16.msra.mxu0 %v2656
        %6088 = vmatprep.subr.bf16.mxu0 %v2673
        %6089 = vmatpush1.bf16.msra.mxu0 %v2672
        %6090 = vmatprep.subr.bf16.mxu0 %v2689
        %6091 = vmatpush1.bf16.msra.mxu0 %v2688
        %6092 = vmatprep.subr.bf16.mxu0 %v2705
        %6093 = vmatpush1.bf16.msra.mxu0 %v2704
        %6094 = vmatprep.subr.bf16.mxu0 %v2721
        %6095 = vmatpush1.bf16.msra.mxu0 %v2720
        %6096 = vmatprep.subr.bf16.mxu0 %v2737
        %6097 = vmatpush1.bf16.msra.mxu0 %v2736
        %6098 = vmatprep.subr.bf16.mxu0 %v2753
        %6099 = vmatpush1.bf16.msra.mxu0 %v2752
        %6100 = vmatprep.subr.bf16.mxu0 %v2769
        %6101 = vmatpush1.bf16.msra.mxu0 %v2768
        %6102 = vmatprep.subr.bf16.mxu0 %v2785
        %6103 = vmatpush1.bf16.msra.mxu0 %v2784
        %6104 = vmatprep.subr.bf16.mxu0 %v2801
        %6105 = vmatpush1.bf16.msra.mxu0 %v2800
        %6106 = vmatprep.subr.bf16.mxu0 %v2817
        %6107 = vmatpush1.bf16.msra.mxu0 %v2816
        %6108 = vmatprep.mubr.bf16.mxu0 %v5788
        %6109 = vmatmul.mubr.bf16.gmra.mrb[0].mxu0 %v5787
        %v6110 = vpop.f32.mrb[0].mxu0
        %v6111 = vadd.f32 %v6070, %v6110
        %v6112 = vpop.f32.mrb[0].mxu0
        %v6113 = vadd.f32 %v6072, %v6112
        %v6114 = vpop.f32.mrb[0].mxu0
        %v6115 = vpop.f32.mrb[0].mxu0
        %6116 = vdwg.mxu0
        %6117 = vmatprep.subr.bf16.mxu0 %v2323
        %6118 = vmatpush1.bf16.msra.mxu0 %v2322
        %6119 = vmatprep.subr.bf16.mxu0 %v2339
        %6120 = vmatpush1.bf16.msra.mxu0 %v2338
        %6121 = vmatprep.subr.bf16.mxu0 %v2355
        %6122 = vmatpush1.bf16.msra.mxu0 %v2354
        %6123 = vmatprep.subr.bf16.mxu0 %v2371
        %6124 = vmatpush1.bf16.msra.mxu0 %v2370
        %6125 = vmatprep.subr.bf16.mxu0 %v2387
        %6126 = vmatpush1.bf16.msra.mxu0 %v2386
        %6127 = vmatprep.subr.bf16.mxu0 %v2403
        %6128 = vmatpush1.bf16.msra.mxu0 %v2402
        %6129 = vmatprep.subr.bf16.mxu0 %v2419
        %6130 = vmatpush1.bf16.msra.mxu0 %v2418
        %6131 = vmatprep.subr.bf16.mxu0 %v2435
        %6132 = vmatpush1.bf16.msra.mxu0 %v2434
        %6133 = vmatprep.subr.bf16.mxu0 %v2451
        %6134 = vmatpush1.bf16.msra.mxu0 %v2450
        %6135 = vmatprep.subr.bf16.mxu0 %v2467
        %6136 = vmatpush1.bf16.msra.mxu0 %v2466
        %6137 = vmatprep.subr.bf16.mxu0 %v2483
        %6138 = vmatpush1.bf16.msra.mxu0 %v2482
        %6139 = vmatprep.subr.bf16.mxu0 %v2499
        %6140 = vmatpush1.bf16.msra.mxu0 %v2498
        %6141 = vmatprep.subr.bf16.mxu0 %v2515
        %6142 = vmatpush1.bf16.msra.mxu0 %v2514
        %6143 = vmatprep.subr.bf16.mxu0 %v2531
        %6144 = vmatpush1.bf16.msra.mxu0 %v2530
        %6145 = vmatprep.subr.bf16.mxu0 %v2547
        %6146 = vmatpush1.bf16.msra.mxu0 %v2546
        %6147 = vmatprep.subr.bf16.mxu0 %v2563
        %6148 = vmatpush1.bf16.msra.mxu0 %v2562
        %6149 = vmatprep.mubr.bf16.mxu0 %v5786
        %6150 = vmatmul.mubr.bf16.gmra.mrb[0].mxu0 %v5785
        %v6151 = vpop.f32.mrb[0].mxu0
        %v6152 = vadd.f32 0.0, %v6151
        %v6153 = vpop.f32.mrb[0].mxu0
        %v6154 = vadd.f32 0.0, %v6153
        %v6155 = vpop.f32.mrb[0].mxu0
        %v6156 = vpop.f32.mrb[0].mxu0
        %6157 = vdwg.mxu0
        %6158 = vmatprep.subr.bf16.mxu0 %v2579
        %6159 = vmatpush1.bf16.msra.mxu0 %v2578
        %6160 = vmatprep.subr.bf16.mxu0 %v2595
        %6161 = vmatpush1.bf16.msra.mxu0 %v2594
        %6162 = vmatprep.subr.bf16.mxu0 %v2611
        %6163 = vmatpush1.bf16.msra.mxu0 %v2610
        %6164 = vmatprep.subr.bf16.mxu0 %v2627
        %6165 = vmatpush1.bf16.msra.mxu0 %v2626
        %6166 = vmatprep.subr.bf16.mxu0 %v2643
        %6167 = vmatpush1.bf16.msra.mxu0 %v2642
        %6168 = vmatprep.subr.bf16.mxu0 %v2659
        %6169 = vmatpush1.bf16.msra.mxu0 %v2658
        %6170 = vmatprep.subr.bf16.mxu0 %v2675
        %6171 = vmatpush1.bf16.msra.mxu0 %v2674
        %6172 = vmatprep.subr.bf16.mxu0 %v2691
        %6173 = vmatpush1.bf16.msra.mxu0 %v2690
        %6174 = vmatprep.subr.bf16.mxu0 %v2707
        %6175 = vmatpush1.bf16.msra.mxu0 %v2706
        %6176 = vmatprep.subr.bf16.mxu0 %v2723
        %6177 = vmatpush1.bf16.msra.mxu0 %v2722
        %6178 = vmatprep.subr.bf16.mxu0 %v2739
        %6179 = vmatpush1.bf16.msra.mxu0 %v2738
        %6180 = vmatprep.subr.bf16.mxu0 %v2755
        %6181 = vmatpush1.bf16.msra.mxu0 %v2754
        %6182 = vmatprep.subr.bf16.mxu0 %v2771
        %6183 = vmatpush1.bf16.msra.mxu0 %v2770
        %6184 = vmatprep.subr.bf16.mxu0 %v2787
        %6185 = vmatpush1.bf16.msra.mxu0 %v2786
        %6186 = vmatprep.subr.bf16.mxu0 %v2803
        %6187 = vmatpush1.bf16.msra.mxu0 %v2802
        %6188 = vmatprep.subr.bf16.mxu0 %v2819
        %6189 = vmatpush1.bf16.msra.mxu0 %v2818
        %6190 = vmatprep.mubr.bf16.mxu0 %v5788
        %6191 = vmatmul.mubr.bf16.gmra.mrb[0].mxu0 %v5787
        %v6192 = vpop.f32.mrb[0].mxu0
        %v6193 = vadd.f32 %v6152, %v6192
        %v6194 = vpop.f32.mrb[0].mxu0
        %v6195 = vadd.f32 %v6154, %v6194
        %v6196 = vpop.f32.mrb[0].mxu0
        %v6197 = vpop.f32.mrb[0].mxu0
        %6198 = vdwg.mxu0
        %6199 = vmatprep.subr.bf16.mxu0 %v2325
        %6200 = vmatpush1.bf16.msra.mxu0 %v2324
        %6201 = vmatprep.subr.bf16.mxu0 %v2341
        %6202 = vmatpush1.bf16.msra.mxu0 %v2340
        %6203 = vmatprep.subr.bf16.mxu0 %v2357
        %6204 = vmatpush1.bf16.msra.mxu0 %v2356
        %6205 = vmatprep.subr.bf16.mxu0 %v2373
        %6206 = vmatpush1.bf16.msra.mxu0 %v2372
        %6207 = vmatprep.subr.bf16.mxu0 %v2389
        %6208 = vmatpush1.bf16.msra.mxu0 %v2388
        %6209 = vmatprep.subr.bf16.mxu0 %v2405
        %6210 = vmatpush1.bf16.msra.mxu0 %v2404
        %6211 = vmatprep.subr.bf16.mxu0 %v2421
        %6212 = vmatpush1.bf16.msra.mxu0 %v2420
        %6213 = vmatprep.subr.bf16.mxu0 %v2437
        %6214 = vmatpush1.bf16.msra.mxu0 %v2436
        %6215 = vmatprep.subr.bf16.mxu0 %v2453
        %6216 = vmatpush1.bf16.msra.mxu0 %v2452
        %6217 = vmatprep.subr.bf16.mxu0 %v2469
        %6218 = vmatpush1.bf16.msra.mxu0 %v2468
        %6219 = vmatprep.subr.bf16.mxu0 %v2485
        %6220 = vmatpush1.bf16.msra.mxu0 %v2484
        %6221 = vmatprep.subr.bf16.mxu0 %v2501
        %6222 = vmatpush1.bf16.msra.mxu0 %v2500
        %6223 = vmatprep.subr.bf16.mxu0 %v2517
        %6224 = vmatpush1.bf16.msra.mxu0 %v2516
        %6225 = vmatprep.subr.bf16.mxu0 %v2533
        %6226 = vmatpush1.bf16.msra.mxu0 %v2532
        %6227 = vmatprep.subr.bf16.mxu0 %v2549
        %6228 = vmatpush1.bf16.msra.mxu0 %v2548
        %6229 = vmatprep.subr.bf16.mxu0 %v2565
        %6230 = vmatpush1.bf16.msra.mxu0 %v2564
        %6231 = vmatprep.mubr.bf16.mxu0 %v5786
        %6232 = vmatmul.mubr.bf16.gmra.mrb[0].mxu0 %v5785
        %v6233 = vpop.f32.mrb[0].mxu0
        %v6234 = vadd.f32 0.0, %v6233
        %v6235 = vpop.f32.mrb[0].mxu0
        %v6236 = vadd.f32 0.0, %v6235
        %v6237 = vpop.f32.mrb[0].mxu0
        %v6238 = vpop.f32.mrb[0].mxu0
        %6239 = vdwg.mxu0
        %6240 = vmatprep.subr.bf16.mxu0 %v2581
        %6241 = vmatpush1.bf16.msra.mxu0 %v2580
        %6242 = vmatprep.subr.bf16.mxu0 %v2597
        %6243 = vmatpush1.bf16.msra.mxu0 %v2596
        %6244 = vmatprep.subr.bf16.mxu0 %v2613
        %6245 = vmatpush1.bf16.msra.mxu0 %v2612
        %6246 = vmatprep.subr.bf16.mxu0 %v2629
        %6247 = vmatpush1.bf16.msra.mxu0 %v2628
        %6248 = vmatprep.subr.bf16.mxu0 %v2645
        %6249 = vmatpush1.bf16.msra.mxu0 %v2644
        %6250 = vmatprep.subr.bf16.mxu0 %v2661
        %6251 = vmatpush1.bf16.msra.mxu0 %v2660
        %6252 = vmatprep.subr.bf16.mxu0 %v2677
        %6253 = vmatpush1.bf16.msra.mxu0 %v2676
        %6254 = vmatprep.subr.bf16.mxu0 %v2693
        %6255 = vmatpush1.bf16.msra.mxu0 %v2692
        %6256 = vmatprep.subr.bf16.mxu0 %v2709
        %6257 = vmatpush1.bf16.msra.mxu0 %v2708
        %6258 = vmatprep.subr.bf16.mxu0 %v2725
        %6259 = vmatpush1.bf16.msra.mxu0 %v2724
        %6260 = vmatprep.subr.bf16.mxu0 %v2741
        %6261 = vmatpush1.bf16.msra.mxu0 %v2740
        %6262 = vmatprep.subr.bf16.mxu0 %v2757
        %6263 = vmatpush1.bf16.msra.mxu0 %v2756
        %6264 = vmatprep.subr.bf16.mxu0 %v2773
        %6265 = vmatpush1.bf16.msra.mxu0 %v2772
        %6266 = vmatprep.subr.bf16.mxu0 %v2789
        %6267 = vmatpush1.bf16.msra.mxu0 %v2788
        %6268 = vmatprep.subr.bf16.mxu0 %v2805
        %6269 = vmatpush1.bf16.msra.mxu0 %v2804
        %6270 = vmatprep.subr.bf16.mxu0 %v2821
        %6271 = vmatpush1.bf16.msra.mxu0 %v2820
        %6272 = vmatprep.mubr.bf16.mxu0 %v5788
        %6273 = vmatmul.mubr.bf16.gmra.mrb[0].mxu0 %v5787
        %v6274 = vpop.f32.mrb[0].mxu0
        %v6275 = vadd.f32 %v6234, %v6274
        %v6276 = vpop.f32.mrb[0].mxu0
        %v6277 = vadd.f32 %v6236, %v6276
        %v6278 = vpop.f32.mrb[0].mxu0
        %v6279 = vpop.f32.mrb[0].mxu0
        %6280 = vdwg.mxu0
        %6281 = vmatprep.subr.bf16.mxu0 %v2327
        %6282 = vmatpush1.bf16.msra.mxu0 %v2326
        %6283 = vmatprep.subr.bf16.mxu0 %v2343
        %6284 = vmatpush1.bf16.msra.mxu0 %v2342
        %6285 = vmatprep.subr.bf16.mxu0 %v2359
        %6286 = vmatpush1.bf16.msra.mxu0 %v2358
        %6287 = vmatprep.subr.bf16.mxu0 %v2375
        %6288 = vmatpush1.bf16.msra.mxu0 %v2374
        %6289 = vmatprep.subr.bf16.mxu0 %v2391
        %6290 = vmatpush1.bf16.msra.mxu0 %v2390
        %6291 = vmatprep.subr.bf16.mxu0 %v2407
        %6292 = vmatpush1.bf16.msra.mxu0 %v2406
        %6293 = vmatprep.subr.bf16.mxu0 %v2423
        %6294 = vmatpush1.bf16.msra.mxu0 %v2422
        %6295 = vmatprep.subr.bf16.mxu0 %v2439
        %6296 = vmatpush1.bf16.msra.mxu0 %v2438
        %6297 = vmatprep.subr.bf16.mxu0 %v2455
        %6298 = vmatpush1.bf16.msra.mxu0 %v2454
        %6299 = vmatprep.subr.bf16.mxu0 %v2471
        %6300 = vmatpush1.bf16.msra.mxu0 %v2470
        %6301 = vmatprep.subr.bf16.mxu0 %v2487
        %6302 = vmatpush1.bf16.msra.mxu0 %v2486
        %6303 = vmatprep.subr.bf16.mxu0 %v2503
        %6304 = vmatpush1.bf16.msra.mxu0 %v2502
        %6305 = vmatprep.subr.bf16.mxu0 %v2519
        %6306 = vmatpush1.bf16.msra.mxu0 %v2518
        %6307 = vmatprep.subr.bf16.mxu0 %v2535
        %6308 = vmatpush1.bf16.msra.mxu0 %v2534
        %6309 = vmatprep.subr.bf16.mxu0 %v2551
        %6310 = vmatpush1.bf16.msra.mxu0 %v2550
        %6311 = vmatprep.subr.bf16.mxu0 %v2567
        %6312 = vmatpush1.bf16.msra.mxu0 %v2566
        %6313 = vmatprep.mubr.bf16.mxu0 %v5786
        %6314 = vmatmul.mubr.bf16.gmra.mrb[0].mxu0 %v5785
        %v6315 = vpop.f32.mrb[0].mxu0
        %v6316 = vadd.f32 0.0, %v6315
        %v6317 = vpop.f32.mrb[0].mxu0
        %v6318 = vadd.f32 0.0, %v6317
        %v6319 = vpop.f32.mrb[0].mxu0
        %v6320 = vpop.f32.mrb[0].mxu0
        %6321 = vdwg.mxu0
        %6322 = vmatprep.subr.bf16.mxu0 %v2583
        %6323 = vmatpush1.bf16.msra.mxu0 %v2582
        %6324 = vmatprep.subr.bf16.mxu0 %v2599
        %6325 = vmatpush1.bf16.msra.mxu0 %v2598
        %6326 = vmatprep.subr.bf16.mxu0 %v2615
        %6327 = vmatpush1.bf16.msra.mxu0 %v2614
        %6328 = vmatprep.subr.bf16.mxu0 %v2631
        %6329 = vmatpush1.bf16.msra.mxu0 %v2630
        %6330 = vmatprep.subr.bf16.mxu0 %v2647
        %6331 = vmatpush1.bf16.msra.mxu0 %v2646
        %6332 = vmatprep.subr.bf16.mxu0 %v2663
        %6333 = vmatpush1.bf16.msra.mxu0 %v2662
        %6334 = vmatprep.subr.bf16.mxu0 %v2679
        %6335 = vmatpush1.bf16.msra.mxu0 %v2678
        %6336 = vmatprep.subr.bf16.mxu0 %v2695
        %6337 = vmatpush1.bf16.msra.mxu0 %v2694
        %6338 = vmatprep.subr.bf16.mxu0 %v2711
        %6339 = vmatpush1.bf16.msra.mxu0 %v2710
        %6340 = vmatprep.subr.bf16.mxu0 %v2727
        %6341 = vmatpush1.bf16.msra.mxu0 %v2726
        %6342 = vmatprep.subr.bf16.mxu0 %v2743
        %6343 = vmatpush1.bf16.msra.mxu0 %v2742
        %6344 = vmatprep.subr.bf16.mxu0 %v2759
        %6345 = vmatpush1.bf16.msra.mxu0 %v2758
        %6346 = vmatprep.subr.bf16.mxu0 %v2775
        %6347 = vmatpush1.bf16.msra.mxu0 %v2774
        %6348 = vmatprep.subr.bf16.mxu0 %v2791
        %6349 = vmatpush1.bf16.msra.mxu0 %v2790
        %6350 = vmatprep.subr.bf16.mxu0 %v2807
        %6351 = vmatpush1.bf16.msra.mxu0 %v2806
        %6352 = vmatprep.subr.bf16.mxu0 %v2823
        %6353 = vmatpush1.bf16.msra.mxu0 %v2822
        %6354 = vmatprep.mubr.bf16.mxu0 %v5788
        %6355 = vmatmul.mubr.bf16.gmra.mrb[0].mxu0 %v5787
        %v6356 = vpop.f32.mrb[0].mxu0
        %v6357 = vadd.f32 %v6316, %v6356
        %v6358 = vpop.f32.mrb[0].mxu0
        %v6359 = vadd.f32 %v6318, %v6358
        %v6360 = vpop.f32.mrb[0].mxu0
        %v6361 = vpop.f32.mrb[0].mxu0
        %6362 = vdwg.mxu0
        %6363 = vmatprep.subr.bf16.mxu0 %v2329
        %6364 = vmatpush1.bf16.msra.mxu0 %v2328
        %6365 = vmatprep.subr.bf16.mxu0 %v2345
        %6366 = vmatpush1.bf16.msra.mxu0 %v2344
        %6367 = vmatprep.subr.bf16.mxu0 %v2361
        %6368 = vmatpush1.bf16.msra.mxu0 %v2360
        %6369 = vmatprep.subr.bf16.mxu0 %v2377
        %6370 = vmatpush1.bf16.msra.mxu0 %v2376
        %6371 = vmatprep.subr.bf16.mxu0 %v2393
        %6372 = vmatpush1.bf16.msra.mxu0 %v2392
        %6373 = vmatprep.subr.bf16.mxu0 %v2409
        %6374 = vmatpush1.bf16.msra.mxu0 %v2408
        %6375 = vmatprep.subr.bf16.mxu0 %v2425
        %6376 = vmatpush1.bf16.msra.mxu0 %v2424
        %6377 = vmatprep.subr.bf16.mxu0 %v2441
        %6378 = vmatpush1.bf16.msra.mxu0 %v2440
        %6379 = vmatprep.subr.bf16.mxu0 %v2457
        %6380 = vmatpush1.bf16.msra.mxu0 %v2456
        %6381 = vmatprep.subr.bf16.mxu0 %v2473
        %6382 = vmatpush1.bf16.msra.mxu0 %v2472
        %6383 = vmatprep.subr.bf16.mxu0 %v2489
        %6384 = vmatpush1.bf16.msra.mxu0 %v2488
        %6385 = vmatprep.subr.bf16.mxu0 %v2505
        %6386 = vmatpush1.bf16.msra.mxu0 %v2504
        %6387 = vmatprep.subr.bf16.mxu0 %v2521
        %6388 = vmatpush1.bf16.msra.mxu0 %v2520
        %6389 = vmatprep.subr.bf16.mxu0 %v2537
        %6390 = vmatpush1.bf16.msra.mxu0 %v2536
        %6391 = vmatprep.subr.bf16.mxu0 %v2553
        %6392 = vmatpush1.bf16.msra.mxu0 %v2552
        %6393 = vmatprep.subr.bf16.mxu0 %v2569
        %6394 = vmatpush1.bf16.msra.mxu0 %v2568
        %6395 = vmatprep.mubr.bf16.mxu0 %v5786
        %6396 = vmatmul.mubr.bf16.gmra.mrb[0].mxu0 %v5785
        %v6397 = vpop.f32.mrb[0].mxu0
        %v6398 = vadd.f32 0.0, %v6397
        %v6399 = vpop.f32.mrb[0].mxu0
        %v6400 = vadd.f32 0.0, %v6399
        %v6401 = vpop.f32.mrb[0].mxu0
        %v6402 = vpop.f32.mrb[0].mxu0
        %6403 = vdwg.mxu0
        %6404 = vmatprep.subr.bf16.mxu0 %v2585
        %6405 = vmatpush1.bf16.msra.mxu0 %v2584
        %6406 = vmatprep.subr.bf16.mxu0 %v2601
        %6407 = vmatpush1.bf16.msra.mxu0 %v2600
        %6408 = vmatprep.subr.bf16.mxu0 %v2617
        %6409 = vmatpush1.bf16.msra.mxu0 %v2616
        %6410 = vmatprep.subr.bf16.mxu0 %v2633
        %6411 = vmatpush1.bf16.msra.mxu0 %v2632
        %6412 = vmatprep.subr.bf16.mxu0 %v2649
        %6413 = vmatpush1.bf16.msra.mxu0 %v2648
        %6414 = vmatprep.subr.bf16.mxu0 %v2665
        %6415 = vmatpush1.bf16.msra.mxu0 %v2664
        %6416 = vmatprep.subr.bf16.mxu0 %v2681
        %6417 = vmatpush1.bf16.msra.mxu0 %v2680
        %6418 = vmatprep.subr.bf16.mxu0 %v2697
        %6419 = vmatpush1.bf16.msra.mxu0 %v2696
        %6420 = vmatprep.subr.bf16.mxu0 %v2713
        %6421 = vmatpush1.bf16.msra.mxu0 %v2712
        %6422 = vmatprep.subr.bf16.mxu0 %v2729
        %6423 = vmatpush1.bf16.msra.mxu0 %v2728
        %6424 = vmatprep.subr.bf16.mxu0 %v2745
        %6425 = vmatpush1.bf16.msra.mxu0 %v2744
        %6426 = vmatprep.subr.bf16.mxu0 %v2761
        %6427 = vmatpush1.bf16.msra.mxu0 %v2760
        %6428 = vmatprep.subr.bf16.mxu0 %v2777
        %6429 = vmatpush1.bf16.msra.mxu0 %v2776
        %6430 = vmatprep.subr.bf16.mxu0 %v2793
        %6431 = vmatpush1.bf16.msra.mxu0 %v2792
        %6432 = vmatprep.subr.bf16.mxu0 %v2809
        %6433 = vmatpush1.bf16.msra.mxu0 %v2808
        %6434 = vmatprep.subr.bf16.mxu0 %v2825
        %6435 = vmatpush1.bf16.msra.mxu0 %v2824
        %6436 = vmatprep.mubr.bf16.mxu0 %v5788
        %6437 = vmatmul.mubr.bf16.gmra.mrb[0].mxu0 %v5787
        %v6438 = vpop.f32.mrb[0].mxu0
        %v6439 = vadd.f32 %v6398, %v6438
        %v6440 = vpop.f32.mrb[0].mxu0
        %v6441 = vadd.f32 %v6400, %v6440
        %v6442 = vpop.f32.mrb[0].mxu0
        %v6443 = vpop.f32.mrb[0].mxu0
        %6444 = vdwg.mxu0
        %v6445 = vadd.f32 %v5769, %v5865
        %v6446 = vadd.f32 %v5770, %v5867
        %v6447 = vadd.f32 %v5771, %v5947
        %v6448 = vadd.f32 %v5772, %v5949
        %v6449 = vadd.f32 %v5773, %v6029
        %v6450 = vadd.f32 %v5774, %v6031
        %v6451 = vadd.f32 %v5775, %v6111
        %v6452 = vadd.f32 %v5776, %v6113
        %v6453 = vadd.f32 %v5777, %v6193
        %v6454 = vadd.f32 %v5778, %v6195
        %v6455 = vadd.f32 %v5779, %v6275
        %v6456 = vadd.f32 %v5780, %v6277
        %v6457 = vadd.f32 %v5781, %v6357
        %v6458 = vadd.f32 %v5782, %v6359
        %v6459 = vadd.f32 %v5783, %v6439
        %v6460 = vadd.f32 %v5784, %v6441
        %v6461 = vxor.u32 %v6445, 2147483648
        %v6462 = vxor.u32 %v6446, 2147483648
        %v6463 = vxor.u32 %v6447, 2147483648
        %v6464 = vxor.u32 %v6448, 2147483648
        %v6465 = vmul.f32 %v6461, 1.442695
        %v6466 = vpow.pop %v6465
        %v6467 = vmul.f32 %v6462, 1.442695
        %v6468 = vpow.pop %v6467
        %v6469 = vmul.f32 %v6463, 1.442695
        %v6470 = vpow.pop %v6469
        %v6471 = vmul.f32 %v6464, 1.442695
        %v6472 = vpow.pop %v6471
        %v6473 = vadd.f32 %v6466, 1.0
        %v6474 = vadd.f32 %v6468, 1.0
        %v6475 = vadd.f32 %v6470, 1.0
        %v6476 = vadd.f32 %v6472, 1.0
        %v6477 = vrcp.pop %v6473
        %v6478 = vmul.f32 1.0, %v6477
        %v6479 = vrcp.pop %v6474
        %v6480 = vmul.f32 1.0, %v6479
        %v6481 = vrcp.pop %v6475
        %v6482 = vmul.f32 1.0, %v6481
        %v6483 = vrcp.pop %v6476
        %v6484 = vmul.f32 1.0, %v6483
        %v6485 = vxor.u32 %v6449, 2147483648
        %v6486 = vxor.u32 %v6450, 2147483648
        %v6487 = vxor.u32 %v6451, 2147483648
        %v6488 = vxor.u32 %v6452, 2147483648
        %v6489 = vmul.f32 %v6485, 1.442695
        %v6490 = vpow.pop %v6489
        %v6491 = vmul.f32 %v6486, 1.442695
        %v6492 = vpow.pop %v6491
        %v6493 = vmul.f32 %v6487, 1.442695
        %v6494 = vpow.pop %v6493
        %v6495 = vmul.f32 %v6488, 1.442695
        %v6496 = vpow.pop %v6495
        %v6497 = vadd.f32 %v6490, 1.0
        %v6498 = vadd.f32 %v6492, 1.0
        %v6499 = vadd.f32 %v6494, 1.0
        %v6500 = vadd.f32 %v6496, 1.0
        %v6501 = vrcp.pop %v6497
        %v6502 = vmul.f32 1.0, %v6501
        %v6503 = vrcp.pop %v6498
        %v6504 = vmul.f32 1.0, %v6503
        %v6505 = vrcp.pop %v6499
        %v6506 = vmul.f32 1.0, %v6505
        %v6507 = vrcp.pop %v6500
        %v6508 = vmul.f32 1.0, %v6507
        %v6509 = vtanh.pop %v6453
        %v6510 = vtanh.pop %v6454
        %v6511 = vtanh.pop %v6455
        %v6512 = vtanh.pop %v6456
        %v6513 = vxor.u32 %v6457, 2147483648
        %v6514 = vxor.u32 %v6458, 2147483648
        %v6515 = vxor.u32 %v6459, 2147483648
        %v6516 = vxor.u32 %v6460, 2147483648
        %v6517 = vmul.f32 %v6513, 1.442695
        %v6518 = vpow.pop %v6517
        %v6519 = vmul.f32 %v6514, 1.442695
        %v6520 = vpow.pop %v6519
        %v6521 = vmul.f32 %v6515, 1.442695
        %v6522 = vpow.pop %v6521
        %v6523 = vmul.f32 %v6516, 1.442695
        %v6524 = vpow.pop %v6523
        %v6525 = vadd.f32 %v6518, 1.0
        %v6526 = vadd.f32 %v6520, 1.0
        %v6527 = vadd.f32 %v6522, 1.0
        %v6528 = vadd.f32 %v6524, 1.0
        %v6529 = vrcp.pop %v6525
        %v6530 = vmul.f32 1.0, %v6529
        %v6531 = vrcp.pop %v6526
        %v6532 = vmul.f32 1.0, %v6531
        %v6533 = vrcp.pop %v6527
        %v6534 = vmul.f32 1.0, %v6533
        %v6535 = vrcp.pop %v6528
        %v6536 = vmul.f32 1.0, %v6535
        %v6537 = vmul.f32 %v6502, %v5752
        %v6538 = vmul.f32 %v6504, %v5753
        %v6539 = vmul.f32 %v6506, %v5754
        %v6540 = vmul.f32 %v6508, %v5755
        %v6541 = vmul.f32 %v6478, %v6509
        %v6542 = vmul.f32 %v6480, %v6510
        %v6543 = vmul.f32 %v6482, %v6511
        %v6544 = vmul.f32 %v6484, %v6512
        %v6545 = vadd.f32 %v6537, %v6541
        %v6546 = vadd.f32 %v6538, %v6542
        %v6547 = vadd.f32 %v6539, %v6543
        %v6548 = vadd.f32 %v6540, %v6544
        %v6549 = vtanh.pop %v6545
        %v6550 = vtanh.pop %v6546
        %v6551 = vtanh.pop %v6547
        %v6552 = vtanh.pop %v6548
        %v6553 = vmul.f32 %v6530, %v6549
        %v6554 = vmul.f32 %v6532, %v6550
        %v6555 = vmul.f32 %v6534, %v6551
        %v6556 = vmul.f32 %v6536, %v6552
        %s6557 = scalar_lea.vmem %s248, 24
        %v6558 = vld [vmem:[%s6557] sm:$0xff]
        %v6559 = vsub.f32 %v6545, %v5752
        %v6560 = vsub.f32 %v6546, %v5753
        %v6561 = vsub.f32 %v6547, %v5754
        %v6562 = vsub.f32 %v6548, %v5755
        %6564 = vset.pattern.permute.xlu0 0
        %6565 = vperm.xlu0 %6564, %v6558
        %v6566 = vpop.permute.xlu0 %6565
        %v6568 = vmul.f32 %v6566, %v6559
        %v6569 = vmul.f32 %v6566, %v6560
        %v6570 = vmul.f32 %v6566, %v6561
        %v6571 = vmul.f32 %v6566, %v6562
        %v6572 = vadd.f32 %v5752, %v6568
        %v6573 = vadd.f32 %v5753, %v6569
        %v6574 = vadd.f32 %v5754, %v6570
        %v6575 = vadd.f32 %v5755, %v6571
        %v6576 = vsub.f32 %v6553, %v5764
        %v6577 = vsub.f32 %v6554, %v5765
        %v6578 = vsub.f32 %v6555, %v5766
        %v6579 = vsub.f32 %v6556, %v5767
        %v6580 = vmul.f32 %v6566, %v6576
        %v6581 = vmul.f32 %v6566, %v6577
        %v6582 = vmul.f32 %v6566, %v6578
        %v6583 = vmul.f32 %v6566, %v6579
        %v6584 = vadd.f32 %v5764, %v6580
        %v6585 = vadd.f32 %v5765, %v6581
        %v6586 = vadd.f32 %v5766, %v6582
        %v6587 = vadd.f32 %v5767, %v6583
        %s6588 = scalar_lea.vmem %s202, 512 [#allocation2]
        %v6589 = vld [vmem:[%s6588] sm:$0xff]
        %v6590 = vld [vmem:[%s6588 + $0x8] sm:$0xff]
        %v6591 = vld [vmem:[%s6588 + $0x10] sm:$0xff]
        %v6592 = vld [vmem:[%s6588 + $0x18] sm:$0xff]
        %v6593 = vld [vmem:[%s6588 + $0x20] sm:$0xff]
        %v6594 = vld [vmem:[%s6588 + $0x28] sm:$0xff]
        %v6595 = vld [vmem:[%s6588 + $0x30] sm:$0xff]
        %v6596 = vld [vmem:[%s6588 + $0x38] sm:$0xff]
        %v6597 = vld [vmem:[%s6588 + $0x40] sm:$0xff]
        %v6598 = vld [vmem:[%s6588 + $0x48] sm:$0xff]
        %v6599 = vld [vmem:[%s6588 + $0x50] sm:$0xff]
        %v6600 = vld [vmem:[%s6588 + $0x58] sm:$0xff]
        %v6601 = vld [vmem:[%s6588 + $0x60] sm:$0xff]
        %v6602 = vld [vmem:[%s6588 + $0x68] sm:$0xff]
        %v6603 = vld [vmem:[%s6588 + $0x70] sm:$0xff]
        %v6604 = vld [vmem:[%s6588 + $0x78] sm:$0xff]
        %v6605 = vpack.c.bf16 %v6584, %v6584
        %v6606 = vpack.c.bf16 %v6585, %v6585
        %v6607 = vpack.c.bf16 %v6586, %v6586
        %v6608 = vpack.c.bf16 %v6587, %v6587
        %6609 = vmatprep.subr.bf16.mxu0 %v2315
        %6610 = vmatpush1.bf16.msra.mxu0 %v2314
        %6611 = vmatprep.subr.bf16.mxu0 %v2331
        %6612 = vmatpush1.bf16.msra.mxu0 %v2330
        %6613 = vmatprep.subr.bf16.mxu0 %v2347
        %6614 = vmatpush1.bf16.msra.mxu0 %v2346
        %6615 = vmatprep.subr.bf16.mxu0 %v2363
        %6616 = vmatpush1.bf16.msra.mxu0 %v2362
        %6617 = vmatprep.subr.bf16.mxu0 %v2379
        %6618 = vmatpush1.bf16.msra.mxu0 %v2378
        %6619 = vmatprep.subr.bf16.mxu0 %v2395
        %6620 = vmatpush1.bf16.msra.mxu0 %v2394
        %6621 = vmatprep.subr.bf16.mxu0 %v2411
        %6622 = vmatpush1.bf16.msra.mxu0 %v2410
        %6623 = vmatprep.subr.bf16.mxu0 %v2427
        %6624 = vmatpush1.bf16.msra.mxu0 %v2426
        %6625 = vmatprep.subr.bf16.mxu0 %v2443
        %6626 = vmatpush1.bf16.msra.mxu0 %v2442
        %6627 = vmatprep.subr.bf16.mxu0 %v2459
        %6628 = vmatpush1.bf16.msra.mxu0 %v2458
        %6629 = vmatprep.subr.bf16.mxu0 %v2475
        %6630 = vmatpush1.bf16.msra.mxu0 %v2474
        %6631 = vmatprep.subr.bf16.mxu0 %v2491
        %6632 = vmatpush1.bf16.msra.mxu0 %v2490
        %6633 = vmatprep.subr.bf16.mxu0 %v2507
        %6634 = vmatpush1.bf16.msra.mxu0 %v2506
        %6635 = vmatprep.subr.bf16.mxu0 %v2523
        %6636 = vmatpush1.bf16.msra.mxu0 %v2522
        %6637 = vmatprep.subr.bf16.mxu0 %v2539
        %6638 = vmatpush1.bf16.msra.mxu0 %v2538
        %6639 = vmatprep.subr.bf16.mxu0 %v2555
        %6640 = vmatpush1.bf16.msra.mxu0 %v2554
        %6641 = vmatprep.mubr.bf16.mxu0 %v6606
        %6642 = vmatmul.mubr.bf16.gmra.mrb[0].mxu0 %v6605
        %v6643 = vpop.f32.mrb[0].mxu0
        %v6644 = vadd.f32 0.0, %v6643
        %v6645 = vpop.f32.mrb[0].mxu0
        %v6646 = vadd.f32 0.0, %v6645
        %v6647 = vpop.f32.mrb[0].mxu0
        %v6648 = vpop.f32.mrb[0].mxu0
        %6649 = vdwg.mxu0
        %6650 = vmatprep.subr.bf16.mxu0 %v2571
        %6651 = vmatpush1.bf16.msra.mxu0 %v2570
        %6652 = vmatprep.subr.bf16.mxu0 %v2587
        %6653 = vmatpush1.bf16.msra.mxu0 %v2586
        %6654 = vmatprep.subr.bf16.mxu0 %v2603
        %6655 = vmatpush1.bf16.msra.mxu0 %v2602
        %6656 = vmatprep.subr.bf16.mxu0 %v2619
        %6657 = vmatpush1.bf16.msra.mxu0 %v2618
        %6658 = vmatprep.subr.bf16.mxu0 %v2635
        %6659 = vmatpush1.bf16.msra.mxu0 %v2634
        %6660 = vmatprep.subr.bf16.mxu0 %v2651
        %6661 = vmatpush1.bf16.msra.mxu0 %v2650
        %6662 = vmatprep.subr.bf16.mxu0 %v2667
        %6663 = vmatpush1.bf16.msra.mxu0 %v2666
        %6664 = vmatprep.subr.bf16.mxu0 %v2683
        %6665 = vmatpush1.bf16.msra.mxu0 %v2682
        %6666 = vmatprep.subr.bf16.mxu0 %v2699
        %6667 = vmatpush1.bf16.msra.mxu0 %v2698
        %6668 = vmatprep.subr.bf16.mxu0 %v2715
        %6669 = vmatpush1.bf16.msra.mxu0 %v2714
        %6670 = vmatprep.subr.bf16.mxu0 %v2731
        %6671 = vmatpush1.bf16.msra.mxu0 %v2730
        %6672 = vmatprep.subr.bf16.mxu0 %v2747
        %6673 = vmatpush1.bf16.msra.mxu0 %v2746
        %6674 = vmatprep.subr.bf16.mxu0 %v2763
        %6675 = vmatpush1.bf16.msra.mxu0 %v2762
        %6676 = vmatprep.subr.bf16.mxu0 %v2779
        %6677 = vmatpush1.bf16.msra.mxu0 %v2778
        %6678 = vmatprep.subr.bf16.mxu0 %v2795
        %6679 = vmatpush1.bf16.msra.mxu0 %v2794
        %6680 = vmatprep.subr.bf16.mxu0 %v2811
        %6681 = vmatpush1.bf16.msra.mxu0 %v2810
        %6682 = vmatprep.mubr.bf16.mxu0 %v6608
        %6683 = vmatmul.mubr.bf16.gmra.mrb[0].mxu0 %v6607
        %v6684 = vpop.f32.mrb[0].mxu0
        %v6685 = vadd.f32 %v6644, %v6684
        %v6686 = vpop.f32.mrb[0].mxu0
        %v6687 = vadd.f32 %v6646, %v6686
        %v6688 = vpop.f32.mrb[0].mxu0
        %v6689 = vpop.f32.mrb[0].mxu0
        %6690 = vdwg.mxu0
        %6691 = vmatprep.subr.bf16.mxu0 %v2317
        %6692 = vmatpush1.bf16.msra.mxu0 %v2316
        %6693 = vmatprep.subr.bf16.mxu0 %v2333
        %6694 = vmatpush1.bf16.msra.mxu0 %v2332
        %6695 = vmatprep.subr.bf16.mxu0 %v2349
        %6696 = vmatpush1.bf16.msra.mxu0 %v2348
        %6697 = vmatprep.subr.bf16.mxu0 %v2365
        %6698 = vmatpush1.bf16.msra.mxu0 %v2364
        %6699 = vmatprep.subr.bf16.mxu0 %v2381
        %6700 = vmatpush1.bf16.msra.mxu0 %v2380
        %6701 = vmatprep.subr.bf16.mxu0 %v2397
        %6702 = vmatpush1.bf16.msra.mxu0 %v2396
        %6703 = vmatprep.subr.bf16.mxu0 %v2413
        %6704 = vmatpush1.bf16.msra.mxu0 %v2412
        %6705 = vmatprep.subr.bf16.mxu0 %v2429
        %6706 = vmatpush1.bf16.msra.mxu0 %v2428
        %6707 = vmatprep.subr.bf16.mxu0 %v2445
        %6708 = vmatpush1.bf16.msra.mxu0 %v2444
        %6709 = vmatprep.subr.bf16.mxu0 %v2461
        %6710 = vmatpush1.bf16.msra.mxu0 %v2460
        %6711 = vmatprep.subr.bf16.mxu0 %v2477
        %6712 = vmatpush1.bf16.msra.mxu0 %v2476
        %6713 = vmatprep.subr.bf16.mxu0 %v2493
        %6714 = vmatpush1.bf16.msra.mxu0 %v2492
        %6715 = vmatprep.subr.bf16.mxu0 %v2509
        %6716 = vmatpush1.bf16.msra.mxu0 %v2508
        %6717 = vmatprep.subr.bf16.mxu0 %v2525
        %6718 = vmatpush1.bf16.msra.mxu0 %v2524
        %6719 = vmatprep.subr.bf16.mxu0 %v2541
        %6720 = vmatpush1.bf16.msra.mxu0 %v2540
        %6721 = vmatprep.subr.bf16.mxu0 %v2557
        %6722 = vmatpush1.bf16.msra.mxu0 %v2556
        %6723 = vmatprep.mubr.bf16.mxu0 %v6606
        %6724 = vmatmul.mubr.bf16.gmra.mrb[0].mxu0 %v6605
        %v6725 = vpop.f32.mrb[0].mxu0
        %v6726 = vadd.f32 0.0, %v6725
        %v6727 = vpop.f32.mrb[0].mxu0
        %v6728 = vadd.f32 0.0, %v6727
        %v6729 = vpop.f32.mrb[0].mxu0
        %v6730 = vpop.f32.mrb[0].mxu0
        %6731 = vdwg.mxu0
        %6732 = vmatprep.subr.bf16.mxu0 %v2573
        %6733 = vmatpush1.bf16.msra.mxu0 %v2572
        %6734 = vmatprep.subr.bf16.mxu0 %v2589
        %6735 = vmatpush1.bf16.msra.mxu0 %v2588
        %6736 = vmatprep.subr.bf16.mxu0 %v2605
        %6737 = vmatpush1.bf16.msra.mxu0 %v2604
        %6738 = vmatprep.subr.bf16.mxu0 %v2621
        %6739 = vmatpush1.bf16.msra.mxu0 %v2620
        %6740 = vmatprep.subr.bf16.mxu0 %v2637
        %6741 = vmatpush1.bf16.msra.mxu0 %v2636
        %6742 = vmatprep.subr.bf16.mxu0 %v2653
        %6743 = vmatpush1.bf16.msra.mxu0 %v2652
        %6744 = vmatprep.subr.bf16.mxu0 %v2669
        %6745 = vmatpush1.bf16.msra.mxu0 %v2668
        %6746 = vmatprep.subr.bf16.mxu0 %v2685
        %6747 = vmatpush1.bf16.msra.mxu0 %v2684
        %6748 = vmatprep.subr.bf16.mxu0 %v2701
        %6749 = vmatpush1.bf16.msra.mxu0 %v2700
        %6750 = vmatprep.subr.bf16.mxu0 %v2717
        %6751 = vmatpush1.bf16.msra.mxu0 %v2716
        %6752 = vmatprep.subr.bf16.mxu0 %v2733
        %6753 = vmatpush1.bf16.msra.mxu0 %v2732
        %6754 = vmatprep.subr.bf16.mxu0 %v2749
        %6755 = vmatpush1.bf16.msra.mxu0 %v2748
        %6756 = vmatprep.subr.bf16.mxu0 %v2765
        %6757 = vmatpush1.bf16.msra.mxu0 %v2764
        %6758 = vmatprep.subr.bf16.mxu0 %v2781
        %6759 = vmatpush1.bf16.msra.mxu0 %v2780
        %6760 = vmatprep.subr.bf16.mxu0 %v2797
        %6761 = vmatpush1.bf16.msra.mxu0 %v2796
        %6762 = vmatprep.subr.bf16.mxu0 %v2813
        %6763 = vmatpush1.bf16.msra.mxu0 %v2812
        %6764 = vmatprep.mubr.bf16.mxu0 %v6608
        %6765 = vmatmul.mubr.bf16.gmra.mrb[0].mxu0 %v6607
        %v6766 = vpop.f32.mrb[0].mxu0
        %v6767 = vadd.f32 %v6726, %v6766
        %v6768 = vpop.f32.mrb[0].mxu0
        %v6769 = vadd.f32 %v6728, %v6768
        %v6770 = vpop.f32.mrb[0].mxu0
        %v6771 = vpop.f32.mrb[0].mxu0
        %6772 = vdwg.mxu0
        %6773 = vmatprep.subr.bf16.mxu0 %v2319
        %6774 = vmatpush1.bf16.msra.mxu0 %v2318
        %6775 = vmatprep.subr.bf16.mxu0 %v2335
        %6776 = vmatpush1.bf16.msra.mxu0 %v2334
        %6777 = vmatprep.subr.bf16.mxu0 %v2351
        %6778 = vmatpush1.bf16.msra.mxu0 %v2350
        %6779 = vmatprep.subr.bf16.mxu0 %v2367
        %6780 = vmatpush1.bf16.msra.mxu0 %v2366
        %6781 = vmatprep.subr.bf16.mxu0 %v2383
        %6782 = vmatpush1.bf16.msra.mxu0 %v2382
        %6783 = vmatprep.subr.bf16.mxu0 %v2399
        %6784 = vmatpush1.bf16.msra.mxu0 %v2398
        %6785 = vmatprep.subr.bf16.mxu0 %v2415
        %6786 = vmatpush1.bf16.msra.mxu0 %v2414
        %6787 = vmatprep.subr.bf16.mxu0 %v2431
        %6788 = vmatpush1.bf16.msra.mxu0 %v2430
        %6789 = vmatprep.subr.bf16.mxu0 %v2447
        %6790 = vmatpush1.bf16.msra.mxu0 %v2446
        %6791 = vmatprep.subr.bf16.mxu0 %v2463
        %6792 = vmatpush1.bf16.msra.mxu0 %v2462
        %6793 = vmatprep.subr.bf16.mxu0 %v2479
        %6794 = vmatpush1.bf16.msra.mxu0 %v2478
        %6795 = vmatprep.subr.bf16.mxu0 %v2495
        %6796 = vmatpush1.bf16.msra.mxu0 %v2494
        %6797 = vmatprep.subr.bf16.mxu0 %v2511
        %6798 = vmatpush1.bf16.msra.mxu0 %v2510
        %6799 = vmatprep.subr.bf16.mxu0 %v2527
        %6800 = vmatpush1.bf16.msra.mxu0 %v2526
        %6801 = vmatprep.subr.bf16.mxu0 %v2543
        %6802 = vmatpush1.bf16.msra.mxu0 %v2542
        %6803 = vmatprep.subr.bf16.mxu0 %v2559
        %6804 = vmatpush1.bf16.msra.mxu0 %v2558
        %6805 = vmatprep.mubr.bf16.mxu0 %v6606
        %6806 = vmatmul.mubr.bf16.gmra.mrb[0].mxu0 %v6605
        %v6807 = vpop.f32.mrb[0].mxu0
        %v6808 = vadd.f32 0.0, %v6807
        %v6809 = vpop.f32.mrb[0].mxu0
        %v6810 = vadd.f32 0.0, %v6809
        %v6811 = vpop.f32.mrb[0].mxu0
        %v6812 = vpop.f32.mrb[0].mxu0
        %6813 = vdwg.mxu0
        %6814 = vmatprep.subr.bf16.mxu0 %v2575
        %6815 = vmatpush1.bf16.msra.mxu0 %v2574
        %6816 = vmatprep.subr.bf16.mxu0 %v2591
        %6817 = vmatpush1.bf16.msra.mxu0 %v2590
        %6818 = vmatprep.subr.bf16.mxu0 %v2607
        %6819 = vmatpush1.bf16.msra.mxu0 %v2606
        %6820 = vmatprep.subr.bf16.mxu0 %v2623
        %6821 = vmatpush1.bf16.msra.mxu0 %v2622
        %6822 = vmatprep.subr.bf16.mxu0 %v2639
        %6823 = vmatpush1.bf16.msra.mxu0 %v2638
        %6824 = vmatprep.subr.bf16.mxu0 %v2655
        %6825 = vmatpush1.bf16.msra.mxu0 %v2654
        %6826 = vmatprep.subr.bf16.mxu0 %v2671
        %6827 = vmatpush1.bf16.msra.mxu0 %v2670
        %6828 = vmatprep.subr.bf16.mxu0 %v2687
        %6829 = vmatpush1.bf16.msra.mxu0 %v2686
        %6830 = vmatprep.subr.bf16.mxu0 %v2703
        %6831 = vmatpush1.bf16.msra.mxu0 %v2702
        %6832 = vmatprep.subr.bf16.mxu0 %v2719
        %6833 = vmatpush1.bf16.msra.mxu0 %v2718
        %6834 = vmatprep.subr.bf16.mxu0 %v2735
        %6835 = vmatpush1.bf16.msra.mxu0 %v2734
        %6836 = vmatprep.subr.bf16.mxu0 %v2751
        %6837 = vmatpush1.bf16.msra.mxu0 %v2750
        %6838 = vmatprep.subr.bf16.mxu0 %v2767
        %6839 = vmatpush1.bf16.msra.mxu0 %v2766
        %6840 = vmatprep.subr.bf16.mxu0 %v2783
        %6841 = vmatpush1.bf16.msra.mxu0 %v2782
        %6842 = vmatprep.subr.bf16.mxu0 %v2799
        %6843 = vmatpush1.bf16.msra.mxu0 %v2798
        %6844 = vmatprep.subr.bf16.mxu0 %v2815
        %6845 = vmatpush1.bf16.msra.mxu0 %v2814
        %6846 = vmatprep.mubr.bf16.mxu0 %v6608
        %6847 = vmatmul.mubr.bf16.gmra.mrb[0].mxu0 %v6607
        %v6848 = vpop.f32.mrb[0].mxu0
        %v6849 = vadd.f32 %v6808, %v6848
        %v6850 = vpop.f32.mrb[0].mxu0
        %v6851 = vadd.f32 %v6810, %v6850
        %v6852 = vpop.f32.mrb[0].mxu0
        %v6853 = vpop.f32.mrb[0].mxu0
        %6854 = vdwg.mxu0
        %6855 = vmatprep.subr.bf16.mxu0 %v2321
        %6856 = vmatpush1.bf16.msra.mxu0 %v2320
        %6857 = vmatprep.subr.bf16.mxu0 %v2337
        %6858 = vmatpush1.bf16.msra.mxu0 %v2336
        %6859 = vmatprep.subr.bf16.mxu0 %v2353
        %6860 = vmatpush1.bf16.msra.mxu0 %v2352
        %6861 = vmatprep.subr.bf16.mxu0 %v2369
        %6862 = vmatpush1.bf16.msra.mxu0 %v2368
        %6863 = vmatprep.subr.bf16.mxu0 %v2385
        %6864 = vmatpush1.bf16.msra.mxu0 %v2384
        %6865 = vmatprep.subr.bf16.mxu0 %v2401
        %6866 = vmatpush1.bf16.msra.mxu0 %v2400
        %6867 = vmatprep.subr.bf16.mxu0 %v2417
        %6868 = vmatpush1.bf16.msra.mxu0 %v2416
        %6869 = vmatprep.subr.bf16.mxu0 %v2433
        %6870 = vmatpush1.bf16.msra.mxu0 %v2432
        %6871 = vmatprep.subr.bf16.mxu0 %v2449
        %6872 = vmatpush1.bf16.msra.mxu0 %v2448
        %6873 = vmatprep.subr.bf16.mxu0 %v2465
        %6874 = vmatpush1.bf16.msra.mxu0 %v2464
        %6875 = vmatprep.subr.bf16.mxu0 %v2481
        %6876 = vmatpush1.bf16.msra.mxu0 %v2480
        %6877 = vmatprep.subr.bf16.mxu0 %v2497
        %6878 = vmatpush1.bf16.msra.mxu0 %v2496
        %6879 = vmatprep.subr.bf16.mxu0 %v2513
        %6880 = vmatpush1.bf16.msra.mxu0 %v2512
        %6881 = vmatprep.subr.bf16.mxu0 %v2529
        %6882 = vmatpush1.bf16.msra.mxu0 %v2528
        %6883 = vmatprep.subr.bf16.mxu0 %v2545
        %6884 = vmatpush1.bf16.msra.mxu0 %v2544
        %6885 = vmatprep.subr.bf16.mxu0 %v2561
        %6886 = vmatpush1.bf16.msra.mxu0 %v2560
        %6887 = vmatprep.mubr.bf16.mxu0 %v6606
        %6888 = vmatmul.mubr.bf16.gmra.mrb[0].mxu0 %v6605
        %v6889 = vpop.f32.mrb[0].mxu0
        %v6890 = vadd.f32 0.0, %v6889
        %v6891 = vpop.f32.mrb[0].mxu0
        %v6892 = vadd.f32 0.0, %v6891
        %v6893 = vpop.f32.mrb[0].mxu0
        %v6894 = vpop.f32.mrb[0].mxu0
        %6895 = vdwg.mxu0
        %6896 = vmatprep.subr.bf16.mxu0 %v2577
        %6897 = vmatpush1.bf16.msra.mxu0 %v2576
        %6898 = vmatprep.subr.bf16.mxu0 %v2593
        %6899 = vmatpush1.bf16.msra.mxu0 %v2592
        %6900 = vmatprep.subr.bf16.mxu0 %v2609
        %6901 = vmatpush1.bf16.msra.mxu0 %v2608
        %6902 = vmatprep.subr.bf16.mxu0 %v2625
        %6903 = vmatpush1.bf16.msra.mxu0 %v2624
        %6904 = vmatprep.subr.bf16.mxu0 %v2641
        %6905 = vmatpush1.bf16.msra.mxu0 %v2640
        %6906 = vmatprep.subr.bf16.mxu0 %v2657
        %6907 = vmatpush1.bf16.msra.mxu0 %v2656
        %6908 = vmatprep.subr.bf16.mxu0 %v2673
        %6909 = vmatpush1.bf16.msra.mxu0 %v2672
        %6910 = vmatprep.subr.bf16.mxu0 %v2689
        %6911 = vmatpush1.bf16.msra.mxu0 %v2688
        %6912 = vmatprep.subr.bf16.mxu0 %v2705
        %6913 = vmatpush1.bf16.msra.mxu0 %v2704
        %6914 = vmatprep.subr.bf16.mxu0 %v2721
        %6915 = vmatpush1.bf16.msra.mxu0 %v2720
        %6916 = vmatprep.subr.bf16.mxu0 %v2737
        %6917 = vmatpush1.bf16.msra.mxu0 %v2736
        %6918 = vmatprep.subr.bf16.mxu0 %v2753
        %6919 = vmatpush1.bf16.msra.mxu0 %v2752
        %6920 = vmatprep.subr.bf16.mxu0 %v2769
        %6921 = vmatpush1.bf16.msra.mxu0 %v2768
        %6922 = vmatprep.subr.bf16.mxu0 %v2785
        %6923 = vmatpush1.bf16.msra.mxu0 %v2784
        %6924 = vmatprep.subr.bf16.mxu0 %v2801
        %6925 = vmatpush1.bf16.msra.mxu0 %v2800
        %6926 = vmatprep.subr.bf16.mxu0 %v2817
        %6927 = vmatpush1.bf16.msra.mxu0 %v2816
        %6928 = vmatprep.mubr.bf16.mxu0 %v6608
        %6929 = vmatmul.mubr.bf16.gmra.mrb[0].mxu0 %v6607
        %v6930 = vpop.f32.mrb[0].mxu0
        %v6931 = vadd.f32 %v6890, %v6930
        %v6932 = vpop.f32.mrb[0].mxu0
        %v6933 = vadd.f32 %v6892, %v6932
        %v6934 = vpop.f32.mrb[0].mxu0
        %v6935 = vpop.f32.mrb[0].mxu0
        %6936 = vdwg.mxu0
        %6937 = vmatprep.subr.bf16.mxu0 %v2323
        %6938 = vmatpush1.bf16.msra.mxu0 %v2322
        %6939 = vmatprep.subr.bf16.mxu0 %v2339
        %6940 = vmatpush1.bf16.msra.mxu0 %v2338
        %6941 = vmatprep.subr.bf16.mxu0 %v2355
        %6942 = vmatpush1.bf16.msra.mxu0 %v2354
        %6943 = vmatprep.subr.bf16.mxu0 %v2371
        %6944 = vmatpush1.bf16.msra.mxu0 %v2370
        %6945 = vmatprep.subr.bf16.mxu0 %v2387
        %6946 = vmatpush1.bf16.msra.mxu0 %v2386
        %6947 = vmatprep.subr.bf16.mxu0 %v2403
        %6948 = vmatpush1.bf16.msra.mxu0 %v2402
        %6949 = vmatprep.subr.bf16.mxu0 %v2419
        %6950 = vmatpush1.bf16.msra.mxu0 %v2418
        %6951 = vmatprep.subr.bf16.mxu0 %v2435
        %6952 = vmatpush1.bf16.msra.mxu0 %v2434
        %6953 = vmatprep.subr.bf16.mxu0 %v2451
        %6954 = vmatpush1.bf16.msra.mxu0 %v2450
        %6955 = vmatprep.subr.bf16.mxu0 %v2467
        %6956 = vmatpush1.bf16.msra.mxu0 %v2466
        %6957 = vmatprep.subr.bf16.mxu0 %v2483
        %6958 = vmatpush1.bf16.msra.mxu0 %v2482
        %6959 = vmatprep.subr.bf16.mxu0 %v2499
        %6960 = vmatpush1.bf16.msra.mxu0 %v2498
        %6961 = vmatprep.subr.bf16.mxu0 %v2515
        %6962 = vmatpush1.bf16.msra.mxu0 %v2514
        %6963 = vmatprep.subr.bf16.mxu0 %v2531
        %6964 = vmatpush1.bf16.msra.mxu0 %v2530
        %6965 = vmatprep.subr.bf16.mxu0 %v2547
        %6966 = vmatpush1.bf16.msra.mxu0 %v2546
        %6967 = vmatprep.subr.bf16.mxu0 %v2563
        %6968 = vmatpush1.bf16.msra.mxu0 %v2562
        %6969 = vmatprep.mubr.bf16.mxu0 %v6606
        %6970 = vmatmul.mubr.bf16.gmra.mrb[0].mxu0 %v6605
        %v6971 = vpop.f32.mrb[0].mxu0
        %v6972 = vadd.f32 0.0, %v6971
        %v6973 = vpop.f32.mrb[0].mxu0
        %v6974 = vadd.f32 0.0, %v6973
        %v6975 = vpop.f32.mrb[0].mxu0
        %v6976 = vpop.f32.mrb[0].mxu0
        %6977 = vdwg.mxu0
        %6978 = vmatprep.subr.bf16.mxu0 %v2579
        %6979 = vmatpush1.bf16.msra.mxu0 %v2578
        %6980 = vmatprep.subr.bf16.mxu0 %v2595
        %6981 = vmatpush1.bf16.msra.mxu0 %v2594
        %6982 = vmatprep.subr.bf16.mxu0 %v2611
        %6983 = vmatpush1.bf16.msra.mxu0 %v2610
        %6984 = vmatprep.subr.bf16.mxu0 %v2627
        %6985 = vmatpush1.bf16.msra.mxu0 %v2626
        %6986 = vmatprep.subr.bf16.mxu0 %v2643
        %6987 = vmatpush1.bf16.msra.mxu0 %v2642
        %6988 = vmatprep.subr.bf16.mxu0 %v2659
        %6989 = vmatpush1.bf16.msra.mxu0 %v2658
        %6990 = vmatprep.subr.bf16.mxu0 %v2675
        %6991 = vmatpush1.bf16.msra.mxu0 %v2674
        %6992 = vmatprep.subr.bf16.mxu0 %v2691
        %6993 = vmatpush1.bf16.msra.mxu0 %v2690
        %6994 = vmatprep.subr.bf16.mxu0 %v2707
        %6995 = vmatpush1.bf16.msra.mxu0 %v2706
        %6996 = vmatprep.subr.bf16.mxu0 %v2723
        %6997 = vmatpush1.bf16.msra.mxu0 %v2722
        %6998 = vmatprep.subr.bf16.mxu0 %v2739
        %6999 = vmatpush1.bf16.msra.mxu0 %v2738
        %7000 = vmatprep.subr.bf16.mxu0 %v2755
        %7001 = vmatpush1.bf16.msra.mxu0 %v2754
        %7002 = vmatprep.subr.bf16.mxu0 %v2771
        %7003 = vmatpush1.bf16.msra.mxu0 %v2770
        %7004 = vmatprep.subr.bf16.mxu0 %v2787
        %7005 = vmatpush1.bf16.msra.mxu0 %v2786
        %7006 = vmatprep.subr.bf16.mxu0 %v2803
        %7007 = vmatpush1.bf16.msra.mxu0 %v2802
        %7008 = vmatprep.subr.bf16.mxu0 %v2819
        %7009 = vmatpush1.bf16.msra.mxu0 %v2818
        %7010 = vmatprep.mubr.bf16.mxu0 %v6608
        %7011 = vmatmul.mubr.bf16.gmra.mrb[0].mxu0 %v6607
        %v7012 = vpop.f32.mrb[0].mxu0
        %v7013 = vadd.f32 %v6972, %v7012
        %v7014 = vpop.f32.mrb[0].mxu0
        %v7015 = vadd.f32 %v6974, %v7014
        %v7016 = vpop.f32.mrb[0].mxu0
        %v7017 = vpop.f32.mrb[0].mxu0
        %7018 = vdwg.mxu0
        %7019 = vmatprep.subr.bf16.mxu0 %v2325
        %7020 = vmatpush1.bf16.msra.mxu0 %v2324
        %7021 = vmatprep.subr.bf16.mxu0 %v2341
        %7022 = vmatpush1.bf16.msra.mxu0 %v2340
        %7023 = vmatprep.subr.bf16.mxu0 %v2357
        %7024 = vmatpush1.bf16.msra.mxu0 %v2356
        %7025 = vmatprep.subr.bf16.mxu0 %v2373
        %7026 = vmatpush1.bf16.msra.mxu0 %v2372
        %7027 = vmatprep.subr.bf16.mxu0 %v2389
        %7028 = vmatpush1.bf16.msra.mxu0 %v2388
        %7029 = vmatprep.subr.bf16.mxu0 %v2405
        %7030 = vmatpush1.bf16.msra.mxu0 %v2404
        %7031 = vmatprep.subr.bf16.mxu0 %v2421
        %7032 = vmatpush1.bf16.msra.mxu0 %v2420
        %7033 = vmatprep.subr.bf16.mxu0 %v2437
        %7034 = vmatpush1.bf16.msra.mxu0 %v2436
        %7035 = vmatprep.subr.bf16.mxu0 %v2453
        %7036 = vmatpush1.bf16.msra.mxu0 %v2452
        %7037 = vmatprep.subr.bf16.mxu0 %v2469
        %7038 = vmatpush1.bf16.msra.mxu0 %v2468
        %7039 = vmatprep.subr.bf16.mxu0 %v2485
        %7040 = vmatpush1.bf16.msra.mxu0 %v2484
        %7041 = vmatprep.subr.bf16.mxu0 %v2501
        %7042 = vmatpush1.bf16.msra.mxu0 %v2500
        %7043 = vmatprep.subr.bf16.mxu0 %v2517
        %7044 = vmatpush1.bf16.msra.mxu0 %v2516
        %7045 = vmatprep.subr.bf16.mxu0 %v2533
        %7046 = vmatpush1.bf16.msra.mxu0 %v2532
        %7047 = vmatprep.subr.bf16.mxu0 %v2549
        %7048 = vmatpush1.bf16.msra.mxu0 %v2548
        %7049 = vmatprep.subr.bf16.mxu0 %v2565
        %7050 = vmatpush1.bf16.msra.mxu0 %v2564
        %7051 = vmatprep.mubr.bf16.mxu0 %v6606
        %7052 = vmatmul.mubr.bf16.gmra.mrb[0].mxu0 %v6605
        %v7053 = vpop.f32.mrb[0].mxu0
        %v7054 = vadd.f32 0.0, %v7053
        %v7055 = vpop.f32.mrb[0].mxu0
        %v7056 = vadd.f32 0.0, %v7055
        %v7057 = vpop.f32.mrb[0].mxu0
        %v7058 = vpop.f32.mrb[0].mxu0
        %7059 = vdwg.mxu0
        %7060 = vmatprep.subr.bf16.mxu0 %v2581
        %7061 = vmatpush1.bf16.msra.mxu0 %v2580
        %7062 = vmatprep.subr.bf16.mxu0 %v2597
        %7063 = vmatpush1.bf16.msra.mxu0 %v2596
        %7064 = vmatprep.subr.bf16.mxu0 %v2613
        %7065 = vmatpush1.bf16.msra.mxu0 %v2612
        %7066 = vmatprep.subr.bf16.mxu0 %v2629
        %7067 = vmatpush1.bf16.msra.mxu0 %v2628
        %7068 = vmatprep.subr.bf16.mxu0 %v2645
        %7069 = vmatpush1.bf16.msra.mxu0 %v2644
        %7070 = vmatprep.subr.bf16.mxu0 %v2661
        %7071 = vmatpush1.bf16.msra.mxu0 %v2660
        %7072 = vmatprep.subr.bf16.mxu0 %v2677
        %7073 = vmatpush1.bf16.msra.mxu0 %v2676
        %7074 = vmatprep.subr.bf16.mxu0 %v2693
        %7075 = vmatpush1.bf16.msra.mxu0 %v2692
        %7076 = vmatprep.subr.bf16.mxu0 %v2709
        %7077 = vmatpush1.bf16.msra.mxu0 %v2708
        %7078 = vmatprep.subr.bf16.mxu0 %v2725
        %7079 = vmatpush1.bf16.msra.mxu0 %v2724
        %7080 = vmatprep.subr.bf16.mxu0 %v2741
        %7081 = vmatpush1.bf16.msra.mxu0 %v2740
        %7082 = vmatprep.subr.bf16.mxu0 %v2757
        %7083 = vmatpush1.bf16.msra.mxu0 %v2756
        %7084 = vmatprep.subr.bf16.mxu0 %v2773
        %7085 = vmatpush1.bf16.msra.mxu0 %v2772
        %7086 = vmatprep.subr.bf16.mxu0 %v2789
        %7087 = vmatpush1.bf16.msra.mxu0 %v2788
        %7088 = vmatprep.subr.bf16.mxu0 %v2805
        %7089 = vmatpush1.bf16.msra.mxu0 %v2804
        %7090 = vmatprep.subr.bf16.mxu0 %v2821
        %7091 = vmatpush1.bf16.msra.mxu0 %v2820
        %7092 = vmatprep.mubr.bf16.mxu0 %v6608
        %7093 = vmatmul.mubr.bf16.gmra.mrb[0].mxu0 %v6607
        %v7094 = vpop.f32.mrb[0].mxu0
        %v7095 = vadd.f32 %v7054, %v7094
        %v7096 = vpop.f32.mrb[0].mxu0
        %v7097 = vadd.f32 %v7056, %v7096
        %v7098 = vpop.f32.mrb[0].mxu0
        %v7099 = vpop.f32.mrb[0].mxu0
        %7100 = vdwg.mxu0
        %7101 = vmatprep.subr.bf16.mxu0 %v2327
        %7102 = vmatpush1.bf16.msra.mxu0 %v2326
        %7103 = vmatprep.subr.bf16.mxu0 %v2343
        %7104 = vmatpush1.bf16.msra.mxu0 %v2342
        %7105 = vmatprep.subr.bf16.mxu0 %v2359
        %7106 = vmatpush1.bf16.msra.mxu0 %v2358
        %7107 = vmatprep.subr.bf16.mxu0 %v2375
        %7108 = vmatpush1.bf16.msra.mxu0 %v2374
        %7109 = vmatprep.subr.bf16.mxu0 %v2391
        %7110 = vmatpush1.bf16.msra.mxu0 %v2390
        %7111 = vmatprep.subr.bf16.mxu0 %v2407
        %7112 = vmatpush1.bf16.msra.mxu0 %v2406
        %7113 = vmatprep.subr.bf16.mxu0 %v2423
        %7114 = vmatpush1.bf16.msra.mxu0 %v2422
        %7115 = vmatprep.subr.bf16.mxu0 %v2439
        %7116 = vmatpush1.bf16.msra.mxu0 %v2438
        %7117 = vmatprep.subr.bf16.mxu0 %v2455
        %7118 = vmatpush1.bf16.msra.mxu0 %v2454
        %7119 = vmatprep.subr.bf16.mxu0 %v2471
        %7120 = vmatpush1.bf16.msra.mxu0 %v2470
        %7121 = vmatprep.subr.bf16.mxu0 %v2487
        %7122 = vmatpush1.bf16.msra.mxu0 %v2486
        %7123 = vmatprep.subr.bf16.mxu0 %v2503
        %7124 = vmatpush1.bf16.msra.mxu0 %v2502
        %7125 = vmatprep.subr.bf16.mxu0 %v2519
        %7126 = vmatpush1.bf16.msra.mxu0 %v2518
        %7127 = vmatprep.subr.bf16.mxu0 %v2535
        %7128 = vmatpush1.bf16.msra.mxu0 %v2534
        %7129 = vmatprep.subr.bf16.mxu0 %v2551
        %7130 = vmatpush1.bf16.msra.mxu0 %v2550
        %7131 = vmatprep.subr.bf16.mxu0 %v2567
        %7132 = vmatpush1.bf16.msra.mxu0 %v2566
        %7133 = vmatprep.mubr.bf16.mxu0 %v6606
        %7134 = vmatmul.mubr.bf16.gmra.mrb[0].mxu0 %v6605
        %v7135 = vpop.f32.mrb[0].mxu0
        %v7136 = vadd.f32 0.0, %v7135
        %v7137 = vpop.f32.mrb[0].mxu0
        %v7138 = vadd.f32 0.0, %v7137
        %v7139 = vpop.f32.mrb[0].mxu0
        %v7140 = vpop.f32.mrb[0].mxu0
        %7141 = vdwg.mxu0
        %7142 = vmatprep.subr.bf16.mxu0 %v2583
        %7143 = vmatpush1.bf16.msra.mxu0 %v2582
        %7144 = vmatprep.subr.bf16.mxu0 %v2599
        %7145 = vmatpush1.bf16.msra.mxu0 %v2598
        %7146 = vmatprep.subr.bf16.mxu0 %v2615
        %7147 = vmatpush1.bf16.msra.mxu0 %v2614
        %7148 = vmatprep.subr.bf16.mxu0 %v2631
        %7149 = vmatpush1.bf16.msra.mxu0 %v2630
        %7150 = vmatprep.subr.bf16.mxu0 %v2647
        %7151 = vmatpush1.bf16.msra.mxu0 %v2646
        %7152 = vmatprep.subr.bf16.mxu0 %v2663
        %7153 = vmatpush1.bf16.msra.mxu0 %v2662
        %7154 = vmatprep.subr.bf16.mxu0 %v2679
        %7155 = vmatpush1.bf16.msra.mxu0 %v2678
        %7156 = vmatprep.subr.bf16.mxu0 %v2695
        %7157 = vmatpush1.bf16.msra.mxu0 %v2694
        %7158 = vmatprep.subr.bf16.mxu0 %v2711
        %7159 = vmatpush1.bf16.msra.mxu0 %v2710
        %7160 = vmatprep.subr.bf16.mxu0 %v2727
        %7161 = vmatpush1.bf16.msra.mxu0 %v2726
        %7162 = vmatprep.subr.bf16.mxu0 %v2743
        %7163 = vmatpush1.bf16.msra.mxu0 %v2742
        %7164 = vmatprep.subr.bf16.mxu0 %v2759
        %7165 = vmatpush1.bf16.msra.mxu0 %v2758
        %7166 = vmatprep.subr.bf16.mxu0 %v2775
        %7167 = vmatpush1.bf16.msra.mxu0 %v2774
        %7168 = vmatprep.subr.bf16.mxu0 %v2791
        %7169 = vmatpush1.bf16.msra.mxu0 %v2790
        %7170 = vmatprep.subr.bf16.mxu0 %v2807
        %7171 = vmatpush1.bf16.msra.mxu0 %v2806
        %7172 = vmatprep.subr.bf16.mxu0 %v2823
        %7173 = vmatpush1.bf16.msra.mxu0 %v2822
        %7174 = vmatprep.mubr.bf16.mxu0 %v6608
        %7175 = vmatmul.mubr.bf16.gmra.mrb[0].mxu0 %v6607
        %v7176 = vpop.f32.mrb[0].mxu0
        %v7177 = vadd.f32 %v7136, %v7176
        %v7178 = vpop.f32.mrb[0].mxu0
        %v7179 = vadd.f32 %v7138, %v7178
        %v7180 = vpop.f32.mrb[0].mxu0
        %v7181 = vpop.f32.mrb[0].mxu0
        %7182 = vdwg.mxu0
        %7183 = vmatprep.subr.bf16.mxu0 %v2329
        %7184 = vmatpush1.bf16.msra.mxu0 %v2328
        %7185 = vmatprep.subr.bf16.mxu0 %v2345
        %7186 = vmatpush1.bf16.msra.mxu0 %v2344
        %7187 = vmatprep.subr.bf16.mxu0 %v2361
        %7188 = vmatpush1.bf16.msra.mxu0 %v2360
        %7189 = vmatprep.subr.bf16.mxu0 %v2377
        %7190 = vmatpush1.bf16.msra.mxu0 %v2376
        %7191 = vmatprep.subr.bf16.mxu0 %v2393
        %7192 = vmatpush1.bf16.msra.mxu0 %v2392
        %7193 = vmatprep.subr.bf16.mxu0 %v2409
        %7194 = vmatpush1.bf16.msra.mxu0 %v2408
        %7195 = vmatprep.subr.bf16.mxu0 %v2425
        %7196 = vmatpush1.bf16.msra.mxu0 %v2424
        %7197 = vmatprep.subr.bf16.mxu0 %v2441
        %7198 = vmatpush1.bf16.msra.mxu0 %v2440
        %7199 = vmatprep.subr.bf16.mxu0 %v2457
        %7200 = vmatpush1.bf16.msra.mxu0 %v2456
        %7201 = vmatprep.subr.bf16.mxu0 %v2473
        %7202 = vmatpush1.bf16.msra.mxu0 %v2472
        %7203 = vmatprep.subr.bf16.mxu0 %v2489
        %7204 = vmatpush1.bf16.msra.mxu0 %v2488
        %7205 = vmatprep.subr.bf16.mxu0 %v2505
        %7206 = vmatpush1.bf16.msra.mxu0 %v2504
        %7207 = vmatprep.subr.bf16.mxu0 %v2521
        %7208 = vmatpush1.bf16.msra.mxu0 %v2520
        %7209 = vmatprep.subr.bf16.mxu0 %v2537
        %7210 = vmatpush1.bf16.msra.mxu0 %v2536
        %7211 = vmatprep.subr.bf16.mxu0 %v2553
        %7212 = vmatpush1.bf16.msra.mxu0 %v2552
        %7213 = vmatprep.subr.bf16.mxu0 %v2569
        %7214 = vmatpush1.bf16.msra.mxu0 %v2568
        %7215 = vmatprep.mubr.bf16.mxu0 %v6606
        %7216 = vmatmul.mubr.bf16.gmra.mrb[0].mxu0 %v6605
        %v7217 = vpop.f32.mrb[0].mxu0
        %v7218 = vadd.f32 0.0, %v7217
        %v7219 = vpop.f32.mrb[0].mxu0
        %v7220 = vadd.f32 0.0, %v7219
        %v7221 = vpop.f32.mrb[0].mxu0
        %v7222 = vpop.f32.mrb[0].mxu0
        %7223 = vdwg.mxu0
        %7224 = vmatprep.subr.bf16.mxu0 %v2585
        %7225 = vmatpush1.bf16.msra.mxu0 %v2584
        %7226 = vmatprep.subr.bf16.mxu0 %v2601
        %7227 = vmatpush1.bf16.msra.mxu0 %v2600
        %7228 = vmatprep.subr.bf16.mxu0 %v2617
        %7229 = vmatpush1.bf16.msra.mxu0 %v2616
        %7230 = vmatprep.subr.bf16.mxu0 %v2633
        %7231 = vmatpush1.bf16.msra.mxu0 %v2632
        %7232 = vmatprep.subr.bf16.mxu0 %v2649
        %7233 = vmatpush1.bf16.msra.mxu0 %v2648
        %7234 = vmatprep.subr.bf16.mxu0 %v2665
        %7235 = vmatpush1.bf16.msra.mxu0 %v2664
        %7236 = vmatprep.subr.bf16.mxu0 %v2681
        %7237 = vmatpush1.bf16.msra.mxu0 %v2680
        %7238 = vmatprep.subr.bf16.mxu0 %v2697
        %7239 = vmatpush1.bf16.msra.mxu0 %v2696
        %7240 = vmatprep.subr.bf16.mxu0 %v2713
        %7241 = vmatpush1.bf16.msra.mxu0 %v2712
        %7242 = vmatprep.subr.bf16.mxu0 %v2729
        %7243 = vmatpush1.bf16.msra.mxu0 %v2728
        %7244 = vmatprep.subr.bf16.mxu0 %v2745
        %7245 = vmatpush1.bf16.msra.mxu0 %v2744
        %7246 = vmatprep.subr.bf16.mxu0 %v2761
        %7247 = vmatpush1.bf16.msra.mxu0 %v2760
        %7248 = vmatprep.subr.bf16.mxu0 %v2777
        %7249 = vmatpush1.bf16.msra.mxu0 %v2776
        %7250 = vmatprep.subr.bf16.mxu0 %v2793
        %7251 = vmatpush1.bf16.msra.mxu0 %v2792
        %7252 = vmatprep.subr.bf16.mxu0 %v2809
        %7253 = vmatpush1.bf16.msra.mxu0 %v2808
        %7254 = vmatprep.subr.bf16.mxu0 %v2825
        %7255 = vmatpush1.bf16.msra.mxu0 %v2824
        %7256 = vmatprep.mubr.bf16.mxu0 %v6608
        %7257 = vmatmul.mubr.bf16.gmra.mrb[0].mxu0 %v6607
        %v7258 = vpop.f32.mrb[0].mxu0
        %v7259 = vadd.f32 %v7218, %v7258
        %v7260 = vpop.f32.mrb[0].mxu0
        %v7261 = vadd.f32 %v7220, %v7260
        %v7262 = vpop.f32.mrb[0].mxu0
        %v7263 = vpop.f32.mrb[0].mxu0
        %7264 = vdwg.mxu0
        %v7265 = vadd.f32 %v6589, %v6685
        %v7266 = vadd.f32 %v6590, %v6687
        %v7267 = vadd.f32 %v6591, %v6767
        %v7268 = vadd.f32 %v6592, %v6769
        %v7269 = vadd.f32 %v6593, %v6849
        %v7270 = vadd.f32 %v6594, %v6851
        %v7271 = vadd.f32 %v6595, %v6931
        %v7272 = vadd.f32 %v6596, %v6933
        %v7273 = vadd.f32 %v6597, %v7013
        %v7274 = vadd.f32 %v6598, %v7015
        %v7275 = vadd.f32 %v6599, %v7095
        %v7276 = vadd.f32 %v6600, %v7097
        %v7277 = vadd.f32 %v6601, %v7177
        %v7278 = vadd.f32 %v6602, %v7179
        %v7279 = vadd.f32 %v6603, %v7259
        %v7280 = vadd.f32 %v6604, %v7261
        %v7281 = vxor.u32 %v7265, 2147483648
        %v7282 = vxor.u32 %v7266, 2147483648
        %v7283 = vxor.u32 %v7267, 2147483648
        %v7284 = vxor.u32 %v7268, 2147483648
        %v7285 = vmul.f32 %v7281, 1.442695
        %v7286 = vpow.pop %v7285
        %v7287 = vmul.f32 %v7282, 1.442695
        %v7288 = vpow.pop %v7287
        %v7289 = vmul.f32 %v7283, 1.442695
        %v7290 = vpow.pop %v7289
        %v7291 = vmul.f32 %v7284, 1.442695
        %v7292 = vpow.pop %v7291
        %v7293 = vadd.f32 %v7286, 1.0
        %v7294 = vadd.f32 %v7288, 1.0
        %v7295 = vadd.f32 %v7290, 1.0
        %v7296 = vadd.f32 %v7292, 1.0
        %v7297 = vrcp.pop %v7293
        %v7298 = vmul.f32 1.0, %v7297
        %v7299 = vrcp.pop %v7294
        %v7300 = vmul.f32 1.0, %v7299
        %v7301 = vrcp.pop %v7295
        %v7302 = vmul.f32 1.0, %v7301
        %v7303 = vrcp.pop %v7296
        %v7304 = vmul.f32 1.0, %v7303
        %v7305 = vxor.u32 %v7269, 2147483648
        %v7306 = vxor.u32 %v7270, 2147483648
        %v7307 = vxor.u32 %v7271, 2147483648
        %v7308 = vxor.u32 %v7272, 2147483648
        %v7309 = vmul.f32 %v7305, 1.442695
        %v7310 = vpow.pop %v7309
        %v7311 = vmul.f32 %v7306, 1.442695
        %v7312 = vpow.pop %v7311
        %v7313 = vmul.f32 %v7307, 1.442695
        %v7314 = vpow.pop %v7313
        %v7315 = vmul.f32 %v7308, 1.442695
        %v7316 = vpow.pop %v7315
        %v7317 = vadd.f32 %v7310, 1.0
        %v7318 = vadd.f32 %v7312, 1.0
        %v7319 = vadd.f32 %v7314, 1.0
        %v7320 = vadd.f32 %v7316, 1.0
        %v7321 = vrcp.pop %v7317
        %v7322 = vmul.f32 1.0, %v7321
        %v7323 = vrcp.pop %v7318
        %v7324 = vmul.f32 1.0, %v7323
        %v7325 = vrcp.pop %v7319
        %v7326 = vmul.f32 1.0, %v7325
        %v7327 = vrcp.pop %v7320
        %v7328 = vmul.f32 1.0, %v7327
        %v7329 = vtanh.pop %v7273
        %v7330 = vtanh.pop %v7274
        %v7331 = vtanh.pop %v7275
        %v7332 = vtanh.pop %v7276
        %v7333 = vxor.u32 %v7277, 2147483648
        %v7334 = vxor.u32 %v7278, 2147483648
        %v7335 = vxor.u32 %v7279, 2147483648
        %v7336 = vxor.u32 %v7280, 2147483648
        %v7337 = vmul.f32 %v7333, 1.442695
        %v7338 = vpow.pop %v7337
        %v7339 = vmul.f32 %v7334, 1.442695
        %v7340 = vpow.pop %v7339
        %v7341 = vmul.f32 %v7335, 1.442695
        %v7342 = vpow.pop %v7341
        %v7343 = vmul.f32 %v7336, 1.442695
        %v7344 = vpow.pop %v7343
        %v7345 = vadd.f32 %v7338, 1.0
        %v7346 = vadd.f32 %v7340, 1.0
        %v7347 = vadd.f32 %v7342, 1.0
        %v7348 = vadd.f32 %v7344, 1.0
        %v7349 = vrcp.pop %v7345
        %v7350 = vmul.f32 1.0, %v7349
        %v7351 = vrcp.pop %v7346
        %v7352 = vmul.f32 1.0, %v7351
        %v7353 = vrcp.pop %v7347
        %v7354 = vmul.f32 1.0, %v7353
        %v7355 = vrcp.pop %v7348
        %v7356 = vmul.f32 1.0, %v7355
        %v7357 = vmul.f32 %v7322, %v6572
        %v7358 = vmul.f32 %v7324, %v6573
        %v7359 = vmul.f32 %v7326, %v6574
        %v7360 = vmul.f32 %v7328, %v6575
        %v7361 = vmul.f32 %v7298, %v7329
        %v7362 = vmul.f32 %v7300, %v7330
        %v7363 = vmul.f32 %v7302, %v7331
        %v7364 = vmul.f32 %v7304, %v7332
        %v7365 = vadd.f32 %v7357, %v7361
        %v7366 = vadd.f32 %v7358, %v7362
        %v7367 = vadd.f32 %v7359, %v7363
        %v7368 = vadd.f32 %v7360, %v7364
        %v7369 = vtanh.pop %v7365
        %v7370 = vtanh.pop %v7366
        %v7371 = vtanh.pop %v7367
        %v7372 = vtanh.pop %v7368
        %v7373 = vmul.f32 %v7350, %v7369
        %v7374 = vmul.f32 %v7352, %v7370
        %v7375 = vmul.f32 %v7354, %v7371
        %v7376 = vmul.f32 %v7356, %v7372
        %s7377 = scalar_lea.vmem %s248, 32
        %v7378 = vld [vmem:[%s7377] sm:$0xff]
        %v7379 = vsub.f32 %v7365, %v6572
        %v7380 = vsub.f32 %v7366, %v6573
        %v7381 = vsub.f32 %v7367, %v6574
        %v7382 = vsub.f32 %v7368, %v6575
        %7384 = vset.pattern.permute.xlu0 0
        %7385 = vperm.xlu0 %7384, %v7378
        %v7386 = vpop.permute.xlu0 %7385
        %v7388 = vmul.f32 %v7386, %v7379
        %v7389 = vmul.f32 %v7386, %v7380
        %v7390 = vmul.f32 %v7386, %v7381
        %v7391 = vmul.f32 %v7386, %v7382
        %v7392 = vadd.f32 %v6572, %v7388
        %v7393 = vadd.f32 %v6573, %v7389
        %v7394 = vadd.f32 %v6574, %v7390
        %v7395 = vadd.f32 %v6575, %v7391
        %v7396 = vsub.f32 %v7373, %v6584
        %v7397 = vsub.f32 %v7374, %v6585
        %v7398 = vsub.f32 %v7375, %v6586
        %v7399 = vsub.f32 %v7376, %v6587
        %v7400 = vmul.f32 %v7386, %v7396
        %v7401 = vmul.f32 %v7386, %v7397
        %v7402 = vmul.f32 %v7386, %v7398
        %v7403 = vmul.f32 %v7386, %v7399
        %v7404 = vadd.f32 %v6584, %v7400
        %v7405 = vadd.f32 %v6585, %v7401
        %v7406 = vadd.f32 %v6586, %v7402
        %v7407 = vadd.f32 %v6587, %v7403
        %s7408 = scalar_lea.vmem %s202, 640 [#allocation2]
        %v7409 = vld [vmem:[%s7408] sm:$0xff]
        %v7410 = vld [vmem:[%s7408 + $0x8] sm:$0xff]
        %v7411 = vld [vmem:[%s7408 + $0x10] sm:$0xff]
        %v7412 = vld [vmem:[%s7408 + $0x18] sm:$0xff]
        %v7413 = vld [vmem:[%s7408 + $0x20] sm:$0xff]
        %v7414 = vld [vmem:[%s7408 + $0x28] sm:$0xff]
        %v7415 = vld [vmem:[%s7408 + $0x30] sm:$0xff]
        %v7416 = vld [vmem:[%s7408 + $0x38] sm:$0xff]
        %v7417 = vld [vmem:[%s7408 + $0x40] sm:$0xff]
        %v7418 = vld [vmem:[%s7408 + $0x48] sm:$0xff]
        %v7419 = vld [vmem:[%s7408 + $0x50] sm:$0xff]
        %v7420 = vld [vmem:[%s7408 + $0x58] sm:$0xff]
        %v7421 = vld [vmem:[%s7408 + $0x60] sm:$0xff]
        %v7422 = vld [vmem:[%s7408 + $0x68] sm:$0xff]
        %v7423 = vld [vmem:[%s7408 + $0x70] sm:$0xff]
        %v7424 = vld [vmem:[%s7408 + $0x78] sm:$0xff]
        %v7425 = vpack.c.bf16 %v7404, %v7404
        %v7426 = vpack.c.bf16 %v7405, %v7405
        %v7427 = vpack.c.bf16 %v7406, %v7406
        %v7428 = vpack.c.bf16 %v7407, %v7407
        %7429 = vmatprep.subr.bf16.mxu0 %v2315
        %7430 = vmatpush1.bf16.msra.mxu0 %v2314
        %7431 = vmatprep.subr.bf16.mxu0 %v2331
        %7432 = vmatpush1.bf16.msra.mxu0 %v2330
        %7433 = vmatprep.subr.bf16.mxu0 %v2347
        %7434 = vmatpush1.bf16.msra.mxu0 %v2346
        %7435 = vmatprep.subr.bf16.mxu0 %v2363
        %7436 = vmatpush1.bf16.msra.mxu0 %v2362
        %7437 = vmatprep.subr.bf16.mxu0 %v2379
        %7438 = vmatpush1.bf16.msra.mxu0 %v2378
        %7439 = vmatprep.subr.bf16.mxu0 %v2395
        %7440 = vmatpush1.bf16.msra.mxu0 %v2394
        %7441 = vmatprep.subr.bf16.mxu0 %v2411
        %7442 = vmatpush1.bf16.msra.mxu0 %v2410
        %7443 = vmatprep.subr.bf16.mxu0 %v2427
        %7444 = vmatpush1.bf16.msra.mxu0 %v2426
        %7445 = vmatprep.subr.bf16.mxu0 %v2443
        %7446 = vmatpush1.bf16.msra.mxu0 %v2442
        %7447 = vmatprep.subr.bf16.mxu0 %v2459
        %7448 = vmatpush1.bf16.msra.mxu0 %v2458
        %7449 = vmatprep.subr.bf16.mxu0 %v2475
        %7450 = vmatpush1.bf16.msra.mxu0 %v2474
        %7451 = vmatprep.subr.bf16.mxu0 %v2491
        %7452 = vmatpush1.bf16.msra.mxu0 %v2490
        %7453 = vmatprep.subr.bf16.mxu0 %v2507
        %7454 = vmatpush1.bf16.msra.mxu0 %v2506
        %7455 = vmatprep.subr.bf16.mxu0 %v2523
        %7456 = vmatpush1.bf16.msra.mxu0 %v2522
        %7457 = vmatprep.subr.bf16.mxu0 %v2539
        %7458 = vmatpush1.bf16.msra.mxu0 %v2538
        %7459 = vmatprep.subr.bf16.mxu0 %v2555
        %7460 = vmatpush1.bf16.msra.mxu0 %v2554
        %7461 = vmatprep.mubr.bf16.mxu0 %v7426
        %7462 = vmatmul.mubr.bf16.gmra.mrb[0].mxu0 %v7425
        %v7463 = vpop.f32.mrb[0].mxu0
        %v7464 = vadd.f32 0.0, %v7463
        %v7465 = vpop.f32.mrb[0].mxu0
        %v7466 = vadd.f32 0.0, %v7465
        %v7467 = vpop.f32.mrb[0].mxu0
        %v7468 = vpop.f32.mrb[0].mxu0
        %7469 = vdwg.mxu0
        %7470 = vmatprep.subr.bf16.mxu0 %v2571
        %7471 = vmatpush1.bf16.msra.mxu0 %v2570
        %7472 = vmatprep.subr.bf16.mxu0 %v2587
        %7473 = vmatpush1.bf16.msra.mxu0 %v2586
        %7474 = vmatprep.subr.bf16.mxu0 %v2603
        %7475 = vmatpush1.bf16.msra.mxu0 %v2602
        %7476 = vmatprep.subr.bf16.mxu0 %v2619
        %7477 = vmatpush1.bf16.msra.mxu0 %v2618
        %7478 = vmatprep.subr.bf16.mxu0 %v2635
        %7479 = vmatpush1.bf16.msra.mxu0 %v2634
        %7480 = vmatprep.subr.bf16.mxu0 %v2651
        %7481 = vmatpush1.bf16.msra.mxu0 %v2650
        %7482 = vmatprep.subr.bf16.mxu0 %v2667
        %7483 = vmatpush1.bf16.msra.mxu0 %v2666
        %7484 = vmatprep.subr.bf16.mxu0 %v2683
        %7485 = vmatpush1.bf16.msra.mxu0 %v2682
        %7486 = vmatprep.subr.bf16.mxu0 %v2699
        %7487 = vmatpush1.bf16.msra.mxu0 %v2698
        %7488 = vmatprep.subr.bf16.mxu0 %v2715
        %7489 = vmatpush1.bf16.msra.mxu0 %v2714
        %7490 = vmatprep.subr.bf16.mxu0 %v2731
        %7491 = vmatpush1.bf16.msra.mxu0 %v2730
        %7492 = vmatprep.subr.bf16.mxu0 %v2747
        %7493 = vmatpush1.bf16.msra.mxu0 %v2746
        %7494 = vmatprep.subr.bf16.mxu0 %v2763
        %7495 = vmatpush1.bf16.msra.mxu0 %v2762
        %7496 = vmatprep.subr.bf16.mxu0 %v2779
        %7497 = vmatpush1.bf16.msra.mxu0 %v2778
        %7498 = vmatprep.subr.bf16.mxu0 %v2795
        %7499 = vmatpush1.bf16.msra.mxu0 %v2794
        %7500 = vmatprep.subr.bf16.mxu0 %v2811
        %7501 = vmatpush1.bf16.msra.mxu0 %v2810
        %7502 = vmatprep.mubr.bf16.mxu0 %v7428
        %7503 = vmatmul.mubr.bf16.gmra.mrb[0].mxu0 %v7427
        %v7504 = vpop.f32.mrb[0].mxu0
        %v7505 = vadd.f32 %v7464, %v7504
        %v7506 = vpop.f32.mrb[0].mxu0
        %v7507 = vadd.f32 %v7466, %v7506
        %v7508 = vpop.f32.mrb[0].mxu0
        %v7509 = vpop.f32.mrb[0].mxu0
        %7510 = vdwg.mxu0
        %7511 = vmatprep.subr.bf16.mxu0 %v2317
        %7512 = vmatpush1.bf16.msra.mxu0 %v2316
        %7513 = vmatprep.subr.bf16.mxu0 %v2333
        %7514 = vmatpush1.bf16.msra.mxu0 %v2332
        %7515 = vmatprep.subr.bf16.mxu0 %v2349
        %7516 = vmatpush1.bf16.msra.mxu0 %v2348
        %7517 = vmatprep.subr.bf16.mxu0 %v2365
        %7518 = vmatpush1.bf16.msra.mxu0 %v2364
        %7519 = vmatprep.subr.bf16.mxu0 %v2381
        %7520 = vmatpush1.bf16.msra.mxu0 %v2380
        %7521 = vmatprep.subr.bf16.mxu0 %v2397
        %7522 = vmatpush1.bf16.msra.mxu0 %v2396
        %7523 = vmatprep.subr.bf16.mxu0 %v2413
        %7524 = vmatpush1.bf16.msra.mxu0 %v2412
        %7525 = vmatprep.subr.bf16.mxu0 %v2429
        %7526 = vmatpush1.bf16.msra.mxu0 %v2428
        %7527 = vmatprep.subr.bf16.mxu0 %v2445
        %7528 = vmatpush1.bf16.msra.mxu0 %v2444
        %7529 = vmatprep.subr.bf16.mxu0 %v2461
        %7530 = vmatpush1.bf16.msra.mxu0 %v2460
        %7531 = vmatprep.subr.bf16.mxu0 %v2477
        %7532 = vmatpush1.bf16.msra.mxu0 %v2476
        %7533 = vmatprep.subr.bf16.mxu0 %v2493
        %7534 = vmatpush1.bf16.msra.mxu0 %v2492
        %7535 = vmatprep.subr.bf16.mxu0 %v2509
        %7536 = vmatpush1.bf16.msra.mxu0 %v2508
        %7537 = vmatprep.subr.bf16.mxu0 %v2525
        %7538 = vmatpush1.bf16.msra.mxu0 %v2524
        %7539 = vmatprep.subr.bf16.mxu0 %v2541
        %7540 = vmatpush1.bf16.msra.mxu0 %v2540
        %7541 = vmatprep.subr.bf16.mxu0 %v2557
        %7542 = vmatpush1.bf16.msra.mxu0 %v2556
        %7543 = vmatprep.mubr.bf16.mxu0 %v7426
        %7544 = vmatmul.mubr.bf16.gmra.mrb[0].mxu0 %v7425
        %v7545 = vpop.f32.mrb[0].mxu0
        %v7546 = vadd.f32 0.0, %v7545
        %v7547 = vpop.f32.mrb[0].mxu0
        %v7548 = vadd.f32 0.0, %v7547
        %v7549 = vpop.f32.mrb[0].mxu0
        %v7550 = vpop.f32.mrb[0].mxu0
        %7551 = vdwg.mxu0
        %7552 = vmatprep.subr.bf16.mxu0 %v2573
        %7553 = vmatpush1.bf16.msra.mxu0 %v2572
        %7554 = vmatprep.subr.bf16.mxu0 %v2589
        %7555 = vmatpush1.bf16.msra.mxu0 %v2588
        %7556 = vmatprep.subr.bf16.mxu0 %v2605
        %7557 = vmatpush1.bf16.msra.mxu0 %v2604
        %7558 = vmatprep.subr.bf16.mxu0 %v2621
        %7559 = vmatpush1.bf16.msra.mxu0 %v2620
        %7560 = vmatprep.subr.bf16.mxu0 %v2637
        %7561 = vmatpush1.bf16.msra.mxu0 %v2636
        %7562 = vmatprep.subr.bf16.mxu0 %v2653
        %7563 = vmatpush1.bf16.msra.mxu0 %v2652
        %7564 = vmatprep.subr.bf16.mxu0 %v2669
        %7565 = vmatpush1.bf16.msra.mxu0 %v2668
        %7566 = vmatprep.subr.bf16.mxu0 %v2685
        %7567 = vmatpush1.bf16.msra.mxu0 %v2684
        %7568 = vmatprep.subr.bf16.mxu0 %v2701
        %7569 = vmatpush1.bf16.msra.mxu0 %v2700
        %7570 = vmatprep.subr.bf16.mxu0 %v2717
        %7571 = vmatpush1.bf16.msra.mxu0 %v2716
        %7572 = vmatprep.subr.bf16.mxu0 %v2733
        %7573 = vmatpush1.bf16.msra.mxu0 %v2732
        %7574 = vmatprep.subr.bf16.mxu0 %v2749
        %7575 = vmatpush1.bf16.msra.mxu0 %v2748
        %7576 = vmatprep.subr.bf16.mxu0 %v2765
        %7577 = vmatpush1.bf16.msra.mxu0 %v2764
        %7578 = vmatprep.subr.bf16.mxu0 %v2781
        %7579 = vmatpush1.bf16.msra.mxu0 %v2780
        %7580 = vmatprep.subr.bf16.mxu0 %v2797
        %7581 = vmatpush1.bf16.msra.mxu0 %v2796
        %7582 = vmatprep.subr.bf16.mxu0 %v2813
        %7583 = vmatpush1.bf16.msra.mxu0 %v2812
        %7584 = vmatprep.mubr.bf16.mxu0 %v7428
        %7585 = vmatmul.mubr.bf16.gmra.mrb[0].mxu0 %v7427
        %v7586 = vpop.f32.mrb[0].mxu0
        %v7587 = vadd.f32 %v7546, %v7586
        %v7588 = vpop.f32.mrb[0].mxu0
        %v7589 = vadd.f32 %v7548, %v7588
        %v7590 = vpop.f32.mrb[0].mxu0
        %v7591 = vpop.f32.mrb[0].mxu0
        %7592 = vdwg.mxu0
        %7593 = vmatprep.subr.bf16.mxu0 %v2319
        %7594 = vmatpush1.bf16.msra.mxu0 %v2318
        %7595 = vmatprep.subr.bf16.mxu0 %v2335
        %7596 = vmatpush1.bf16.msra.mxu0 %v2334
        %7597 = vmatprep.subr.bf16.mxu0 %v2351
        %7598 = vmatpush1.bf16.msra.mxu0 %v2350
        %7599 = vmatprep.subr.bf16.mxu0 %v2367
        %7600 = vmatpush1.bf16.msra.mxu0 %v2366
        %7601 = vmatprep.subr.bf16.mxu0 %v2383
        %7602 = vmatpush1.bf16.msra.mxu0 %v2382
        %7603 = vmatprep.subr.bf16.mxu0 %v2399
        %7604 = vmatpush1.bf16.msra.mxu0 %v2398
        %7605 = vmatprep.subr.bf16.mxu0 %v2415
        %7606 = vmatpush1.bf16.msra.mxu0 %v2414
        %7607 = vmatprep.subr.bf16.mxu0 %v2431
        %7608 = vmatpush1.bf16.msra.mxu0 %v2430
        %7609 = vmatprep.subr.bf16.mxu0 %v2447
        %7610 = vmatpush1.bf16.msra.mxu0 %v2446
        %7611 = vmatprep.subr.bf16.mxu0 %v2463
        %7612 = vmatpush1.bf16.msra.mxu0 %v2462
        %7613 = vmatprep.subr.bf16.mxu0 %v2479
        %7614 = vmatpush1.bf16.msra.mxu0 %v2478
        %7615 = vmatprep.subr.bf16.mxu0 %v2495
        %7616 = vmatpush1.bf16.msra.mxu0 %v2494
        %7617 = vmatprep.subr.bf16.mxu0 %v2511
        %7618 = vmatpush1.bf16.msra.mxu0 %v2510
        %7619 = vmatprep.subr.bf16.mxu0 %v2527
        %7620 = vmatpush1.bf16.msra.mxu0 %v2526
        %7621 = vmatprep.subr.bf16.mxu0 %v2543
        %7622 = vmatpush1.bf16.msra.mxu0 %v2542
        %7623 = vmatprep.subr.bf16.mxu0 %v2559
        %7624 = vmatpush1.bf16.msra.mxu0 %v2558
        %7625 = vmatprep.mubr.bf16.mxu0 %v7426
        %7626 = vmatmul.mubr.bf16.gmra.mrb[0].mxu0 %v7425
        %v7627 = vpop.f32.mrb[0].mxu0
        %v7628 = vadd.f32 0.0, %v7627
        %v7629 = vpop.f32.mrb[0].mxu0
        %v7630 = vadd.f32 0.0, %v7629
        %v7631 = vpop.f32.mrb[0].mxu0
        %v7632 = vpop.f32.mrb[0].mxu0
        %7633 = vdwg.mxu0
        %7634 = vmatprep.subr.bf16.mxu0 %v2575
        %7635 = vmatpush1.bf16.msra.mxu0 %v2574
        %7636 = vmatprep.subr.bf16.mxu0 %v2591
        %7637 = vmatpush1.bf16.msra.mxu0 %v2590
        %7638 = vmatprep.subr.bf16.mxu0 %v2607
        %7639 = vmatpush1.bf16.msra.mxu0 %v2606
        %7640 = vmatprep.subr.bf16.mxu0 %v2623
        %7641 = vmatpush1.bf16.msra.mxu0 %v2622
        %7642 = vmatprep.subr.bf16.mxu0 %v2639
        %7643 = vmatpush1.bf16.msra.mxu0 %v2638
        %7644 = vmatprep.subr.bf16.mxu0 %v2655
        %7645 = vmatpush1.bf16.msra.mxu0 %v2654
        %7646 = vmatprep.subr.bf16.mxu0 %v2671
        %7647 = vmatpush1.bf16.msra.mxu0 %v2670
        %7648 = vmatprep.subr.bf16.mxu0 %v2687
        %7649 = vmatpush1.bf16.msra.mxu0 %v2686
        %7650 = vmatprep.subr.bf16.mxu0 %v2703
        %7651 = vmatpush1.bf16.msra.mxu0 %v2702
        %7652 = vmatprep.subr.bf16.mxu0 %v2719
        %7653 = vmatpush1.bf16.msra.mxu0 %v2718
        %7654 = vmatprep.subr.bf16.mxu0 %v2735
        %7655 = vmatpush1.bf16.msra.mxu0 %v2734
        %7656 = vmatprep.subr.bf16.mxu0 %v2751
        %7657 = vmatpush1.bf16.msra.mxu0 %v2750
        %7658 = vmatprep.subr.bf16.mxu0 %v2767
        %7659 = vmatpush1.bf16.msra.mxu0 %v2766
        %7660 = vmatprep.subr.bf16.mxu0 %v2783
        %7661 = vmatpush1.bf16.msra.mxu0 %v2782
        %7662 = vmatprep.subr.bf16.mxu0 %v2799
        %7663 = vmatpush1.bf16.msra.mxu0 %v2798
        %7664 = vmatprep.subr.bf16.mxu0 %v2815
        %7665 = vmatpush1.bf16.msra.mxu0 %v2814
        %7666 = vmatprep.mubr.bf16.mxu0 %v7428
        %7667 = vmatmul.mubr.bf16.gmra.mrb[0].mxu0 %v7427
        %v7668 = vpop.f32.mrb[0].mxu0
        %v7669 = vadd.f32 %v7628, %v7668
        %v7670 = vpop.f32.mrb[0].mxu0
        %v7671 = vadd.f32 %v7630, %v7670
        %v7672 = vpop.f32.mrb[0].mxu0
        %v7673 = vpop.f32.mrb[0].mxu0
        %7674 = vdwg.mxu0
        %7675 = vmatprep.subr.bf16.mxu0 %v2321
        %7676 = vmatpush1.bf16.msra.mxu0 %v2320
        %7677 = vmatprep.subr.bf16.mxu0 %v2337
        %7678 = vmatpush1.bf16.msra.mxu0 %v2336
        %7679 = vmatprep.subr.bf16.mxu0 %v2353
        %7680 = vmatpush1.bf16.msra.mxu0 %v2352
        %7681 = vmatprep.subr.bf16.mxu0 %v2369
        %7682 = vmatpush1.bf16.msra.mxu0 %v2368
        %7683 = vmatprep.subr.bf16.mxu0 %v2385
        %7684 = vmatpush1.bf16.msra.mxu0 %v2384
        %7685 = vmatprep.subr.bf16.mxu0 %v2401
        %7686 = vmatpush1.bf16.msra.mxu0 %v2400
        %7687 = vmatprep.subr.bf16.mxu0 %v2417
        %7688 = vmatpush1.bf16.msra.mxu0 %v2416
        %7689 = vmatprep.subr.bf16.mxu0 %v2433
        %7690 = vmatpush1.bf16.msra.mxu0 %v2432
        %7691 = vmatprep.subr.bf16.mxu0 %v2449
        %7692 = vmatpush1.bf16.msra.mxu0 %v2448
        %7693 = vmatprep.subr.bf16.mxu0 %v2465
        %7694 = vmatpush1.bf16.msra.mxu0 %v2464
        %7695 = vmatprep.subr.bf16.mxu0 %v2481
        %7696 = vmatpush1.bf16.msra.mxu0 %v2480
        %7697 = vmatprep.subr.bf16.mxu0 %v2497
        %7698 = vmatpush1.bf16.msra.mxu0 %v2496
        %7699 = vmatprep.subr.bf16.mxu0 %v2513
        %7700 = vmatpush1.bf16.msra.mxu0 %v2512
        %7701 = vmatprep.subr.bf16.mxu0 %v2529
        %7702 = vmatpush1.bf16.msra.mxu0 %v2528
        %7703 = vmatprep.subr.bf16.mxu0 %v2545
        %7704 = vmatpush1.bf16.msra.mxu0 %v2544
        %7705 = vmatprep.subr.bf16.mxu0 %v2561
        %7706 = vmatpush1.bf16.msra.mxu0 %v2560
        %7707 = vmatprep.mubr.bf16.mxu0 %v7426
        %7708 = vmatmul.mubr.bf16.gmra.mrb[0].mxu0 %v7425
        %v7709 = vpop.f32.mrb[0].mxu0
        %v7710 = vadd.f32 0.0, %v7709
        %v7711 = vpop.f32.mrb[0].mxu0
        %v7712 = vadd.f32 0.0, %v7711
        %v7713 = vpop.f32.mrb[0].mxu0
        %v7714 = vpop.f32.mrb[0].mxu0
        %7715 = vdwg.mxu0
        %7716 = vmatprep.subr.bf16.mxu0 %v2577
        %7717 = vmatpush1.bf16.msra.mxu0 %v2576
        %7718 = vmatprep.subr.bf16.mxu0 %v2593
        %7719 = vmatpush1.bf16.msra.mxu0 %v2592
        %7720 = vmatprep.subr.bf16.mxu0 %v2609
        %7721 = vmatpush1.bf16.msra.mxu0 %v2608
        %7722 = vmatprep.subr.bf16.mxu0 %v2625
        %7723 = vmatpush1.bf16.msra.mxu0 %v2624
        %7724 = vmatprep.subr.bf16.mxu0 %v2641
        %7725 = vmatpush1.bf16.msra.mxu0 %v2640
        %7726 = vmatprep.subr.bf16.mxu0 %v2657
        %7727 = vmatpush1.bf16.msra.mxu0 %v2656
        %7728 = vmatprep.subr.bf16.mxu0 %v2673
        %7729 = vmatpush1.bf16.msra.mxu0 %v2672
        %7730 = vmatprep.subr.bf16.mxu0 %v2689
        %7731 = vmatpush1.bf16.msra.mxu0 %v2688
        %7732 = vmatprep.subr.bf16.mxu0 %v2705
        %7733 = vmatpush1.bf16.msra.mxu0 %v2704
        %7734 = vmatprep.subr.bf16.mxu0 %v2721
        %7735 = vmatpush1.bf16.msra.mxu0 %v2720
        %7736 = vmatprep.subr.bf16.mxu0 %v2737
        %7737 = vmatpush1.bf16.msra.mxu0 %v2736
        %7738 = vmatprep.subr.bf16.mxu0 %v2753
        %7739 = vmatpush1.bf16.msra.mxu0 %v2752
        %7740 = vmatprep.subr.bf16.mxu0 %v2769
        %7741 = vmatpush1.bf16.msra.mxu0 %v2768
        %7742 = vmatprep.subr.bf16.mxu0 %v2785
        %7743 = vmatpush1.bf16.msra.mxu0 %v2784
        %7744 = vmatprep.subr.bf16.mxu0 %v2801
        %7745 = vmatpush1.bf16.msra.mxu0 %v2800
        %7746 = vmatprep.subr.bf16.mxu0 %v2817
        %7747 = vmatpush1.bf16.msra.mxu0 %v2816
        %7748 = vmatprep.mubr.bf16.mxu0 %v7428
        %7749 = vmatmul.mubr.bf16.gmra.mrb[0].mxu0 %v7427
        %v7750 = vpop.f32.mrb[0].mxu0
        %v7751 = vadd.f32 %v7710, %v7750
        %v7752 = vpop.f32.mrb[0].mxu0
        %v7753 = vadd.f32 %v7712, %v7752
        %v7754 = vpop.f32.mrb[0].mxu0
        %v7755 = vpop.f32.mrb[0].mxu0
        %7756 = vdwg.mxu0
        %7757 = vmatprep.subr.bf16.mxu0 %v2323
        %7758 = vmatpush1.bf16.msra.mxu0 %v2322
        %7759 = vmatprep.subr.bf16.mxu0 %v2339
        %7760 = vmatpush1.bf16.msra.mxu0 %v2338
        %7761 = vmatprep.subr.bf16.mxu0 %v2355
        %7762 = vmatpush1.bf16.msra.mxu0 %v2354
        %7763 = vmatprep.subr.bf16.mxu0 %v2371
        %7764 = vmatpush1.bf16.msra.mxu0 %v2370
        %7765 = vmatprep.subr.bf16.mxu0 %v2387
        %7766 = vmatpush1.bf16.msra.mxu0 %v2386
        %7767 = vmatprep.subr.bf16.mxu0 %v2403
        %7768 = vmatpush1.bf16.msra.mxu0 %v2402
        %7769 = vmatprep.subr.bf16.mxu0 %v2419
        %7770 = vmatpush1.bf16.msra.mxu0 %v2418
        %7771 = vmatprep.subr.bf16.mxu0 %v2435
        %7772 = vmatpush1.bf16.msra.mxu0 %v2434
        %7773 = vmatprep.subr.bf16.mxu0 %v2451
        %7774 = vmatpush1.bf16.msra.mxu0 %v2450
        %7775 = vmatprep.subr.bf16.mxu0 %v2467
        %7776 = vmatpush1.bf16.msra.mxu0 %v2466
        %7777 = vmatprep.subr.bf16.mxu0 %v2483
        %7778 = vmatpush1.bf16.msra.mxu0 %v2482
        %7779 = vmatprep.subr.bf16.mxu0 %v2499
        %7780 = vmatpush1.bf16.msra.mxu0 %v2498
        %7781 = vmatprep.subr.bf16.mxu0 %v2515
        %7782 = vmatpush1.bf16.msra.mxu0 %v2514
        %7783 = vmatprep.subr.bf16.mxu0 %v2531
        %7784 = vmatpush1.bf16.msra.mxu0 %v2530
        %7785 = vmatprep.subr.bf16.mxu0 %v2547
        %7786 = vmatpush1.bf16.msra.mxu0 %v2546
        %7787 = vmatprep.subr.bf16.mxu0 %v2563
        %7788 = vmatpush1.bf16.msra.mxu0 %v2562
        %7789 = vmatprep.mubr.bf16.mxu0 %v7426
        %7790 = vmatmul.mubr.bf16.gmra.mrb[0].mxu0 %v7425
        %v7791 = vpop.f32.mrb[0].mxu0
        %v7792 = vadd.f32 0.0, %v7791
        %v7793 = vpop.f32.mrb[0].mxu0
        %v7794 = vadd.f32 0.0, %v7793
        %v7795 = vpop.f32.mrb[0].mxu0
        %v7796 = vpop.f32.mrb[0].mxu0
        %7797 = vdwg.mxu0
        %7798 = vmatprep.subr.bf16.mxu0 %v2579
        %7799 = vmatpush1.bf16.msra.mxu0 %v2578
        %7800 = vmatprep.subr.bf16.mxu0 %v2595
        %7801 = vmatpush1.bf16.msra.mxu0 %v2594
        %7802 = vmatprep.subr.bf16.mxu0 %v2611
        %7803 = vmatpush1.bf16.msra.mxu0 %v2610
        %7804 = vmatprep.subr.bf16.mxu0 %v2627
        %7805 = vmatpush1.bf16.msra.mxu0 %v2626
        %7806 = vmatprep.subr.bf16.mxu0 %v2643
        %7807 = vmatpush1.bf16.msra.mxu0 %v2642
        %7808 = vmatprep.subr.bf16.mxu0 %v2659
        %7809 = vmatpush1.bf16.msra.mxu0 %v2658
        %7810 = vmatprep.subr.bf16.mxu0 %v2675
        %7811 = vmatpush1.bf16.msra.mxu0 %v2674
        %7812 = vmatprep.subr.bf16.mxu0 %v2691
        %7813 = vmatpush1.bf16.msra.mxu0 %v2690
        %7814 = vmatprep.subr.bf16.mxu0 %v2707
        %7815 = vmatpush1.bf16.msra.mxu0 %v2706
        %7816 = vmatprep.subr.bf16.mxu0 %v2723
        %7817 = vmatpush1.bf16.msra.mxu0 %v2722
        %7818 = vmatprep.subr.bf16.mxu0 %v2739
        %7819 = vmatpush1.bf16.msra.mxu0 %v2738
        %7820 = vmatprep.subr.bf16.mxu0 %v2755
        %7821 = vmatpush1.bf16.msra.mxu0 %v2754
        %7822 = vmatprep.subr.bf16.mxu0 %v2771
        %7823 = vmatpush1.bf16.msra.mxu0 %v2770
        %7824 = vmatprep.subr.bf16.mxu0 %v2787
        %7825 = vmatpush1.bf16.msra.mxu0 %v2786
        %7826 = vmatprep.subr.bf16.mxu0 %v2803
        %7827 = vmatpush1.bf16.msra.mxu0 %v2802
        %7828 = vmatprep.subr.bf16.mxu0 %v2819
        %7829 = vmatpush1.bf16.msra.mxu0 %v2818
        %7830 = vmatprep.mubr.bf16.mxu0 %v7428
        %7831 = vmatmul.mubr.bf16.gmra.mrb[0].mxu0 %v7427
        %v7832 = vpop.f32.mrb[0].mxu0
        %v7833 = vadd.f32 %v7792, %v7832
        %v7834 = vpop.f32.mrb[0].mxu0
        %v7835 = vadd.f32 %v7794, %v7834
        %v7836 = vpop.f32.mrb[0].mxu0
        %v7837 = vpop.f32.mrb[0].mxu0
        %7838 = vdwg.mxu0
        %7839 = vmatprep.subr.bf16.mxu0 %v2325
        %7840 = vmatpush1.bf16.msra.mxu0 %v2324
        %7841 = vmatprep.subr.bf16.mxu0 %v2341
        %7842 = vmatpush1.bf16.msra.mxu0 %v2340
        %7843 = vmatprep.subr.bf16.mxu0 %v2357
        %7844 = vmatpush1.bf16.msra.mxu0 %v2356
        %7845 = vmatprep.subr.bf16.mxu0 %v2373
        %7846 = vmatpush1.bf16.msra.mxu0 %v2372
        %7847 = vmatprep.subr.bf16.mxu0 %v2389
        %7848 = vmatpush1.bf16.msra.mxu0 %v2388
        %7849 = vmatprep.subr.bf16.mxu0 %v2405
        %7850 = vmatpush1.bf16.msra.mxu0 %v2404
        %7851 = vmatprep.subr.bf16.mxu0 %v2421
        %7852 = vmatpush1.bf16.msra.mxu0 %v2420
        %7853 = vmatprep.subr.bf16.mxu0 %v2437
        %7854 = vmatpush1.bf16.msra.mxu0 %v2436
        %7855 = vmatprep.subr.bf16.mxu0 %v2453
        %7856 = vmatpush1.bf16.msra.mxu0 %v2452
        %7857 = vmatprep.subr.bf16.mxu0 %v2469
        %7858 = vmatpush1.bf16.msra.mxu0 %v2468
        %7859 = vmatprep.subr.bf16.mxu0 %v2485
        %7860 = vmatpush1.bf16.msra.mxu0 %v2484
        %7861 = vmatprep.subr.bf16.mxu0 %v2501
        %7862 = vmatpush1.bf16.msra.mxu0 %v2500
        %7863 = vmatprep.subr.bf16.mxu0 %v2517
        %7864 = vmatpush1.bf16.msra.mxu0 %v2516
        %7865 = vmatprep.subr.bf16.mxu0 %v2533
        %7866 = vmatpush1.bf16.msra.mxu0 %v2532
        %7867 = vmatprep.subr.bf16.mxu0 %v2549
        %7868 = vmatpush1.bf16.msra.mxu0 %v2548
        %7869 = vmatprep.subr.bf16.mxu0 %v2565
        %7870 = vmatpush1.bf16.msra.mxu0 %v2564
        %7871 = vmatprep.mubr.bf16.mxu0 %v7426
        %7872 = vmatmul.mubr.bf16.gmra.mrb[0].mxu0 %v7425
        %v7873 = vpop.f32.mrb[0].mxu0
        %v7874 = vadd.f32 0.0, %v7873
        %v7875 = vpop.f32.mrb[0].mxu0
        %v7876 = vadd.f32 0.0, %v7875
        %v7877 = vpop.f32.mrb[0].mxu0
        %v7878 = vpop.f32.mrb[0].mxu0
        %7879 = vdwg.mxu0
        %7880 = vmatprep.subr.bf16.mxu0 %v2581
        %7881 = vmatpush1.bf16.msra.mxu0 %v2580
        %7882 = vmatprep.subr.bf16.mxu0 %v2597
        %7883 = vmatpush1.bf16.msra.mxu0 %v2596
        %7884 = vmatprep.subr.bf16.mxu0 %v2613
        %7885 = vmatpush1.bf16.msra.mxu0 %v2612
        %7886 = vmatprep.subr.bf16.mxu0 %v2629
        %7887 = vmatpush1.bf16.msra.mxu0 %v2628
        %7888 = vmatprep.subr.bf16.mxu0 %v2645
        %7889 = vmatpush1.bf16.msra.mxu0 %v2644
        %7890 = vmatprep.subr.bf16.mxu0 %v2661
        %7891 = vmatpush1.bf16.msra.mxu0 %v2660
        %7892 = vmatprep.subr.bf16.mxu0 %v2677
        %7893 = vmatpush1.bf16.msra.mxu0 %v2676
        %7894 = vmatprep.subr.bf16.mxu0 %v2693
        %7895 = vmatpush1.bf16.msra.mxu0 %v2692
        %7896 = vmatprep.subr.bf16.mxu0 %v2709
        %7897 = vmatpush1.bf16.msra.mxu0 %v2708
        %7898 = vmatprep.subr.bf16.mxu0 %v2725
        %7899 = vmatpush1.bf16.msra.mxu0 %v2724
        %7900 = vmatprep.subr.bf16.mxu0 %v2741
        %7901 = vmatpush1.bf16.msra.mxu0 %v2740
        %7902 = vmatprep.subr.bf16.mxu0 %v2757
        %7903 = vmatpush1.bf16.msra.mxu0 %v2756
        %7904 = vmatprep.subr.bf16.mxu0 %v2773
        %7905 = vmatpush1.bf16.msra.mxu0 %v2772
        %7906 = vmatprep.subr.bf16.mxu0 %v2789
        %7907 = vmatpush1.bf16.msra.mxu0 %v2788
        %7908 = vmatprep.subr.bf16.mxu0 %v2805
        %7909 = vmatpush1.bf16.msra.mxu0 %v2804
        %7910 = vmatprep.subr.bf16.mxu0 %v2821
        %7911 = vmatpush1.bf16.msra.mxu0 %v2820
        %7912 = vmatprep.mubr.bf16.mxu0 %v7428
        %7913 = vmatmul.mubr.bf16.gmra.mrb[0].mxu0 %v7427
        %v7914 = vpop.f32.mrb[0].mxu0
        %v7915 = vadd.f32 %v7874, %v7914
        %v7916 = vpop.f32.mrb[0].mxu0
        %v7917 = vadd.f32 %v7876, %v7916
        %v7918 = vpop.f32.mrb[0].mxu0
        %v7919 = vpop.f32.mrb[0].mxu0
        %7920 = vdwg.mxu0
        %7921 = vmatprep.subr.bf16.mxu0 %v2327
        %7922 = vmatpush1.bf16.msra.mxu0 %v2326
        %7923 = vmatprep.subr.bf16.mxu0 %v2343
        %7924 = vmatpush1.bf16.msra.mxu0 %v2342
        %7925 = vmatprep.subr.bf16.mxu0 %v2359
        %7926 = vmatpush1.bf16.msra.mxu0 %v2358
        %7927 = vmatprep.subr.bf16.mxu0 %v2375
        %7928 = vmatpush1.bf16.msra.mxu0 %v2374
        %7929 = vmatprep.subr.bf16.mxu0 %v2391
        %7930 = vmatpush1.bf16.msra.mxu0 %v2390
        %7931 = vmatprep.subr.bf16.mxu0 %v2407
        %7932 = vmatpush1.bf16.msra.mxu0 %v2406
        %7933 = vmatprep.subr.bf16.mxu0 %v2423
        %7934 = vmatpush1.bf16.msra.mxu0 %v2422
        %7935 = vmatprep.subr.bf16.mxu0 %v2439
        %7936 = vmatpush1.bf16.msra.mxu0 %v2438
        %7937 = vmatprep.subr.bf16.mxu0 %v2455
        %7938 = vmatpush1.bf16.msra.mxu0 %v2454
        %7939 = vmatprep.subr.bf16.mxu0 %v2471
        %7940 = vmatpush1.bf16.msra.mxu0 %v2470
        %7941 = vmatprep.subr.bf16.mxu0 %v2487
        %7942 = vmatpush1.bf16.msra.mxu0 %v2486
        %7943 = vmatprep.subr.bf16.mxu0 %v2503
        %7944 = vmatpush1.bf16.msra.mxu0 %v2502
        %7945 = vmatprep.subr.bf16.mxu0 %v2519
        %7946 = vmatpush1.bf16.msra.mxu0 %v2518
        %7947 = vmatprep.subr.bf16.mxu0 %v2535
        %7948 = vmatpush1.bf16.msra.mxu0 %v2534
        %7949 = vmatprep.subr.bf16.mxu0 %v2551
        %7950 = vmatpush1.bf16.msra.mxu0 %v2550
        %7951 = vmatprep.subr.bf16.mxu0 %v2567
        %7952 = vmatpush1.bf16.msra.mxu0 %v2566
        %7953 = vmatprep.mubr.bf16.mxu0 %v7426
        %7954 = vmatmul.mubr.bf16.gmra.mrb[0].mxu0 %v7425
        %v7955 = vpop.f32.mrb[0].mxu0
        %v7956 = vadd.f32 0.0, %v7955
        %v7957 = vpop.f32.mrb[0].mxu0
        %v7958 = vadd.f32 0.0, %v7957
        %v7959 = vpop.f32.mrb[0].mxu0
        %v7960 = vpop.f32.mrb[0].mxu0
        %7961 = vdwg.mxu0
        %7962 = vmatprep.subr.bf16.mxu0 %v2583
        %7963 = vmatpush1.bf16.msra.mxu0 %v2582
        %7964 = vmatprep.subr.bf16.mxu0 %v2599
        %7965 = vmatpush1.bf16.msra.mxu0 %v2598
        %7966 = vmatprep.subr.bf16.mxu0 %v2615
        %7967 = vmatpush1.bf16.msra.mxu0 %v2614
        %7968 = vmatprep.subr.bf16.mxu0 %v2631
        %7969 = vmatpush1.bf16.msra.mxu0 %v2630
        %7970 = vmatprep.subr.bf16.mxu0 %v2647
        %7971 = vmatpush1.bf16.msra.mxu0 %v2646
        %7972 = vmatprep.subr.bf16.mxu0 %v2663
        %7973 = vmatpush1.bf16.msra.mxu0 %v2662
        %7974 = vmatprep.subr.bf16.mxu0 %v2679
        %7975 = vmatpush1.bf16.msra.mxu0 %v2678
        %7976 = vmatprep.subr.bf16.mxu0 %v2695
        %7977 = vmatpush1.bf16.msra.mxu0 %v2694
        %7978 = vmatprep.subr.bf16.mxu0 %v2711
        %7979 = vmatpush1.bf16.msra.mxu0 %v2710
        %7980 = vmatprep.subr.bf16.mxu0 %v2727
        %7981 = vmatpush1.bf16.msra.mxu0 %v2726
        %7982 = vmatprep.subr.bf16.mxu0 %v2743
        %7983 = vmatpush1.bf16.msra.mxu0 %v2742
        %7984 = vmatprep.subr.bf16.mxu0 %v2759
        %7985 = vmatpush1.bf16.msra.mxu0 %v2758
        %7986 = vmatprep.subr.bf16.mxu0 %v2775
        %7987 = vmatpush1.bf16.msra.mxu0 %v2774
        %7988 = vmatprep.subr.bf16.mxu0 %v2791
        %7989 = vmatpush1.bf16.msra.mxu0 %v2790
        %7990 = vmatprep.subr.bf16.mxu0 %v2807
        %7991 = vmatpush1.bf16.msra.mxu0 %v2806
        %7992 = vmatprep.subr.bf16.mxu0 %v2823
        %7993 = vmatpush1.bf16.msra.mxu0 %v2822
        %7994 = vmatprep.mubr.bf16.mxu0 %v7428
        %7995 = vmatmul.mubr.bf16.gmra.mrb[0].mxu0 %v7427
        %v7996 = vpop.f32.mrb[0].mxu0
        %v7997 = vadd.f32 %v7956, %v7996
        %v7998 = vpop.f32.mrb[0].mxu0
        %v7999 = vadd.f32 %v7958, %v7998
        %v8000 = vpop.f32.mrb[0].mxu0
        %v8001 = vpop.f32.mrb[0].mxu0
        %8002 = vdwg.mxu0
        %8003 = vmatprep.subr.bf16.mxu0 %v2329
        %8004 = vmatpush1.bf16.msra.mxu0 %v2328
        %8005 = vmatprep.subr.bf16.mxu0 %v2345
        %8006 = vmatpush1.bf16.msra.mxu0 %v2344
        %8007 = vmatprep.subr.bf16.mxu0 %v2361
        %8008 = vmatpush1.bf16.msra.mxu0 %v2360
        %8009 = vmatprep.subr.bf16.mxu0 %v2377
        %8010 = vmatpush1.bf16.msra.mxu0 %v2376
        %8011 = vmatprep.subr.bf16.mxu0 %v2393
        %8012 = vmatpush1.bf16.msra.mxu0 %v2392
        %8013 = vmatprep.subr.bf16.mxu0 %v2409
        %8014 = vmatpush1.bf16.msra.mxu0 %v2408
        %8015 = vmatprep.subr.bf16.mxu0 %v2425
        %8016 = vmatpush1.bf16.msra.mxu0 %v2424
        %8017 = vmatprep.subr.bf16.mxu0 %v2441
        %8018 = vmatpush1.bf16.msra.mxu0 %v2440
        %8019 = vmatprep.subr.bf16.mxu0 %v2457
        %8020 = vmatpush1.bf16.msra.mxu0 %v2456
        %8021 = vmatprep.subr.bf16.mxu0 %v2473
        %8022 = vmatpush1.bf16.msra.mxu0 %v2472
        %8023 = vmatprep.subr.bf16.mxu0 %v2489
        %8024 = vmatpush1.bf16.msra.mxu0 %v2488
        %8025 = vmatprep.subr.bf16.mxu0 %v2505
        %8026 = vmatpush1.bf16.msra.mxu0 %v2504
        %8027 = vmatprep.subr.bf16.mxu0 %v2521
        %8028 = vmatpush1.bf16.msra.mxu0 %v2520
        %8029 = vmatprep.subr.bf16.mxu0 %v2537
        %8030 = vmatpush1.bf16.msra.mxu0 %v2536
        %8031 = vmatprep.subr.bf16.mxu0 %v2553
        %8032 = vmatpush1.bf16.msra.mxu0 %v2552
        %8033 = vmatprep.subr.bf16.mxu0 %v2569
        %8034 = vmatpush1.bf16.msra.mxu0 %v2568
        %8035 = vmatprep.mubr.bf16.mxu0 %v7426
        %8036 = vmatmul.mubr.bf16.gmra.mrb[0].mxu0 %v7425
        %v8037 = vpop.f32.mrb[0].mxu0
        %v8038 = vadd.f32 0.0, %v8037
        %v8039 = vpop.f32.mrb[0].mxu0
        %v8040 = vadd.f32 0.0, %v8039
        %v8041 = vpop.f32.mrb[0].mxu0
        %v8042 = vpop.f32.mrb[0].mxu0
        %8043 = vdwg.mxu0
        %8044 = vmatprep.subr.bf16.mxu0 %v2585
        %8045 = vmatpush1.bf16.msra.mxu0 %v2584
        %8046 = vmatprep.subr.bf16.mxu0 %v2601
        %8047 = vmatpush1.bf16.msra.mxu0 %v2600
        %8048 = vmatprep.subr.bf16.mxu0 %v2617
        %8049 = vmatpush1.bf16.msra.mxu0 %v2616
        %8050 = vmatprep.subr.bf16.mxu0 %v2633
        %8051 = vmatpush1.bf16.msra.mxu0 %v2632
        %8052 = vmatprep.subr.bf16.mxu0 %v2649
        %8053 = vmatpush1.bf16.msra.mxu0 %v2648
        %8054 = vmatprep.subr.bf16.mxu0 %v2665
        %8055 = vmatpush1.bf16.msra.mxu0 %v2664
        %8056 = vmatprep.subr.bf16.mxu0 %v2681
        %8057 = vmatpush1.bf16.msra.mxu0 %v2680
        %8058 = vmatprep.subr.bf16.mxu0 %v2697
        %8059 = vmatpush1.bf16.msra.mxu0 %v2696
        %8060 = vmatprep.subr.bf16.mxu0 %v2713
        %8061 = vmatpush1.bf16.msra.mxu0 %v2712
        %8062 = vmatprep.subr.bf16.mxu0 %v2729
        %8063 = vmatpush1.bf16.msra.mxu0 %v2728
        %8064 = vmatprep.subr.bf16.mxu0 %v2745
        %8065 = vmatpush1.bf16.msra.mxu0 %v2744
        %8066 = vmatprep.subr.bf16.mxu0 %v2761
        %8067 = vmatpush1.bf16.msra.mxu0 %v2760
        %8068 = vmatprep.subr.bf16.mxu0 %v2777
        %8069 = vmatpush1.bf16.msra.mxu0 %v2776
        %8070 = vmatprep.subr.bf16.mxu0 %v2793
        %8071 = vmatpush1.bf16.msra.mxu0 %v2792
        %8072 = vmatprep.subr.bf16.mxu0 %v2809
        %8073 = vmatpush1.bf16.msra.mxu0 %v2808
        %8074 = vmatprep.subr.bf16.mxu0 %v2825
        %8075 = vmatpush1.bf16.msra.mxu0 %v2824
        %8076 = vmatprep.mubr.bf16.mxu0 %v7428
        %8077 = vmatmul.mubr.bf16.gmra.mrb[0].mxu0 %v7427
        %v8078 = vpop.f32.mrb[0].mxu0
        %v8079 = vadd.f32 %v8038, %v8078
        %v8080 = vpop.f32.mrb[0].mxu0
        %v8081 = vadd.f32 %v8040, %v8080
        %v8082 = vpop.f32.mrb[0].mxu0
        %v8083 = vpop.f32.mrb[0].mxu0
        %8084 = vdwg.mxu0
        %v8085 = vadd.f32 %v7409, %v7505
        %v8086 = vadd.f32 %v7410, %v7507
        %v8087 = vadd.f32 %v7411, %v7587
        %v8088 = vadd.f32 %v7412, %v7589
        %v8089 = vadd.f32 %v7413, %v7669
        %v8090 = vadd.f32 %v7414, %v7671
        %v8091 = vadd.f32 %v7415, %v7751
        %v8092 = vadd.f32 %v7416, %v7753
        %v8093 = vadd.f32 %v7417, %v7833
        %v8094 = vadd.f32 %v7418, %v7835
        %v8095 = vadd.f32 %v7419, %v7915
        %v8096 = vadd.f32 %v7420, %v7917
        %v8097 = vadd.f32 %v7421, %v7997
        %v8098 = vadd.f32 %v7422, %v7999
        %v8099 = vadd.f32 %v7423, %v8079
        %v8100 = vadd.f32 %v7424, %v8081
        %v8101 = vxor.u32 %v8085, 2147483648
        %v8102 = vxor.u32 %v8086, 2147483648
        %v8103 = vxor.u32 %v8087, 2147483648
        %v8104 = vxor.u32 %v8088, 2147483648
        %v8105 = vmul.f32 %v8101, 1.442695
        %v8106 = vpow.pop %v8105
        %v8107 = vmul.f32 %v8102, 1.442695
        %v8108 = vpow.pop %v8107
        %v8109 = vmul.f32 %v8103, 1.442695
        %v8110 = vpow.pop %v8109
        %v8111 = vmul.f32 %v8104, 1.442695
        %v8112 = vpow.pop %v8111
        %v8113 = vadd.f32 %v8106, 1.0
        %v8114 = vadd.f32 %v8108, 1.0
        %v8115 = vadd.f32 %v8110, 1.0
        %v8116 = vadd.f32 %v8112, 1.0
        %v8117 = vrcp.pop %v8113
        %v8118 = vmul.f32 1.0, %v8117
        %v8119 = vrcp.pop %v8114
        %v8120 = vmul.f32 1.0, %v8119
        %v8121 = vrcp.pop %v8115
        %v8122 = vmul.f32 1.0, %v8121
        %v8123 = vrcp.pop %v8116
        %v8124 = vmul.f32 1.0, %v8123
        %v8125 = vxor.u32 %v8089, 2147483648
        %v8126 = vxor.u32 %v8090, 2147483648
        %v8127 = vxor.u32 %v8091, 2147483648
        %v8128 = vxor.u32 %v8092, 2147483648
        %v8129 = vmul.f32 %v8125, 1.442695
        %v8130 = vpow.pop %v8129
        %v8131 = vmul.f32 %v8126, 1.442695
        %v8132 = vpow.pop %v8131
        %v8133 = vmul.f32 %v8127, 1.442695
        %v8134 = vpow.pop %v8133
        %v8135 = vmul.f32 %v8128, 1.442695
        %v8136 = vpow.pop %v8135
        %v8137 = vadd.f32 %v8130, 1.0
        %v8138 = vadd.f32 %v8132, 1.0
        %v8139 = vadd.f32 %v8134, 1.0
        %v8140 = vadd.f32 %v8136, 1.0
        %v8141 = vrcp.pop %v8137
        %v8142 = vmul.f32 1.0, %v8141
        %v8143 = vrcp.pop %v8138
        %v8144 = vmul.f32 1.0, %v8143
        %v8145 = vrcp.pop %v8139
        %v8146 = vmul.f32 1.0, %v8145
        %v8147 = vrcp.pop %v8140
        %v8148 = vmul.f32 1.0, %v8147
        %v8149 = vtanh.pop %v8093
        %v8150 = vtanh.pop %v8094
        %v8151 = vtanh.pop %v8095
        %v8152 = vtanh.pop %v8096
        %v8153 = vxor.u32 %v8097, 2147483648
        %v8154 = vxor.u32 %v8098, 2147483648
        %v8155 = vxor.u32 %v8099, 2147483648
        %v8156 = vxor.u32 %v8100, 2147483648
        %v8157 = vmul.f32 %v8153, 1.442695
        %v8158 = vpow.pop %v8157
        %v8159 = vmul.f32 %v8154, 1.442695
        %v8160 = vpow.pop %v8159
        %v8161 = vmul.f32 %v8155, 1.442695
        %v8162 = vpow.pop %v8161
        %v8163 = vmul.f32 %v8156, 1.442695
        %v8164 = vpow.pop %v8163
        %v8165 = vadd.f32 %v8158, 1.0
        %v8166 = vadd.f32 %v8160, 1.0
        %v8167 = vadd.f32 %v8162, 1.0
        %v8168 = vadd.f32 %v8164, 1.0
        %v8169 = vrcp.pop %v8165
        %v8170 = vmul.f32 1.0, %v8169
        %v8171 = vrcp.pop %v8166
        %v8172 = vmul.f32 1.0, %v8171
        %v8173 = vrcp.pop %v8167
        %v8174 = vmul.f32 1.0, %v8173
        %v8175 = vrcp.pop %v8168
        %v8176 = vmul.f32 1.0, %v8175
        %v8177 = vmul.f32 %v8142, %v7392
        %v8178 = vmul.f32 %v8144, %v7393
        %v8179 = vmul.f32 %v8146, %v7394
        %v8180 = vmul.f32 %v8148, %v7395
        %v8181 = vmul.f32 %v8118, %v8149
        %v8182 = vmul.f32 %v8120, %v8150
        %v8183 = vmul.f32 %v8122, %v8151
        %v8184 = vmul.f32 %v8124, %v8152
        %v8185 = vadd.f32 %v8177, %v8181
        %v8186 = vadd.f32 %v8178, %v8182
        %v8187 = vadd.f32 %v8179, %v8183
        %v8188 = vadd.f32 %v8180, %v8184
        %v8189 = vtanh.pop %v8185
        %v8190 = vtanh.pop %v8186
        %v8191 = vtanh.pop %v8187
        %v8192 = vtanh.pop %v8188
        %v8193 = vmul.f32 %v8170, %v8189
        %v8194 = vmul.f32 %v8172, %v8190
        %v8195 = vmul.f32 %v8174, %v8191
        %v8196 = vmul.f32 %v8176, %v8192
        %s8197 = scalar_lea.vmem %s248, 40
        %v8198 = vld [vmem:[%s8197] sm:$0xff]
        %v8199 = vsub.f32 %v8185, %v7392
        %v8200 = vsub.f32 %v8186, %v7393
        %v8201 = vsub.f32 %v8187, %v7394
        %v8202 = vsub.f32 %v8188, %v7395
        %8204 = vset.pattern.permute.xlu0 0
        %8205 = vperm.xlu0 %8204, %v8198
        %v8206 = vpop.permute.xlu0 %8205
        %v8208 = vmul.f32 %v8206, %v8199
        %v8209 = vmul.f32 %v8206, %v8200
        %v8210 = vmul.f32 %v8206, %v8201
        %v8211 = vmul.f32 %v8206, %v8202
        %v8212 = vadd.f32 %v7392, %v8208
        %v8213 = vadd.f32 %v7393, %v8209
        %v8214 = vadd.f32 %v7394, %v8210
        %v8215 = vadd.f32 %v7395, %v8211
        %v8216 = vsub.f32 %v8193, %v7404
        %v8217 = vsub.f32 %v8194, %v7405
        %v8218 = vsub.f32 %v8195, %v7406
        %v8219 = vsub.f32 %v8196, %v7407
        %v8220 = vmul.f32 %v8206, %v8216
        %v8221 = vmul.f32 %v8206, %v8217
        %v8222 = vmul.f32 %v8206, %v8218
        %v8223 = vmul.f32 %v8206, %v8219
        %v8224 = vadd.f32 %v7404, %v8220
        %v8225 = vadd.f32 %v7405, %v8221
        %v8226 = vadd.f32 %v7406, %v8222
        %v8227 = vadd.f32 %v7407, %v8223
        %s8228 = scalar_lea.vmem %s202, 768 [#allocation2]
        %v8229 = vld [vmem:[%s8228] sm:$0xff]
        %v8230 = vld [vmem:[%s8228 + $0x8] sm:$0xff]
        %v8231 = vld [vmem:[%s8228 + $0x10] sm:$0xff]
        %v8232 = vld [vmem:[%s8228 + $0x18] sm:$0xff]
        %v8233 = vld [vmem:[%s8228 + $0x20] sm:$0xff]
        %v8234 = vld [vmem:[%s8228 + $0x28] sm:$0xff]
        %v8235 = vld [vmem:[%s8228 + $0x30] sm:$0xff]
        %v8236 = vld [vmem:[%s8228 + $0x38] sm:$0xff]
        %v8237 = vld [vmem:[%s8228 + $0x40] sm:$0xff]
        %v8238 = vld [vmem:[%s8228 + $0x48] sm:$0xff]
        %v8239 = vld [vmem:[%s8228 + $0x50] sm:$0xff]
        %v8240 = vld [vmem:[%s8228 + $0x58] sm:$0xff]
        %v8241 = vld [vmem:[%s8228 + $0x60] sm:$0xff]
        %v8242 = vld [vmem:[%s8228 + $0x68] sm:$0xff]
        %v8243 = vld [vmem:[%s8228 + $0x70] sm:$0xff]
        %v8244 = vld [vmem:[%s8228 + $0x78] sm:$0xff]
        %v8245 = vpack.c.bf16 %v8224, %v8224
        %v8246 = vpack.c.bf16 %v8225, %v8225
        %v8247 = vpack.c.bf16 %v8226, %v8226
        %v8248 = vpack.c.bf16 %v8227, %v8227
        %8249 = vmatprep.subr.bf16.mxu0 %v2315
        %8250 = vmatpush1.bf16.msra.mxu0 %v2314
        %8251 = vmatprep.subr.bf16.mxu0 %v2331
        %8252 = vmatpush1.bf16.msra.mxu0 %v2330
        %8253 = vmatprep.subr.bf16.mxu0 %v2347
        %8254 = vmatpush1.bf16.msra.mxu0 %v2346
        %8255 = vmatprep.subr.bf16.mxu0 %v2363
        %8256 = vmatpush1.bf16.msra.mxu0 %v2362
        %8257 = vmatprep.subr.bf16.mxu0 %v2379
        %8258 = vmatpush1.bf16.msra.mxu0 %v2378
        %8259 = vmatprep.subr.bf16.mxu0 %v2395
        %8260 = vmatpush1.bf16.msra.mxu0 %v2394
        %8261 = vmatprep.subr.bf16.mxu0 %v2411
        %8262 = vmatpush1.bf16.msra.mxu0 %v2410
        %8263 = vmatprep.subr.bf16.mxu0 %v2427
        %8264 = vmatpush1.bf16.msra.mxu0 %v2426
        %8265 = vmatprep.subr.bf16.mxu0 %v2443
        %8266 = vmatpush1.bf16.msra.mxu0 %v2442
        %8267 = vmatprep.subr.bf16.mxu0 %v2459
        %8268 = vmatpush1.bf16.msra.mxu0 %v2458
        %8269 = vmatprep.subr.bf16.mxu0 %v2475
        %8270 = vmatpush1.bf16.msra.mxu0 %v2474
        %8271 = vmatprep.subr.bf16.mxu0 %v2491
        %8272 = vmatpush1.bf16.msra.mxu0 %v2490
        %8273 = vmatprep.subr.bf16.mxu0 %v2507
        %8274 = vmatpush1.bf16.msra.mxu0 %v2506
        %8275 = vmatprep.subr.bf16.mxu0 %v2523
        %8276 = vmatpush1.bf16.msra.mxu0 %v2522
        %8277 = vmatprep.subr.bf16.mxu0 %v2539
        %8278 = vmatpush1.bf16.msra.mxu0 %v2538
        %8279 = vmatprep.subr.bf16.mxu0 %v2555
        %8280 = vmatpush1.bf16.msra.mxu0 %v2554
        %8281 = vmatprep.mubr.bf16.mxu0 %v8246
        %8282 = vmatmul.mubr.bf16.gmra.mrb[0].mxu0 %v8245
        %v8283 = vpop.f32.mrb[0].mxu0
        %v8284 = vadd.f32 0.0, %v8283
        %v8285 = vpop.f32.mrb[0].mxu0
        %v8286 = vadd.f32 0.0, %v8285
        %v8287 = vpop.f32.mrb[0].mxu0
        %v8288 = vpop.f32.mrb[0].mxu0
        %8289 = vdwg.mxu0
        %8290 = vmatprep.subr.bf16.mxu0 %v2571
        %8291 = vmatpush1.bf16.msra.mxu0 %v2570
        %8292 = vmatprep.subr.bf16.mxu0 %v2587
        %8293 = vmatpush1.bf16.msra.mxu0 %v2586
        %8294 = vmatprep.subr.bf16.mxu0 %v2603
        %8295 = vmatpush1.bf16.msra.mxu0 %v2602
        %8296 = vmatprep.subr.bf16.mxu0 %v2619
        %8297 = vmatpush1.bf16.msra.mxu0 %v2618
        %8298 = vmatprep.subr.bf16.mxu0 %v2635
        %8299 = vmatpush1.bf16.msra.mxu0 %v2634
        %8300 = vmatprep.subr.bf16.mxu0 %v2651
        %8301 = vmatpush1.bf16.msra.mxu0 %v2650
        %8302 = vmatprep.subr.bf16.mxu0 %v2667
        %8303 = vmatpush1.bf16.msra.mxu0 %v2666
        %8304 = vmatprep.subr.bf16.mxu0 %v2683
        %8305 = vmatpush1.bf16.msra.mxu0 %v2682
        %8306 = vmatprep.subr.bf16.mxu0 %v2699
        %8307 = vmatpush1.bf16.msra.mxu0 %v2698
        %8308 = vmatprep.subr.bf16.mxu0 %v2715
        %8309 = vmatpush1.bf16.msra.mxu0 %v2714
        %8310 = vmatprep.subr.bf16.mxu0 %v2731
        %8311 = vmatpush1.bf16.msra.mxu0 %v2730
        %8312 = vmatprep.subr.bf16.mxu0 %v2747
        %8313 = vmatpush1.bf16.msra.mxu0 %v2746
        %8314 = vmatprep.subr.bf16.mxu0 %v2763
        %8315 = vmatpush1.bf16.msra.mxu0 %v2762
        %8316 = vmatprep.subr.bf16.mxu0 %v2779
        %8317 = vmatpush1.bf16.msra.mxu0 %v2778
        %8318 = vmatprep.subr.bf16.mxu0 %v2795
        %8319 = vmatpush1.bf16.msra.mxu0 %v2794
        %8320 = vmatprep.subr.bf16.mxu0 %v2811
        %8321 = vmatpush1.bf16.msra.mxu0 %v2810
        %8322 = vmatprep.mubr.bf16.mxu0 %v8248
        %8323 = vmatmul.mubr.bf16.gmra.mrb[0].mxu0 %v8247
        %v8324 = vpop.f32.mrb[0].mxu0
        %v8325 = vadd.f32 %v8284, %v8324
        %v8326 = vpop.f32.mrb[0].mxu0
        %v8327 = vadd.f32 %v8286, %v8326
        %v8328 = vpop.f32.mrb[0].mxu0
        %v8329 = vpop.f32.mrb[0].mxu0
        %8330 = vdwg.mxu0
        %8331 = vmatprep.subr.bf16.mxu0 %v2317
        %8332 = vmatpush1.bf16.msra.mxu0 %v2316
        %8333 = vmatprep.subr.bf16.mxu0 %v2333
        %8334 = vmatpush1.bf16.msra.mxu0 %v2332
        %8335 = vmatprep.subr.bf16.mxu0 %v2349
        %8336 = vmatpush1.bf16.msra.mxu0 %v2348
        %8337 = vmatprep.subr.bf16.mxu0 %v2365
        %8338 = vmatpush1.bf16.msra.mxu0 %v2364
        %8339 = vmatprep.subr.bf16.mxu0 %v2381
        %8340 = vmatpush1.bf16.msra.mxu0 %v2380
        %8341 = vmatprep.subr.bf16.mxu0 %v2397
        %8342 = vmatpush1.bf16.msra.mxu0 %v2396
        %8343 = vmatprep.subr.bf16.mxu0 %v2413
        %8344 = vmatpush1.bf16.msra.mxu0 %v2412
        %8345 = vmatprep.subr.bf16.mxu0 %v2429
        %8346 = vmatpush1.bf16.msra.mxu0 %v2428
        %8347 = vmatprep.subr.bf16.mxu0 %v2445
        %8348 = vmatpush1.bf16.msra.mxu0 %v2444
        %8349 = vmatprep.subr.bf16.mxu0 %v2461
        %8350 = vmatpush1.bf16.msra.mxu0 %v2460
        %8351 = vmatprep.subr.bf16.mxu0 %v2477
        %8352 = vmatpush1.bf16.msra.mxu0 %v2476
        %8353 = vmatprep.subr.bf16.mxu0 %v2493
        %8354 = vmatpush1.bf16.msra.mxu0 %v2492
        %8355 = vmatprep.subr.bf16.mxu0 %v2509
        %8356 = vmatpush1.bf16.msra.mxu0 %v2508
        %8357 = vmatprep.subr.bf16.mxu0 %v2525
        %8358 = vmatpush1.bf16.msra.mxu0 %v2524
        %8359 = vmatprep.subr.bf16.mxu0 %v2541
        %8360 = vmatpush1.bf16.msra.mxu0 %v2540
        %8361 = vmatprep.subr.bf16.mxu0 %v2557
        %8362 = vmatpush1.bf16.msra.mxu0 %v2556
        %8363 = vmatprep.mubr.bf16.mxu0 %v8246
        %8364 = vmatmul.mubr.bf16.gmra.mrb[0].mxu0 %v8245
        %v8365 = vpop.f32.mrb[0].mxu0
        %v8366 = vadd.f32 0.0, %v8365
        %v8367 = vpop.f32.mrb[0].mxu0
        %v8368 = vadd.f32 0.0, %v8367
        %v8369 = vpop.f32.mrb[0].mxu0
        %v8370 = vpop.f32.mrb[0].mxu0
        %8371 = vdwg.mxu0
        %8372 = vmatprep.subr.bf16.mxu0 %v2573
        %8373 = vmatpush1.bf16.msra.mxu0 %v2572
        %8374 = vmatprep.subr.bf16.mxu0 %v2589
        %8375 = vmatpush1.bf16.msra.mxu0 %v2588
        %8376 = vmatprep.subr.bf16.mxu0 %v2605
        %8377 = vmatpush1.bf16.msra.mxu0 %v2604
        %8378 = vmatprep.subr.bf16.mxu0 %v2621
        %8379 = vmatpush1.bf16.msra.mxu0 %v2620
        %8380 = vmatprep.subr.bf16.mxu0 %v2637
        %8381 = vmatpush1.bf16.msra.mxu0 %v2636
        %8382 = vmatprep.subr.bf16.mxu0 %v2653
        %8383 = vmatpush1.bf16.msra.mxu0 %v2652
        %8384 = vmatprep.subr.bf16.mxu0 %v2669
        %8385 = vmatpush1.bf16.msra.mxu0 %v2668
        %8386 = vmatprep.subr.bf16.mxu0 %v2685
        %8387 = vmatpush1.bf16.msra.mxu0 %v2684
        %8388 = vmatprep.subr.bf16.mxu0 %v2701
        %8389 = vmatpush1.bf16.msra.mxu0 %v2700
        %8390 = vmatprep.subr.bf16.mxu0 %v2717
        %8391 = vmatpush1.bf16.msra.mxu0 %v2716
        %8392 = vmatprep.subr.bf16.mxu0 %v2733
        %8393 = vmatpush1.bf16.msra.mxu0 %v2732
        %8394 = vmatprep.subr.bf16.mxu0 %v2749
        %8395 = vmatpush1.bf16.msra.mxu0 %v2748
        %8396 = vmatprep.subr.bf16.mxu0 %v2765
        %8397 = vmatpush1.bf16.msra.mxu0 %v2764
        %8398 = vmatprep.subr.bf16.mxu0 %v2781
        %8399 = vmatpush1.bf16.msra.mxu0 %v2780
        %8400 = vmatprep.subr.bf16.mxu0 %v2797
        %8401 = vmatpush1.bf16.msra.mxu0 %v2796
        %8402 = vmatprep.subr.bf16.mxu0 %v2813
        %8403 = vmatpush1.bf16.msra.mxu0 %v2812
        %8404 = vmatprep.mubr.bf16.mxu0 %v8248
        %8405 = vmatmul.mubr.bf16.gmra.mrb[0].mxu0 %v8247
        %v8406 = vpop.f32.mrb[0].mxu0
        %v8407 = vadd.f32 %v8366, %v8406
        %v8408 = vpop.f32.mrb[0].mxu0
        %v8409 = vadd.f32 %v8368, %v8408
        %v8410 = vpop.f32.mrb[0].mxu0
        %v8411 = vpop.f32.mrb[0].mxu0
        %8412 = vdwg.mxu0
        %8413 = vmatprep.subr.bf16.mxu0 %v2319
        %8414 = vmatpush1.bf16.msra.mxu0 %v2318
        %8415 = vmatprep.subr.bf16.mxu0 %v2335
        %8416 = vmatpush1.bf16.msra.mxu0 %v2334
        %8417 = vmatprep.subr.bf16.mxu0 %v2351
        %8418 = vmatpush1.bf16.msra.mxu0 %v2350
        %8419 = vmatprep.subr.bf16.mxu0 %v2367
        %8420 = vmatpush1.bf16.msra.mxu0 %v2366
        %8421 = vmatprep.subr.bf16.mxu0 %v2383
        %8422 = vmatpush1.bf16.msra.mxu0 %v2382
        %8423 = vmatprep.subr.bf16.mxu0 %v2399
        %8424 = vmatpush1.bf16.msra.mxu0 %v2398
        %8425 = vmatprep.subr.bf16.mxu0 %v2415
        %8426 = vmatpush1.bf16.msra.mxu0 %v2414
        %8427 = vmatprep.subr.bf16.mxu0 %v2431
        %8428 = vmatpush1.bf16.msra.mxu0 %v2430
        %8429 = vmatprep.subr.bf16.mxu0 %v2447
        %8430 = vmatpush1.bf16.msra.mxu0 %v2446
        %8431 = vmatprep.subr.bf16.mxu0 %v2463
        %8432 = vmatpush1.bf16.msra.mxu0 %v2462
        %8433 = vmatprep.subr.bf16.mxu0 %v2479
        %8434 = vmatpush1.bf16.msra.mxu0 %v2478
        %8435 = vmatprep.subr.bf16.mxu0 %v2495
        %8436 = vmatpush1.bf16.msra.mxu0 %v2494
        %8437 = vmatprep.subr.bf16.mxu0 %v2511
        %8438 = vmatpush1.bf16.msra.mxu0 %v2510
        %8439 = vmatprep.subr.bf16.mxu0 %v2527
        %8440 = vmatpush1.bf16.msra.mxu0 %v2526
        %8441 = vmatprep.subr.bf16.mxu0 %v2543
        %8442 = vmatpush1.bf16.msra.mxu0 %v2542
        %8443 = vmatprep.subr.bf16.mxu0 %v2559
        %8444 = vmatpush1.bf16.msra.mxu0 %v2558
        %8445 = vmatprep.mubr.bf16.mxu0 %v8246
        %8446 = vmatmul.mubr.bf16.gmra.mrb[0].mxu0 %v8245
        %v8447 = vpop.f32.mrb[0].mxu0
        %v8448 = vadd.f32 0.0, %v8447
        %v8449 = vpop.f32.mrb[0].mxu0
        %v8450 = vadd.f32 0.0, %v8449
        %v8451 = vpop.f32.mrb[0].mxu0
        %v8452 = vpop.f32.mrb[0].mxu0
        %8453 = vdwg.mxu0
        %8454 = vmatprep.subr.bf16.mxu0 %v2575
        %8455 = vmatpush1.bf16.msra.mxu0 %v2574
        %8456 = vmatprep.subr.bf16.mxu0 %v2591
        %8457 = vmatpush1.bf16.msra.mxu0 %v2590
        %8458 = vmatprep.subr.bf16.mxu0 %v2607
        %8459 = vmatpush1.bf16.msra.mxu0 %v2606
        %8460 = vmatprep.subr.bf16.mxu0 %v2623
        %8461 = vmatpush1.bf16.msra.mxu0 %v2622
        %8462 = vmatprep.subr.bf16.mxu0 %v2639
        %8463 = vmatpush1.bf16.msra.mxu0 %v2638
        %8464 = vmatprep.subr.bf16.mxu0 %v2655
        %8465 = vmatpush1.bf16.msra.mxu0 %v2654
        %8466 = vmatprep.subr.bf16.mxu0 %v2671
        %8467 = vmatpush1.bf16.msra.mxu0 %v2670
        %8468 = vmatprep.subr.bf16.mxu0 %v2687
        %8469 = vmatpush1.bf16.msra.mxu0 %v2686
        %8470 = vmatprep.subr.bf16.mxu0 %v2703
        %8471 = vmatpush1.bf16.msra.mxu0 %v2702
        %8472 = vmatprep.subr.bf16.mxu0 %v2719
        %8473 = vmatpush1.bf16.msra.mxu0 %v2718
        %8474 = vmatprep.subr.bf16.mxu0 %v2735
        %8475 = vmatpush1.bf16.msra.mxu0 %v2734
        %8476 = vmatprep.subr.bf16.mxu0 %v2751
        %8477 = vmatpush1.bf16.msra.mxu0 %v2750
        %8478 = vmatprep.subr.bf16.mxu0 %v2767
        %8479 = vmatpush1.bf16.msra.mxu0 %v2766
        %8480 = vmatprep.subr.bf16.mxu0 %v2783
        %8481 = vmatpush1.bf16.msra.mxu0 %v2782
        %8482 = vmatprep.subr.bf16.mxu0 %v2799
        %8483 = vmatpush1.bf16.msra.mxu0 %v2798
        %8484 = vmatprep.subr.bf16.mxu0 %v2815
        %8485 = vmatpush1.bf16.msra.mxu0 %v2814
        %8486 = vmatprep.mubr.bf16.mxu0 %v8248
        %8487 = vmatmul.mubr.bf16.gmra.mrb[0].mxu0 %v8247
        %v8488 = vpop.f32.mrb[0].mxu0
        %v8489 = vadd.f32 %v8448, %v8488
        %v8490 = vpop.f32.mrb[0].mxu0
        %v8491 = vadd.f32 %v8450, %v8490
        %v8492 = vpop.f32.mrb[0].mxu0
        %v8493 = vpop.f32.mrb[0].mxu0
        %8494 = vdwg.mxu0
        %8495 = vmatprep.subr.bf16.mxu0 %v2321
        %8496 = vmatpush1.bf16.msra.mxu0 %v2320
        %8497 = vmatprep.subr.bf16.mxu0 %v2337
        %8498 = vmatpush1.bf16.msra.mxu0 %v2336
        %8499 = vmatprep.subr.bf16.mxu0 %v2353
        %8500 = vmatpush1.bf16.msra.mxu0 %v2352
        %8501 = vmatprep.subr.bf16.mxu0 %v2369
        %8502 = vmatpush1.bf16.msra.mxu0 %v2368
        %8503 = vmatprep.subr.bf16.mxu0 %v2385
        %8504 = vmatpush1.bf16.msra.mxu0 %v2384
        %8505 = vmatprep.subr.bf16.mxu0 %v2401
        %8506 = vmatpush1.bf16.msra.mxu0 %v2400
        %8507 = vmatprep.subr.bf16.mxu0 %v2417
        %8508 = vmatpush1.bf16.msra.mxu0 %v2416
        %8509 = vmatprep.subr.bf16.mxu0 %v2433
        %8510 = vmatpush1.bf16.msra.mxu0 %v2432
        %8511 = vmatprep.subr.bf16.mxu0 %v2449
        %8512 = vmatpush1.bf16.msra.mxu0 %v2448
        %8513 = vmatprep.subr.bf16.mxu0 %v2465
        %8514 = vmatpush1.bf16.msra.mxu0 %v2464
        %8515 = vmatprep.subr.bf16.mxu0 %v2481
        %8516 = vmatpush1.bf16.msra.mxu0 %v2480
        %8517 = vmatprep.subr.bf16.mxu0 %v2497
        %8518 = vmatpush1.bf16.msra.mxu0 %v2496
        %8519 = vmatprep.subr.bf16.mxu0 %v2513
        %8520 = vmatpush1.bf16.msra.mxu0 %v2512
        %8521 = vmatprep.subr.bf16.mxu0 %v2529
        %8522 = vmatpush1.bf16.msra.mxu0 %v2528
        %8523 = vmatprep.subr.bf16.mxu0 %v2545
        %8524 = vmatpush1.bf16.msra.mxu0 %v2544
        %8525 = vmatprep.subr.bf16.mxu0 %v2561
        %8526 = vmatpush1.bf16.msra.mxu0 %v2560
        %8527 = vmatprep.mubr.bf16.mxu0 %v8246
        %8528 = vmatmul.mubr.bf16.gmra.mrb[0].mxu0 %v8245
        %v8529 = vpop.f32.mrb[0].mxu0
        %v8530 = vadd.f32 0.0, %v8529
        %v8531 = vpop.f32.mrb[0].mxu0
        %v8532 = vadd.f32 0.0, %v8531
        %v8533 = vpop.f32.mrb[0].mxu0
        %v8534 = vpop.f32.mrb[0].mxu0
        %8535 = vdwg.mxu0
        %8536 = vmatprep.subr.bf16.mxu0 %v2577
        %8537 = vmatpush1.bf16.msra.mxu0 %v2576
        %8538 = vmatprep.subr.bf16.mxu0 %v2593
        %8539 = vmatpush1.bf16.msra.mxu0 %v2592
        %8540 = vmatprep.subr.bf16.mxu0 %v2609
        %8541 = vmatpush1.bf16.msra.mxu0 %v2608
        %8542 = vmatprep.subr.bf16.mxu0 %v2625
        %8543 = vmatpush1.bf16.msra.mxu0 %v2624
        %8544 = vmatprep.subr.bf16.mxu0 %v2641
        %8545 = vmatpush1.bf16.msra.mxu0 %v2640
        %8546 = vmatprep.subr.bf16.mxu0 %v2657
        %8547 = vmatpush1.bf16.msra.mxu0 %v2656
        %8548 = vmatprep.subr.bf16.mxu0 %v2673
        %8549 = vmatpush1.bf16.msra.mxu0 %v2672
        %8550 = vmatprep.subr.bf16.mxu0 %v2689
        %8551 = vmatpush1.bf16.msra.mxu0 %v2688
        %8552 = vmatprep.subr.bf16.mxu0 %v2705
        %8553 = vmatpush1.bf16.msra.mxu0 %v2704
        %8554 = vmatprep.subr.bf16.mxu0 %v2721
        %8555 = vmatpush1.bf16.msra.mxu0 %v2720
        %8556 = vmatprep.subr.bf16.mxu0 %v2737
        %8557 = vmatpush1.bf16.msra.mxu0 %v2736
        %8558 = vmatprep.subr.bf16.mxu0 %v2753
        %8559 = vmatpush1.bf16.msra.mxu0 %v2752
        %8560 = vmatprep.subr.bf16.mxu0 %v2769
        %8561 = vmatpush1.bf16.msra.mxu0 %v2768
        %8562 = vmatprep.subr.bf16.mxu0 %v2785
        %8563 = vmatpush1.bf16.msra.mxu0 %v2784
        %8564 = vmatprep.subr.bf16.mxu0 %v2801
        %8565 = vmatpush1.bf16.msra.mxu0 %v2800
        %8566 = vmatprep.subr.bf16.mxu0 %v2817
        %8567 = vmatpush1.bf16.msra.mxu0 %v2816
        %8568 = vmatprep.mubr.bf16.mxu0 %v8248
        %8569 = vmatmul.mubr.bf16.gmra.mrb[0].mxu0 %v8247
        %v8570 = vpop.f32.mrb[0].mxu0
        %v8571 = vadd.f32 %v8530, %v8570
        %v8572 = vpop.f32.mrb[0].mxu0
        %v8573 = vadd.f32 %v8532, %v8572
        %v8574 = vpop.f32.mrb[0].mxu0
        %v8575 = vpop.f32.mrb[0].mxu0
        %8576 = vdwg.mxu0
        %8577 = vmatprep.subr.bf16.mxu0 %v2323
        %8578 = vmatpush1.bf16.msra.mxu0 %v2322
        %8579 = vmatprep.subr.bf16.mxu0 %v2339
        %8580 = vmatpush1.bf16.msra.mxu0 %v2338
        %8581 = vmatprep.subr.bf16.mxu0 %v2355
        %8582 = vmatpush1.bf16.msra.mxu0 %v2354
        %8583 = vmatprep.subr.bf16.mxu0 %v2371
        %8584 = vmatpush1.bf16.msra.mxu0 %v2370
        %8585 = vmatprep.subr.bf16.mxu0 %v2387
        %8586 = vmatpush1.bf16.msra.mxu0 %v2386
        %8587 = vmatprep.subr.bf16.mxu0 %v2403
        %8588 = vmatpush1.bf16.msra.mxu0 %v2402
        %8589 = vmatprep.subr.bf16.mxu0 %v2419
        %8590 = vmatpush1.bf16.msra.mxu0 %v2418
        %8591 = vmatprep.subr.bf16.mxu0 %v2435
        %8592 = vmatpush1.bf16.msra.mxu0 %v2434
        %8593 = vmatprep.subr.bf16.mxu0 %v2451
        %8594 = vmatpush1.bf16.msra.mxu0 %v2450
        %8595 = vmatprep.subr.bf16.mxu0 %v2467
        %8596 = vmatpush1.bf16.msra.mxu0 %v2466
        %8597 = vmatprep.subr.bf16.mxu0 %v2483
        %8598 = vmatpush1.bf16.msra.mxu0 %v2482
        %8599 = vmatprep.subr.bf16.mxu0 %v2499
        %8600 = vmatpush1.bf16.msra.mxu0 %v2498
        %8601 = vmatprep.subr.bf16.mxu0 %v2515
        %8602 = vmatpush1.bf16.msra.mxu0 %v2514
        %8603 = vmatprep.subr.bf16.mxu0 %v2531
        %8604 = vmatpush1.bf16.msra.mxu0 %v2530
        %8605 = vmatprep.subr.bf16.mxu0 %v2547
        %8606 = vmatpush1.bf16.msra.mxu0 %v2546
        %8607 = vmatprep.subr.bf16.mxu0 %v2563
        %8608 = vmatpush1.bf16.msra.mxu0 %v2562
        %8609 = vmatprep.mubr.bf16.mxu0 %v8246
        %8610 = vmatmul.mubr.bf16.gmra.mrb[0].mxu0 %v8245
        %v8611 = vpop.f32.mrb[0].mxu0
        %v8612 = vadd.f32 0.0, %v8611
        %v8613 = vpop.f32.mrb[0].mxu0
        %v8614 = vadd.f32 0.0, %v8613
        %v8615 = vpop.f32.mrb[0].mxu0
        %v8616 = vpop.f32.mrb[0].mxu0
        %8617 = vdwg.mxu0
        %8618 = vmatprep.subr.bf16.mxu0 %v2579
        %8619 = vmatpush1.bf16.msra.mxu0 %v2578
        %8620 = vmatprep.subr.bf16.mxu0 %v2595
        %8621 = vmatpush1.bf16.msra.mxu0 %v2594
        %8622 = vmatprep.subr.bf16.mxu0 %v2611
        %8623 = vmatpush1.bf16.msra.mxu0 %v2610
        %8624 = vmatprep.subr.bf16.mxu0 %v2627
        %8625 = vmatpush1.bf16.msra.mxu0 %v2626
        %8626 = vmatprep.subr.bf16.mxu0 %v2643
        %8627 = vmatpush1.bf16.msra.mxu0 %v2642
        %8628 = vmatprep.subr.bf16.mxu0 %v2659
        %8629 = vmatpush1.bf16.msra.mxu0 %v2658
        %8630 = vmatprep.subr.bf16.mxu0 %v2675
        %8631 = vmatpush1.bf16.msra.mxu0 %v2674
        %8632 = vmatprep.subr.bf16.mxu0 %v2691
        %8633 = vmatpush1.bf16.msra.mxu0 %v2690
        %8634 = vmatprep.subr.bf16.mxu0 %v2707
        %8635 = vmatpush1.bf16.msra.mxu0 %v2706
        %8636 = vmatprep.subr.bf16.mxu0 %v2723
        %8637 = vmatpush1.bf16.msra.mxu0 %v2722
        %8638 = vmatprep.subr.bf16.mxu0 %v2739
        %8639 = vmatpush1.bf16.msra.mxu0 %v2738
        %8640 = vmatprep.subr.bf16.mxu0 %v2755
        %8641 = vmatpush1.bf16.msra.mxu0 %v2754
        %8642 = vmatprep.subr.bf16.mxu0 %v2771
        %8643 = vmatpush1.bf16.msra.mxu0 %v2770
        %8644 = vmatprep.subr.bf16.mxu0 %v2787
        %8645 = vmatpush1.bf16.msra.mxu0 %v2786
        %8646 = vmatprep.subr.bf16.mxu0 %v2803
        %8647 = vmatpush1.bf16.msra.mxu0 %v2802
        %8648 = vmatprep.subr.bf16.mxu0 %v2819
        %8649 = vmatpush1.bf16.msra.mxu0 %v2818
        %8650 = vmatprep.mubr.bf16.mxu0 %v8248
        %8651 = vmatmul.mubr.bf16.gmra.mrb[0].mxu0 %v8247
        %v8652 = vpop.f32.mrb[0].mxu0
        %v8653 = vadd.f32 %v8612, %v8652
        %v8654 = vpop.f32.mrb[0].mxu0
        %v8655 = vadd.f32 %v8614, %v8654
        %v8656 = vpop.f32.mrb[0].mxu0
        %v8657 = vpop.f32.mrb[0].mxu0
        %8658 = vdwg.mxu0
        %8659 = vmatprep.subr.bf16.mxu0 %v2325
        %8660 = vmatpush1.bf16.msra.mxu0 %v2324
        %8661 = vmatprep.subr.bf16.mxu0 %v2341
        %8662 = vmatpush1.bf16.msra.mxu0 %v2340
        %8663 = vmatprep.subr.bf16.mxu0 %v2357
        %8664 = vmatpush1.bf16.msra.mxu0 %v2356
        %8665 = vmatprep.subr.bf16.mxu0 %v2373
        %8666 = vmatpush1.bf16.msra.mxu0 %v2372
        %8667 = vmatprep.subr.bf16.mxu0 %v2389
        %8668 = vmatpush1.bf16.msra.mxu0 %v2388
        %8669 = vmatprep.subr.bf16.mxu0 %v2405
        %8670 = vmatpush1.bf16.msra.mxu0 %v2404
        %8671 = vmatprep.subr.bf16.mxu0 %v2421
        %8672 = vmatpush1.bf16.msra.mxu0 %v2420
        %8673 = vmatprep.subr.bf16.mxu0 %v2437
        %8674 = vmatpush1.bf16.msra.mxu0 %v2436
        %8675 = vmatprep.subr.bf16.mxu0 %v2453
        %8676 = vmatpush1.bf16.msra.mxu0 %v2452
        %8677 = vmatprep.subr.bf16.mxu0 %v2469
        %8678 = vmatpush1.bf16.msra.mxu0 %v2468
        %8679 = vmatprep.subr.bf16.mxu0 %v2485
        %8680 = vmatpush1.bf16.msra.mxu0 %v2484
        %8681 = vmatprep.subr.bf16.mxu0 %v2501
        %8682 = vmatpush1.bf16.msra.mxu0 %v2500
        %8683 = vmatprep.subr.bf16.mxu0 %v2517
        %8684 = vmatpush1.bf16.msra.mxu0 %v2516
        %8685 = vmatprep.subr.bf16.mxu0 %v2533
        %8686 = vmatpush1.bf16.msra.mxu0 %v2532
        %8687 = vmatprep.subr.bf16.mxu0 %v2549
        %8688 = vmatpush1.bf16.msra.mxu0 %v2548
        %8689 = vmatprep.subr.bf16.mxu0 %v2565
        %8690 = vmatpush1.bf16.msra.mxu0 %v2564
        %8691 = vmatprep.mubr.bf16.mxu0 %v8246
        %8692 = vmatmul.mubr.bf16.gmra.mrb[0].mxu0 %v8245
        %v8693 = vpop.f32.mrb[0].mxu0
        %v8694 = vadd.f32 0.0, %v8693
        %v8695 = vpop.f32.mrb[0].mxu0
        %v8696 = vadd.f32 0.0, %v8695
        %v8697 = vpop.f32.mrb[0].mxu0
        %v8698 = vpop.f32.mrb[0].mxu0
        %8699 = vdwg.mxu0
        %8700 = vmatprep.subr.bf16.mxu0 %v2581
        %8701 = vmatpush1.bf16.msra.mxu0 %v2580
        %8702 = vmatprep.subr.bf16.mxu0 %v2597
        %8703 = vmatpush1.bf16.msra.mxu0 %v2596
        %8704 = vmatprep.subr.bf16.mxu0 %v2613
        %8705 = vmatpush1.bf16.msra.mxu0 %v2612
        %8706 = vmatprep.subr.bf16.mxu0 %v2629
        %8707 = vmatpush1.bf16.msra.mxu0 %v2628
        %8708 = vmatprep.subr.bf16.mxu0 %v2645
        %8709 = vmatpush1.bf16.msra.mxu0 %v2644
        %8710 = vmatprep.subr.bf16.mxu0 %v2661
        %8711 = vmatpush1.bf16.msra.mxu0 %v2660
        %8712 = vmatprep.subr.bf16.mxu0 %v2677
        %8713 = vmatpush1.bf16.msra.mxu0 %v2676
        %8714 = vmatprep.subr.bf16.mxu0 %v2693
        %8715 = vmatpush1.bf16.msra.mxu0 %v2692
        %8716 = vmatprep.subr.bf16.mxu0 %v2709
        %8717 = vmatpush1.bf16.msra.mxu0 %v2708
        %8718 = vmatprep.subr.bf16.mxu0 %v2725
        %8719 = vmatpush1.bf16.msra.mxu0 %v2724
        %8720 = vmatprep.subr.bf16.mxu0 %v2741
        %8721 = vmatpush1.bf16.msra.mxu0 %v2740
        %8722 = vmatprep.subr.bf16.mxu0 %v2757
        %8723 = vmatpush1.bf16.msra.mxu0 %v2756
        %8724 = vmatprep.subr.bf16.mxu0 %v2773
        %8725 = vmatpush1.bf16.msra.mxu0 %v2772
        %8726 = vmatprep.subr.bf16.mxu0 %v2789
        %8727 = vmatpush1.bf16.msra.mxu0 %v2788
        %8728 = vmatprep.subr.bf16.mxu0 %v2805
        %8729 = vmatpush1.bf16.msra.mxu0 %v2804
        %8730 = vmatprep.subr.bf16.mxu0 %v2821
        %8731 = vmatpush1.bf16.msra.mxu0 %v2820
        %8732 = vmatprep.mubr.bf16.mxu0 %v8248
        %8733 = vmatmul.mubr.bf16.gmra.mrb[0].mxu0 %v8247
        %v8734 = vpop.f32.mrb[0].mxu0
        %v8735 = vadd.f32 %v8694, %v8734
        %v8736 = vpop.f32.mrb[0].mxu0
        %v8737 = vadd.f32 %v8696, %v8736
        %v8738 = vpop.f32.mrb[0].mxu0
        %v8739 = vpop.f32.mrb[0].mxu0
        %8740 = vdwg.mxu0
        %8741 = vmatprep.subr.bf16.mxu0 %v2327
        %8742 = vmatpush1.bf16.msra.mxu0 %v2326
        %8743 = vmatprep.subr.bf16.mxu0 %v2343
        %8744 = vmatpush1.bf16.msra.mxu0 %v2342
        %8745 = vmatprep.subr.bf16.mxu0 %v2359
        %8746 = vmatpush1.bf16.msra.mxu0 %v2358
        %8747 = vmatprep.subr.bf16.mxu0 %v2375
        %8748 = vmatpush1.bf16.msra.mxu0 %v2374
        %8749 = vmatprep.subr.bf16.mxu0 %v2391
        %8750 = vmatpush1.bf16.msra.mxu0 %v2390
        %8751 = vmatprep.subr.bf16.mxu0 %v2407
        %8752 = vmatpush1.bf16.msra.mxu0 %v2406
        %8753 = vmatprep.subr.bf16.mxu0 %v2423
        %8754 = vmatpush1.bf16.msra.mxu0 %v2422
        %8755 = vmatprep.subr.bf16.mxu0 %v2439
        %8756 = vmatpush1.bf16.msra.mxu0 %v2438
        %8757 = vmatprep.subr.bf16.mxu0 %v2455
        %8758 = vmatpush1.bf16.msra.mxu0 %v2454
        %8759 = vmatprep.subr.bf16.mxu0 %v2471
        %8760 = vmatpush1.bf16.msra.mxu0 %v2470
        %8761 = vmatprep.subr.bf16.mxu0 %v2487
        %8762 = vmatpush1.bf16.msra.mxu0 %v2486
        %8763 = vmatprep.subr.bf16.mxu0 %v2503
        %8764 = vmatpush1.bf16.msra.mxu0 %v2502
        %8765 = vmatprep.subr.bf16.mxu0 %v2519
        %8766 = vmatpush1.bf16.msra.mxu0 %v2518
        %8767 = vmatprep.subr.bf16.mxu0 %v2535
        %8768 = vmatpush1.bf16.msra.mxu0 %v2534
        %8769 = vmatprep.subr.bf16.mxu0 %v2551
        %8770 = vmatpush1.bf16.msra.mxu0 %v2550
        %8771 = vmatprep.subr.bf16.mxu0 %v2567
        %8772 = vmatpush1.bf16.msra.mxu0 %v2566
        %8773 = vmatprep.mubr.bf16.mxu0 %v8246
        %8774 = vmatmul.mubr.bf16.gmra.mrb[0].mxu0 %v8245
        %v8775 = vpop.f32.mrb[0].mxu0
        %v8776 = vadd.f32 0.0, %v8775
        %v8777 = vpop.f32.mrb[0].mxu0
        %v8778 = vadd.f32 0.0, %v8777
        %v8779 = vpop.f32.mrb[0].mxu0
        %v8780 = vpop.f32.mrb[0].mxu0
        %8781 = vdwg.mxu0
        %8782 = vmatprep.subr.bf16.mxu0 %v2583
        %8783 = vmatpush1.bf16.msra.mxu0 %v2582
        %8784 = vmatprep.subr.bf16.mxu0 %v2599
        %8785 = vmatpush1.bf16.msra.mxu0 %v2598
        %8786 = vmatprep.subr.bf16.mxu0 %v2615
        %8787 = vmatpush1.bf16.msra.mxu0 %v2614
        %8788 = vmatprep.subr.bf16.mxu0 %v2631
        %8789 = vmatpush1.bf16.msra.mxu0 %v2630
        %8790 = vmatprep.subr.bf16.mxu0 %v2647
        %8791 = vmatpush1.bf16.msra.mxu0 %v2646
        %8792 = vmatprep.subr.bf16.mxu0 %v2663
        %8793 = vmatpush1.bf16.msra.mxu0 %v2662
        %8794 = vmatprep.subr.bf16.mxu0 %v2679
        %8795 = vmatpush1.bf16.msra.mxu0 %v2678
        %8796 = vmatprep.subr.bf16.mxu0 %v2695
        %8797 = vmatpush1.bf16.msra.mxu0 %v2694
        %8798 = vmatprep.subr.bf16.mxu0 %v2711
        %8799 = vmatpush1.bf16.msra.mxu0 %v2710
        %8800 = vmatprep.subr.bf16.mxu0 %v2727
        %8801 = vmatpush1.bf16.msra.mxu0 %v2726
        %8802 = vmatprep.subr.bf16.mxu0 %v2743
        %8803 = vmatpush1.bf16.msra.mxu0 %v2742
        %8804 = vmatprep.subr.bf16.mxu0 %v2759
        %8805 = vmatpush1.bf16.msra.mxu0 %v2758
        %8806 = vmatprep.subr.bf16.mxu0 %v2775
        %8807 = vmatpush1.bf16.msra.mxu0 %v2774
        %8808 = vmatprep.subr.bf16.mxu0 %v2791
        %8809 = vmatpush1.bf16.msra.mxu0 %v2790
        %8810 = vmatprep.subr.bf16.mxu0 %v2807
        %8811 = vmatpush1.bf16.msra.mxu0 %v2806
        %8812 = vmatprep.subr.bf16.mxu0 %v2823
        %8813 = vmatpush1.bf16.msra.mxu0 %v2822
        %8814 = vmatprep.mubr.bf16.mxu0 %v8248
        %8815 = vmatmul.mubr.bf16.gmra.mrb[0].mxu0 %v8247
        %v8816 = vpop.f32.mrb[0].mxu0
        %v8817 = vadd.f32 %v8776, %v8816
        %v8818 = vpop.f32.mrb[0].mxu0
        %v8819 = vadd.f32 %v8778, %v8818
        %v8820 = vpop.f32.mrb[0].mxu0
        %v8821 = vpop.f32.mrb[0].mxu0
        %8822 = vdwg.mxu0
        %8823 = vmatprep.subr.bf16.mxu0 %v2329
        %8824 = vmatpush1.bf16.msra.mxu0 %v2328
        %8825 = vmatprep.subr.bf16.mxu0 %v2345
        %8826 = vmatpush1.bf16.msra.mxu0 %v2344
        %8827 = vmatprep.subr.bf16.mxu0 %v2361
        %8828 = vmatpush1.bf16.msra.mxu0 %v2360
        %8829 = vmatprep.subr.bf16.mxu0 %v2377
        %8830 = vmatpush1.bf16.msra.mxu0 %v2376
        %8831 = vmatprep.subr.bf16.mxu0 %v2393
        %8832 = vmatpush1.bf16.msra.mxu0 %v2392
        %8833 = vmatprep.subr.bf16.mxu0 %v2409
        %8834 = vmatpush1.bf16.msra.mxu0 %v2408
        %8835 = vmatprep.subr.bf16.mxu0 %v2425
        %8836 = vmatpush1.bf16.msra.mxu0 %v2424
        %8837 = vmatprep.subr.bf16.mxu0 %v2441
        %8838 = vmatpush1.bf16.msra.mxu0 %v2440
        %8839 = vmatprep.subr.bf16.mxu0 %v2457
        %8840 = vmatpush1.bf16.msra.mxu0 %v2456
        %8841 = vmatprep.subr.bf16.mxu0 %v2473
        %8842 = vmatpush1.bf16.msra.mxu0 %v2472
        %8843 = vmatprep.subr.bf16.mxu0 %v2489
        %8844 = vmatpush1.bf16.msra.mxu0 %v2488
        %8845 = vmatprep.subr.bf16.mxu0 %v2505
        %8846 = vmatpush1.bf16.msra.mxu0 %v2504
        %8847 = vmatprep.subr.bf16.mxu0 %v2521
        %8848 = vmatpush1.bf16.msra.mxu0 %v2520
        %8849 = vmatprep.subr.bf16.mxu0 %v2537
        %8850 = vmatpush1.bf16.msra.mxu0 %v2536
        %8851 = vmatprep.subr.bf16.mxu0 %v2553
        %8852 = vmatpush1.bf16.msra.mxu0 %v2552
        %8853 = vmatprep.subr.bf16.mxu0 %v2569
        %8854 = vmatpush1.bf16.msra.mxu0 %v2568
        %8855 = vmatprep.mubr.bf16.mxu0 %v8246
        %8856 = vmatmul.mubr.bf16.gmra.mrb[0].mxu0 %v8245
        %v8857 = vpop.f32.mrb[0].mxu0
        %v8858 = vadd.f32 0.0, %v8857
        %v8859 = vpop.f32.mrb[0].mxu0
        %v8860 = vadd.f32 0.0, %v8859
        %v8861 = vpop.f32.mrb[0].mxu0
        %v8862 = vpop.f32.mrb[0].mxu0
        %8863 = vdwg.mxu0
        %8864 = vmatprep.subr.bf16.mxu0 %v2585
        %8865 = vmatpush1.bf16.msra.mxu0 %v2584
        %8866 = vmatprep.subr.bf16.mxu0 %v2601
        %8867 = vmatpush1.bf16.msra.mxu0 %v2600
        %8868 = vmatprep.subr.bf16.mxu0 %v2617
        %8869 = vmatpush1.bf16.msra.mxu0 %v2616
        %8870 = vmatprep.subr.bf16.mxu0 %v2633
        %8871 = vmatpush1.bf16.msra.mxu0 %v2632
        %8872 = vmatprep.subr.bf16.mxu0 %v2649
        %8873 = vmatpush1.bf16.msra.mxu0 %v2648
        %8874 = vmatprep.subr.bf16.mxu0 %v2665
        %8875 = vmatpush1.bf16.msra.mxu0 %v2664
        %8876 = vmatprep.subr.bf16.mxu0 %v2681
        %8877 = vmatpush1.bf16.msra.mxu0 %v2680
        %8878 = vmatprep.subr.bf16.mxu0 %v2697
        %8879 = vmatpush1.bf16.msra.mxu0 %v2696
        %8880 = vmatprep.subr.bf16.mxu0 %v2713
        %8881 = vmatpush1.bf16.msra.mxu0 %v2712
        %8882 = vmatprep.subr.bf16.mxu0 %v2729
        %8883 = vmatpush1.bf16.msra.mxu0 %v2728
        %8884 = vmatprep.subr.bf16.mxu0 %v2745
        %8885 = vmatpush1.bf16.msra.mxu0 %v2744
        %8886 = vmatprep.subr.bf16.mxu0 %v2761
        %8887 = vmatpush1.bf16.msra.mxu0 %v2760
        %8888 = vmatprep.subr.bf16.mxu0 %v2777
        %8889 = vmatpush1.bf16.msra.mxu0 %v2776
        %8890 = vmatprep.subr.bf16.mxu0 %v2793
        %8891 = vmatpush1.bf16.msra.mxu0 %v2792
        %8892 = vmatprep.subr.bf16.mxu0 %v2809
        %8893 = vmatpush1.bf16.msra.mxu0 %v2808
        %8894 = vmatprep.subr.bf16.mxu0 %v2825
        %8895 = vmatpush1.bf16.msra.mxu0 %v2824
        %8896 = vmatprep.mubr.bf16.mxu0 %v8248
        %8897 = vmatmul.mubr.bf16.gmra.mrb[0].mxu0 %v8247
        %v8898 = vpop.f32.mrb[0].mxu0
        %v8899 = vadd.f32 %v8858, %v8898
        %v8900 = vpop.f32.mrb[0].mxu0
        %v8901 = vadd.f32 %v8860, %v8900
        %v8902 = vpop.f32.mrb[0].mxu0
        %v8903 = vpop.f32.mrb[0].mxu0
        %8904 = vdwg.mxu0
        %v8905 = vadd.f32 %v8229, %v8325
        %v8906 = vadd.f32 %v8230, %v8327
        %v8907 = vadd.f32 %v8231, %v8407
        %v8908 = vadd.f32 %v8232, %v8409
        %v8909 = vadd.f32 %v8233, %v8489
        %v8910 = vadd.f32 %v8234, %v8491
        %v8911 = vadd.f32 %v8235, %v8571
        %v8912 = vadd.f32 %v8236, %v8573
        %v8913 = vadd.f32 %v8237, %v8653
        %v8914 = vadd.f32 %v8238, %v8655
        %v8915 = vadd.f32 %v8239, %v8735
        %v8916 = vadd.f32 %v8240, %v8737
        %v8917 = vadd.f32 %v8241, %v8817
        %v8918 = vadd.f32 %v8242, %v8819
        %v8919 = vadd.f32 %v8243, %v8899
        %v8920 = vadd.f32 %v8244, %v8901
        %v8921 = vxor.u32 %v8905, 2147483648
        %v8922 = vxor.u32 %v8906, 2147483648
        %v8923 = vxor.u32 %v8907, 2147483648
        %v8924 = vxor.u32 %v8908, 2147483648
        %v8925 = vmul.f32 %v8921, 1.442695
        %v8926 = vpow.pop %v8925
        %v8927 = vmul.f32 %v8922, 1.442695
        %v8928 = vpow.pop %v8927
        %v8929 = vmul.f32 %v8923, 1.442695
        %v8930 = vpow.pop %v8929
        %v8931 = vmul.f32 %v8924, 1.442695
        %v8932 = vpow.pop %v8931
        %v8933 = vadd.f32 %v8926, 1.0
        %v8934 = vadd.f32 %v8928, 1.0
        %v8935 = vadd.f32 %v8930, 1.0
        %v8936 = vadd.f32 %v8932, 1.0
        %v8937 = vrcp.pop %v8933
        %v8938 = vmul.f32 1.0, %v8937
        %v8939 = vrcp.pop %v8934
        %v8940 = vmul.f32 1.0, %v8939
        %v8941 = vrcp.pop %v8935
        %v8942 = vmul.f32 1.0, %v8941
        %v8943 = vrcp.pop %v8936
        %v8944 = vmul.f32 1.0, %v8943
        %v8945 = vxor.u32 %v8909, 2147483648
        %v8946 = vxor.u32 %v8910, 2147483648
        %v8947 = vxor.u32 %v8911, 2147483648
        %v8948 = vxor.u32 %v8912, 2147483648
        %v8949 = vmul.f32 %v8945, 1.442695
        %v8950 = vpow.pop %v8949
        %v8951 = vmul.f32 %v8946, 1.442695
        %v8952 = vpow.pop %v8951
        %v8953 = vmul.f32 %v8947, 1.442695
        %v8954 = vpow.pop %v8953
        %v8955 = vmul.f32 %v8948, 1.442695
        %v8956 = vpow.pop %v8955
        %v8957 = vadd.f32 %v8950, 1.0
        %v8958 = vadd.f32 %v8952, 1.0
        %v8959 = vadd.f32 %v8954, 1.0
        %v8960 = vadd.f32 %v8956, 1.0
        %v8961 = vrcp.pop %v8957
        %v8962 = vmul.f32 1.0, %v8961
        %v8963 = vrcp.pop %v8958
        %v8964 = vmul.f32 1.0, %v8963
        %v8965 = vrcp.pop %v8959
        %v8966 = vmul.f32 1.0, %v8965
        %v8967 = vrcp.pop %v8960
        %v8968 = vmul.f32 1.0, %v8967
        %v8969 = vtanh.pop %v8913
        %v8970 = vtanh.pop %v8914
        %v8971 = vtanh.pop %v8915
        %v8972 = vtanh.pop %v8916
        %v8973 = vxor.u32 %v8917, 2147483648
        %v8974 = vxor.u32 %v8918, 2147483648
        %v8975 = vxor.u32 %v8919, 2147483648
        %v8976 = vxor.u32 %v8920, 2147483648
        %v8977 = vmul.f32 %v8973, 1.442695
        %v8978 = vpow.pop %v8977
        %v8979 = vmul.f32 %v8974, 1.442695
        %v8980 = vpow.pop %v8979
        %v8981 = vmul.f32 %v8975, 1.442695
        %v8982 = vpow.pop %v8981
        %v8983 = vmul.f32 %v8976, 1.442695
        %v8984 = vpow.pop %v8983
        %v8985 = vadd.f32 %v8978, 1.0
        %v8986 = vadd.f32 %v8980, 1.0
        %v8987 = vadd.f32 %v8982, 1.0
        %v8988 = vadd.f32 %v8984, 1.0
        %v8989 = vrcp.pop %v8985
        %v8990 = vmul.f32 1.0, %v8989
        %v8991 = vrcp.pop %v8986
        %v8992 = vmul.f32 1.0, %v8991
        %v8993 = vrcp.pop %v8987
        %v8994 = vmul.f32 1.0, %v8993
        %v8995 = vrcp.pop %v8988
        %v8996 = vmul.f32 1.0, %v8995
        %v8997 = vmul.f32 %v8962, %v8212
        %v8998 = vmul.f32 %v8964, %v8213
        %v8999 = vmul.f32 %v8966, %v8214
        %v9000 = vmul.f32 %v8968, %v8215
        %v9001 = vmul.f32 %v8938, %v8969
        %v9002 = vmul.f32 %v8940, %v8970
        %v9003 = vmul.f32 %v8942, %v8971
        %v9004 = vmul.f32 %v8944, %v8972
        %v9005 = vadd.f32 %v8997, %v9001
        %v9006 = vadd.f32 %v8998, %v9002
        %v9007 = vadd.f32 %v8999, %v9003
        %v9008 = vadd.f32 %v9000, %v9004
        %v9009 = vtanh.pop %v9005
        %v9010 = vtanh.pop %v9006
        %v9011 = vtanh.pop %v9007
        %v9012 = vtanh.pop %v9008
        %v9013 = vmul.f32 %v8990, %v9009
        %v9014 = vmul.f32 %v8992, %v9010
        %v9015 = vmul.f32 %v8994, %v9011
        %v9016 = vmul.f32 %v8996, %v9012
        %s9017 = scalar_lea.vmem %s248, 48
        %v9018 = vld [vmem:[%s9017] sm:$0xff]
        %v9019 = vsub.f32 %v9005, %v8212
        %v9020 = vsub.f32 %v9006, %v8213
        %v9021 = vsub.f32 %v9007, %v8214
        %v9022 = vsub.f32 %v9008, %v8215
        %9024 = vset.pattern.permute.xlu0 0
        %9025 = vperm.xlu0 %9024, %v9018
        %v9026 = vpop.permute.xlu0 %9025
        %v9028 = vmul.f32 %v9026, %v9019
        %v9029 = vmul.f32 %v9026, %v9020
        %v9030 = vmul.f32 %v9026, %v9021
        %v9031 = vmul.f32 %v9026, %v9022
        %v9032 = vadd.f32 %v8212, %v9028
        %v9033 = vadd.f32 %v8213, %v9029
        %v9034 = vadd.f32 %v8214, %v9030
        %v9035 = vadd.f32 %v8215, %v9031
        %v9036 = vsub.f32 %v9013, %v8224
        %v9037 = vsub.f32 %v9014, %v8225
        %v9038 = vsub.f32 %v9015, %v8226
        %v9039 = vsub.f32 %v9016, %v8227
        %v9040 = vmul.f32 %v9026, %v9036
        %v9041 = vmul.f32 %v9026, %v9037
        %v9042 = vmul.f32 %v9026, %v9038
        %v9043 = vmul.f32 %v9026, %v9039
        %v9044 = vadd.f32 %v8224, %v9040
        %v9045 = vadd.f32 %v8225, %v9041
        %v9046 = vadd.f32 %v8226, %v9042
        %v9047 = vadd.f32 %v8227, %v9043
        %s9048 = scalar_lea.vmem %s202, 896 [#allocation2]
        %v9049 = vld [vmem:[%s9048] sm:$0xff]
        %v9050 = vld [vmem:[%s9048 + $0x8] sm:$0xff]
        %v9051 = vld [vmem:[%s9048 + $0x10] sm:$0xff]
        %v9052 = vld [vmem:[%s9048 + $0x18] sm:$0xff]
        %v9053 = vld [vmem:[%s9048 + $0x20] sm:$0xff]
        %v9054 = vld [vmem:[%s9048 + $0x28] sm:$0xff]
        %v9055 = vld [vmem:[%s9048 + $0x30] sm:$0xff]
        %v9056 = vld [vmem:[%s9048 + $0x38] sm:$0xff]
        %v9057 = vld [vmem:[%s9048 + $0x40] sm:$0xff]
        %v9058 = vld [vmem:[%s9048 + $0x48] sm:$0xff]
        %v9059 = vld [vmem:[%s9048 + $0x50] sm:$0xff]
        %v9060 = vld [vmem:[%s9048 + $0x58] sm:$0xff]
        %v9061 = vld [vmem:[%s9048 + $0x60] sm:$0xff]
        %v9062 = vld [vmem:[%s9048 + $0x68] sm:$0xff]
        %v9063 = vld [vmem:[%s9048 + $0x70] sm:$0xff]
        %v9064 = vld [vmem:[%s9048 + $0x78] sm:$0xff]
        %v9065 = vpack.c.bf16 %v9044, %v9044
        %v9066 = vpack.c.bf16 %v9045, %v9045
        %v9067 = vpack.c.bf16 %v9046, %v9046
        %v9068 = vpack.c.bf16 %v9047, %v9047
        %9069 = vmatprep.subr.bf16.mxu0 %v2315
        %9070 = vmatpush1.bf16.msra.mxu0 %v2314
        %9071 = vmatprep.subr.bf16.mxu0 %v2331
        %9072 = vmatpush1.bf16.msra.mxu0 %v2330
        %9073 = vmatprep.subr.bf16.mxu0 %v2347
        %9074 = vmatpush1.bf16.msra.mxu0 %v2346
        %9075 = vmatprep.subr.bf16.mxu0 %v2363
        %9076 = vmatpush1.bf16.msra.mxu0 %v2362
        %9077 = vmatprep.subr.bf16.mxu0 %v2379
        %9078 = vmatpush1.bf16.msra.mxu0 %v2378
        %9079 = vmatprep.subr.bf16.mxu0 %v2395
        %9080 = vmatpush1.bf16.msra.mxu0 %v2394
        %9081 = vmatprep.subr.bf16.mxu0 %v2411
        %9082 = vmatpush1.bf16.msra.mxu0 %v2410
        %9083 = vmatprep.subr.bf16.mxu0 %v2427
        %9084 = vmatpush1.bf16.msra.mxu0 %v2426
        %9085 = vmatprep.subr.bf16.mxu0 %v2443
        %9086 = vmatpush1.bf16.msra.mxu0 %v2442
        %9087 = vmatprep.subr.bf16.mxu0 %v2459
        %9088 = vmatpush1.bf16.msra.mxu0 %v2458
        %9089 = vmatprep.subr.bf16.mxu0 %v2475
        %9090 = vmatpush1.bf16.msra.mxu0 %v2474
        %9091 = vmatprep.subr.bf16.mxu0 %v2491
        %9092 = vmatpush1.bf16.msra.mxu0 %v2490
        %9093 = vmatprep.subr.bf16.mxu0 %v2507
        %9094 = vmatpush1.bf16.msra.mxu0 %v2506
        %9095 = vmatprep.subr.bf16.mxu0 %v2523
        %9096 = vmatpush1.bf16.msra.mxu0 %v2522
        %9097 = vmatprep.subr.bf16.mxu0 %v2539
        %9098 = vmatpush1.bf16.msra.mxu0 %v2538
        %9099 = vmatprep.subr.bf16.mxu0 %v2555
        %9100 = vmatpush1.bf16.msra.mxu0 %v2554
        %9101 = vmatprep.mubr.bf16.mxu0 %v9066
        %9102 = vmatmul.mubr.bf16.gmra.mrb[0].mxu0 %v9065
        %v9103 = vpop.f32.mrb[0].mxu0
        %v9104 = vadd.f32 0.0, %v9103
        %v9105 = vpop.f32.mrb[0].mxu0
        %v9106 = vadd.f32 0.0, %v9105
        %v9107 = vpop.f32.mrb[0].mxu0
        %v9108 = vpop.f32.mrb[0].mxu0
        %9109 = vdwg.mxu0
        %9110 = vmatprep.subr.bf16.mxu0 %v2571
        %9111 = vmatpush1.bf16.msra.mxu0 %v2570
        %9112 = vmatprep.subr.bf16.mxu0 %v2587
        %9113 = vmatpush1.bf16.msra.mxu0 %v2586
        %9114 = vmatprep.subr.bf16.mxu0 %v2603
        %9115 = vmatpush1.bf16.msra.mxu0 %v2602
        %9116 = vmatprep.subr.bf16.mxu0 %v2619
        %9117 = vmatpush1.bf16.msra.mxu0 %v2618
        %9118 = vmatprep.subr.bf16.mxu0 %v2635
        %9119 = vmatpush1.bf16.msra.mxu0 %v2634
        %9120 = vmatprep.subr.bf16.mxu0 %v2651
        %9121 = vmatpush1.bf16.msra.mxu0 %v2650
        %9122 = vmatprep.subr.bf16.mxu0 %v2667
        %9123 = vmatpush1.bf16.msra.mxu0 %v2666
        %9124 = vmatprep.subr.bf16.mxu0 %v2683
        %9125 = vmatpush1.bf16.msra.mxu0 %v2682
        %9126 = vmatprep.subr.bf16.mxu0 %v2699
        %9127 = vmatpush1.bf16.msra.mxu0 %v2698
        %9128 = vmatprep.subr.bf16.mxu0 %v2715
        %9129 = vmatpush1.bf16.msra.mxu0 %v2714
        %9130 = vmatprep.subr.bf16.mxu0 %v2731
        %9131 = vmatpush1.bf16.msra.mxu0 %v2730
        %9132 = vmatprep.subr.bf16.mxu0 %v2747
        %9133 = vmatpush1.bf16.msra.mxu0 %v2746
        %9134 = vmatprep.subr.bf16.mxu0 %v2763
        %9135 = vmatpush1.bf16.msra.mxu0 %v2762
        %9136 = vmatprep.subr.bf16.mxu0 %v2779
        %9137 = vmatpush1.bf16.msra.mxu0 %v2778
        %9138 = vmatprep.subr.bf16.mxu0 %v2795
        %9139 = vmatpush1.bf16.msra.mxu0 %v2794
        %9140 = vmatprep.subr.bf16.mxu0 %v2811
        %9141 = vmatpush1.bf16.msra.mxu0 %v2810
        %9142 = vmatprep.mubr.bf16.mxu0 %v9068
        %9143 = vmatmul.mubr.bf16.gmra.mrb[0].mxu0 %v9067
        %v9144 = vpop.f32.mrb[0].mxu0
        %v9145 = vadd.f32 %v9104, %v9144
        %v9146 = vpop.f32.mrb[0].mxu0
        %v9147 = vadd.f32 %v9106, %v9146
        %v9148 = vpop.f32.mrb[0].mxu0
        %v9149 = vpop.f32.mrb[0].mxu0
        %9150 = vdwg.mxu0
        %9151 = vmatprep.subr.bf16.mxu0 %v2317
        %9152 = vmatpush1.bf16.msra.mxu0 %v2316
        %9153 = vmatprep.subr.bf16.mxu0 %v2333
        %9154 = vmatpush1.bf16.msra.mxu0 %v2332
        %9155 = vmatprep.subr.bf16.mxu0 %v2349
        %9156 = vmatpush1.bf16.msra.mxu0 %v2348
        %9157 = vmatprep.subr.bf16.mxu0 %v2365
        %9158 = vmatpush1.bf16.msra.mxu0 %v2364
        %9159 = vmatprep.subr.bf16.mxu0 %v2381
        %9160 = vmatpush1.bf16.msra.mxu0 %v2380
        %9161 = vmatprep.subr.bf16.mxu0 %v2397
        %9162 = vmatpush1.bf16.msra.mxu0 %v2396
        %9163 = vmatprep.subr.bf16.mxu0 %v2413
        %9164 = vmatpush1.bf16.msra.mxu0 %v2412
        %9165 = vmatprep.subr.bf16.mxu0 %v2429
        %9166 = vmatpush1.bf16.msra.mxu0 %v2428
        %9167 = vmatprep.subr.bf16.mxu0 %v2445
        %9168 = vmatpush1.bf16.msra.mxu0 %v2444
        %9169 = vmatprep.subr.bf16.mxu0 %v2461
        %9170 = vmatpush1.bf16.msra.mxu0 %v2460
        %9171 = vmatprep.subr.bf16.mxu0 %v2477
        %9172 = vmatpush1.bf16.msra.mxu0 %v2476
        %9173 = vmatprep.subr.bf16.mxu0 %v2493
        %9174 = vmatpush1.bf16.msra.mxu0 %v2492
        %9175 = vmatprep.subr.bf16.mxu0 %v2509
        %9176 = vmatpush1.bf16.msra.mxu0 %v2508
        %9177 = vmatprep.subr.bf16.mxu0 %v2525
        %9178 = vmatpush1.bf16.msra.mxu0 %v2524
        %9179 = vmatprep.subr.bf16.mxu0 %v2541
        %9180 = vmatpush1.bf16.msra.mxu0 %v2540
        %9181 = vmatprep.subr.bf16.mxu0 %v2557
        %9182 = vmatpush1.bf16.msra.mxu0 %v2556
        %9183 = vmatprep.mubr.bf16.mxu0 %v9066
        %9184 = vmatmul.mubr.bf16.gmra.mrb[0].mxu0 %v9065
        %v9185 = vpop.f32.mrb[0].mxu0
        %v9186 = vadd.f32 0.0, %v9185
        %v9187 = vpop.f32.mrb[0].mxu0
        %v9188 = vadd.f32 0.0, %v9187
        %v9189 = vpop.f32.mrb[0].mxu0
        %v9190 = vpop.f32.mrb[0].mxu0
        %9191 = vdwg.mxu0
        %9192 = vmatprep.subr.bf16.mxu0 %v2573
        %9193 = vmatpush1.bf16.msra.mxu0 %v2572
        %9194 = vmatprep.subr.bf16.mxu0 %v2589
        %9195 = vmatpush1.bf16.msra.mxu0 %v2588
        %9196 = vmatprep.subr.bf16.mxu0 %v2605
        %9197 = vmatpush1.bf16.msra.mxu0 %v2604
        %9198 = vmatprep.subr.bf16.mxu0 %v2621
        %9199 = vmatpush1.bf16.msra.mxu0 %v2620
        %9200 = vmatprep.subr.bf16.mxu0 %v2637
        %9201 = vmatpush1.bf16.msra.mxu0 %v2636
        %9202 = vmatprep.subr.bf16.mxu0 %v2653
        %9203 = vmatpush1.bf16.msra.mxu0 %v2652
        %9204 = vmatprep.subr.bf16.mxu0 %v2669
        %9205 = vmatpush1.bf16.msra.mxu0 %v2668
        %9206 = vmatprep.subr.bf16.mxu0 %v2685
        %9207 = vmatpush1.bf16.msra.mxu0 %v2684
        %9208 = vmatprep.subr.bf16.mxu0 %v2701
        %9209 = vmatpush1.bf16.msra.mxu0 %v2700
        %9210 = vmatprep.subr.bf16.mxu0 %v2717
        %9211 = vmatpush1.bf16.msra.mxu0 %v2716
        %9212 = vmatprep.subr.bf16.mxu0 %v2733
        %9213 = vmatpush1.bf16.msra.mxu0 %v2732
        %9214 = vmatprep.subr.bf16.mxu0 %v2749
        %9215 = vmatpush1.bf16.msra.mxu0 %v2748
        %9216 = vmatprep.subr.bf16.mxu0 %v2765
        %9217 = vmatpush1.bf16.msra.mxu0 %v2764
        %9218 = vmatprep.subr.bf16.mxu0 %v2781
        %9219 = vmatpush1.bf16.msra.mxu0 %v2780
        %9220 = vmatprep.subr.bf16.mxu0 %v2797
        %9221 = vmatpush1.bf16.msra.mxu0 %v2796
        %9222 = vmatprep.subr.bf16.mxu0 %v2813
        %9223 = vmatpush1.bf16.msra.mxu0 %v2812
        %9224 = vmatprep.mubr.bf16.mxu0 %v9068
        %9225 = vmatmul.mubr.bf16.gmra.mrb[0].mxu0 %v9067
        %v9226 = vpop.f32.mrb[0].mxu0
        %v9227 = vadd.f32 %v9186, %v9226
        %v9228 = vpop.f32.mrb[0].mxu0
        %v9229 = vadd.f32 %v9188, %v9228
        %v9230 = vpop.f32.mrb[0].mxu0
        %v9231 = vpop.f32.mrb[0].mxu0
        %9232 = vdwg.mxu0
        %9233 = vmatprep.subr.bf16.mxu0 %v2319
        %9234 = vmatpush1.bf16.msra.mxu0 %v2318
        %9235 = vmatprep.subr.bf16.mxu0 %v2335
        %9236 = vmatpush1.bf16.msra.mxu0 %v2334
        %9237 = vmatprep.subr.bf16.mxu0 %v2351
        %9238 = vmatpush1.bf16.msra.mxu0 %v2350
        %9239 = vmatprep.subr.bf16.mxu0 %v2367
        %9240 = vmatpush1.bf16.msra.mxu0 %v2366
        %9241 = vmatprep.subr.bf16.mxu0 %v2383
        %9242 = vmatpush1.bf16.msra.mxu0 %v2382
        %9243 = vmatprep.subr.bf16.mxu0 %v2399
        %9244 = vmatpush1.bf16.msra.mxu0 %v2398
        %9245 = vmatprep.subr.bf16.mxu0 %v2415
        %9246 = vmatpush1.bf16.msra.mxu0 %v2414
        %9247 = vmatprep.subr.bf16.mxu0 %v2431
        %9248 = vmatpush1.bf16.msra.mxu0 %v2430
        %9249 = vmatprep.subr.bf16.mxu0 %v2447
        %9250 = vmatpush1.bf16.msra.mxu0 %v2446
        %9251 = vmatprep.subr.bf16.mxu0 %v2463
        %9252 = vmatpush1.bf16.msra.mxu0 %v2462
        %9253 = vmatprep.subr.bf16.mxu0 %v2479
        %9254 = vmatpush1.bf16.msra.mxu0 %v2478
        %9255 = vmatprep.subr.bf16.mxu0 %v2495
        %9256 = vmatpush1.bf16.msra.mxu0 %v2494
        %9257 = vmatprep.subr.bf16.mxu0 %v2511
        %9258 = vmatpush1.bf16.msra.mxu0 %v2510
        %9259 = vmatprep.subr.bf16.mxu0 %v2527
        %9260 = vmatpush1.bf16.msra.mxu0 %v2526
        %9261 = vmatprep.subr.bf16.mxu0 %v2543
        %9262 = vmatpush1.bf16.msra.mxu0 %v2542
        %9263 = vmatprep.subr.bf16.mxu0 %v2559
        %9264 = vmatpush1.bf16.msra.mxu0 %v2558
        %9265 = vmatprep.mubr.bf16.mxu0 %v9066
        %9266 = vmatmul.mubr.bf16.gmra.mrb[0].mxu0 %v9065
        %v9267 = vpop.f32.mrb[0].mxu0
        %v9268 = vadd.f32 0.0, %v9267
        %v9269 = vpop.f32.mrb[0].mxu0
        %v9270 = vadd.f32 0.0, %v9269
        %v9271 = vpop.f32.mrb[0].mxu0
        %v9272 = vpop.f32.mrb[0].mxu0
        %9273 = vdwg.mxu0
        %9274 = vmatprep.subr.bf16.mxu0 %v2575
        %9275 = vmatpush1.bf16.msra.mxu0 %v2574
        %9276 = vmatprep.subr.bf16.mxu0 %v2591
        %9277 = vmatpush1.bf16.msra.mxu0 %v2590
        %9278 = vmatprep.subr.bf16.mxu0 %v2607
        %9279 = vmatpush1.bf16.msra.mxu0 %v2606
        %9280 = vmatprep.subr.bf16.mxu0 %v2623
        %9281 = vmatpush1.bf16.msra.mxu0 %v2622
        %9282 = vmatprep.subr.bf16.mxu0 %v2639
        %9283 = vmatpush1.bf16.msra.mxu0 %v2638
        %9284 = vmatprep.subr.bf16.mxu0 %v2655
        %9285 = vmatpush1.bf16.msra.mxu0 %v2654
        %9286 = vmatprep.subr.bf16.mxu0 %v2671
        %9287 = vmatpush1.bf16.msra.mxu0 %v2670
        %9288 = vmatprep.subr.bf16.mxu0 %v2687
        %9289 = vmatpush1.bf16.msra.mxu0 %v2686
        %9290 = vmatprep.subr.bf16.mxu0 %v2703
        %9291 = vmatpush1.bf16.msra.mxu0 %v2702
        %9292 = vmatprep.subr.bf16.mxu0 %v2719
        %9293 = vmatpush1.bf16.msra.mxu0 %v2718
        %9294 = vmatprep.subr.bf16.mxu0 %v2735
        %9295 = vmatpush1.bf16.msra.mxu0 %v2734
        %9296 = vmatprep.subr.bf16.mxu0 %v2751
        %9297 = vmatpush1.bf16.msra.mxu0 %v2750
        %9298 = vmatprep.subr.bf16.mxu0 %v2767
        %9299 = vmatpush1.bf16.msra.mxu0 %v2766
        %9300 = vmatprep.subr.bf16.mxu0 %v2783
        %9301 = vmatpush1.bf16.msra.mxu0 %v2782
        %9302 = vmatprep.subr.bf16.mxu0 %v2799
        %9303 = vmatpush1.bf16.msra.mxu0 %v2798
        %9304 = vmatprep.subr.bf16.mxu0 %v2815
        %9305 = vmatpush1.bf16.msra.mxu0 %v2814
        %9306 = vmatprep.mubr.bf16.mxu0 %v9068
        %9307 = vmatmul.mubr.bf16.gmra.mrb[0].mxu0 %v9067
        %v9308 = vpop.f32.mrb[0].mxu0
        %v9309 = vadd.f32 %v9268, %v9308
        %v9310 = vpop.f32.mrb[0].mxu0
        %v9311 = vadd.f32 %v9270, %v9310
        %v9312 = vpop.f32.mrb[0].mxu0
        %v9313 = vpop.f32.mrb[0].mxu0
        %9314 = vdwg.mxu0
        %9315 = vmatprep.subr.bf16.mxu0 %v2321
        %9316 = vmatpush1.bf16.msra.mxu0 %v2320
        %9317 = vmatprep.subr.bf16.mxu0 %v2337
        %9318 = vmatpush1.bf16.msra.mxu0 %v2336
        %9319 = vmatprep.subr.bf16.mxu0 %v2353
        %9320 = vmatpush1.bf16.msra.mxu0 %v2352
        %9321 = vmatprep.subr.bf16.mxu0 %v2369
        %9322 = vmatpush1.bf16.msra.mxu0 %v2368
        %9323 = vmatprep.subr.bf16.mxu0 %v2385
        %9324 = vmatpush1.bf16.msra.mxu0 %v2384
        %9325 = vmatprep.subr.bf16.mxu0 %v2401
        %9326 = vmatpush1.bf16.msra.mxu0 %v2400
        %9327 = vmatprep.subr.bf16.mxu0 %v2417
        %9328 = vmatpush1.bf16.msra.mxu0 %v2416
        %9329 = vmatprep.subr.bf16.mxu0 %v2433
        %9330 = vmatpush1.bf16.msra.mxu0 %v2432
        %9331 = vmatprep.subr.bf16.mxu0 %v2449
        %9332 = vmatpush1.bf16.msra.mxu0 %v2448
        %9333 = vmatprep.subr.bf16.mxu0 %v2465
        %9334 = vmatpush1.bf16.msra.mxu0 %v2464
        %9335 = vmatprep.subr.bf16.mxu0 %v2481
        %9336 = vmatpush1.bf16.msra.mxu0 %v2480
        %9337 = vmatprep.subr.bf16.mxu0 %v2497
        %9338 = vmatpush1.bf16.msra.mxu0 %v2496
        %9339 = vmatprep.subr.bf16.mxu0 %v2513
        %9340 = vmatpush1.bf16.msra.mxu0 %v2512
        %9341 = vmatprep.subr.bf16.mxu0 %v2529
        %9342 = vmatpush1.bf16.msra.mxu0 %v2528
        %9343 = vmatprep.subr.bf16.mxu0 %v2545
        %9344 = vmatpush1.bf16.msra.mxu0 %v2544
        %9345 = vmatprep.subr.bf16.mxu0 %v2561
        %9346 = vmatpush1.bf16.msra.mxu0 %v2560
        %9347 = vmatprep.mubr.bf16.mxu0 %v9066
        %9348 = vmatmul.mubr.bf16.gmra.mrb[0].mxu0 %v9065
        %v9349 = vpop.f32.mrb[0].mxu0
        %v9350 = vadd.f32 0.0, %v9349
        %v9351 = vpop.f32.mrb[0].mxu0
        %v9352 = vadd.f32 0.0, %v9351
        %v9353 = vpop.f32.mrb[0].mxu0
        %v9354 = vpop.f32.mrb[0].mxu0
        %9355 = vdwg.mxu0
        %9356 = vmatprep.subr.bf16.mxu0 %v2577
        %9357 = vmatpush1.bf16.msra.mxu0 %v2576
        %9358 = vmatprep.subr.bf16.mxu0 %v2593
        %9359 = vmatpush1.bf16.msra.mxu0 %v2592
        %9360 = vmatprep.subr.bf16.mxu0 %v2609
        %9361 = vmatpush1.bf16.msra.mxu0 %v2608
        %9362 = vmatprep.subr.bf16.mxu0 %v2625
        %9363 = vmatpush1.bf16.msra.mxu0 %v2624
        %9364 = vmatprep.subr.bf16.mxu0 %v2641
        %9365 = vmatpush1.bf16.msra.mxu0 %v2640
        %9366 = vmatprep.subr.bf16.mxu0 %v2657
        %9367 = vmatpush1.bf16.msra.mxu0 %v2656
        %9368 = vmatprep.subr.bf16.mxu0 %v2673
        %9369 = vmatpush1.bf16.msra.mxu0 %v2672
        %9370 = vmatprep.subr.bf16.mxu0 %v2689
        %9371 = vmatpush1.bf16.msra.mxu0 %v2688
        %9372 = vmatprep.subr.bf16.mxu0 %v2705
        %9373 = vmatpush1.bf16.msra.mxu0 %v2704
        %9374 = vmatprep.subr.bf16.mxu0 %v2721
        %9375 = vmatpush1.bf16.msra.mxu0 %v2720
        %9376 = vmatprep.subr.bf16.mxu0 %v2737
        %9377 = vmatpush1.bf16.msra.mxu0 %v2736
        %9378 = vmatprep.subr.bf16.mxu0 %v2753
        %9379 = vmatpush1.bf16.msra.mxu0 %v2752
        %9380 = vmatprep.subr.bf16.mxu0 %v2769
        %9381 = vmatpush1.bf16.msra.mxu0 %v2768
        %9382 = vmatprep.subr.bf16.mxu0 %v2785
        %9383 = vmatpush1.bf16.msra.mxu0 %v2784
        %9384 = vmatprep.subr.bf16.mxu0 %v2801
        %9385 = vmatpush1.bf16.msra.mxu0 %v2800
        %9386 = vmatprep.subr.bf16.mxu0 %v2817
        %9387 = vmatpush1.bf16.msra.mxu0 %v2816
        %9388 = vmatprep.mubr.bf16.mxu0 %v9068
        %9389 = vmatmul.mubr.bf16.gmra.mrb[0].mxu0 %v9067
        %v9390 = vpop.f32.mrb[0].mxu0
        %v9391 = vadd.f32 %v9350, %v9390
        %v9392 = vpop.f32.mrb[0].mxu0
        %v9393 = vadd.f32 %v9352, %v9392
        %v9394 = vpop.f32.mrb[0].mxu0
        %v9395 = vpop.f32.mrb[0].mxu0
        %9396 = vdwg.mxu0
        %9397 = vmatprep.subr.bf16.mxu0 %v2323
        %9398 = vmatpush1.bf16.msra.mxu0 %v2322
        %9399 = vmatprep.subr.bf16.mxu0 %v2339
        %9400 = vmatpush1.bf16.msra.mxu0 %v2338
        %9401 = vmatprep.subr.bf16.mxu0 %v2355
        %9402 = vmatpush1.bf16.msra.mxu0 %v2354
        %9403 = vmatprep.subr.bf16.mxu0 %v2371
        %9404 = vmatpush1.bf16.msra.mxu0 %v2370
        %9405 = vmatprep.subr.bf16.mxu0 %v2387
        %9406 = vmatpush1.bf16.msra.mxu0 %v2386
        %9407 = vmatprep.subr.bf16.mxu0 %v2403
        %9408 = vmatpush1.bf16.msra.mxu0 %v2402
        %9409 = vmatprep.subr.bf16.mxu0 %v2419
        %9410 = vmatpush1.bf16.msra.mxu0 %v2418
        %9411 = vmatprep.subr.bf16.mxu0 %v2435
        %9412 = vmatpush1.bf16.msra.mxu0 %v2434
        %9413 = vmatprep.subr.bf16.mxu0 %v2451
        %9414 = vmatpush1.bf16.msra.mxu0 %v2450
        %9415 = vmatprep.subr.bf16.mxu0 %v2467
        %9416 = vmatpush1.bf16.msra.mxu0 %v2466
        %9417 = vmatprep.subr.bf16.mxu0 %v2483
        %9418 = vmatpush1.bf16.msra.mxu0 %v2482
        %9419 = vmatprep.subr.bf16.mxu0 %v2499
        %9420 = vmatpush1.bf16.msra.mxu0 %v2498
        %9421 = vmatprep.subr.bf16.mxu0 %v2515
        %9422 = vmatpush1.bf16.msra.mxu0 %v2514
        %9423 = vmatprep.subr.bf16.mxu0 %v2531
        %9424 = vmatpush1.bf16.msra.mxu0 %v2530
        %9425 = vmatprep.subr.bf16.mxu0 %v2547
        %9426 = vmatpush1.bf16.msra.mxu0 %v2546
        %9427 = vmatprep.subr.bf16.mxu0 %v2563
        %9428 = vmatpush1.bf16.msra.mxu0 %v2562
        %9429 = vmatprep.mubr.bf16.mxu0 %v9066
        %9430 = vmatmul.mubr.bf16.gmra.mrb[0].mxu0 %v9065
        %v9431 = vpop.f32.mrb[0].mxu0
        %v9432 = vadd.f32 0.0, %v9431
        %v9433 = vpop.f32.mrb[0].mxu0
        %v9434 = vadd.f32 0.0, %v9433
        %v9435 = vpop.f32.mrb[0].mxu0
        %v9436 = vpop.f32.mrb[0].mxu0
        %9437 = vdwg.mxu0
        %9438 = vmatprep.subr.bf16.mxu0 %v2579
        %9439 = vmatpush1.bf16.msra.mxu0 %v2578
        %9440 = vmatprep.subr.bf16.mxu0 %v2595
        %9441 = vmatpush1.bf16.msra.mxu0 %v2594
        %9442 = vmatprep.subr.bf16.mxu0 %v2611
        %9443 = vmatpush1.bf16.msra.mxu0 %v2610
        %9444 = vmatprep.subr.bf16.mxu0 %v2627
        %9445 = vmatpush1.bf16.msra.mxu0 %v2626
        %9446 = vmatprep.subr.bf16.mxu0 %v2643
        %9447 = vmatpush1.bf16.msra.mxu0 %v2642
        %9448 = vmatprep.subr.bf16.mxu0 %v2659
        %9449 = vmatpush1.bf16.msra.mxu0 %v2658
        %9450 = vmatprep.subr.bf16.mxu0 %v2675
        %9451 = vmatpush1.bf16.msra.mxu0 %v2674
        %9452 = vmatprep.subr.bf16.mxu0 %v2691
        %9453 = vmatpush1.bf16.msra.mxu0 %v2690
        %9454 = vmatprep.subr.bf16.mxu0 %v2707
        %9455 = vmatpush1.bf16.msra.mxu0 %v2706
        %9456 = vmatprep.subr.bf16.mxu0 %v2723
        %9457 = vmatpush1.bf16.msra.mxu0 %v2722
        %9458 = vmatprep.subr.bf16.mxu0 %v2739
        %9459 = vmatpush1.bf16.msra.mxu0 %v2738
        %9460 = vmatprep.subr.bf16.mxu0 %v2755
        %9461 = vmatpush1.bf16.msra.mxu0 %v2754
        %9462 = vmatprep.subr.bf16.mxu0 %v2771
        %9463 = vmatpush1.bf16.msra.mxu0 %v2770
        %9464 = vmatprep.subr.bf16.mxu0 %v2787
        %9465 = vmatpush1.bf16.msra.mxu0 %v2786
        %9466 = vmatprep.subr.bf16.mxu0 %v2803
        %9467 = vmatpush1.bf16.msra.mxu0 %v2802
        %9468 = vmatprep.subr.bf16.mxu0 %v2819
        %9469 = vmatpush1.bf16.msra.mxu0 %v2818
        %9470 = vmatprep.mubr.bf16.mxu0 %v9068
        %9471 = vmatmul.mubr.bf16.gmra.mrb[0].mxu0 %v9067
        %v9472 = vpop.f32.mrb[0].mxu0
        %v9473 = vadd.f32 %v9432, %v9472
        %v9474 = vpop.f32.mrb[0].mxu0
        %v9475 = vadd.f32 %v9434, %v9474
        %v9476 = vpop.f32.mrb[0].mxu0
        %v9477 = vpop.f32.mrb[0].mxu0
        %9478 = vdwg.mxu0
        %9479 = vmatprep.subr.bf16.mxu0 %v2325
        %9480 = vmatpush1.bf16.msra.mxu0 %v2324
        %9481 = vmatprep.subr.bf16.mxu0 %v2341
        %9482 = vmatpush1.bf16.msra.mxu0 %v2340
        %9483 = vmatprep.subr.bf16.mxu0 %v2357
        %9484 = vmatpush1.bf16.msra.mxu0 %v2356
        %9485 = vmatprep.subr.bf16.mxu0 %v2373
        %9486 = vmatpush1.bf16.msra.mxu0 %v2372
        %9487 = vmatprep.subr.bf16.mxu0 %v2389
        %9488 = vmatpush1.bf16.msra.mxu0 %v2388
        %9489 = vmatprep.subr.bf16.mxu0 %v2405
        %9490 = vmatpush1.bf16.msra.mxu0 %v2404
        %9491 = vmatprep.subr.bf16.mxu0 %v2421
        %9492 = vmatpush1.bf16.msra.mxu0 %v2420
        %9493 = vmatprep.subr.bf16.mxu0 %v2437
        %9494 = vmatpush1.bf16.msra.mxu0 %v2436
        %9495 = vmatprep.subr.bf16.mxu0 %v2453
        %9496 = vmatpush1.bf16.msra.mxu0 %v2452
        %9497 = vmatprep.subr.bf16.mxu0 %v2469
        %9498 = vmatpush1.bf16.msra.mxu0 %v2468
        %9499 = vmatprep.subr.bf16.mxu0 %v2485
        %9500 = vmatpush1.bf16.msra.mxu0 %v2484
        %9501 = vmatprep.subr.bf16.mxu0 %v2501
        %9502 = vmatpush1.bf16.msra.mxu0 %v2500
        %9503 = vmatprep.subr.bf16.mxu0 %v2517
        %9504 = vmatpush1.bf16.msra.mxu0 %v2516
        %9505 = vmatprep.subr.bf16.mxu0 %v2533
        %9506 = vmatpush1.bf16.msra.mxu0 %v2532
        %9507 = vmatprep.subr.bf16.mxu0 %v2549
        %9508 = vmatpush1.bf16.msra.mxu0 %v2548
        %9509 = vmatprep.subr.bf16.mxu0 %v2565
        %9510 = vmatpush1.bf16.msra.mxu0 %v2564
        %9511 = vmatprep.mubr.bf16.mxu0 %v9066
        %9512 = vmatmul.mubr.bf16.gmra.mrb[0].mxu0 %v9065
        %v9513 = vpop.f32.mrb[0].mxu0
        %v9514 = vadd.f32 0.0, %v9513
        %v9515 = vpop.f32.mrb[0].mxu0
        %v9516 = vadd.f32 0.0, %v9515
        %v9517 = vpop.f32.mrb[0].mxu0
        %v9518 = vpop.f32.mrb[0].mxu0
        %9519 = vdwg.mxu0
        %9520 = vmatprep.subr.bf16.mxu0 %v2581
        %9521 = vmatpush1.bf16.msra.mxu0 %v2580
        %9522 = vmatprep.subr.bf16.mxu0 %v2597
        %9523 = vmatpush1.bf16.msra.mxu0 %v2596
        %9524 = vmatprep.subr.bf16.mxu0 %v2613
        %9525 = vmatpush1.bf16.msra.mxu0 %v2612
        %9526 = vmatprep.subr.bf16.mxu0 %v2629
        %9527 = vmatpush1.bf16.msra.mxu0 %v2628
        %9528 = vmatprep.subr.bf16.mxu0 %v2645
        %9529 = vmatpush1.bf16.msra.mxu0 %v2644
        %9530 = vmatprep.subr.bf16.mxu0 %v2661
        %9531 = vmatpush1.bf16.msra.mxu0 %v2660
        %9532 = vmatprep.subr.bf16.mxu0 %v2677
        %9533 = vmatpush1.bf16.msra.mxu0 %v2676
        %9534 = vmatprep.subr.bf16.mxu0 %v2693
        %9535 = vmatpush1.bf16.msra.mxu0 %v2692
        %9536 = vmatprep.subr.bf16.mxu0 %v2709
        %9537 = vmatpush1.bf16.msra.mxu0 %v2708
        %9538 = vmatprep.subr.bf16.mxu0 %v2725
        %9539 = vmatpush1.bf16.msra.mxu0 %v2724
        %9540 = vmatprep.subr.bf16.mxu0 %v2741
        %9541 = vmatpush1.bf16.msra.mxu0 %v2740
        %9542 = vmatprep.subr.bf16.mxu0 %v2757
        %9543 = vmatpush1.bf16.msra.mxu0 %v2756
        %9544 = vmatprep.subr.bf16.mxu0 %v2773
        %9545 = vmatpush1.bf16.msra.mxu0 %v2772
        %9546 = vmatprep.subr.bf16.mxu0 %v2789
        %9547 = vmatpush1.bf16.msra.mxu0 %v2788
        %9548 = vmatprep.subr.bf16.mxu0 %v2805
        %9549 = vmatpush1.bf16.msra.mxu0 %v2804
        %9550 = vmatprep.subr.bf16.mxu0 %v2821
        %9551 = vmatpush1.bf16.msra.mxu0 %v2820
        %9552 = vmatprep.mubr.bf16.mxu0 %v9068
        %9553 = vmatmul.mubr.bf16.gmra.mrb[0].mxu0 %v9067
        %v9554 = vpop.f32.mrb[0].mxu0
        %v9555 = vadd.f32 %v9514, %v9554
        %v9556 = vpop.f32.mrb[0].mxu0
        %v9557 = vadd.f32 %v9516, %v9556
        %v9558 = vpop.f32.mrb[0].mxu0
        %v9559 = vpop.f32.mrb[0].mxu0
        %9560 = vdwg.mxu0
        %9561 = vmatprep.subr.bf16.mxu0 %v2327
        %9562 = vmatpush1.bf16.msra.mxu0 %v2326
        %9563 = vmatprep.subr.bf16.mxu0 %v2343
        %9564 = vmatpush1.bf16.msra.mxu0 %v2342
        %9565 = vmatprep.subr.bf16.mxu0 %v2359
        %9566 = vmatpush1.bf16.msra.mxu0 %v2358
        %9567 = vmatprep.subr.bf16.mxu0 %v2375
        %9568 = vmatpush1.bf16.msra.mxu0 %v2374
        %9569 = vmatprep.subr.bf16.mxu0 %v2391
        %9570 = vmatpush1.bf16.msra.mxu0 %v2390
        %9571 = vmatprep.subr.bf16.mxu0 %v2407
        %9572 = vmatpush1.bf16.msra.mxu0 %v2406
        %9573 = vmatprep.subr.bf16.mxu0 %v2423
        %9574 = vmatpush1.bf16.msra.mxu0 %v2422
        %9575 = vmatprep.subr.bf16.mxu0 %v2439
        %9576 = vmatpush1.bf16.msra.mxu0 %v2438
        %9577 = vmatprep.subr.bf16.mxu0 %v2455
        %9578 = vmatpush1.bf16.msra.mxu0 %v2454
        %9579 = vmatprep.subr.bf16.mxu0 %v2471
        %9580 = vmatpush1.bf16.msra.mxu0 %v2470
        %9581 = vmatprep.subr.bf16.mxu0 %v2487
        %9582 = vmatpush1.bf16.msra.mxu0 %v2486
        %9583 = vmatprep.subr.bf16.mxu0 %v2503
        %9584 = vmatpush1.bf16.msra.mxu0 %v2502
        %9585 = vmatprep.subr.bf16.mxu0 %v2519
        %9586 = vmatpush1.bf16.msra.mxu0 %v2518
        %9587 = vmatprep.subr.bf16.mxu0 %v2535
        %9588 = vmatpush1.bf16.msra.mxu0 %v2534
        %9589 = vmatprep.subr.bf16.mxu0 %v2551
        %9590 = vmatpush1.bf16.msra.mxu0 %v2550
        %9591 = vmatprep.subr.bf16.mxu0 %v2567
        %9592 = vmatpush1.bf16.msra.mxu0 %v2566
        %9593 = vmatprep.mubr.bf16.mxu0 %v9066
        %9594 = vmatmul.mubr.bf16.gmra.mrb[0].mxu0 %v9065
        %v9595 = vpop.f32.mrb[0].mxu0
        %v9596 = vadd.f32 0.0, %v9595
        %v9597 = vpop.f32.mrb[0].mxu0
        %v9598 = vadd.f32 0.0, %v9597
        %v9599 = vpop.f32.mrb[0].mxu0
        %v9600 = vpop.f32.mrb[0].mxu0
        %9601 = vdwg.mxu0
        %9602 = vmatprep.subr.bf16.mxu0 %v2583
        %9603 = vmatpush1.bf16.msra.mxu0 %v2582
        %9604 = vmatprep.subr.bf16.mxu0 %v2599
        %9605 = vmatpush1.bf16.msra.mxu0 %v2598
        %9606 = vmatprep.subr.bf16.mxu0 %v2615
        %9607 = vmatpush1.bf16.msra.mxu0 %v2614
        %9608 = vmatprep.subr.bf16.mxu0 %v2631
        %9609 = vmatpush1.bf16.msra.mxu0 %v2630
        %9610 = vmatprep.subr.bf16.mxu0 %v2647
        %9611 = vmatpush1.bf16.msra.mxu0 %v2646
        %9612 = vmatprep.subr.bf16.mxu0 %v2663
        %9613 = vmatpush1.bf16.msra.mxu0 %v2662
        %9614 = vmatprep.subr.bf16.mxu0 %v2679
        %9615 = vmatpush1.bf16.msra.mxu0 %v2678
        %9616 = vmatprep.subr.bf16.mxu0 %v2695
        %9617 = vmatpush1.bf16.msra.mxu0 %v2694
        %9618 = vmatprep.subr.bf16.mxu0 %v2711
        %9619 = vmatpush1.bf16.msra.mxu0 %v2710
        %9620 = vmatprep.subr.bf16.mxu0 %v2727
        %9621 = vmatpush1.bf16.msra.mxu0 %v2726
        %9622 = vmatprep.subr.bf16.mxu0 %v2743
        %9623 = vmatpush1.bf16.msra.mxu0 %v2742
        %9624 = vmatprep.subr.bf16.mxu0 %v2759
        %9625 = vmatpush1.bf16.msra.mxu0 %v2758
        %9626 = vmatprep.subr.bf16.mxu0 %v2775
        %9627 = vmatpush1.bf16.msra.mxu0 %v2774
        %9628 = vmatprep.subr.bf16.mxu0 %v2791
        %9629 = vmatpush1.bf16.msra.mxu0 %v2790
        %9630 = vmatprep.subr.bf16.mxu0 %v2807
        %9631 = vmatpush1.bf16.msra.mxu0 %v2806
        %9632 = vmatprep.subr.bf16.mxu0 %v2823
        %9633 = vmatpush1.bf16.msra.mxu0 %v2822
        %9634 = vmatprep.mubr.bf16.mxu0 %v9068
        %9635 = vmatmul.mubr.bf16.gmra.mrb[0].mxu0 %v9067
        %v9636 = vpop.f32.mrb[0].mxu0
        %v9637 = vadd.f32 %v9596, %v9636
        %v9638 = vpop.f32.mrb[0].mxu0
        %v9639 = vadd.f32 %v9598, %v9638
        %v9640 = vpop.f32.mrb[0].mxu0
        %v9641 = vpop.f32.mrb[0].mxu0
        %9642 = vdwg.mxu0
        %9643 = vmatprep.subr.bf16.mxu0 %v2329
        %9644 = vmatpush1.bf16.msra.mxu0 %v2328
        %9645 = vmatprep.subr.bf16.mxu0 %v2345
        %9646 = vmatpush1.bf16.msra.mxu0 %v2344
        %9647 = vmatprep.subr.bf16.mxu0 %v2361
        %9648 = vmatpush1.bf16.msra.mxu0 %v2360
        %9649 = vmatprep.subr.bf16.mxu0 %v2377
        %9650 = vmatpush1.bf16.msra.mxu0 %v2376
        %9651 = vmatprep.subr.bf16.mxu0 %v2393
        %9652 = vmatpush1.bf16.msra.mxu0 %v2392
        %9653 = vmatprep.subr.bf16.mxu0 %v2409
        %9654 = vmatpush1.bf16.msra.mxu0 %v2408
        %9655 = vmatprep.subr.bf16.mxu0 %v2425
        %9656 = vmatpush1.bf16.msra.mxu0 %v2424
        %9657 = vmatprep.subr.bf16.mxu0 %v2441
        %9658 = vmatpush1.bf16.msra.mxu0 %v2440
        %9659 = vmatprep.subr.bf16.mxu0 %v2457
        %9660 = vmatpush1.bf16.msra.mxu0 %v2456
        %9661 = vmatprep.subr.bf16.mxu0 %v2473
        %9662 = vmatpush1.bf16.msra.mxu0 %v2472
        %9663 = vmatprep.subr.bf16.mxu0 %v2489
        %9664 = vmatpush1.bf16.msra.mxu0 %v2488
        %9665 = vmatprep.subr.bf16.mxu0 %v2505
        %9666 = vmatpush1.bf16.msra.mxu0 %v2504
        %9667 = vmatprep.subr.bf16.mxu0 %v2521
        %9668 = vmatpush1.bf16.msra.mxu0 %v2520
        %9669 = vmatprep.subr.bf16.mxu0 %v2537
        %9670 = vmatpush1.bf16.msra.mxu0 %v2536
        %9671 = vmatprep.subr.bf16.mxu0 %v2553
        %9672 = vmatpush1.bf16.msra.mxu0 %v2552
        %9673 = vmatprep.subr.bf16.mxu0 %v2569
        %9674 = vmatpush1.bf16.msra.mxu0 %v2568
        %9675 = vmatprep.mubr.bf16.mxu0 %v9066
        %9676 = vmatmul.mubr.bf16.gmra.mrb[0].mxu0 %v9065
        %v9677 = vpop.f32.mrb[0].mxu0
        %v9678 = vadd.f32 0.0, %v9677
        %v9679 = vpop.f32.mrb[0].mxu0
        %v9680 = vadd.f32 0.0, %v9679
        %v9681 = vpop.f32.mrb[0].mxu0
        %v9682 = vpop.f32.mrb[0].mxu0
        %9683 = vdwg.mxu0
        %9684 = vmatprep.subr.bf16.mxu0 %v2585
        %9685 = vmatpush1.bf16.msra.mxu0 %v2584
        %9686 = vmatprep.subr.bf16.mxu0 %v2601
        %9687 = vmatpush1.bf16.msra.mxu0 %v2600
        %9688 = vmatprep.subr.bf16.mxu0 %v2617
        %9689 = vmatpush1.bf16.msra.mxu0 %v2616
        %9690 = vmatprep.subr.bf16.mxu0 %v2633
        %9691 = vmatpush1.bf16.msra.mxu0 %v2632
        %9692 = vmatprep.subr.bf16.mxu0 %v2649
        %9693 = vmatpush1.bf16.msra.mxu0 %v2648
        %9694 = vmatprep.subr.bf16.mxu0 %v2665
        %9695 = vmatpush1.bf16.msra.mxu0 %v2664
        %9696 = vmatprep.subr.bf16.mxu0 %v2681
        %9697 = vmatpush1.bf16.msra.mxu0 %v2680
        %9698 = vmatprep.subr.bf16.mxu0 %v2697
        %9699 = vmatpush1.bf16.msra.mxu0 %v2696
        %9700 = vmatprep.subr.bf16.mxu0 %v2713
        %9701 = vmatpush1.bf16.msra.mxu0 %v2712
        %9702 = vmatprep.subr.bf16.mxu0 %v2729
        %9703 = vmatpush1.bf16.msra.mxu0 %v2728
        %9704 = vmatprep.subr.bf16.mxu0 %v2745
        %9705 = vmatpush1.bf16.msra.mxu0 %v2744
        %9706 = vmatprep.subr.bf16.mxu0 %v2761
        %9707 = vmatpush1.bf16.msra.mxu0 %v2760
        %9708 = vmatprep.subr.bf16.mxu0 %v2777
        %9709 = vmatpush1.bf16.msra.mxu0 %v2776
        %9710 = vmatprep.subr.bf16.mxu0 %v2793
        %9711 = vmatpush1.bf16.msra.mxu0 %v2792
        %9712 = vmatprep.subr.bf16.mxu0 %v2809
        %9713 = vmatpush1.bf16.msra.mxu0 %v2808
        %9714 = vmatprep.subr.bf16.mxu0 %v2825
        %9715 = vmatpush1.bf16.msra.mxu0 %v2824
        %9716 = vmatprep.mubr.bf16.mxu0 %v9068
        %9717 = vmatmul.mubr.bf16.gmra.mrb[0].mxu0 %v9067
        %v9718 = vpop.f32.mrb[0].mxu0
        %v9719 = vadd.f32 %v9678, %v9718
        %v9720 = vpop.f32.mrb[0].mxu0
        %v9721 = vadd.f32 %v9680, %v9720
        %v9722 = vpop.f32.mrb[0].mxu0
        %v9723 = vpop.f32.mrb[0].mxu0
        %9724 = vdwg.mxu0
        %v9725 = vadd.f32 %v9049, %v9145
        %v9726 = vadd.f32 %v9050, %v9147
        %v9727 = vadd.f32 %v9051, %v9227
        %v9728 = vadd.f32 %v9052, %v9229
        %v9729 = vadd.f32 %v9053, %v9309
        %v9730 = vadd.f32 %v9054, %v9311
        %v9731 = vadd.f32 %v9055, %v9391
        %v9732 = vadd.f32 %v9056, %v9393
        %v9733 = vadd.f32 %v9057, %v9473
        %v9734 = vadd.f32 %v9058, %v9475
        %v9735 = vadd.f32 %v9059, %v9555
        %v9736 = vadd.f32 %v9060, %v9557
        %v9737 = vadd.f32 %v9061, %v9637
        %v9738 = vadd.f32 %v9062, %v9639
        %v9739 = vadd.f32 %v9063, %v9719
        %v9740 = vadd.f32 %v9064, %v9721
        %v9741 = vxor.u32 %v9725, 2147483648
        %v9742 = vxor.u32 %v9726, 2147483648
        %v9743 = vxor.u32 %v9727, 2147483648
        %v9744 = vxor.u32 %v9728, 2147483648
        %v9745 = vmul.f32 %v9741, 1.442695
        %v9746 = vpow.pop %v9745
        %v9747 = vmul.f32 %v9742, 1.442695
        %v9748 = vpow.pop %v9747
        %v9749 = vmul.f32 %v9743, 1.442695
        %v9750 = vpow.pop %v9749
        %v9751 = vmul.f32 %v9744, 1.442695
        %v9752 = vpow.pop %v9751
        %v9753 = vadd.f32 %v9746, 1.0
        %v9754 = vadd.f32 %v9748, 1.0
        %v9755 = vadd.f32 %v9750, 1.0
        %v9756 = vadd.f32 %v9752, 1.0
        %v9757 = vrcp.pop %v9753
        %v9758 = vmul.f32 1.0, %v9757
        %v9759 = vrcp.pop %v9754
        %v9760 = vmul.f32 1.0, %v9759
        %v9761 = vrcp.pop %v9755
        %v9762 = vmul.f32 1.0, %v9761
        %v9763 = vrcp.pop %v9756
        %v9764 = vmul.f32 1.0, %v9763
        %v9765 = vxor.u32 %v9729, 2147483648
        %v9766 = vxor.u32 %v9730, 2147483648
        %v9767 = vxor.u32 %v9731, 2147483648
        %v9768 = vxor.u32 %v9732, 2147483648
        %v9769 = vmul.f32 %v9765, 1.442695
        %v9770 = vpow.pop %v9769
        %v9771 = vmul.f32 %v9766, 1.442695
        %v9772 = vpow.pop %v9771
        %v9773 = vmul.f32 %v9767, 1.442695
        %v9774 = vpow.pop %v9773
        %v9775 = vmul.f32 %v9768, 1.442695
        %v9776 = vpow.pop %v9775
        %v9777 = vadd.f32 %v9770, 1.0
        %v9778 = vadd.f32 %v9772, 1.0
        %v9779 = vadd.f32 %v9774, 1.0
        %v9780 = vadd.f32 %v9776, 1.0
        %v9781 = vrcp.pop %v9777
        %v9782 = vmul.f32 1.0, %v9781
        %v9783 = vrcp.pop %v9778
        %v9784 = vmul.f32 1.0, %v9783
        %v9785 = vrcp.pop %v9779
        %v9786 = vmul.f32 1.0, %v9785
        %v9787 = vrcp.pop %v9780
        %v9788 = vmul.f32 1.0, %v9787
        %v9789 = vtanh.pop %v9733
        %v9790 = vtanh.pop %v9734
        %v9791 = vtanh.pop %v9735
        %v9792 = vtanh.pop %v9736
        %v9793 = vxor.u32 %v9737, 2147483648
        %v9794 = vxor.u32 %v9738, 2147483648
        %v9795 = vxor.u32 %v9739, 2147483648
        %v9796 = vxor.u32 %v9740, 2147483648
        %v9797 = vmul.f32 %v9793, 1.442695
        %v9798 = vpow.pop %v9797
        %v9799 = vmul.f32 %v9794, 1.442695
        %v9800 = vpow.pop %v9799
        %v9801 = vmul.f32 %v9795, 1.442695
        %v9802 = vpow.pop %v9801
        %v9803 = vmul.f32 %v9796, 1.442695
        %v9804 = vpow.pop %v9803
        %v9805 = vadd.f32 %v9798, 1.0
        %v9806 = vadd.f32 %v9800, 1.0
        %v9807 = vadd.f32 %v9802, 1.0
        %v9808 = vadd.f32 %v9804, 1.0
        %v9809 = vrcp.pop %v9805
        %v9810 = vmul.f32 1.0, %v9809
        %v9811 = vrcp.pop %v9806
        %v9812 = vmul.f32 1.0, %v9811
        %v9813 = vrcp.pop %v9807
        %v9814 = vmul.f32 1.0, %v9813
        %v9815 = vrcp.pop %v9808
        %v9816 = vmul.f32 1.0, %v9815
        %v9817 = vmul.f32 %v9782, %v9032
        %v9818 = vmul.f32 %v9784, %v9033
        %v9819 = vmul.f32 %v9786, %v9034
        %v9820 = vmul.f32 %v9788, %v9035
        %v9821 = vmul.f32 %v9758, %v9789
        %v9822 = vmul.f32 %v9760, %v9790
        %v9823 = vmul.f32 %v9762, %v9791
        %v9824 = vmul.f32 %v9764, %v9792
        %v9825 = vadd.f32 %v9817, %v9821
        %v9826 = vadd.f32 %v9818, %v9822
        %v9827 = vadd.f32 %v9819, %v9823
        %v9828 = vadd.f32 %v9820, %v9824
        %v9829 = vtanh.pop %v9825
        %v9830 = vtanh.pop %v9826
        %v9831 = vtanh.pop %v9827
        %v9832 = vtanh.pop %v9828
        %v9833 = vmul.f32 %v9810, %v9829
        %v9834 = vmul.f32 %v9812, %v9830
        %v9835 = vmul.f32 %v9814, %v9831
        %v9836 = vmul.f32 %v9816, %v9832
        %s9837 = scalar_lea.vmem %s248, 56
        %v9838 = vld [vmem:[%s9837] sm:$0xff]
        %v9839 = vsub.f32 %v9833, %v9044
        %v9840 = vsub.f32 %v9834, %v9045
        %v9841 = vsub.f32 %v9835, %v9046
        %v9842 = vsub.f32 %v9836, %v9047
        %9844 = vset.pattern.permute.xlu0 0
        %9845 = vperm.xlu0 %9844, %v9838
        %v9846 = vpop.permute.xlu0 %9845
        %v9848 = vmul.f32 %v9846, %v9839
        %v9849 = vmul.f32 %v9846, %v9840
        %v9850 = vmul.f32 %v9846, %v9841
        %v9851 = vmul.f32 %v9846, %v9842
        %v9852 = vadd.f32 %v9044, %v9848
        %v9853 = vadd.f32 %v9045, %v9849
        %v9854 = vadd.f32 %v9046, %v9850
        %v9855 = vadd.f32 %v9047, %v9851
        %9856 = vst [vmem:[%s243] sm:$0xff] %v9852
        %9857 = vst [vmem:[%s243 + $0x8] sm:$0xff] %v9853
        %9858 = vst [vmem:[%s243 + $0x10] sm:$0xff] %v9854
        %9859 = vst [vmem:[%s243 + $0x18] sm:$0xff] %v9855
        %s9860 = sand.u32 %s109, 1
        %s9861 = scalar_lea.sflag [#allocation4], %s9860
        %s9862 = sand.u32 %s109, 1
        %s9863 = smul.addr %s9862, 32
        %s9864 = scalar_lea.vmem [#allocation7], %s9863
        // Predicated region
        $region41: #{tpu_custom_call.1} parent=31 // pred_check
          %p9865 = pneg %p119
        $region42: #{tpu_custom_call.1} parent=31 // pred_check_branch
          %9867 = sbr.rel (%p9865) target = $region44
        $region43: #{tpu_custom_call.1} parent=31 // pred_region
          %s9869 = ssub.s32 512, 512
          %9870 = vsyncadd %s9861, %s9869
          %s9871 = smul.addr %s23, 4
          %s9872 = smul.addr %s9871, 128
          %s9873 = scalar_lea.hbm %s3, %s9872
          %s9875 = sshll.u32 %s9864, 4
          %s9876 = int_to_ptr.vmem [resolvable:$true] %s9875
          %9878 = dma.vmem_to_hbm [thread:$0]  %s9876, 512, %s9873, %s9861
        $region44: #{tpu_custom_call.1} parent=31 // pred_fallthru
          _
      $region32: #{tpu_custom_call.1} parent=5 // pred_fallthru
        _
      %p9879 = scmp.le.s32.totalorder 2, %s18
      // Predicated region
      $region45: #{tpu_custom_call.1} parent=5 // pred_check
        %p9880 = pneg %p9879
      $region46: #{tpu_custom_call.1} parent=5 // pred_check_branch
        %9882 = sbr.rel (%p9880) target = $region48
      $region47: #{tpu_custom_call.1} parent=5 // pred_region
        %s9883 = ssub.s32 %s18, 2
        // Predicated region
        $region49: #{tpu_custom_call.1} parent=47 // pred_check
          %p9884 = pneg %p125
        $region50: #{tpu_custom_call.1} parent=47 // pred_check_branch
          %9886 = sbr.rel (%p9884) target = $region52
        $region51: #{tpu_custom_call.1} parent=47 // pred_region
          %s9887 = sand.u32 %s110, 1
          %s9888 = scalar_lea.sflag [#allocation4], %s9887
          %s9889 = sand.u32 %s110, 1
          %s9890 = smul.addr %s9889, 32
          %s9891 = scalar_lea.vmem [#allocation7], %s9890
          %9892 = dma.done %s9888, 512
        $region52: #{tpu_custom_call.1} parent=47 // pred_fallthru
          _
      $region48: #{tpu_custom_call.1} parent=5 // pred_fallthru
        _
    $region6: #{tpu_custom_call.1} parent=1 // loop_footer
      %s22 = sadd.s32 1, %s18
    $region7: #{tpu_custom_call.1} parent=1 // loop_footer_branch
      %17 = sbr.rel target = $region3
    $region8: #{tpu_custom_call.1} parent=1 // loop_exit
      _
    %9893 = vsyncpa [#allocation3], 1
    %s9894 = scalar_lea.sflag [#allocation3], 1
    %9895 = vsyncpa %s9894, 1
    %9896 = vsyncpa [#allocation6], 1
    %s9897 = scalar_lea.sflag [#allocation6], 1
    %9898 = vsyncpa %s9897, 1
    %9899 = vsyncpa [#allocation4], 1
    %s9900 = scalar_lea.sflag [#allocation4], 1
    %9901 = vsyncpa %s9900, 1

</llo_original>
